<compile_context>
chip_gen: v7x
topology: tpu7x:2x2x1
jax: 0.10.0
libtpu: 0.0.40
codegen_flags: <defaults>
</compile_context>

<pallas_src>
import functools

import jax
import jax.numpy as jnp
from jax import lax
from jax.experimental import pallas as pl
from jax.experimental.pallas import tpu as pltpu

_BIG = 1e30  # sentinel "infinite" key for masked-out (hole / already-used) candidates


def _idw_fill_kernel(key_ref, xq_ref, xc_ref, out_ref, *, K, P, N, C):
    # key_ref: (N, TQ) f32   packed key = d2(candidate, query) * N + candidate_idx
    #                        (exact, unique integers < 2^24)
    # xq_ref : (1, C, TQ)    query-side pixel values (queries on lanes)
    # xc_ref : (1, C, N, 1)  candidate-side pixel values (candidates on sublanes)
    # out_ref: (1, C, TQ)
    tq = out_ref.shape[-1]
    rows = []
    for c in range(C):  # unrolled; C is 3 or 4
        vals_q = xq_ref[0, pl.ds(c, 1), :]          # (1, TQ)
        vals_c = xc_ref[0, c, :, :]                 # (N, 1)
        filled_q = vals_q != 0.0                    # (1, TQ)
        filled_c = vals_c != 0.0                    # (N, 1)

        num = jnp.zeros((1, tq), jnp.float32)
        den = jnp.zeros((1, tq), jnp.float32)
        prev = jnp.full((1, tq), -1.0, jnp.float32)

        for _ in range(K):  # k nearest filled pixels
            # Exclude holes and previously selected candidates on the fly (keys
            # are unique and selected in strictly increasing order, so a simple
            # "> previous minimum" test suffices).  The masked value feeds the
            # min-reduction directly; no (N, TQ) temporary is kept live.
            masked = jnp.where(filled_c & (key_ref[...] > prev), key_ref[...], _BIG)
            m_key = jnp.min(masked, axis=0, keepdims=True)            # (1, TQ)
            # Keys are unique, so matching against the raw key is an exact
            # one-hot (requires >= K filled candidates, see precondition).
            onehot = key_ref[...] == m_key                            # (N, TQ)
            v_sel = jnp.sum(jnp.where(onehot, vals_c, 0.0),
                            axis=0, keepdims=True)                    # (1, TQ)
            # Exact squared-distance recovery from the packed key: round the
            # quotient, then fix the off-by-one with the remainder sign.  All
            # intermediates are exact integers <= 2^24 in f32.
            qd = jnp.floor(m_key / N + 0.5)
            rem = m_key - qd * N
            d2 = jnp.where(rem < 0.0, qd - 1.0, qd)                   # (1, TQ)
            w = lax.rsqrt(d2)                                         # (1/dist)
            if P != 1:
                w = w ** P                                            # (1/dist)^p
            num = num + v_sel * w
            den = den + w
            prev = m_key

        rows.append(jnp.where(filled_q, vals_q, num / den))           # (1, TQ)

    out_ref[0, :, :] = jnp.concatenate(rows, axis=0)                  # (C, TQ) dense store


def my_tree_scatter(coded, *, k=3, p=1, num_channels=4, tq=None):
    """Pallas equivalent of MyTreeScatter.forward.  coded: (B, C, H, W), C == num_channels."""
    B, C, H, W = coded.shape
    if num_channels not in (3, 4):
        raise NotImplementedError("this has not been implemented")
    assert C == num_channels
    N = H * W

    # f32 packed keys (and the products/differences used for d2 recovery) must
    # stay exact integers.
    d2_max = (H - 1) ** 2 + (W - 1) ** 2
    assert d2_max * N + (N - 1) < (1 << 24), "packed f32 key exceeds exact-integer range"
    # TODO(synk): for larger images switch to int32 keys and a streaming top-k over
    # candidate strips (keeps HBM/VMEM traffic linear-ish in N per query tile).

    def round8(n):
        return (n + 7) // 8 * 8

    def vmem_estimate(t):
        key_b = 2 * N * t * 4                      # double-buffered key tile
        col_b = 2 * C * round8(N) * 128 * 4        # (N, 1) blocks pad lanes to 128 in VMEM
        row_b = 2 * 2 * 8 * max(t, 128) * 4        # xq + out blocks, (C, t) pads to (8, t)
        tmp_b = 3 * N * t * 4                      # live (N, t) temporaries headroom
        return key_b + col_b + row_b + tmp_b

    VMEM_BUDGET = 40 * 1024 * 1024                 # safe under v7x's 64 MiB physical VMEM
    if tq is None:
        cands = [d for d in range(N, 0, -1) if N % d == 0 and (d % 128 == 0 or d == N)]
        tq = next((d for d in cands if vmem_estimate(d) <= VMEM_BUDGET), cands[-1])
    assert N % tq == 0 and (tq == N or tq % 128 == 0)
    Q = N // tq
    vmem_limit = int(min(64 * 1024 * 1024, max(32 * 1024 * 1024, 2 * vmem_estimate(tq))))

    x = coded.astype(jnp.float32)
    xq = x.reshape(B, C, N)          # query-side: pixels on lanes
    xc = x.reshape(B, C, N, 1)       # candidate-side: pixels on sublanes

    # Constant pairwise geometry, computed once outside the kernel.
    idx = jnp.arange(N, dtype=jnp.int32)
    rr = (idx // W).astype(jnp.float32)
    cc = (idx % W).astype(jnp.float32)
    d2 = (rr[:, None] - rr[None, :]) ** 2 + (cc[:, None] - cc[None, :]) ** 2   # (cand, query)
    key_base = d2 * jnp.float32(N) + jnp.arange(N, dtype=jnp.float32)[:, None]

    # Grid ordering: keep a leading axis >= 2 when possible (v7x has 2 TCs) and
    # keep the key tile's block index constant across consecutive steps so its
    # DMA is elided (key fetched once per q instead of once per (b, c, q)).
    if Q == 1:
        grid = (B, Q)
        key_map = lambda b, q: (0, q)
        row_map = lambda b, q: (b, 0, q)
        col_map = lambda b, q: (b, 0, 0, 0)
    else:
        grid = (Q, B)
        key_map = lambda q, b: (0, q)
        row_map = lambda q, b: (b, 0, q)
        col_map = lambda q, b: (b, 0, 0, 0)

    kern = functools.partial(_idw_fill_kernel, K=k, P=p, N=N, C=C)
    out = pl.pallas_call(
        kern,
        out_shape=jax.ShapeDtypeStruct((B, C, N), jnp.float32),
        grid=grid,
        in_specs=[
            pl.BlockSpec((N, tq), key_map),          # packed keys (VMEM-resident across steps)
            pl.BlockSpec((1, C, tq), row_map),       # query tile, all channels
            pl.BlockSpec((1, C, N, 1), col_map),     # candidate columns, all channels
        ],
        out_specs=pl.BlockSpec((1, C, tq), row_map),
        compiler_params=pltpu.CompilerParams(
            dimension_semantics=("parallel", "parallel"),
            vmem_limit_bytes=vmem_limit),
    )(key_base, xq, xc)
    return out.reshape(B, C, H, W)


def _reference(coded, k=3, p=1):
    """Independent pure-JAX reference (argsort + gather) with identical semantics."""
    B, C, H, W = coded.shape
    N = H * W
    idx = jnp.arange(N, dtype=jnp.int32)
    rr = (idx // W).astype(jnp.float32)
    cc = (idx % W).astype(jnp.float32)
    d2 = (rr[:, None] - rr[None, :]) ** 2 + (cc[:, None] - cc[None, :]) ** 2   # (cand, query)
    key_base = d2 * jnp.float32(N) + jnp.arange(N, dtype=jnp.float32)[:, None]

    def one(img):
        v = img.reshape(-1)
        filled = v != 0.0
        key = jnp.where(filled[:, None], key_base, _BIG)
        nbr = jnp.argsort(key, axis=0)[:k, :]                 # (k, N) nearest filled pixels
        d2_sel = d2[nbr, jnp.arange(N)[None, :]]              # (k, N)
        v_sel = v[nbr]                                        # (k, N)
        w = (1.0 / jnp.sqrt(d2_sel)) ** p
        fill_vals = (v_sel * w).sum(0) / w.sum(0)
        return jnp.where(filled, v, fill_vals).reshape(H, W)

    return jax.vmap(jax.vmap(one))(coded.astype(jnp.float32))


if __name__ == "__main__":
    B, C, H, W = 2, 4, 16, 16
    key = jax.random.PRNGKey(0)
    k_val, k_mask = jax.random.split(key)
    values = jax.random.uniform(k_val, (B, C, H, W), jnp.float32, minval=0.5, maxval=1.5)
    mask = jax.random.bernoulli(k_mask, 0.5, (B, C, H, W)).astype(jnp.float32)
    coded = values * mask  # ~half the pixels are zero "holes"

    out = my_tree_scatter(coded, k=3, p=1, num_channels=C)
    out = jax.block_until_ready(out)

    ref = _reference(coded, k=3, p=1)
    assert out.shape == (B, C, H, W)
    assert jnp.allclose(out, ref, rtol=1e-5, atol=1e-5), "mismatch vs reference"
    print("KERNEL_OK")
</pallas_src>

<mosaic_0001>
module attributes {stable_mosaic.version = 11 : i64} {
  func.func @_idw_fill_kernel(%arg0: i32, %arg1: i32, %arg2: memref<256x256xf32, #tpu.memory_space<vmem>>, %arg3: memref<1x4x256xf32, #tpu.memory_space<vmem>>, %arg4: memref<1x4x256x1xf32, #tpu.memory_space<vmem>>, %arg5: memref<1x4x256xf32, #tpu.memory_space<vmem>>) attributes {dimension_semantics = [#tpu.dimension_semantics<parallel>, #tpu.dimension_semantics<parallel>], iteration_bounds = array<i64: 2, 1>, scalar_prefetch = 0 : i64, scratch_operands = 0 : i64, tpu.core_type = #tpu.core_type<tc>, window_params = [{transform_indices = @transform_0, window_bounds = array<i64: 256, 256>}, {transform_indices = @transform_1, window_bounds = array<i64: 1, 4, 256>}, {transform_indices = @transform_2, window_bounds = array<i64: 1, 4, 256, 1>}, {transform_indices = @transform_3, window_bounds = array<i64: 1, 4, 256>}]} {
    %c0 = arith.constant 0 : index
    %c0_0 = arith.constant 0 : index
    %c0_1 = arith.constant 0 : index
    %0 = vector.load %arg3[%c0, %c0_0, %c0_1] : memref<1x4x256xf32, #tpu.memory_space<vmem>>, vector<1x1x256xf32>
    %1 = vector.shape_cast %0 : vector<1x1x256xf32> to vector<1x256xf32>
    %c0_2 = arith.constant 0 : index
    %c0_3 = arith.constant 0 : index
    %c0_4 = arith.constant 0 : index
    %c0_5 = arith.constant 0 : index
    %2 = vector.load %arg4[%c0_2, %c0_3, %c0_4, %c0_5] : memref<1x4x256x1xf32, #tpu.memory_space<vmem>>, vector<1x1x256x1xf32>
    %3 = vector.shape_cast %2 : vector<1x1x256x1xf32> to vector<256x1xf32>
    %cst = arith.constant 0.000000e+00 : f32
    %4 = vector.broadcast %cst : f32 to vector<1x256xf32>
    %5 = arith.cmpf one, %1, %4 : vector<1x256xf32>
    %cst_6 = arith.constant 0.000000e+00 : f32
    %6 = vector.broadcast %cst_6 : f32 to vector<256x1xf32>
    %7 = arith.cmpf one, %3, %6 : vector<256x1xf32>
    %cst_7 = arith.constant 0.000000e+00 : f32
    %8 = vector.broadcast %cst_7 : f32 to vector<1x256xf32>
    %cst_8 = arith.constant 0.000000e+00 : f32
    %9 = vector.broadcast %cst_8 : f32 to vector<1x256xf32>
    %cst_9 = arith.constant -1.000000e+00 : f32
    %10 = vector.broadcast %cst_9 : f32 to vector<1x256xf32>
    %c0_10 = arith.constant 0 : index
    %c0_11 = arith.constant 0 : index
    %11 = vector.load %arg2[%c0_10, %c0_11] : memref<256x256xf32, #tpu.memory_space<vmem>>, vector<256x256xf32>
    %12 = vector.broadcast %10 : vector<1x256xf32> to vector<256x256xf32>
    %13 = arith.cmpf ogt, %11, %12 : vector<256x256xf32>
    %14 = vector.broadcast %7 : vector<256x1xi1> to vector<256x256xi1>
    %15 = arith.andi %14, %13 : vector<256x256xi1>
    %c0_12 = arith.constant 0 : index
    %c0_13 = arith.constant 0 : index
    %16 = vector.load %arg2[%c0_12, %c0_13] : memref<256x256xf32, #tpu.memory_space<vmem>>, vector<256x256xf32>
    %cst_14 = arith.constant 1.000000e+30 : f32
    %17 = vector.broadcast %cst_14 : f32 to vector<256x256xf32>
    %18 = arith.select %15, %16, %17 : vector<256x256xi1>, vector<256x256xf32>
    %cst_15 = arith.constant dense<0x7F800000> : vector<256xf32>
    %19 = vector.multi_reduction <minimumf>, %18, %cst_15 [0] : vector<256x256xf32> to vector<256xf32>
    %20 = vector.shape_cast %19 : vector<256xf32> to vector<1x256xf32>
    %c0_16 = arith.constant 0 : index
    %c0_17 = arith.constant 0 : index
    %21 = vector.load %arg2[%c0_16, %c0_17] : memref<256x256xf32, #tpu.memory_space<vmem>>, vector<256x256xf32>
    %22 = vector.broadcast %20 : vector<1x256xf32> to vector<256x256xf32>
    %23 = arith.cmpf oeq, %21, %22 : vector<256x256xf32>
    %cst_18 = arith.constant 0.000000e+00 : f32
    %24 = vector.shape_cast %3 : vector<256x1xf32> to vector<256x1xf32>
    %25 = vector.broadcast %24 : vector<256x1xf32> to vector<256x256xf32>
    %26 = vector.broadcast %cst_18 : f32 to vector<256x256xf32>
    %27 = arith.select %23, %25, %26 : vector<256x256xi1>, vector<256x256xf32>
    %cst_19 = arith.constant dense<0.000000e+00> : vector<256xf32>
    %28 = vector.multi_reduction <add>, %27, %cst_19 [0] : vector<256x256xf32> to vector<256xf32>
    %29 = vector.shape_cast %28 : vector<256xf32> to vector<1x256xf32>
    %cst_20 = arith.constant 2.560000e+02 : f32
    %30 = vector.broadcast %cst_20 : f32 to vector<1x256xf32>
    %31 = arith.divf %20, %30 : vector<1x256xf32>
    %cst_21 = arith.constant 5.000000e-01 : f32
    %32 = vector.broadcast %cst_21 : f32 to vector<1x256xf32>
    %33 = arith.addf %31, %32 : vector<1x256xf32>
    %34 = math.floor %33 : vector<1x256xf32>
    %cst_22 = arith.constant 2.560000e+02 : f32
    %35 = vector.broadcast %cst_22 : f32 to vector<1x256xf32>
    %36 = arith.mulf %34, %35 : vector<1x256xf32>
    %37 = arith.subf %20, %36 : vector<1x256xf32>
    %cst_23 = arith.constant 0.000000e+00 : f32
    %38 = vector.broadcast %cst_23 : f32 to vector<1x256xf32>
    %39 = arith.cmpf olt, %37, %38 : vector<1x256xf32>
    %cst_24 = arith.constant 1.000000e+00 : f32
    %40 = vector.broadcast %cst_24 : f32 to vector<1x256xf32>
    %41 = arith.subf %34, %40 : vector<1x256xf32>
    %42 = arith.select %39, %41, %34 : vector<1x256xi1>, vector<1x256xf32>
    %43 = math.rsqrt %42 : vector<1x256xf32>
    %44 = arith.mulf %29, %43 : vector<1x256xf32>
    %45 = arith.addf %8, %44 : vector<1x256xf32>
    %46 = arith.addf %9, %43 : vector<1x256xf32>
    %c0_25 = arith.constant 0 : index
    %c0_26 = arith.constant 0 : index
    %47 = vector.load %arg2[%c0_25, %c0_26] : memref<256x256xf32, #tpu.memory_space<vmem>>, vector<256x256xf32>
    %48 = vector.broadcast %20 : vector<1x256xf32> to vector<256x256xf32>
    %49 = arith.cmpf ogt, %47, %48 : vector<256x256xf32>
    %50 = vector.broadcast %7 : vector<256x1xi1> to vector<256x256xi1>
    %51 = arith.andi %50, %49 : vector<256x256xi1>
    %c0_27 = arith.constant 0 : index
    %c0_28 = arith.constant 0 : index
    %52 = vector.load %arg2[%c0_27, %c0_28] : memref<256x256xf32, #tpu.memory_space<vmem>>, vector<256x256xf32>
    %cst_29 = arith.constant 1.000000e+30 : f32
    %53 = vector.broadcast %cst_29 : f32 to vector<256x256xf32>
    %54 = arith.select %51, %52, %53 : vector<256x256xi1>, vector<256x256xf32>
    %cst_30 = arith.constant dense<0x7F800000> : vector<256xf32>
    %55 = vector.multi_reduction <minimumf>, %54, %cst_30 [0] : vector<256x256xf32> to vector<256xf32>
    %56 = vector.shape_cast %55 : vector<256xf32> to vector<1x256xf32>
    %c0_31 = arith.constant 0 : index
    %c0_32 = arith.constant 0 : index
    %57 = vector.load %arg2[%c0_31, %c0_32] : memref<256x256xf32, #tpu.memory_space<vmem>>, vector<256x256xf32>
    %58 = vector.broadcast %56 : vector<1x256xf32> to vector<256x256xf32>
    %59 = arith.cmpf oeq, %57, %58 : vector<256x256xf32>
    %cst_33 = arith.constant 0.000000e+00 : f32
    %60 = vector.shape_cast %3 : vector<256x1xf32> to vector<256x1xf32>
    %61 = vector.broadcast %60 : vector<256x1xf32> to vector<256x256xf32>
    %62 = vector.broadcast %cst_33 : f32 to vector<256x256xf32>
    %63 = arith.select %59, %61, %62 : vector<256x256xi1>, vector<256x256xf32>
    %cst_34 = arith.constant dense<0.000000e+00> : vector<256xf32>
    %64 = vector.multi_reduction <add>, %63, %cst_34 [0] : vector<256x256xf32> to vector<256xf32>
    %65 = vector.shape_cast %64 : vector<256xf32> to vector<1x256xf32>
    %cst_35 = arith.constant 2.560000e+02 : f32
    %66 = vector.broadcast %cst_35 : f32 to vector<1x256xf32>
    %67 = arith.divf %56, %66 : vector<1x256xf32>
    %cst_36 = arith.constant 5.000000e-01 : f32
    %68 = vector.broadcast %cst_36 : f32 to vector<1x256xf32>
    %69 = arith.addf %67, %68 : vector<1x256xf32>
    %70 = math.floor %69 : vector<1x256xf32>
    %cst_37 = arith.constant 2.560000e+02 : f32
    %71 = vector.broadcast %cst_37 : f32 to vector<1x256xf32>
    %72 = arith.mulf %70, %71 : vector<1x256xf32>
    %73 = arith.subf %56, %72 : vector<1x256xf32>
    %cst_38 = arith.constant 0.000000e+00 : f32
    %74 = vector.broadcast %cst_38 : f32 to vector<1x256xf32>
    %75 = arith.cmpf olt, %73, %74 : vector<1x256xf32>
    %cst_39 = arith.constant 1.000000e+00 : f32
    %76 = vector.broadcast %cst_39 : f32 to vector<1x256xf32>
    %77 = arith.subf %70, %76 : vector<1x256xf32>
    %78 = arith.select %75, %77, %70 : vector<1x256xi1>, vector<1x256xf32>
    %79 = math.rsqrt %78 : vector<1x256xf32>
    %80 = arith.mulf %65, %79 : vector<1x256xf32>
    %81 = arith.addf %45, %80 : vector<1x256xf32>
    %82 = arith.addf %46, %79 : vector<1x256xf32>
    %c0_40 = arith.constant 0 : index
    %c0_41 = arith.constant 0 : index
    %83 = vector.load %arg2[%c0_40, %c0_41] : memref<256x256xf32, #tpu.memory_space<vmem>>, vector<256x256xf32>
    %84 = vector.broadcast %56 : vector<1x256xf32> to vector<256x256xf32>
    %85 = arith.cmpf ogt, %83, %84 : vector<256x256xf32>
    %86 = vector.broadcast %7 : vector<256x1xi1> to vector<256x256xi1>
    %87 = arith.andi %86, %85 : vector<256x256xi1>
    %c0_42 = arith.constant 0 : index
    %c0_43 = arith.constant 0 : index
    %88 = vector.load %arg2[%c0_42, %c0_43] : memref<256x256xf32, #tpu.memory_space<vmem>>, vector<256x256xf32>
    %cst_44 = arith.constant 1.000000e+30 : f32
    %89 = vector.broadcast %cst_44 : f32 to vector<256x256xf32>
    %90 = arith.select %87, %88, %89 : vector<256x256xi1>, vector<256x256xf32>
    %cst_45 = arith.constant dense<0x7F800000> : vector<256xf32>
    %91 = vector.multi_reduction <minimumf>, %90, %cst_45 [0] : vector<256x256xf32> to vector<256xf32>
    %92 = vector.shape_cast %91 : vector<256xf32> to vector<1x256xf32>
    %c0_46 = arith.constant 0 : index
    %c0_47 = arith.constant 0 : index
    %93 = vector.load %arg2[%c0_46, %c0_47] : memref<256x256xf32, #tpu.memory_space<vmem>>, vector<256x256xf32>
    %94 = vector.broadcast %92 : vector<1x256xf32> to vector<256x256xf32>
    %95 = arith.cmpf oeq, %93, %94 : vector<256x256xf32>
    %cst_48 = arith.constant 0.000000e+00 : f32
    %96 = vector.shape_cast %3 : vector<256x1xf32> to vector<256x1xf32>
    %97 = vector.broadcast %96 : vector<256x1xf32> to vector<256x256xf32>
    %98 = vector.broadcast %cst_48 : f32 to vector<256x256xf32>
    %99 = arith.select %95, %97, %98 : vector<256x256xi1>, vector<256x256xf32>
    %cst_49 = arith.constant dense<0.000000e+00> : vector<256xf32>
    %100 = vector.multi_reduction <add>, %99, %cst_49 [0] : vector<256x256xf32> to vector<256xf32>
    %101 = vector.shape_cast %100 : vector<256xf32> to vector<1x256xf32>
    %cst_50 = arith.constant 2.560000e+02 : f32
    %102 = vector.broadcast %cst_50 : f32 to vector<1x256xf32>
    %103 = arith.divf %92, %102 : vector<1x256xf32>
    %cst_51 = arith.constant 5.000000e-01 : f32
    %104 = vector.broadcast %cst_51 : f32 to vector<1x256xf32>
    %105 = arith.addf %103, %104 : vector<1x256xf32>
    %106 = math.floor %105 : vector<1x256xf32>
    %cst_52 = arith.constant 2.560000e+02 : f32
    %107 = vector.broadcast %cst_52 : f32 to vector<1x256xf32>
    %108 = arith.mulf %106, %107 : vector<1x256xf32>
    %109 = arith.subf %92, %108 : vector<1x256xf32>
    %cst_53 = arith.constant 0.000000e+00 : f32
    %110 = vector.broadcast %cst_53 : f32 to vector<1x256xf32>
    %111 = arith.cmpf olt, %109, %110 : vector<1x256xf32>
    %cst_54 = arith.constant 1.000000e+00 : f32
    %112 = vector.broadcast %cst_54 : f32 to vector<1x256xf32>
    %113 = arith.subf %106, %112 : vector<1x256xf32>
    %114 = arith.select %111, %113, %106 : vector<1x256xi1>, vector<1x256xf32>
    %115 = math.rsqrt %114 : vector<1x256xf32>
    %116 = arith.mulf %101, %115 : vector<1x256xf32>
    %117 = arith.addf %81, %116 : vector<1x256xf32>
    %118 = arith.addf %82, %115 : vector<1x256xf32>
    %119 = arith.divf %117, %118 : vector<1x256xf32>
    %120 = arith.select %5, %1, %119 : vector<1x256xi1>, vector<1x256xf32>
    %c0_55 = arith.constant 0 : index
    %c1 = arith.constant 1 : index
    %c0_56 = arith.constant 0 : index
    %121 = vector.load %arg3[%c0_55, %c1, %c0_56] : memref<1x4x256xf32, #tpu.memory_space<vmem>>, vector<1x1x256xf32>
    %122 = vector.shape_cast %121 : vector<1x1x256xf32> to vector<1x256xf32>
    %c0_57 = arith.constant 0 : index
    %c1_58 = arith.constant 1 : index
    %c0_59 = arith.constant 0 : index
    %c0_60 = arith.constant 0 : index
    %123 = vector.load %arg4[%c0_57, %c1_58, %c0_59, %c0_60] : memref<1x4x256x1xf32, #tpu.memory_space<vmem>>, vector<1x1x256x1xf32>
    %124 = vector.shape_cast %123 : vector<1x1x256x1xf32> to vector<256x1xf32>
    %cst_61 = arith.constant 0.000000e+00 : f32
    %125 = vector.broadcast %cst_61 : f32 to vector<1x256xf32>
    %126 = arith.cmpf one, %122, %125 : vector<1x256xf32>
    %cst_62 = arith.constant 0.000000e+00 : f32
    %127 = vector.broadcast %cst_62 : f32 to vector<256x1xf32>
    %128 = arith.cmpf one, %124, %127 : vector<256x1xf32>
    %cst_63 = arith.constant 0.000000e+00 : f32
    %129 = vector.broadcast %cst_63 : f32 to vector<1x256xf32>
    %cst_64 = arith.constant 0.000000e+00 : f32
    %130 = vector.broadcast %cst_64 : f32 to vector<1x256xf32>
    %cst_65 = arith.constant -1.000000e+00 : f32
    %131 = vector.broadcast %cst_65 : f32 to vector<1x256xf32>
    %c0_66 = arith.constant 0 : index
    %c0_67 = arith.constant 0 : index
    %132 = vector.load %arg2[%c0_66, %c0_67] : memref<256x256xf32, #tpu.memory_space<vmem>>, vector<256x256xf32>
    %133 = vector.broadcast %131 : vector<1x256xf32> to vector<256x256xf32>
    %134 = arith.cmpf ogt, %132, %133 : vector<256x256xf32>
    %135 = vector.broadcast %128 : vector<256x1xi1> to vector<256x256xi1>
    %136 = arith.andi %135, %134 : vector<256x256xi1>
    %c0_68 = arith.constant 0 : index
    %c0_69 = arith.constant 0 : index
    %137 = vector.load %arg2[%c0_68, %c0_69] : memref<256x256xf32, #tpu.memory_space<vmem>>, vector<256x256xf32>
    %cst_70 = arith.constant 1.000000e+30 : f32
    %138 = vector.broadcast %cst_70 : f32 to vector<256x256xf32>
    %139 = arith.select %136, %137, %138 : vector<256x256xi1>, vector<256x256xf32>
    %cst_71 = arith.constant dense<0x7F800000> : vector<256xf32>
    %140 = vector.multi_reduction <minimumf>, %139, %cst_71 [0] : vector<256x256xf32> to vector<256xf32>
    %141 = vector.shape_cast %140 : vector<256xf32> to vector<1x256xf32>
    %c0_72 = arith.constant 0 : index
    %c0_73 = arith.constant 0 : index
    %142 = vector.load %arg2[%c0_72, %c0_73] : memref<256x256xf32, #tpu.memory_space<vmem>>, vector<256x256xf32>
    %143 = vector.broadcast %141 : vector<1x256xf32> to vector<256x256xf32>
    %144 = arith.cmpf oeq, %142, %143 : vector<256x256xf32>
    %cst_74 = arith.constant 0.000000e+00 : f32
    %145 = vector.shape_cast %124 : vector<256x1xf32> to vector<256x1xf32>
    %146 = vector.broadcast %145 : vector<256x1xf32> to vector<256x256xf32>
    %147 = vector.broadcast %cst_74 : f32 to vector<256x256xf32>
    %148 = arith.select %144, %146, %147 : vector<256x256xi1>, vector<256x256xf32>
    %cst_75 = arith.constant dense<0.000000e+00> : vector<256xf32>
    %149 = vector.multi_reduction <add>, %148, %cst_75 [0] : vector<256x256xf32> to vector<256xf32>
    %150 = vector.shape_cast %149 : vector<256xf32> to vector<1x256xf32>
    %cst_76 = arith.constant 2.560000e+02 : f32
    %151 = vector.broadcast %cst_76 : f32 to vector<1x256xf32>
    %152 = arith.divf %141, %151 : vector<1x256xf32>
    %cst_77 = arith.constant 5.000000e-01 : f32
    %153 = vector.broadcast %cst_77 : f32 to vector<1x256xf32>
    %154 = arith.addf %152, %153 : vector<1x256xf32>
    %155 = math.floor %154 : vector<1x256xf32>
    %cst_78 = arith.constant 2.560000e+02 : f32
    %156 = vector.broadcast %cst_78 : f32 to vector<1x256xf32>
    %157 = arith.mulf %155, %156 : vector<1x256xf32>
    %158 = arith.subf %141, %157 : vector<1x256xf32>
    %cst_79 = arith.constant 0.000000e+00 : f32
    %159 = vector.broadcast %cst_79 : f32 to vector<1x256xf32>
    %160 = arith.cmpf olt, %158, %159 : vector<1x256xf32>
    %cst_80 = arith.constant 1.000000e+00 : f32
    %161 = vector.broadcast %cst_80 : f32 to vector<1x256xf32>
    %162 = arith.subf %155, %161 : vector<1x256xf32>
    %163 = arith.select %160, %162, %155 : vector<1x256xi1>, vector<1x256xf32>
    %164 = math.rsqrt %163 : vector<1x256xf32>
    %165 = arith.mulf %150, %164 : vector<1x256xf32>
    %166 = arith.addf %129, %165 : vector<1x256xf32>
    %167 = arith.addf %130, %164 : vector<1x256xf32>
    %c0_81 = arith.constant 0 : index
    %c0_82 = arith.constant 0 : index
    %168 = vector.load %arg2[%c0_81, %c0_82] : memref<256x256xf32, #tpu.memory_space<vmem>>, vector<256x256xf32>
    %169 = vector.broadcast %141 : vector<1x256xf32> to vector<256x256xf32>
    %170 = arith.cmpf ogt, %168, %169 : vector<256x256xf32>
    %171 = vector.broadcast %128 : vector<256x1xi1> to vector<256x256xi1>
    %172 = arith.andi %171, %170 : vector<256x256xi1>
    %c0_83 = arith.constant 0 : index
    %c0_84 = arith.constant 0 : index
    %173 = vector.load %arg2[%c0_83, %c0_84] : memref<256x256xf32, #tpu.memory_space<vmem>>, vector<256x256xf32>
    %cst_85 = arith.constant 1.000000e+30 : f32
    %174 = vector.broadcast %cst_85 : f32 to vector<256x256xf32>
    %175 = arith.select %172, %173, %174 : vector<256x256xi1>, vector<256x256xf32>
    %cst_86 = arith.constant dense<0x7F800000> : vector<256xf32>
    %176 = vector.multi_reduction <minimumf>, %175, %cst_86 [0] : vector<256x256xf32> to vector<256xf32>
    %177 = vector.shape_cast %176 : vector<256xf32> to vector<1x256xf32>
    %c0_87 = arith.constant 0 : index
    %c0_88 = arith.constant 0 : index
    %178 = vector.load %arg2[%c0_87, %c0_88] : memref<256x256xf32, #tpu.memory_space<vmem>>, vector<256x256xf32>
    %179 = vector.broadcast %177 : vector<1x256xf32> to vector<256x256xf32>
    %180 = arith.cmpf oeq, %178, %179 : vector<256x256xf32>
    %cst_89 = arith.constant 0.000000e+00 : f32
    %181 = vector.shape_cast %124 : vector<256x1xf32> to vector<256x1xf32>
    %182 = vector.broadcast %181 : vector<256x1xf32> to vector<256x256xf32>
    %183 = vector.broadcast %cst_89 : f32 to vector<256x256xf32>
    %184 = arith.select %180, %182, %183 : vector<256x256xi1>, vector<256x256xf32>
    %cst_90 = arith.constant dense<0.000000e+00> : vector<256xf32>
    %185 = vector.multi_reduction <add>, %184, %cst_90 [0] : vector<256x256xf32> to vector<256xf32>
    %186 = vector.shape_cast %185 : vector<256xf32> to vector<1x256xf32>
    %cst_91 = arith.constant 2.560000e+02 : f32
    %187 = vector.broadcast %cst_91 : f32 to vector<1x256xf32>
    %188 = arith.divf %177, %187 : vector<1x256xf32>
    %cst_92 = arith.constant 5.000000e-01 : f32
    %189 = vector.broadcast %cst_92 : f32 to vector<1x256xf32>
    %190 = arith.addf %188, %189 : vector<1x256xf32>
    %191 = math.floor %190 : vector<1x256xf32>
    %cst_93 = arith.constant 2.560000e+02 : f32
    %192 = vector.broadcast %cst_93 : f32 to vector<1x256xf32>
    %193 = arith.mulf %191, %192 : vector<1x256xf32>
    %194 = arith.subf %177, %193 : vector<1x256xf32>
    %cst_94 = arith.constant 0.000000e+00 : f32
    %195 = vector.broadcast %cst_94 : f32 to vector<1x256xf32>
    %196 = arith.cmpf olt, %194, %195 : vector<1x256xf32>
    %cst_95 = arith.constant 1.000000e+00 : f32
    %197 = vector.broadcast %cst_95 : f32 to vector<1x256xf32>
    %198 = arith.subf %191, %197 : vector<1x256xf32>
    %199 = arith.select %196, %198, %191 : vector<1x256xi1>, vector<1x256xf32>
    %200 = math.rsqrt %199 : vector<1x256xf32>
    %201 = arith.mulf %186, %200 : vector<1x256xf32>
    %202 = arith.addf %166, %201 : vector<1x256xf32>
    %203 = arith.addf %167, %200 : vector<1x256xf32>
    %c0_96 = arith.constant 0 : index
    %c0_97 = arith.constant 0 : index
    %204 = vector.load %arg2[%c0_96, %c0_97] : memref<256x256xf32, #tpu.memory_space<vmem>>, vector<256x256xf32>
    %205 = vector.broadcast %177 : vector<1x256xf32> to vector<256x256xf32>
    %206 = arith.cmpf ogt, %204, %205 : vector<256x256xf32>
    %207 = vector.broadcast %128 : vector<256x1xi1> to vector<256x256xi1>
    %208 = arith.andi %207, %206 : vector<256x256xi1>
    %c0_98 = arith.constant 0 : index
    %c0_99 = arith.constant 0 : index
    %209 = vector.load %arg2[%c0_98, %c0_99] : memref<256x256xf32, #tpu.memory_space<vmem>>, vector<256x256xf32>
    %cst_100 = arith.constant 1.000000e+30 : f32
    %210 = vector.broadcast %cst_100 : f32 to vector<256x256xf32>
    %211 = arith.select %208, %209, %210 : vector<256x256xi1>, vector<256x256xf32>
    %cst_101 = arith.constant dense<0x7F800000> : vector<256xf32>
    %212 = vector.multi_reduction <minimumf>, %211, %cst_101 [0] : vector<256x256xf32> to vector<256xf32>
    %213 = vector.shape_cast %212 : vector<256xf32> to vector<1x256xf32>
    %c0_102 = arith.constant 0 : index
    %c0_103 = arith.constant 0 : index
    %214 = vector.load %arg2[%c0_102, %c0_103] : memref<256x256xf32, #tpu.memory_space<vmem>>, vector<256x256xf32>
    %215 = vector.broadcast %213 : vector<1x256xf32> to vector<256x256xf32>
    %216 = arith.cmpf oeq, %214, %215 : vector<256x256xf32>
    %cst_104 = arith.constant 0.000000e+00 : f32
    %217 = vector.shape_cast %124 : vector<256x1xf32> to vector<256x1xf32>
    %218 = vector.broadcast %217 : vector<256x1xf32> to vector<256x256xf32>
    %219 = vector.broadcast %cst_104 : f32 to vector<256x256xf32>
    %220 = arith.select %216, %218, %219 : vector<256x256xi1>, vector<256x256xf32>
    %cst_105 = arith.constant dense<0.000000e+00> : vector<256xf32>
    %221 = vector.multi_reduction <add>, %220, %cst_105 [0] : vector<256x256xf32> to vector<256xf32>
    %222 = vector.shape_cast %221 : vector<256xf32> to vector<1x256xf32>
    %cst_106 = arith.constant 2.560000e+02 : f32
    %223 = vector.broadcast %cst_106 : f32 to vector<1x256xf32>
    %224 = arith.divf %213, %223 : vector<1x256xf32>
    %cst_107 = arith.constant 5.000000e-01 : f32
    %225 = vector.broadcast %cst_107 : f32 to vector<1x256xf32>
    %226 = arith.addf %224, %225 : vector<1x256xf32>
    %227 = math.floor %226 : vector<1x256xf32>
    %cst_108 = arith.constant 2.560000e+02 : f32
    %228 = vector.broadcast %cst_108 : f32 to vector<1x256xf32>
    %229 = arith.mulf %227, %228 : vector<1x256xf32>
    %230 = arith.subf %213, %229 : vector<1x256xf32>
    %cst_109 = arith.constant 0.000000e+00 : f32
    %231 = vector.broadcast %cst_109 : f32 to vector<1x256xf32>
    %232 = arith.cmpf olt, %230, %231 : vector<1x256xf32>
    %cst_110 = arith.constant 1.000000e+00 : f32
    %233 = vector.broadcast %cst_110 : f32 to vector<1x256xf32>
    %234 = arith.subf %227, %233 : vector<1x256xf32>
    %235 = arith.select %232, %234, %227 : vector<1x256xi1>, vector<1x256xf32>
    %236 = math.rsqrt %235 : vector<1x256xf32>
    %237 = arith.mulf %222, %236 : vector<1x256xf32>
    %238 = arith.addf %202, %237 : vector<1x256xf32>
    %239 = arith.addf %203, %236 : vector<1x256xf32>
    %240 = arith.divf %238, %239 : vector<1x256xf32>
    %241 = arith.select %126, %122, %240 : vector<1x256xi1>, vector<1x256xf32>
    %c0_111 = arith.constant 0 : index
    %c2 = arith.constant 2 : index
    %c0_112 = arith.constant 0 : index
    %242 = vector.load %arg3[%c0_111, %c2, %c0_112] : memref<1x4x256xf32, #tpu.memory_space<vmem>>, vector<1x1x256xf32>
    %243 = vector.shape_cast %242 : vector<1x1x256xf32> to vector<1x256xf32>
    %c0_113 = arith.constant 0 : index
    %c2_114 = arith.constant 2 : index
    %c0_115 = arith.constant 0 : index
    %c0_116 = arith.constant 0 : index
    %244 = vector.load %arg4[%c0_113, %c2_114, %c0_115, %c0_116] : memref<1x4x256x1xf32, #tpu.memory_space<vmem>>, vector<1x1x256x1xf32>
    %245 = vector.shape_cast %244 : vector<1x1x256x1xf32> to vector<256x1xf32>
    %cst_117 = arith.constant 0.000000e+00 : f32
    %246 = vector.broadcast %cst_117 : f32 to vector<1x256xf32>
    %247 = arith.cmpf one, %243, %246 : vector<1x256xf32>
    %cst_118 = arith.constant 0.000000e+00 : f32
    %248 = vector.broadcast %cst_118 : f32 to vector<256x1xf32>
    %249 = arith.cmpf one, %245, %248 : vector<256x1xf32>
    %cst_119 = arith.constant 0.000000e+00 : f32
    %250 = vector.broadcast %cst_119 : f32 to vector<1x256xf32>
    %cst_120 = arith.constant 0.000000e+00 : f32
    %251 = vector.broadcast %cst_120 : f32 to vector<1x256xf32>
    %cst_121 = arith.constant -1.000000e+00 : f32
    %252 = vector.broadcast %cst_121 : f32 to vector<1x256xf32>
    %c0_122 = arith.constant 0 : index
    %c0_123 = arith.constant 0 : index
    %253 = vector.load %arg2[%c0_122, %c0_123] : memref<256x256xf32, #tpu.memory_space<vmem>>, vector<256x256xf32>
    %254 = vector.broadcast %252 : vector<1x256xf32> to vector<256x256xf32>
    %255 = arith.cmpf ogt, %253, %254 : vector<256x256xf32>
    %256 = vector.broadcast %249 : vector<256x1xi1> to vector<256x256xi1>
    %257 = arith.andi %256, %255 : vector<256x256xi1>
    %c0_124 = arith.constant 0 : index
    %c0_125 = arith.constant 0 : index
    %258 = vector.load %arg2[%c0_124, %c0_125] : memref<256x256xf32, #tpu.memory_space<vmem>>, vector<256x256xf32>
    %cst_126 = arith.constant 1.000000e+30 : f32
    %259 = vector.broadcast %cst_126 : f32 to vector<256x256xf32>
    %260 = arith.select %257, %258, %259 : vector<256x256xi1>, vector<256x256xf32>
    %cst_127 = arith.constant dense<0x7F800000> : vector<256xf32>
    %261 = vector.multi_reduction <minimumf>, %260, %cst_127 [0] : vector<256x256xf32> to vector<256xf32>
    %262 = vector.shape_cast %261 : vector<256xf32> to vector<1x256xf32>
    %c0_128 = arith.constant 0 : index
    %c0_129 = arith.constant 0 : index
    %263 = vector.load %arg2[%c0_128, %c0_129] : memref<256x256xf32, #tpu.memory_space<vmem>>, vector<256x256xf32>
    %264 = vector.broadcast %262 : vector<1x256xf32> to vector<256x256xf32>
    %265 = arith.cmpf oeq, %263, %264 : vector<256x256xf32>
    %cst_130 = arith.constant 0.000000e+00 : f32
    %266 = vector.shape_cast %245 : vector<256x1xf32> to vector<256x1xf32>
    %267 = vector.broadcast %266 : vector<256x1xf32> to vector<256x256xf32>
    %268 = vector.broadcast %cst_130 : f32 to vector<256x256xf32>
    %269 = arith.select %265, %267, %268 : vector<256x256xi1>, vector<256x256xf32>
    %cst_131 = arith.constant dense<0.000000e+00> : vector<256xf32>
    %270 = vector.multi_reduction <add>, %269, %cst_131 [0] : vector<256x256xf32> to vector<256xf32>
    %271 = vector.shape_cast %270 : vector<256xf32> to vector<1x256xf32>
    %cst_132 = arith.constant 2.560000e+02 : f32
    %272 = vector.broadcast %cst_132 : f32 to vector<1x256xf32>
    %273 = arith.divf %262, %272 : vector<1x256xf32>
    %cst_133 = arith.constant 5.000000e-01 : f32
    %274 = vector.broadcast %cst_133 : f32 to vector<1x256xf32>
    %275 = arith.addf %273, %274 : vector<1x256xf32>
    %276 = math.floor %275 : vector<1x256xf32>
    %cst_134 = arith.constant 2.560000e+02 : f32
    %277 = vector.broadcast %cst_134 : f32 to vector<1x256xf32>
    %278 = arith.mulf %276, %277 : vector<1x256xf32>
    %279 = arith.subf %262, %278 : vector<1x256xf32>
    %cst_135 = arith.constant 0.000000e+00 : f32
    %280 = vector.broadcast %cst_135 : f32 to vector<1x256xf32>
    %281 = arith.cmpf olt, %279, %280 : vector<1x256xf32>
    %cst_136 = arith.constant 1.000000e+00 : f32
    %282 = vector.broadcast %cst_136 : f32 to vector<1x256xf32>
    %283 = arith.subf %276, %282 : vector<1x256xf32>
    %284 = arith.select %281, %283, %276 : vector<1x256xi1>, vector<1x256xf32>
    %285 = math.rsqrt %284 : vector<1x256xf32>
    %286 = arith.mulf %271, %285 : vector<1x256xf32>
    %287 = arith.addf %250, %286 : vector<1x256xf32>
    %288 = arith.addf %251, %285 : vector<1x256xf32>
    %c0_137 = arith.constant 0 : index
    %c0_138 = arith.constant 0 : index
    %289 = vector.load %arg2[%c0_137, %c0_138] : memref<256x256xf32, #tpu.memory_space<vmem>>, vector<256x256xf32>
    %290 = vector.broadcast %262 : vector<1x256xf32> to vector<256x256xf32>
    %291 = arith.cmpf ogt, %289, %290 : vector<256x256xf32>
    %292 = vector.broadcast %249 : vector<256x1xi1> to vector<256x256xi1>
    %293 = arith.andi %292, %291 : vector<256x256xi1>
    %c0_139 = arith.constant 0 : index
    %c0_140 = arith.constant 0 : index
    %294 = vector.load %arg2[%c0_139, %c0_140] : memref<256x256xf32, #tpu.memory_space<vmem>>, vector<256x256xf32>
    %cst_141 = arith.constant 1.000000e+30 : f32
    %295 = vector.broadcast %cst_141 : f32 to vector<256x256xf32>
    %296 = arith.select %293, %294, %295 : vector<256x256xi1>, vector<256x256xf32>
    %cst_142 = arith.constant dense<0x7F800000> : vector<256xf32>
    %297 = vector.multi_reduction <minimumf>, %296, %cst_142 [0] : vector<256x256xf32> to vector<256xf32>
    %298 = vector.shape_cast %297 : vector<256xf32> to vector<1x256xf32>
    %c0_143 = arith.constant 0 : index
    %c0_144 = arith.constant 0 : index
    %299 = vector.load %arg2[%c0_143, %c0_144] : memref<256x256xf32, #tpu.memory_space<vmem>>, vector<256x256xf32>
    %300 = vector.broadcast %298 : vector<1x256xf32> to vector<256x256xf32>
    %301 = arith.cmpf oeq, %299, %300 : vector<256x256xf32>
    %cst_145 = arith.constant 0.000000e+00 : f32
    %302 = vector.shape_cast %245 : vector<256x1xf32> to vector<256x1xf32>
    %303 = vector.broadcast %302 : vector<256x1xf32> to vector<256x256xf32>
    %304 = vector.broadcast %cst_145 : f32 to vector<256x256xf32>
    %305 = arith.select %301, %303, %304 : vector<256x256xi1>, vector<256x256xf32>
    %cst_146 = arith.constant dense<0.000000e+00> : vector<256xf32>
    %306 = vector.multi_reduction <add>, %305, %cst_146 [0] : vector<256x256xf32> to vector<256xf32>
    %307 = vector.shape_cast %306 : vector<256xf32> to vector<1x256xf32>
    %cst_147 = arith.constant 2.560000e+02 : f32
    %308 = vector.broadcast %cst_147 : f32 to vector<1x256xf32>
    %309 = arith.divf %298, %308 : vector<1x256xf32>
    %cst_148 = arith.constant 5.000000e-01 : f32
    %310 = vector.broadcast %cst_148 : f32 to vector<1x256xf32>
    %311 = arith.addf %309, %310 : vector<1x256xf32>
    %312 = math.floor %311 : vector<1x256xf32>
    %cst_149 = arith.constant 2.560000e+02 : f32
    %313 = vector.broadcast %cst_149 : f32 to vector<1x256xf32>
    %314 = arith.mulf %312, %313 : vector<1x256xf32>
    %315 = arith.subf %298, %314 : vector<1x256xf32>
    %cst_150 = arith.constant 0.000000e+00 : f32
    %316 = vector.broadcast %cst_150 : f32 to vector<1x256xf32>
    %317 = arith.cmpf olt, %315, %316 : vector<1x256xf32>
    %cst_151 = arith.constant 1.000000e+00 : f32
    %318 = vector.broadcast %cst_151 : f32 to vector<1x256xf32>
    %319 = arith.subf %312, %318 : vector<1x256xf32>
    %320 = arith.select %317, %319, %312 : vector<1x256xi1>, vector<1x256xf32>
    %321 = math.rsqrt %320 : vector<1x256xf32>
    %322 = arith.mulf %307, %321 : vector<1x256xf32>
    %323 = arith.addf %287, %322 : vector<1x256xf32>
    %324 = arith.addf %288, %321 : vector<1x256xf32>
    %c0_152 = arith.constant 0 : index
    %c0_153 = arith.constant 0 : index
    %325 = vector.load %arg2[%c0_152, %c0_153] : memref<256x256xf32, #tpu.memory_space<vmem>>, vector<256x256xf32>
    %326 = vector.broadcast %298 : vector<1x256xf32> to vector<256x256xf32>
    %327 = arith.cmpf ogt, %325, %326 : vector<256x256xf32>
    %328 = vector.broadcast %249 : vector<256x1xi1> to vector<256x256xi1>
    %329 = arith.andi %328, %327 : vector<256x256xi1>
    %c0_154 = arith.constant 0 : index
    %c0_155 = arith.constant 0 : index
    %330 = vector.load %arg2[%c0_154, %c0_155] : memref<256x256xf32, #tpu.memory_space<vmem>>, vector<256x256xf32>
    %cst_156 = arith.constant 1.000000e+30 : f32
    %331 = vector.broadcast %cst_156 : f32 to vector<256x256xf32>
    %332 = arith.select %329, %330, %331 : vector<256x256xi1>, vector<256x256xf32>
    %cst_157 = arith.constant dense<0x7F800000> : vector<256xf32>
    %333 = vector.multi_reduction <minimumf>, %332, %cst_157 [0] : vector<256x256xf32> to vector<256xf32>
    %334 = vector.shape_cast %333 : vector<256xf32> to vector<1x256xf32>
    %c0_158 = arith.constant 0 : index
    %c0_159 = arith.constant 0 : index
    %335 = vector.load %arg2[%c0_158, %c0_159] : memref<256x256xf32, #tpu.memory_space<vmem>>, vector<256x256xf32>
    %336 = vector.broadcast %334 : vector<1x256xf32> to vector<256x256xf32>
    %337 = arith.cmpf oeq, %335, %336 : vector<256x256xf32>
    %cst_160 = arith.constant 0.000000e+00 : f32
    %338 = vector.shape_cast %245 : vector<256x1xf32> to vector<256x1xf32>
    %339 = vector.broadcast %338 : vector<256x1xf32> to vector<256x256xf32>
    %340 = vector.broadcast %cst_160 : f32 to vector<256x256xf32>
    %341 = arith.select %337, %339, %340 : vector<256x256xi1>, vector<256x256xf32>
    %cst_161 = arith.constant dense<0.000000e+00> : vector<256xf32>
    %342 = vector.multi_reduction <add>, %341, %cst_161 [0] : vector<256x256xf32> to vector<256xf32>
    %343 = vector.shape_cast %342 : vector<256xf32> to vector<1x256xf32>
    %cst_162 = arith.constant 2.560000e+02 : f32
    %344 = vector.broadcast %cst_162 : f32 to vector<1x256xf32>
    %345 = arith.divf %334, %344 : vector<1x256xf32>
    %cst_163 = arith.constant 5.000000e-01 : f32
    %346 = vector.broadcast %cst_163 : f32 to vector<1x256xf32>
    %347 = arith.addf %345, %346 : vector<1x256xf32>
    %348 = math.floor %347 : vector<1x256xf32>
    %cst_164 = arith.constant 2.560000e+02 : f32
    %349 = vector.broadcast %cst_164 : f32 to vector<1x256xf32>
    %350 = arith.mulf %348, %349 : vector<1x256xf32>
    %351 = arith.subf %334, %350 : vector<1x256xf32>
    %cst_165 = arith.constant 0.000000e+00 : f32
    %352 = vector.broadcast %cst_165 : f32 to vector<1x256xf32>
    %353 = arith.cmpf olt, %351, %352 : vector<1x256xf32>
    %cst_166 = arith.constant 1.000000e+00 : f32
    %354 = vector.broadcast %cst_166 : f32 to vector<1x256xf32>
    %355 = arith.subf %348, %354 : vector<1x256xf32>
    %356 = arith.select %353, %355, %348 : vector<1x256xi1>, vector<1x256xf32>
    %357 = math.rsqrt %356 : vector<1x256xf32>
    %358 = arith.mulf %343, %357 : vector<1x256xf32>
    %359 = arith.addf %323, %358 : vector<1x256xf32>
    %360 = arith.addf %324, %357 : vector<1x256xf32>
    %361 = arith.divf %359, %360 : vector<1x256xf32>
    %362 = arith.select %247, %243, %361 : vector<1x256xi1>, vector<1x256xf32>
    %c0_167 = arith.constant 0 : index
    %c3 = arith.constant 3 : index
    %c0_168 = arith.constant 0 : index
    %363 = vector.load %arg3[%c0_167, %c3, %c0_168] : memref<1x4x256xf32, #tpu.memory_space<vmem>>, vector<1x1x256xf32>
    %364 = vector.shape_cast %363 : vector<1x1x256xf32> to vector<1x256xf32>
    %c0_169 = arith.constant 0 : index
    %c3_170 = arith.constant 3 : index
    %c0_171 = arith.constant 0 : index
    %c0_172 = arith.constant 0 : index
    %365 = vector.load %arg4[%c0_169, %c3_170, %c0_171, %c0_172] : memref<1x4x256x1xf32, #tpu.memory_space<vmem>>, vector<1x1x256x1xf32>
    %366 = vector.shape_cast %365 : vector<1x1x256x1xf32> to vector<256x1xf32>
    %cst_173 = arith.constant 0.000000e+00 : f32
    %367 = vector.broadcast %cst_173 : f32 to vector<1x256xf32>
    %368 = arith.cmpf one, %364, %367 : vector<1x256xf32>
    %cst_174 = arith.constant 0.000000e+00 : f32
    %369 = vector.broadcast %cst_174 : f32 to vector<256x1xf32>
    %370 = arith.cmpf one, %366, %369 : vector<256x1xf32>
    %cst_175 = arith.constant 0.000000e+00 : f32
    %371 = vector.broadcast %cst_175 : f32 to vector<1x256xf32>
    %cst_176 = arith.constant 0.000000e+00 : f32
    %372 = vector.broadcast %cst_176 : f32 to vector<1x256xf32>
    %cst_177 = arith.constant -1.000000e+00 : f32
    %373 = vector.broadcast %cst_177 : f32 to vector<1x256xf32>
    %c0_178 = arith.constant 0 : index
    %c0_179 = arith.constant 0 : index
    %374 = vector.load %arg2[%c0_178, %c0_179] : memref<256x256xf32, #tpu.memory_space<vmem>>, vector<256x256xf32>
    %375 = vector.broadcast %373 : vector<1x256xf32> to vector<256x256xf32>
    %376 = arith.cmpf ogt, %374, %375 : vector<256x256xf32>
    %377 = vector.broadcast %370 : vector<256x1xi1> to vector<256x256xi1>
    %378 = arith.andi %377, %376 : vector<256x256xi1>
    %c0_180 = arith.constant 0 : index
    %c0_181 = arith.constant 0 : index
    %379 = vector.load %arg2[%c0_180, %c0_181] : memref<256x256xf32, #tpu.memory_space<vmem>>, vector<256x256xf32>
    %cst_182 = arith.constant 1.000000e+30 : f32
    %380 = vector.broadcast %cst_182 : f32 to vector<256x256xf32>
    %381 = arith.select %378, %379, %380 : vector<256x256xi1>, vector<256x256xf32>
    %cst_183 = arith.constant dense<0x7F800000> : vector<256xf32>
    %382 = vector.multi_reduction <minimumf>, %381, %cst_183 [0] : vector<256x256xf32> to vector<256xf32>
    %383 = vector.shape_cast %382 : vector<256xf32> to vector<1x256xf32>
    %c0_184 = arith.constant 0 : index
    %c0_185 = arith.constant 0 : index
    %384 = vector.load %arg2[%c0_184, %c0_185] : memref<256x256xf32, #tpu.memory_space<vmem>>, vector<256x256xf32>
    %385 = vector.broadcast %383 : vector<1x256xf32> to vector<256x256xf32>
    %386 = arith.cmpf oeq, %384, %385 : vector<256x256xf32>
    %cst_186 = arith.constant 0.000000e+00 : f32
    %387 = vector.shape_cast %366 : vector<256x1xf32> to vector<256x1xf32>
    %388 = vector.broadcast %387 : vector<256x1xf32> to vector<256x256xf32>
    %389 = vector.broadcast %cst_186 : f32 to vector<256x256xf32>
    %390 = arith.select %386, %388, %389 : vector<256x256xi1>, vector<256x256xf32>
    %cst_187 = arith.constant dense<0.000000e+00> : vector<256xf32>
    %391 = vector.multi_reduction <add>, %390, %cst_187 [0] : vector<256x256xf32> to vector<256xf32>
    %392 = vector.shape_cast %391 : vector<256xf32> to vector<1x256xf32>
    %cst_188 = arith.constant 2.560000e+02 : f32
    %393 = vector.broadcast %cst_188 : f32 to vector<1x256xf32>
    %394 = arith.divf %383, %393 : vector<1x256xf32>
    %cst_189 = arith.constant 5.000000e-01 : f32
    %395 = vector.broadcast %cst_189 : f32 to vector<1x256xf32>
    %396 = arith.addf %394, %395 : vector<1x256xf32>
    %397 = math.floor %396 : vector<1x256xf32>
    %cst_190 = arith.constant 2.560000e+02 : f32
    %398 = vector.broadcast %cst_190 : f32 to vector<1x256xf32>
    %399 = arith.mulf %397, %398 : vector<1x256xf32>
    %400 = arith.subf %383, %399 : vector<1x256xf32>
    %cst_191 = arith.constant 0.000000e+00 : f32
    %401 = vector.broadcast %cst_191 : f32 to vector<1x256xf32>
    %402 = arith.cmpf olt, %400, %401 : vector<1x256xf32>
    %cst_192 = arith.constant 1.000000e+00 : f32
    %403 = vector.broadcast %cst_192 : f32 to vector<1x256xf32>
    %404 = arith.subf %397, %403 : vector<1x256xf32>
    %405 = arith.select %402, %404, %397 : vector<1x256xi1>, vector<1x256xf32>
    %406 = math.rsqrt %405 : vector<1x256xf32>
    %407 = arith.mulf %392, %406 : vector<1x256xf32>
    %408 = arith.addf %371, %407 : vector<1x256xf32>
    %409 = arith.addf %372, %406 : vector<1x256xf32>
    %c0_193 = arith.constant 0 : index
    %c0_194 = arith.constant 0 : index
    %410 = vector.load %arg2[%c0_193, %c0_194] : memref<256x256xf32, #tpu.memory_space<vmem>>, vector<256x256xf32>
    %411 = vector.broadcast %383 : vector<1x256xf32> to vector<256x256xf32>
    %412 = arith.cmpf ogt, %410, %411 : vector<256x256xf32>
    %413 = vector.broadcast %370 : vector<256x1xi1> to vector<256x256xi1>
    %414 = arith.andi %413, %412 : vector<256x256xi1>
    %c0_195 = arith.constant 0 : index
    %c0_196 = arith.constant 0 : index
    %415 = vector.load %arg2[%c0_195, %c0_196] : memref<256x256xf32, #tpu.memory_space<vmem>>, vector<256x256xf32>
    %cst_197 = arith.constant 1.000000e+30 : f32
    %416 = vector.broadcast %cst_197 : f32 to vector<256x256xf32>
    %417 = arith.select %414, %415, %416 : vector<256x256xi1>, vector<256x256xf32>
    %cst_198 = arith.constant dense<0x7F800000> : vector<256xf32>
    %418 = vector.multi_reduction <minimumf>, %417, %cst_198 [0] : vector<256x256xf32> to vector<256xf32>
    %419 = vector.shape_cast %418 : vector<256xf32> to vector<1x256xf32>
    %c0_199 = arith.constant 0 : index
    %c0_200 = arith.constant 0 : index
    %420 = vector.load %arg2[%c0_199, %c0_200] : memref<256x256xf32, #tpu.memory_space<vmem>>, vector<256x256xf32>
    %421 = vector.broadcast %419 : vector<1x256xf32> to vector<256x256xf32>
    %422 = arith.cmpf oeq, %420, %421 : vector<256x256xf32>
    %cst_201 = arith.constant 0.000000e+00 : f32
    %423 = vector.shape_cast %366 : vector<256x1xf32> to vector<256x1xf32>
    %424 = vector.broadcast %423 : vector<256x1xf32> to vector<256x256xf32>
    %425 = vector.broadcast %cst_201 : f32 to vector<256x256xf32>
    %426 = arith.select %422, %424, %425 : vector<256x256xi1>, vector<256x256xf32>
    %cst_202 = arith.constant dense<0.000000e+00> : vector<256xf32>
    %427 = vector.multi_reduction <add>, %426, %cst_202 [0] : vector<256x256xf32> to vector<256xf32>
    %428 = vector.shape_cast %427 : vector<256xf32> to vector<1x256xf32>
    %cst_203 = arith.constant 2.560000e+02 : f32
    %429 = vector.broadcast %cst_203 : f32 to vector<1x256xf32>
    %430 = arith.divf %419, %429 : vector<1x256xf32>
    %cst_204 = arith.constant 5.000000e-01 : f32
    %431 = vector.broadcast %cst_204 : f32 to vector<1x256xf32>
    %432 = arith.addf %430, %431 : vector<1x256xf32>
    %433 = math.floor %432 : vector<1x256xf32>
    %cst_205 = arith.constant 2.560000e+02 : f32
    %434 = vector.broadcast %cst_205 : f32 to vector<1x256xf32>
    %435 = arith.mulf %433, %434 : vector<1x256xf32>
    %436 = arith.subf %419, %435 : vector<1x256xf32>
    %cst_206 = arith.constant 0.000000e+00 : f32
    %437 = vector.broadcast %cst_206 : f32 to vector<1x256xf32>
    %438 = arith.cmpf olt, %436, %437 : vector<1x256xf32>
    %cst_207 = arith.constant 1.000000e+00 : f32
    %439 = vector.broadcast %cst_207 : f32 to vector<1x256xf32>
    %440 = arith.subf %433, %439 : vector<1x256xf32>
    %441 = arith.select %438, %440, %433 : vector<1x256xi1>, vector<1x256xf32>
    %442 = math.rsqrt %441 : vector<1x256xf32>
    %443 = arith.mulf %428, %442 : vector<1x256xf32>
    %444 = arith.addf %408, %443 : vector<1x256xf32>
    %445 = arith.addf %409, %442 : vector<1x256xf32>
    %c0_208 = arith.constant 0 : index
    %c0_209 = arith.constant 0 : index
    %446 = vector.load %arg2[%c0_208, %c0_209] : memref<256x256xf32, #tpu.memory_space<vmem>>, vector<256x256xf32>
    %447 = vector.broadcast %419 : vector<1x256xf32> to vector<256x256xf32>
    %448 = arith.cmpf ogt, %446, %447 : vector<256x256xf32>
    %449 = vector.broadcast %370 : vector<256x1xi1> to vector<256x256xi1>
    %450 = arith.andi %449, %448 : vector<256x256xi1>
    %c0_210 = arith.constant 0 : index
    %c0_211 = arith.constant 0 : index
    %451 = vector.load %arg2[%c0_210, %c0_211] : memref<256x256xf32, #tpu.memory_space<vmem>>, vector<256x256xf32>
    %cst_212 = arith.constant 1.000000e+30 : f32
    %452 = vector.broadcast %cst_212 : f32 to vector<256x256xf32>
    %453 = arith.select %450, %451, %452 : vector<256x256xi1>, vector<256x256xf32>
    %cst_213 = arith.constant dense<0x7F800000> : vector<256xf32>
    %454 = vector.multi_reduction <minimumf>, %453, %cst_213 [0] : vector<256x256xf32> to vector<256xf32>
    %455 = vector.shape_cast %454 : vector<256xf32> to vector<1x256xf32>
    %c0_214 = arith.constant 0 : index
    %c0_215 = arith.constant 0 : index
    %456 = vector.load %arg2[%c0_214, %c0_215] : memref<256x256xf32, #tpu.memory_space<vmem>>, vector<256x256xf32>
    %457 = vector.broadcast %455 : vector<1x256xf32> to vector<256x256xf32>
    %458 = arith.cmpf oeq, %456, %457 : vector<256x256xf32>
    %cst_216 = arith.constant 0.000000e+00 : f32
    %459 = vector.shape_cast %366 : vector<256x1xf32> to vector<256x1xf32>
    %460 = vector.broadcast %459 : vector<256x1xf32> to vector<256x256xf32>
    %461 = vector.broadcast %cst_216 : f32 to vector<256x256xf32>
    %462 = arith.select %458, %460, %461 : vector<256x256xi1>, vector<256x256xf32>
    %cst_217 = arith.constant dense<0.000000e+00> : vector<256xf32>
    %463 = vector.multi_reduction <add>, %462, %cst_217 [0] : vector<256x256xf32> to vector<256xf32>
    %464 = vector.shape_cast %463 : vector<256xf32> to vector<1x256xf32>
    %cst_218 = arith.constant 2.560000e+02 : f32
    %465 = vector.broadcast %cst_218 : f32 to vector<1x256xf32>
    %466 = arith.divf %455, %465 : vector<1x256xf32>
    %cst_219 = arith.constant 5.000000e-01 : f32
    %467 = vector.broadcast %cst_219 : f32 to vector<1x256xf32>
    %468 = arith.addf %466, %467 : vector<1x256xf32>
    %469 = math.floor %468 : vector<1x256xf32>
    %cst_220 = arith.constant 2.560000e+02 : f32
    %470 = vector.broadcast %cst_220 : f32 to vector<1x256xf32>
    %471 = arith.mulf %469, %470 : vector<1x256xf32>
    %472 = arith.subf %455, %471 : vector<1x256xf32>
    %cst_221 = arith.constant 0.000000e+00 : f32
    %473 = vector.broadcast %cst_221 : f32 to vector<1x256xf32>
    %474 = arith.cmpf olt, %472, %473 : vector<1x256xf32>
    %cst_222 = arith.constant 1.000000e+00 : f32
    %475 = vector.broadcast %cst_222 : f32 to vector<1x256xf32>
    %476 = arith.subf %469, %475 : vector<1x256xf32>
    %477 = arith.select %474, %476, %469 : vector<1x256xi1>, vector<1x256xf32>
    %478 = math.rsqrt %477 : vector<1x256xf32>
    %479 = arith.mulf %464, %478 : vector<1x256xf32>
    %480 = arith.addf %444, %479 : vector<1x256xf32>
    %481 = arith.addf %445, %478 : vector<1x256xf32>
    %482 = arith.divf %480, %481 : vector<1x256xf32>
    %483 = arith.select %368, %364, %482 : vector<1x256xi1>, vector<1x256xf32>
    %484 = tpu.concatenate %120, %241, %362, %483 in 0 : vector<1x256xf32>, vector<1x256xf32>, vector<1x256xf32>, vector<1x256xf32> -> vector<4x256xf32>
    %c0_223 = arith.constant 0 : index
    %c0_224 = arith.constant 0 : index
    %c0_225 = arith.constant 0 : index
    %485 = vector.load %arg5[%c0_223, %c0_224, %c0_225] : memref<1x4x256xf32, #tpu.memory_space<vmem>>, vector<1x4x256xf32>
    %486 = vector.shape_cast %485 : vector<1x4x256xf32> to vector<4x256xf32>
    %487 = vector.shape_cast %484 : vector<4x256xf32> to vector<1x4x256xf32>
    tpu.vector_store %arg5[%c0_223, %c0_224, %c0_225], %487 {strides = array<i32>} : memref<1x4x256xf32, #tpu.memory_space<vmem>>, vector<1x4x256xf32>,
    return
  }
  func.func @transform_0(%arg0: i32, %arg1: i32) -> (i32, i32) {
    %c0_i32 = arith.constant 0 : i32
    %c0_i32_0 = arith.constant 0 : i32
    return %c0_i32, %arg1 : i32, i32
  }
  func.func @transform_1(%arg0: i32, %arg1: i32) -> (i32, i32, i32) {
    %c0_i32 = arith.constant 0 : i32
    %c0_i32_0 = arith.constant 0 : i32
    return %arg0, %c0_i32, %arg1 : i32, i32, i32
  }
  func.func @transform_2(%arg0: i32, %arg1: i32) -> (i32, i32, i32, i32) {
    %c0_i32 = arith.constant 0 : i32
    %c0_i32_0 = arith.constant 0 : i32
    %c0_i32_1 = arith.constant 0 : i32
    %c0_i32_2 = arith.constant 0 : i32
    return %arg0, %c0_i32, %c0_i32_0, %c0_i32_1 : i32, i32, i32, i32
  }
  func.func @transform_3(%arg0: i32, %arg1: i32) -> (i32, i32, i32) {
    %c0_i32 = arith.constant 0 : i32
    %c0_i32_0 = arith.constant 0 : i32
    return %arg0, %c0_i32, %arg1 : i32, i32, i32
  }
}

</mosaic_0001>

<llo_original>
// kernel: tpu_custom_call.1
$region0: #{tpu_custom_call.1}
  #allocation0 [shape = 'u32[]', space=smem, size = 0x4, offset = 0x4, fixed_abs, tag = 'smem constant byte address 0x4 - core index']
  #allocation1 [shape = 'u32[144,128]{1,0:T(1,128)}', space=vmem, size = 0x12000, scoped, tag = 'internal scratch']
  %s0 = inlined_call_operand.vmem [shape: f32[256,256], index: 0, kind: input, shape index: {}]
  %s1 = inlined_call_operand.vmem [shape: f32[2,4,256], index: 1, kind: input, shape index: {}]
  %s2 = inlined_call_operand.vmem [shape: f32[2,4,256,1], index: 2, kind: input, shape index: {}]
  %s3 = inlined_call_operand.hbm [shape: f32[2,4,256], index: 3, kind: output, shape index: {}]
  %s4 = sld [smem:[#allocation0]]
  $region45: #{tpu_custom_call.1} parent=0
    _
  %s6 = ssub.s32 1, %s4
  %s7 = scalar_select 0, %s6, %s4
  $region1: #{tpu_custom_call.1} parent=0
    #allocation2 [shape = 'u8[8192]{0}', space=vmem, size = 0x2000, scoped, tag = 'output window, operand 0']
    #allocation3 [shape = 's32[2]{0}', space=sflag, size = 0x8, scoped, tag = 'scoped memory for tpu_custom_call.1']
    %8 = vsyncpa [#allocation3], 0
    %s9 = scalar_lea.sflag [#allocation3], 1
    %10 = vsyncpa %s9, 0
    loop: start=0, step=1, limit=4
    $region2: #{tpu_custom_call.1} parent=1 // loop_pre_header
      _
    $region3: #{tpu_custom_call.1} parent=1 // loop_header
      %s12 = sphi 0, %s16
      %p13 = scmp.ge.s32.totalorder %s12, 4
      %s19 = sphi 0, %s31
      %s20 = sphi 0, %s27
      %s21 = sphi 0, %s19
      %s22 = sphi 0, %s20
      %s23 = sphi 0, %s21
      %s24 = sphi 0, %s22
      %s34 = sphi 0, %s36
      %s37 = sphi 0, %s34
      %s38 = sphi 0, %s37
      %s54 = sphi 0, %s38
      %s62 = sphi 0, %s64
      %s65 = sphi 0, %s62
      %s66 = sphi 0, %s65
      %s82 = sphi 0, %s66
      %s88 = sphi 0, %s90
      %s91 = sphi 0, %s88
      %s92 = sphi 0, %s91
      %s108 = sphi 0, %s92
      %s116 = sphi 0, %s118
      %s119 = sphi 0, %s116
      %s120 = sphi 0, %s119
      %s136 = sphi 0, %s120
    $region4: #{tpu_custom_call.1} parent=1 // loop_header_branch
      %15 = sbr.rel (%p13) target = $region8
    $region5: #{tpu_custom_call.1} parent=1 // loop_body
      %s17 = ssub.s32 %s12, 1
      %s18 = ssub.s32 %s12, 2
      %s25 = sadd.s32 1, %s20
      %p26 = scmp.ge.s32.totalorder %s25, 1
      %s27 = scalar_select %p26, 0, %s25
      %s28 = sadd.s32 1, %s19
      %s29 = scalar_select %p26, %s28, %s19
      %p30 = scmp.ge.s32.totalorder %s29, 2
      %s31 = scalar_select %p30, 0, %s29
      %s32 = ssub.s32 %s20, %s27
      %p33 = scmp.eq.s32.totalorder %s32, 0
      %s35 = sadd.s32 %s34, 1
      %s36 = scalar_select %p33, %s34, %s35
      %p39 = pneg %p33
      %p40 = scmp.eq.s32.totalorder %s12, 1
      %p41 = por %p39, %p40
      %p42 = scmp.ne.s32.totalorder %s34, %s37
      %p43 = scmp.eq.s32.totalorder %s12, 0
      %p44 = por %p42, %p43
      %p45 = scmp.ne.s32.totalorder %s34, %s37
      %p46 = scmp.eq.s32.totalorder %s17, 1
      %p47 = por %p45, %p46
      %p48 = scmp.ne.s32.totalorder %s37, %s38
      %p49 = scmp.eq.s32.totalorder %s17, 0
      %p50 = por %p48, %p49
      %p51 = scmp.ne.s32.totalorder %s37, %s38
      %p52 = scmp.eq.s32.totalorder %s18, 1
      %p53 = por %p51, %p52
      %p55 = scmp.ne.s32.totalorder %s38, %s54
      %p56 = scmp.eq.s32.totalorder %s18, 0
      %p57 = por %p55, %p56
      %s58 = ssub.s32 %s19, %s31
      %s59 = ssub.s32 %s20, %s27
      %s60 = sor.u32 %s58, %s59
      %p61 = scmp.eq.s32.totalorder %s60, 0
      %s63 = sadd.s32 %s62, 1
      %s64 = scalar_select %p61, %s62, %s63
      %p67 = pneg %p61
      %p68 = scmp.eq.s32.totalorder %s12, 1
      %p69 = por %p67, %p68
      %p70 = scmp.ne.s32.totalorder %s62, %s65
      %p71 = scmp.eq.s32.totalorder %s12, 0
      %p72 = por %p70, %p71
      %p73 = scmp.ne.s32.totalorder %s62, %s65
      %p74 = scmp.eq.s32.totalorder %s17, 1
      %p75 = por %p73, %p74
      %p76 = scmp.ne.s32.totalorder %s65, %s66
      %p77 = scmp.eq.s32.totalorder %s17, 0
      %p78 = por %p76, %p77
      %p79 = scmp.ne.s32.totalorder %s65, %s66
      %p80 = scmp.eq.s32.totalorder %s18, 1
      %p81 = por %p79, %p80
      %p83 = scmp.ne.s32.totalorder %s66, %s82
      %p84 = scmp.eq.s32.totalorder %s18, 0
      %p85 = por %p83, %p84
      %s86 = ssub.s32 %s19, %s31
      %p87 = scmp.eq.s32.totalorder %s86, 0
      %s89 = sadd.s32 %s88, 1
      %s90 = scalar_select %p87, %s88, %s89
      %p93 = pneg %p87
      %p94 = scmp.eq.s32.totalorder %s12, 1
      %p95 = por %p93, %p94
      %p96 = scmp.ne.s32.totalorder %s88, %s91
      %p97 = scmp.eq.s32.totalorder %s12, 0
      %p98 = por %p96, %p97
      %p99 = scmp.ne.s32.totalorder %s88, %s91
      %p100 = scmp.eq.s32.totalorder %s17, 1
      %p101 = por %p99, %p100
      %p102 = scmp.ne.s32.totalorder %s91, %s92
      %p103 = scmp.eq.s32.totalorder %s17, 0
      %p104 = por %p102, %p103
      %p105 = scmp.ne.s32.totalorder %s91, %s92
      %p106 = scmp.eq.s32.totalorder %s18, 1
      %p107 = por %p105, %p106
      %p109 = scmp.ne.s32.totalorder %s92, %s108
      %p110 = scmp.eq.s32.totalorder %s18, 0
      %p111 = por %p109, %p110
      %s112 = ssub.s32 %s19, %s31
      %s113 = ssub.s32 %s20, %s27
      %s114 = sor.u32 %s112, %s113
      %p115 = scmp.eq.s32.totalorder %s114, 0
      %s117 = sadd.s32 %s116, 1
      %s118 = scalar_select %p115, %s116, %s117
      %p121 = pneg %p115
      %p122 = scmp.eq.s32.totalorder %s12, 1
      %p123 = por %p121, %p122
      %p124 = scmp.ne.s32.totalorder %s116, %s119
      %p125 = scmp.eq.s32.totalorder %s12, 0
      %p126 = por %p124, %p125
      %p127 = scmp.ne.s32.totalorder %s116, %s119
      %p128 = scmp.eq.s32.totalorder %s17, 1
      %p129 = por %p127, %p128
      %p130 = scmp.ne.s32.totalorder %s119, %s120
      %p131 = scmp.eq.s32.totalorder %s17, 0
      %p132 = por %p130, %p131
      %p133 = scmp.ne.s32.totalorder %s119, %s120
      %p134 = scmp.eq.s32.totalorder %s18, 1
      %p135 = por %p133, %p134
      %p137 = scmp.ne.s32.totalorder %s120, %s136
      %p138 = scmp.eq.s32.totalorder %s18, 0
      %p139 = por %p137, %p138
      %p140 = scmp.le.s32.totalorder 1, %s12
      %p141 = scmp.lt.s32.totalorder %s12, 3
      %p142 = pnand %p140, %p141
      %p143 = pneg %p142
      // Predicated region
      $region9: #{tpu_custom_call.1} parent=5 // pred_check
        _
      $region10: #{tpu_custom_call.1} parent=5 // pred_check_branch
        %145 = sbr.rel (%p142) target = $region12
      $region11: #{tpu_custom_call.1} parent=5 // pred_region
        %s146 = ssub.s32 %s12, 1
        // Predicated region
        $region13: #{tpu_custom_call.1} parent=11 // pred_check
          %p147 = pneg %p50
        $region14: #{tpu_custom_call.1} parent=11 // pred_check_branch
          %149 = sbr.rel (%p147) target = $region16
        $region15: #{tpu_custom_call.1} parent=11 // pred_region
          %s150 = smul.u32 2, %s22
          %p151 = scmp.lt.s32.totalorder %s150, 1
          %s152 = scalar_select %p151, %s150, 1
          %s153 = smul.addr %s152, 8
          %s154 = scalar_lea.vmem %s0, %s153
          %s155 = smul.u32 2, %s22
        $region16: #{tpu_custom_call.1} parent=11 // pred_fallthru
          _
      $region12: #{tpu_custom_call.1} parent=5 // pred_fallthru
        _
      %p156 = scmp.lt.s32.totalorder %s12, 2
      // Predicated region
      $region17: #{tpu_custom_call.1} parent=5 // pred_check
        %p157 = pneg %p156
      $region18: #{tpu_custom_call.1} parent=5 // pred_check_branch
        %159 = sbr.rel (%p157) target = $region20
      $region19: #{tpu_custom_call.1} parent=5 // pred_region
        // Predicated region
        $region21: #{tpu_custom_call.1} parent=19 // pred_check
          %p160 = pneg %p72
        $region22: #{tpu_custom_call.1} parent=19 // pred_check_branch
          %162 = sbr.rel (%p160) target = $region24
        $region23: #{tpu_custom_call.1} parent=19 // pred_region
          %s163 = smul.u32 2, %s20
          %p164 = scmp.lt.s32.totalorder %s19, 1
          %s165 = scalar_select %p164, %s19, 1
          %p166 = scmp.lt.s32.totalorder %s163, 1
          %s167 = scalar_select %p166, %s163, 1
          %s168 = smul.addr %s165, 2
          %s169 = sadd.s32 %s167, %s168
          %s170 = smul.addr %s169, 4
          %s171 = scalar_lea.vmem %s1, %s170
          %s172 = smul.u32 2, %s20
        $region24: #{tpu_custom_call.1} parent=19 // pred_fallthru
          _
        // Predicated region
        $region25: #{tpu_custom_call.1} parent=19 // pred_check
          %p173 = pneg %p98
        $region26: #{tpu_custom_call.1} parent=19 // pred_check_branch
          %175 = sbr.rel (%p173) target = $region28
        $region27: #{tpu_custom_call.1} parent=19 // pred_region
          %p176 = scmp.lt.s32.totalorder %s19, 1
          %s177 = scalar_select %p176, %s19, 1
          %s178 = smul.addr %s177, 128
          %s179 = smul.addr %s178, 8
          %s180 = scalar_lea.vmem %s2, %s179
        $region28: #{tpu_custom_call.1} parent=19 // pred_fallthru
          _
      $region20: #{tpu_custom_call.1} parent=5 // pred_fallthru
        _
      %p181 = scmp.le.s32.totalorder 1, %s12
      %p182 = scmp.lt.s32.totalorder %s12, 3
      %p183 = pnand %p181, %p182
      %p184 = pneg %p183
      // Predicated region
      $region29: #{tpu_custom_call.1} parent=5 // pred_check
        _
      $region30: #{tpu_custom_call.1} parent=5 // pred_check_branch
        %186 = sbr.rel (%p183) target = $region32
      $region31: #{tpu_custom_call.1} parent=5 // pred_region
        %s187 = ssub.s32 %s12, 1
        %s188 = smul.u32 2, %s22
        %p189 = scmp.lt.s32.totalorder %s188, 1
        %s190 = scalar_select %p189, %s188, 1
        %s191 = smul.addr %s190, 8
        %s192 = scalar_lea.vmem %s0, %s191
        %p193 = pneg %p50
        %p194 = pneg %p47
        %s195 = smul.u32 2, %s22
        %p196 = scmp.lt.s32.totalorder %s21, 1
        %s197 = scalar_select %p196, %s21, 1
        %p198 = scmp.lt.s32.totalorder %s195, 1
        %s199 = scalar_select %p198, %s195, 1
        %s200 = smul.addr %s197, 2
        %s201 = sadd.s32 %s199, %s200
        %s202 = smul.addr %s201, 4
        %s203 = scalar_lea.vmem %s1, %s202
        %p204 = pneg %p78
        %p205 = pneg %p75
        %p206 = scmp.lt.s32.totalorder %s21, 1
        %s207 = scalar_select %p206, %s21, 1
        %s208 = smul.addr %s207, 128
        %s209 = smul.addr %s208, 8
        %s210 = scalar_lea.vmem %s2, %s209
        %p211 = pneg %p104
        %p212 = pneg %p101
        %p213 = pneg %p132
        %p214 = pneg %p129
        %s215 = sand.u32 %s119, 1
        %s216 = scalar_lea.sflag [#allocation3], %s215
        %s217 = sand.u32 %s119, 1
        %s218 = smul.addr %s217, 8
        %s219 = scalar_lea.vmem [#allocation2], %s218
        %s220 = smul.u32 2, %s22
        %p221 = scmp.lt.s32.totalorder %s220, 1
        %s222 = scalar_select %p221, %s220, 1
        %s223 = smul.addr %s222, 8
        %s224 = scalar_lea.vmem %s0, %s223
        %s225 = smul.u32 2, %s22
        %s226 = smul.u32 2, %s22
        %p227 = scmp.lt.s32.totalorder %s21, 1
        %s228 = scalar_select %p227, %s21, 1
        %p229 = scmp.lt.s32.totalorder %s226, 1
        %s230 = scalar_select %p229, %s226, 1
        %s231 = smul.addr %s228, 2
        %s232 = sadd.s32 %s230, %s231
        %s233 = smul.addr %s232, 4
        %s234 = scalar_lea.vmem %s1, %s233
        %s235 = smul.u32 2, %s22
        %p236 = scmp.lt.s32.totalorder %s21, 1
        %s237 = scalar_select %p236, %s21, 1
        %s238 = smul.addr %s237, 128
        %s239 = smul.addr %s238, 8
        %s240 = scalar_lea.vmem %s2, %s239
        %s241 = smul.u32 2, %s22
        %v242 = vld [vmem:[%s234] ss:$4 sm:$0x3]
        %v243 = vld [vmem:[%s240] sm:$0xff]
        %v244 = vld [vmem:[%s240 + $0x8] sm:$0xff]
        %v245 = vld [vmem:[%s240 + $0x10] sm:$0xff]
        %v246 = vld [vmem:[%s240 + $0x18] sm:$0xff]
        %v247 = vld [vmem:[%s240 + $0x20] sm:$0xff]
        %v248 = vld [vmem:[%s240 + $0x28] sm:$0xff]
        %v249 = vld [vmem:[%s240 + $0x30] sm:$0xff]
        %v250 = vld [vmem:[%s240 + $0x38] sm:$0xff]
        %v251 = vld [vmem:[%s240 + $0x40] sm:$0xff]
        %v252 = vld [vmem:[%s240 + $0x48] sm:$0xff]
        %v253 = vld [vmem:[%s240 + $0x50] sm:$0xff]
        %v254 = vld [vmem:[%s240 + $0x58] sm:$0xff]
        %v255 = vld [vmem:[%s240 + $0x60] sm:$0xff]
        %v256 = vld [vmem:[%s240 + $0x68] sm:$0xff]
        %v257 = vld [vmem:[%s240 + $0x70] sm:$0xff]
        %v258 = vld [vmem:[%s240 + $0x78] sm:$0xff]
        %v259 = vld [vmem:[%s240 + $0x80] sm:$0xff]
        %v260 = vld [vmem:[%s240 + $0x88] sm:$0xff]
        %v261 = vld [vmem:[%s240 + $0x90] sm:$0xff]
        %v262 = vld [vmem:[%s240 + $0x98] sm:$0xff]
        %v263 = vld [vmem:[%s240 + $0xa0] sm:$0xff]
        %v264 = vld [vmem:[%s240 + $0xa8] sm:$0xff]
        %v265 = vld [vmem:[%s240 + $0xb0] sm:$0xff]
        %v266 = vld [vmem:[%s240 + $0xb8] sm:$0xff]
        %v267 = vld [vmem:[%s240 + $0xc0] sm:$0xff]
        %v268 = vld [vmem:[%s240 + $0xc8] sm:$0xff]
        %v269 = vld [vmem:[%s240 + $0xd0] sm:$0xff]
        %v270 = vld [vmem:[%s240 + $0xd8] sm:$0xff]
        %v271 = vld [vmem:[%s240 + $0xe0] sm:$0xff]
        %v272 = vld [vmem:[%s240 + $0xe8] sm:$0xff]
        %v273 = vld [vmem:[%s240 + $0xf0] sm:$0xff]
        %v274 = vld [vmem:[%s240 + $0xf8] sm:$0xff]
        %vm275 = vcmp.ne.f32.partialorder %v242, 0.0
        %vm276 = vcmp.ne.f32.partialorder %v243, 0.0
        %vm277 = vcmp.ne.f32.partialorder %v244, 0.0
        %vm278 = vcmp.ne.f32.partialorder %v245, 0.0
        %vm279 = vcmp.ne.f32.partialorder %v246, 0.0
        %vm280 = vcmp.ne.f32.partialorder %v247, 0.0
        %vm281 = vcmp.ne.f32.partialorder %v248, 0.0
        %vm282 = vcmp.ne.f32.partialorder %v249, 0.0
        %vm283 = vcmp.ne.f32.partialorder %v250, 0.0
        %vm284 = vcmp.ne.f32.partialorder %v251, 0.0
        %vm285 = vcmp.ne.f32.partialorder %v252, 0.0
        %vm286 = vcmp.ne.f32.partialorder %v253, 0.0
        %vm287 = vcmp.ne.f32.partialorder %v254, 0.0
        %vm288 = vcmp.ne.f32.partialorder %v255, 0.0
        %vm289 = vcmp.ne.f32.partialorder %v256, 0.0
        %vm290 = vcmp.ne.f32.partialorder %v257, 0.0
        %vm291 = vcmp.ne.f32.partialorder %v258, 0.0
        %vm292 = vcmp.ne.f32.partialorder %v259, 0.0
        %vm293 = vcmp.ne.f32.partialorder %v260, 0.0
        %vm294 = vcmp.ne.f32.partialorder %v261, 0.0
        %vm295 = vcmp.ne.f32.partialorder %v262, 0.0
        %vm296 = vcmp.ne.f32.partialorder %v263, 0.0
        %vm297 = vcmp.ne.f32.partialorder %v264, 0.0
        %vm298 = vcmp.ne.f32.partialorder %v265, 0.0
        %vm299 = vcmp.ne.f32.partialorder %v266, 0.0
        %vm300 = vcmp.ne.f32.partialorder %v267, 0.0
        %vm301 = vcmp.ne.f32.partialorder %v268, 0.0
        %vm302 = vcmp.ne.f32.partialorder %v269, 0.0
        %vm303 = vcmp.ne.f32.partialorder %v270, 0.0
        %vm304 = vcmp.ne.f32.partialorder %v271, 0.0
        %vm305 = vcmp.ne.f32.partialorder %v272, 0.0
        %vm306 = vcmp.ne.f32.partialorder %v273, 0.0
        %vm307 = vcmp.ne.f32.partialorder %v274, 0.0
        %v308 = vld [vmem:[%s224] sm:$0xff]
        %v309 = vld [vmem:[%s224 + $0x8] sm:$0xff]
        %v310 = vld [vmem:[%s224 + $0x10] sm:$0xff]
        %v311 = vld [vmem:[%s224 + $0x18] sm:$0xff]
        %v312 = vld [vmem:[%s224 + $0x20] sm:$0xff]
        %v313 = vld [vmem:[%s224 + $0x28] sm:$0xff]
        %v314 = vld [vmem:[%s224 + $0x30] sm:$0xff]
        %v315 = vld [vmem:[%s224 + $0x38] sm:$0xff]
        %v316 = vld [vmem:[%s224 + $0x40] sm:$0xff]
        %v317 = vld [vmem:[%s224 + $0x48] sm:$0xff]
        %v318 = vld [vmem:[%s224 + $0x50] sm:$0xff]
        %v319 = vld [vmem:[%s224 + $0x58] sm:$0xff]
        %v320 = vld [vmem:[%s224 + $0x60] sm:$0xff]
        %v321 = vld [vmem:[%s224 + $0x68] sm:$0xff]
        %v322 = vld [vmem:[%s224 + $0x70] sm:$0xff]
        %v323 = vld [vmem:[%s224 + $0x78] sm:$0xff]
        %v324 = vld [vmem:[%s224 + $0x80] sm:$0xff]
        %v325 = vld [vmem:[%s224 + $0x88] sm:$0xff]
        %v326 = vld [vmem:[%s224 + $0x90] sm:$0xff]
        %v327 = vld [vmem:[%s224 + $0x98] sm:$0xff]
        %v328 = vld [vmem:[%s224 + $0xa0] sm:$0xff]
        %v329 = vld [vmem:[%s224 + $0xa8] sm:$0xff]
        %v330 = vld [vmem:[%s224 + $0xb0] sm:$0xff]
        %v331 = vld [vmem:[%s224 + $0xb8] sm:$0xff]
        %v332 = vld [vmem:[%s224 + $0xc0] sm:$0xff]
        %v333 = vld [vmem:[%s224 + $0xc8] sm:$0xff]
        %v334 = vld [vmem:[%s224 + $0xd0] sm:$0xff]
        %v335 = vld [vmem:[%s224 + $0xd8] sm:$0xff]
        %v336 = vld [vmem:[%s224 + $0xe0] sm:$0xff]
        %v337 = vld [vmem:[%s224 + $0xe8] sm:$0xff]
        %v338 = vld [vmem:[%s224 + $0xf0] sm:$0xff]
        %v339 = vld [vmem:[%s224 + $0xf8] sm:$0xff]
        %v340 = vld [vmem:[%s224 + $0x100] sm:$0xff]
        %v341 = vld [vmem:[%s224 + $0x108] sm:$0xff]
        %v342 = vld [vmem:[%s224 + $0x110] sm:$0xff]
        %v343 = vld [vmem:[%s224 + $0x118] sm:$0xff]
        %v344 = vld [vmem:[%s224 + $0x120] sm:$0xff]
        %v345 = vld [vmem:[%s224 + $0x128] sm:$0xff]
        %v346 = vld [vmem:[%s224 + $0x130] sm:$0xff]
        %v347 = vld [vmem:[%s224 + $0x138] sm:$0xff]
        %v348 = vld [vmem:[%s224 + $0x140] sm:$0xff]
        %v349 = vld [vmem:[%s224 + $0x148] sm:$0xff]
        %v350 = vld [vmem:[%s224 + $0x150] sm:$0xff]
        %v351 = vld [vmem:[%s224 + $0x158] sm:$0xff]
        %v352 = vld [vmem:[%s224 + $0x160] sm:$0xff]
        %v353 = vld [vmem:[%s224 + $0x168] sm:$0xff]
        %v354 = vld [vmem:[%s224 + $0x170] sm:$0xff]
        %v355 = vld [vmem:[%s224 + $0x178] sm:$0xff]
        %v356 = vld [vmem:[%s224 + $0x180] sm:$0xff]
        %v357 = vld [vmem:[%s224 + $0x188] sm:$0xff]
        %v358 = vld [vmem:[%s224 + $0x190] sm:$0xff]
        %v359 = vld [vmem:[%s224 + $0x198] sm:$0xff]
        %v360 = vld [vmem:[%s224 + $0x1a0] sm:$0xff]
        %v361 = vld [vmem:[%s224 + $0x1a8] sm:$0xff]
        %v362 = vld [vmem:[%s224 + $0x1b0] sm:$0xff]
        %v363 = vld [vmem:[%s224 + $0x1b8] sm:$0xff]
        %v364 = vld [vmem:[%s224 + $0x1c0] sm:$0xff]
        %v365 = vld [vmem:[%s224 + $0x1c8] sm:$0xff]
        %v366 = vld [vmem:[%s224 + $0x1d0] sm:$0xff]
        %v367 = vld [vmem:[%s224 + $0x1d8] sm:$0xff]
        %v368 = vld [vmem:[%s224 + $0x1e0] sm:$0xff]
        %v369 = vld [vmem:[%s224 + $0x1e8] sm:$0xff]
        %v370 = vld [vmem:[%s224 + $0x1f0] sm:$0xff]
        %v371 = vld [vmem:[%s224 + $0x1f8] sm:$0xff]
        %vm372 = vcmp.gt.f32.partialorder %v308, -1.0
        %vm373 = vcmp.gt.f32.partialorder %v309, -1.0
        %vm374 = vcmp.gt.f32.partialorder %v310, -1.0
        %vm375 = vcmp.gt.f32.partialorder %v311, -1.0
        %vm376 = vcmp.gt.f32.partialorder %v312, -1.0
        %vm377 = vcmp.gt.f32.partialorder %v313, -1.0
        %vm378 = vcmp.gt.f32.partialorder %v314, -1.0
        %vm379 = vcmp.gt.f32.partialorder %v315, -1.0
        %vm380 = vcmp.gt.f32.partialorder %v316, -1.0
        %vm381 = vcmp.gt.f32.partialorder %v317, -1.0
        %vm382 = vcmp.gt.f32.partialorder %v318, -1.0
        %vm383 = vcmp.gt.f32.partialorder %v319, -1.0
        %vm384 = vcmp.gt.f32.partialorder %v320, -1.0
        %vm385 = vcmp.gt.f32.partialorder %v321, -1.0
        %vm386 = vcmp.gt.f32.partialorder %v322, -1.0
        %vm387 = vcmp.gt.f32.partialorder %v323, -1.0
        %vm388 = vcmp.gt.f32.partialorder %v324, -1.0
        %vm389 = vcmp.gt.f32.partialorder %v325, -1.0
        %vm390 = vcmp.gt.f32.partialorder %v326, -1.0
        %vm391 = vcmp.gt.f32.partialorder %v327, -1.0
        %vm392 = vcmp.gt.f32.partialorder %v328, -1.0
        %vm393 = vcmp.gt.f32.partialorder %v329, -1.0
        %vm394 = vcmp.gt.f32.partialorder %v330, -1.0
        %vm395 = vcmp.gt.f32.partialorder %v331, -1.0
        %vm396 = vcmp.gt.f32.partialorder %v332, -1.0
        %vm397 = vcmp.gt.f32.partialorder %v333, -1.0
        %vm398 = vcmp.gt.f32.partialorder %v334, -1.0
        %vm399 = vcmp.gt.f32.partialorder %v335, -1.0
        %vm400 = vcmp.gt.f32.partialorder %v336, -1.0
        %vm401 = vcmp.gt.f32.partialorder %v337, -1.0
        %vm402 = vcmp.gt.f32.partialorder %v338, -1.0
        %vm403 = vcmp.gt.f32.partialorder %v339, -1.0
        %vm404 = vcmp.gt.f32.partialorder %v340, -1.0
        %vm405 = vcmp.gt.f32.partialorder %v341, -1.0
        %vm406 = vcmp.gt.f32.partialorder %v342, -1.0
        %vm407 = vcmp.gt.f32.partialorder %v343, -1.0
        %vm408 = vcmp.gt.f32.partialorder %v344, -1.0
        %vm409 = vcmp.gt.f32.partialorder %v345, -1.0
        %vm410 = vcmp.gt.f32.partialorder %v346, -1.0
        %vm411 = vcmp.gt.f32.partialorder %v347, -1.0
        %vm412 = vcmp.gt.f32.partialorder %v348, -1.0
        %vm413 = vcmp.gt.f32.partialorder %v349, -1.0
        %vm414 = vcmp.gt.f32.partialorder %v350, -1.0
        %vm415 = vcmp.gt.f32.partialorder %v351, -1.0
        %vm416 = vcmp.gt.f32.partialorder %v352, -1.0
        %vm417 = vcmp.gt.f32.partialorder %v353, -1.0
        %vm418 = vcmp.gt.f32.partialorder %v354, -1.0
        %vm419 = vcmp.gt.f32.partialorder %v355, -1.0
        %vm420 = vcmp.gt.f32.partialorder %v356, -1.0
        %vm421 = vcmp.gt.f32.partialorder %v357, -1.0
        %vm422 = vcmp.gt.f32.partialorder %v358, -1.0
        %vm423 = vcmp.gt.f32.partialorder %v359, -1.0
        %vm424 = vcmp.gt.f32.partialorder %v360, -1.0
        %vm425 = vcmp.gt.f32.partialorder %v361, -1.0
        %vm426 = vcmp.gt.f32.partialorder %v362, -1.0
        %vm427 = vcmp.gt.f32.partialorder %v363, -1.0
        %vm428 = vcmp.gt.f32.partialorder %v364, -1.0
        %vm429 = vcmp.gt.f32.partialorder %v365, -1.0
        %vm430 = vcmp.gt.f32.partialorder %v366, -1.0
        %vm431 = vcmp.gt.f32.partialorder %v367, -1.0
        %vm432 = vcmp.gt.f32.partialorder %v368, -1.0
        %vm433 = vcmp.gt.f32.partialorder %v369, -1.0
        %vm434 = vcmp.gt.f32.partialorder %v370, -1.0
        %vm435 = vcmp.gt.f32.partialorder %v371, -1.0
        %v436 = vsel %vm276, 1, 0
        %v437 = vsel %vm277, 1, 0
        %v438 = vsel %vm278, 1, 0
        %v439 = vsel %vm279, 1, 0
        %v440 = vsel %vm280, 1, 0
        %v441 = vsel %vm281, 1, 0
        %v442 = vsel %vm282, 1, 0
        %v443 = vsel %vm283, 1, 0
        %v444 = vsel %vm284, 1, 0
        %v445 = vsel %vm285, 1, 0
        %v446 = vsel %vm286, 1, 0
        %v447 = vsel %vm287, 1, 0
        %v448 = vsel %vm288, 1, 0
        %v449 = vsel %vm289, 1, 0
        %v450 = vsel %vm290, 1, 0
        %v451 = vsel %vm291, 1, 0
        %v452 = vsel %vm292, 1, 0
        %v453 = vsel %vm293, 1, 0
        %v454 = vsel %vm294, 1, 0
        %v455 = vsel %vm295, 1, 0
        %v456 = vsel %vm296, 1, 0
        %v457 = vsel %vm297, 1, 0
        %v458 = vsel %vm298, 1, 0
        %v459 = vsel %vm299, 1, 0
        %v460 = vsel %vm300, 1, 0
        %v461 = vsel %vm301, 1, 0
        %v462 = vsel %vm302, 1, 0
        %v463 = vsel %vm303, 1, 0
        %v464 = vsel %vm304, 1, 0
        %v465 = vsel %vm305, 1, 0
        %v466 = vsel %vm306, 1, 0
        %v467 = vsel %vm307, 1, 0
        %468 = vset.pattern.permute.xlu0 0
        %469 = vperm.xlu0 %468, %v436
        %v470 = vpop.permute.xlu0 %469
        %471 = vset.pattern.permute.xlu0 0
        %472 = vperm.xlu0 %471, %v437
        %v473 = vpop.permute.xlu0 %472
        %474 = vset.pattern.permute.xlu0 0
        %475 = vperm.xlu0 %474, %v438
        %v476 = vpop.permute.xlu0 %475
        %477 = vset.pattern.permute.xlu0 0
        %478 = vperm.xlu0 %477, %v439
        %v479 = vpop.permute.xlu0 %478
        %480 = vset.pattern.permute.xlu0 0
        %481 = vperm.xlu0 %480, %v440
        %v482 = vpop.permute.xlu0 %481
        %483 = vset.pattern.permute.xlu0 0
        %484 = vperm.xlu0 %483, %v441
        %v485 = vpop.permute.xlu0 %484
        %486 = vset.pattern.permute.xlu0 0
        %487 = vperm.xlu0 %486, %v442
        %v488 = vpop.permute.xlu0 %487
        %489 = vset.pattern.permute.xlu0 0
        %490 = vperm.xlu0 %489, %v443
        %v491 = vpop.permute.xlu0 %490
        %492 = vset.pattern.permute.xlu0 0
        %493 = vperm.xlu0 %492, %v444
        %v494 = vpop.permute.xlu0 %493
        %495 = vset.pattern.permute.xlu0 0
        %496 = vperm.xlu0 %495, %v445
        %v497 = vpop.permute.xlu0 %496
        %498 = vset.pattern.permute.xlu0 0
        %499 = vperm.xlu0 %498, %v446
        %v500 = vpop.permute.xlu0 %499
        %501 = vset.pattern.permute.xlu0 0
        %502 = vperm.xlu0 %501, %v447
        %v503 = vpop.permute.xlu0 %502
        %504 = vset.pattern.permute.xlu0 0
        %505 = vperm.xlu0 %504, %v448
        %v506 = vpop.permute.xlu0 %505
        %507 = vset.pattern.permute.xlu0 0
        %508 = vperm.xlu0 %507, %v449
        %v509 = vpop.permute.xlu0 %508
        %510 = vset.pattern.permute.xlu0 0
        %511 = vperm.xlu0 %510, %v450
        %v512 = vpop.permute.xlu0 %511
        %513 = vset.pattern.permute.xlu0 0
        %514 = vperm.xlu0 %513, %v451
        %v515 = vpop.permute.xlu0 %514
        %516 = vset.pattern.permute.xlu0 0
        %517 = vperm.xlu0 %516, %v452
        %v518 = vpop.permute.xlu0 %517
        %519 = vset.pattern.permute.xlu0 0
        %520 = vperm.xlu0 %519, %v453
        %v521 = vpop.permute.xlu0 %520
        %522 = vset.pattern.permute.xlu0 0
        %523 = vperm.xlu0 %522, %v454
        %v524 = vpop.permute.xlu0 %523
        %525 = vset.pattern.permute.xlu0 0
        %526 = vperm.xlu0 %525, %v455
        %v527 = vpop.permute.xlu0 %526
        %528 = vset.pattern.permute.xlu0 0
        %529 = vperm.xlu0 %528, %v456
        %v530 = vpop.permute.xlu0 %529
        %531 = vset.pattern.permute.xlu0 0
        %532 = vperm.xlu0 %531, %v457
        %v533 = vpop.permute.xlu0 %532
        %534 = vset.pattern.permute.xlu0 0
        %535 = vperm.xlu0 %534, %v458
        %v536 = vpop.permute.xlu0 %535
        %537 = vset.pattern.permute.xlu0 0
        %538 = vperm.xlu0 %537, %v459
        %v539 = vpop.permute.xlu0 %538
        %540 = vset.pattern.permute.xlu0 0
        %541 = vperm.xlu0 %540, %v460
        %v542 = vpop.permute.xlu0 %541
        %543 = vset.pattern.permute.xlu0 0
        %544 = vperm.xlu0 %543, %v461
        %v545 = vpop.permute.xlu0 %544
        %546 = vset.pattern.permute.xlu0 0
        %547 = vperm.xlu0 %546, %v462
        %v548 = vpop.permute.xlu0 %547
        %549 = vset.pattern.permute.xlu0 0
        %550 = vperm.xlu0 %549, %v463
        %v551 = vpop.permute.xlu0 %550
        %552 = vset.pattern.permute.xlu0 0
        %553 = vperm.xlu0 %552, %v464
        %v554 = vpop.permute.xlu0 %553
        %555 = vset.pattern.permute.xlu0 0
        %556 = vperm.xlu0 %555, %v465
        %v557 = vpop.permute.xlu0 %556
        %558 = vset.pattern.permute.xlu0 0
        %559 = vperm.xlu0 %558, %v466
        %v560 = vpop.permute.xlu0 %559
        %561 = vset.pattern.permute.xlu0 0
        %562 = vperm.xlu0 %561, %v467
        %v563 = vpop.permute.xlu0 %562
        %vm564 = vcmp.eq.s32.totalorder %v470, 1
        %vm565 = vcmp.eq.s32.totalorder %v473, 1
        %vm566 = vcmp.eq.s32.totalorder %v476, 1
        %vm567 = vcmp.eq.s32.totalorder %v479, 1
        %vm568 = vcmp.eq.s32.totalorder %v482, 1
        %vm569 = vcmp.eq.s32.totalorder %v485, 1
        %vm570 = vcmp.eq.s32.totalorder %v488, 1
        %vm571 = vcmp.eq.s32.totalorder %v491, 1
        %vm572 = vcmp.eq.s32.totalorder %v494, 1
        %vm573 = vcmp.eq.s32.totalorder %v497, 1
        %vm574 = vcmp.eq.s32.totalorder %v500, 1
        %vm575 = vcmp.eq.s32.totalorder %v503, 1
        %vm576 = vcmp.eq.s32.totalorder %v506, 1
        %vm577 = vcmp.eq.s32.totalorder %v509, 1
        %vm578 = vcmp.eq.s32.totalorder %v512, 1
        %vm579 = vcmp.eq.s32.totalorder %v515, 1
        %vm580 = vcmp.eq.s32.totalorder %v518, 1
        %vm581 = vcmp.eq.s32.totalorder %v521, 1
        %vm582 = vcmp.eq.s32.totalorder %v524, 1
        %vm583 = vcmp.eq.s32.totalorder %v527, 1
        %vm584 = vcmp.eq.s32.totalorder %v530, 1
        %vm585 = vcmp.eq.s32.totalorder %v533, 1
        %vm586 = vcmp.eq.s32.totalorder %v536, 1
        %vm587 = vcmp.eq.s32.totalorder %v539, 1
        %vm588 = vcmp.eq.s32.totalorder %v542, 1
        %vm589 = vcmp.eq.s32.totalorder %v545, 1
        %vm590 = vcmp.eq.s32.totalorder %v548, 1
        %vm591 = vcmp.eq.s32.totalorder %v551, 1
        %vm592 = vcmp.eq.s32.totalorder %v554, 1
        %vm593 = vcmp.eq.s32.totalorder %v557, 1
        %vm594 = vcmp.eq.s32.totalorder %v560, 1
        %vm595 = vcmp.eq.s32.totalorder %v563, 1
        %vm596 = vmand %vm564, %vm372
        %vm597 = vmand %vm564, %vm373
        %vm598 = vmand %vm565, %vm374
        %vm599 = vmand %vm565, %vm375
        %vm600 = vmand %vm566, %vm376
        %vm601 = vmand %vm566, %vm377
        %vm602 = vmand %vm567, %vm378
        %vm603 = vmand %vm567, %vm379
        %vm604 = vmand %vm568, %vm380
        %vm605 = vmand %vm568, %vm381
        %vm606 = vmand %vm569, %vm382
        %vm607 = vmand %vm569, %vm383
        %vm608 = vmand %vm570, %vm384
        %vm609 = vmand %vm570, %vm385
        %vm610 = vmand %vm571, %vm386
        %vm611 = vmand %vm571, %vm387
        %vm612 = vmand %vm572, %vm388
        %vm613 = vmand %vm572, %vm389
        %vm614 = vmand %vm573, %vm390
        %vm615 = vmand %vm573, %vm391
        %vm616 = vmand %vm574, %vm392
        %vm617 = vmand %vm574, %vm393
        %vm618 = vmand %vm575, %vm394
        %vm619 = vmand %vm575, %vm395
        %vm620 = vmand %vm576, %vm396
        %vm621 = vmand %vm576, %vm397
        %vm622 = vmand %vm577, %vm398
        %vm623 = vmand %vm577, %vm399
        %vm624 = vmand %vm578, %vm400
        %vm625 = vmand %vm578, %vm401
        %vm626 = vmand %vm579, %vm402
        %vm627 = vmand %vm579, %vm403
        %vm628 = vmand %vm580, %vm404
        %vm629 = vmand %vm580, %vm405
        %vm630 = vmand %vm581, %vm406
        %vm631 = vmand %vm581, %vm407
        %vm632 = vmand %vm582, %vm408
        %vm633 = vmand %vm582, %vm409
        %vm634 = vmand %vm583, %vm410
        %vm635 = vmand %vm583, %vm411
        %vm636 = vmand %vm584, %vm412
        %vm637 = vmand %vm584, %vm413
        %vm638 = vmand %vm585, %vm414
        %vm639 = vmand %vm585, %vm415
        %vm640 = vmand %vm586, %vm416
        %vm641 = vmand %vm586, %vm417
        %vm642 = vmand %vm587, %vm418
        %vm643 = vmand %vm587, %vm419
        %vm644 = vmand %vm588, %vm420
        %vm645 = vmand %vm588, %vm421
        %vm646 = vmand %vm589, %vm422
        %vm647 = vmand %vm589, %vm423
        %vm648 = vmand %vm590, %vm424
        %vm649 = vmand %vm590, %vm425
        %vm650 = vmand %vm591, %vm426
        %vm651 = vmand %vm591, %vm427
        %vm652 = vmand %vm592, %vm428
        %vm653 = vmand %vm592, %vm429
        %vm654 = vmand %vm593, %vm430
        %vm655 = vmand %vm593, %vm431
        %vm656 = vmand %vm594, %vm432
        %vm657 = vmand %vm594, %vm433
        %vm658 = vmand %vm595, %vm434
        %vm659 = vmand %vm595, %vm435
        %v660 = vsel %vm596, %v308, 1e+30
        %v661 = vsel %vm597, %v309, 1e+30
        %v662 = vsel %vm598, %v310, 1e+30
        %v663 = vsel %vm599, %v311, 1e+30
        %v664 = vsel %vm600, %v312, 1e+30
        %v665 = vsel %vm601, %v313, 1e+30
        %v666 = vsel %vm602, %v314, 1e+30
        %v667 = vsel %vm603, %v315, 1e+30
        %v668 = vsel %vm604, %v316, 1e+30
        %v669 = vsel %vm605, %v317, 1e+30
        %v670 = vsel %vm606, %v318, 1e+30
        %v671 = vsel %vm607, %v319, 1e+30
        %v672 = vsel %vm608, %v320, 1e+30
        %v673 = vsel %vm609, %v321, 1e+30
        %v674 = vsel %vm610, %v322, 1e+30
        %v675 = vsel %vm611, %v323, 1e+30
        %v676 = vsel %vm612, %v324, 1e+30
        %v677 = vsel %vm613, %v325, 1e+30
        %v678 = vsel %vm614, %v326, 1e+30
        %v679 = vsel %vm615, %v327, 1e+30
        %v680 = vsel %vm616, %v328, 1e+30
        %v681 = vsel %vm617, %v329, 1e+30
        %v682 = vsel %vm618, %v330, 1e+30
        %v683 = vsel %vm619, %v331, 1e+30
        %v684 = vsel %vm620, %v332, 1e+30
        %v685 = vsel %vm621, %v333, 1e+30
        %v686 = vsel %vm622, %v334, 1e+30
        %v687 = vsel %vm623, %v335, 1e+30
        %v688 = vsel %vm624, %v336, 1e+30
        %v689 = vsel %vm625, %v337, 1e+30
        %v690 = vsel %vm626, %v338, 1e+30
        %v691 = vsel %vm627, %v339, 1e+30
        %v692 = vsel %vm628, %v340, 1e+30
        %v693 = vsel %vm629, %v341, 1e+30
        %v694 = vsel %vm630, %v342, 1e+30
        %v695 = vsel %vm631, %v343, 1e+30
        %v696 = vsel %vm632, %v344, 1e+30
        %v697 = vsel %vm633, %v345, 1e+30
        %v698 = vsel %vm634, %v346, 1e+30
        %v699 = vsel %vm635, %v347, 1e+30
        %v700 = vsel %vm636, %v348, 1e+30
        %v701 = vsel %vm637, %v349, 1e+30
        %v702 = vsel %vm638, %v350, 1e+30
        %v703 = vsel %vm639, %v351, 1e+30
        %v704 = vsel %vm640, %v352, 1e+30
        %v705 = vsel %vm641, %v353, 1e+30
        %v706 = vsel %vm642, %v354, 1e+30
        %v707 = vsel %vm643, %v355, 1e+30
        %v708 = vsel %vm644, %v356, 1e+30
        %v709 = vsel %vm645, %v357, 1e+30
        %v710 = vsel %vm646, %v358, 1e+30
        %v711 = vsel %vm647, %v359, 1e+30
        %v712 = vsel %vm648, %v360, 1e+30
        %v713 = vsel %vm649, %v361, 1e+30
        %v714 = vsel %vm650, %v362, 1e+30
        %v715 = vsel %vm651, %v363, 1e+30
        %v716 = vsel %vm652, %v364, 1e+30
        %v717 = vsel %vm653, %v365, 1e+30
        %v718 = vsel %vm654, %v366, 1e+30
        %v719 = vsel %vm655, %v367, 1e+30
        %v720 = vsel %vm656, %v368, 1e+30
        %v721 = vsel %vm657, %v369, 1e+30
        %v722 = vsel %vm658, %v370, 1e+30
        %v723 = vsel %vm659, %v371, 1e+30
        %v724 = vmin.f32 %v660, %v664
        %v725 = vmin.f32 %v662, %v666
        %v726 = vmin.f32 %v724, %v668
        %v727 = vmin.f32 %v725, %v670
        %v728 = vmin.f32 %v726, %v672
        %v729 = vmin.f32 %v727, %v674
        %v730 = vmin.f32 %v728, %v676
        %v731 = vmin.f32 %v729, %v678
        %v732 = vmin.f32 %v730, %v680
        %v733 = vmin.f32 %v731, %v682
        %v734 = vmin.f32 %v732, %v684
        %v735 = vmin.f32 %v733, %v686
        %v736 = vmin.f32 %v734, %v688
        %v737 = vmin.f32 %v735, %v690
        %v738 = vmin.f32 %v736, %v692
        %v739 = vmin.f32 %v737, %v694
        %v740 = vmin.f32 %v738, %v696
        %v741 = vmin.f32 %v739, %v698
        %v742 = vmin.f32 %v740, %v700
        %v743 = vmin.f32 %v741, %v702
        %v744 = vmin.f32 %v742, %v704
        %v745 = vmin.f32 %v743, %v706
        %v746 = vmin.f32 %v744, %v708
        %v747 = vmin.f32 %v745, %v710
        %v748 = vmin.f32 %v746, %v712
        %v749 = vmin.f32 %v747, %v714
        %v750 = vmin.f32 %v748, %v716
        %v751 = vmin.f32 %v749, %v718
        %v752 = vmin.f32 %v750, %v720
        %v753 = vmin.f32 %v751, %v722
        %v754 = vmin.f32 %v752, %v753
        %v755 = vrot.slane %v754, 4
        %v756 = vmin.f32 %v754, %v755
        %v757 = vrot.slane %v756, 2
        %v758 = vmin.f32 %v756, %v757
        %v759 = vrot.slane %v758, 1
        %v760 = vmin.f32 %v758, %v759
        %v761 = vmin.f32 %v661, %v665
        %v762 = vmin.f32 %v663, %v667
        %v763 = vmin.f32 %v761, %v669
        %v764 = vmin.f32 %v762, %v671
        %v765 = vmin.f32 %v763, %v673
        %v766 = vmin.f32 %v764, %v675
        %v767 = vmin.f32 %v765, %v677
        %v768 = vmin.f32 %v766, %v679
        %v769 = vmin.f32 %v767, %v681
        %v770 = vmin.f32 %v768, %v683
        %v771 = vmin.f32 %v769, %v685
        %v772 = vmin.f32 %v770, %v687
        %v773 = vmin.f32 %v771, %v689
        %v774 = vmin.f32 %v772, %v691
        %v775 = vmin.f32 %v773, %v693
        %v776 = vmin.f32 %v774, %v695
        %v777 = vmin.f32 %v775, %v697
        %v778 = vmin.f32 %v776, %v699
        %v779 = vmin.f32 %v777, %v701
        %v780 = vmin.f32 %v778, %v703
        %v781 = vmin.f32 %v779, %v705
        %v782 = vmin.f32 %v780, %v707
        %v783 = vmin.f32 %v781, %v709
        %v784 = vmin.f32 %v782, %v711
        %v785 = vmin.f32 %v783, %v713
        %v786 = vmin.f32 %v784, %v715
        %v787 = vmin.f32 %v785, %v717
        %v788 = vmin.f32 %v786, %v719
        %v789 = vmin.f32 %v787, %v721
        %v790 = vmin.f32 %v788, %v723
        %v791 = vmin.f32 %v789, %v790
        %v792 = vrot.slane %v791, 4
        %v793 = vmin.f32 %v791, %v792
        %v794 = vrot.slane %v793, 2
        %v795 = vmin.f32 %v793, %v794
        %v796 = vrot.slane %v795, 1
        %v797 = vmin.f32 %v795, %v796
        %vm798 = vcmp.eq.f32.partialorder %v308, %v760
        %vm799 = vcmp.eq.f32.partialorder %v309, %v797
        %vm800 = vcmp.eq.f32.partialorder %v310, %v760
        %vm801 = vcmp.eq.f32.partialorder %v311, %v797
        %vm802 = vcmp.eq.f32.partialorder %v312, %v760
        %vm803 = vcmp.eq.f32.partialorder %v313, %v797
        %vm804 = vcmp.eq.f32.partialorder %v314, %v760
        %vm805 = vcmp.eq.f32.partialorder %v315, %v797
        %vm806 = vcmp.eq.f32.partialorder %v316, %v760
        %vm807 = vcmp.eq.f32.partialorder %v317, %v797
        %vm808 = vcmp.eq.f32.partialorder %v318, %v760
        %vm809 = vcmp.eq.f32.partialorder %v319, %v797
        %vm810 = vcmp.eq.f32.partialorder %v320, %v760
        %vm811 = vcmp.eq.f32.partialorder %v321, %v797
        %vm812 = vcmp.eq.f32.partialorder %v322, %v760
        %vm813 = vcmp.eq.f32.partialorder %v323, %v797
        %vm814 = vcmp.eq.f32.partialorder %v324, %v760
        %vm815 = vcmp.eq.f32.partialorder %v325, %v797
        %vm816 = vcmp.eq.f32.partialorder %v326, %v760
        %vm817 = vcmp.eq.f32.partialorder %v327, %v797
        %vm818 = vcmp.eq.f32.partialorder %v328, %v760
        %vm819 = vcmp.eq.f32.partialorder %v329, %v797
        %vm820 = vcmp.eq.f32.partialorder %v330, %v760
        %vm821 = vcmp.eq.f32.partialorder %v331, %v797
        %vm822 = vcmp.eq.f32.partialorder %v332, %v760
        %vm823 = vcmp.eq.f32.partialorder %v333, %v797
        %vm824 = vcmp.eq.f32.partialorder %v334, %v760
        %vm825 = vcmp.eq.f32.partialorder %v335, %v797
        %vm826 = vcmp.eq.f32.partialorder %v336, %v760
        %vm827 = vcmp.eq.f32.partialorder %v337, %v797
        %vm828 = vcmp.eq.f32.partialorder %v338, %v760
        %vm829 = vcmp.eq.f32.partialorder %v339, %v797
        %vm830 = vcmp.eq.f32.partialorder %v340, %v760
        %vm831 = vcmp.eq.f32.partialorder %v341, %v797
        %vm832 = vcmp.eq.f32.partialorder %v342, %v760
        %vm833 = vcmp.eq.f32.partialorder %v343, %v797
        %vm834 = vcmp.eq.f32.partialorder %v344, %v760
        %vm835 = vcmp.eq.f32.partialorder %v345, %v797
        %vm836 = vcmp.eq.f32.partialorder %v346, %v760
        %vm837 = vcmp.eq.f32.partialorder %v347, %v797
        %vm838 = vcmp.eq.f32.partialorder %v348, %v760
        %vm839 = vcmp.eq.f32.partialorder %v349, %v797
        %vm840 = vcmp.eq.f32.partialorder %v350, %v760
        %vm841 = vcmp.eq.f32.partialorder %v351, %v797
        %vm842 = vcmp.eq.f32.partialorder %v352, %v760
        %vm843 = vcmp.eq.f32.partialorder %v353, %v797
        %vm844 = vcmp.eq.f32.partialorder %v354, %v760
        %vm845 = vcmp.eq.f32.partialorder %v355, %v797
        %vm846 = vcmp.eq.f32.partialorder %v356, %v760
        %vm847 = vcmp.eq.f32.partialorder %v357, %v797
        %vm848 = vcmp.eq.f32.partialorder %v358, %v760
        %vm849 = vcmp.eq.f32.partialorder %v359, %v797
        %vm850 = vcmp.eq.f32.partialorder %v360, %v760
        %vm851 = vcmp.eq.f32.partialorder %v361, %v797
        %vm852 = vcmp.eq.f32.partialorder %v362, %v760
        %vm853 = vcmp.eq.f32.partialorder %v363, %v797
        %vm854 = vcmp.eq.f32.partialorder %v364, %v760
        %vm855 = vcmp.eq.f32.partialorder %v365, %v797
        %vm856 = vcmp.eq.f32.partialorder %v366, %v760
        %vm857 = vcmp.eq.f32.partialorder %v367, %v797
        %vm858 = vcmp.eq.f32.partialorder %v368, %v760
        %vm859 = vcmp.eq.f32.partialorder %v369, %v797
        %vm860 = vcmp.eq.f32.partialorder %v370, %v760
        %vm861 = vcmp.eq.f32.partialorder %v371, %v797
        %863 = vset.pattern.permute.xlu0 0
        %864 = vperm.xlu0 %863, %v243
        %v865 = vpop.permute.xlu0 %864
        %868 = vset.pattern.permute.xlu0 0
        %869 = vperm.xlu0 %868, %v244
        %v870 = vpop.permute.xlu0 %869
        %873 = vset.pattern.permute.xlu0 0
        %874 = vperm.xlu0 %873, %v245
        %v875 = vpop.permute.xlu0 %874
        %878 = vset.pattern.permute.xlu0 0
        %879 = vperm.xlu0 %878, %v246
        %v880 = vpop.permute.xlu0 %879
        %883 = vset.pattern.permute.xlu0 0
        %884 = vperm.xlu0 %883, %v247
        %v885 = vpop.permute.xlu0 %884
        %888 = vset.pattern.permute.xlu0 0
        %889 = vperm.xlu0 %888, %v248
        %v890 = vpop.permute.xlu0 %889
        %893 = vset.pattern.permute.xlu0 0
        %894 = vperm.xlu0 %893, %v249
        %v895 = vpop.permute.xlu0 %894
        %898 = vset.pattern.permute.xlu0 0
        %899 = vperm.xlu0 %898, %v250
        %v900 = vpop.permute.xlu0 %899
        %903 = vset.pattern.permute.xlu0 0
        %904 = vperm.xlu0 %903, %v251
        %v905 = vpop.permute.xlu0 %904
        %908 = vset.pattern.permute.xlu0 0
        %909 = vperm.xlu0 %908, %v252
        %v910 = vpop.permute.xlu0 %909
        %913 = vset.pattern.permute.xlu0 0
        %914 = vperm.xlu0 %913, %v253
        %v915 = vpop.permute.xlu0 %914
        %918 = vset.pattern.permute.xlu0 0
        %919 = vperm.xlu0 %918, %v254
        %v920 = vpop.permute.xlu0 %919
        %923 = vset.pattern.permute.xlu0 0
        %924 = vperm.xlu0 %923, %v255
        %v925 = vpop.permute.xlu0 %924
        %928 = vset.pattern.permute.xlu0 0
        %929 = vperm.xlu0 %928, %v256
        %v930 = vpop.permute.xlu0 %929
        %933 = vset.pattern.permute.xlu0 0
        %934 = vperm.xlu0 %933, %v257
        %v935 = vpop.permute.xlu0 %934
        %938 = vset.pattern.permute.xlu0 0
        %939 = vperm.xlu0 %938, %v258
        %v940 = vpop.permute.xlu0 %939
        %943 = vset.pattern.permute.xlu0 0
        %944 = vperm.xlu0 %943, %v259
        %v945 = vpop.permute.xlu0 %944
        %948 = vset.pattern.permute.xlu0 0
        %949 = vperm.xlu0 %948, %v260
        %v950 = vpop.permute.xlu0 %949
        %953 = vset.pattern.permute.xlu0 0
        %954 = vperm.xlu0 %953, %v261
        %v955 = vpop.permute.xlu0 %954
        %958 = vset.pattern.permute.xlu0 0
        %959 = vperm.xlu0 %958, %v262
        %v960 = vpop.permute.xlu0 %959
        %963 = vset.pattern.permute.xlu0 0
        %964 = vperm.xlu0 %963, %v263
        %v965 = vpop.permute.xlu0 %964
        %968 = vset.pattern.permute.xlu0 0
        %969 = vperm.xlu0 %968, %v264
        %v970 = vpop.permute.xlu0 %969
        %973 = vset.pattern.permute.xlu0 0
        %974 = vperm.xlu0 %973, %v265
        %v975 = vpop.permute.xlu0 %974
        %978 = vset.pattern.permute.xlu0 0
        %979 = vperm.xlu0 %978, %v266
        %v980 = vpop.permute.xlu0 %979
        %983 = vset.pattern.permute.xlu0 0
        %984 = vperm.xlu0 %983, %v267
        %v985 = vpop.permute.xlu0 %984
        %988 = vset.pattern.permute.xlu0 0
        %989 = vperm.xlu0 %988, %v268
        %v990 = vpop.permute.xlu0 %989
        %993 = vset.pattern.permute.xlu0 0
        %994 = vperm.xlu0 %993, %v269
        %v995 = vpop.permute.xlu0 %994
        %998 = vset.pattern.permute.xlu0 0
        %999 = vperm.xlu0 %998, %v270
        %v1000 = vpop.permute.xlu0 %999
        %1003 = vset.pattern.permute.xlu0 0
        %1004 = vperm.xlu0 %1003, %v271
        %v1005 = vpop.permute.xlu0 %1004
        %1008 = vset.pattern.permute.xlu0 0
        %1009 = vperm.xlu0 %1008, %v272
        %v1010 = vpop.permute.xlu0 %1009
        %1013 = vset.pattern.permute.xlu0 0
        %1014 = vperm.xlu0 %1013, %v273
        %v1015 = vpop.permute.xlu0 %1014
        %1018 = vset.pattern.permute.xlu0 0
        %1019 = vperm.xlu0 %1018, %v274
        %v1020 = vpop.permute.xlu0 %1019
        %v1022 = vsel %vm798, %v865, 0.0
        %v1023 = vsel %vm799, %v865, 0.0
        %v1024 = vsel %vm800, %v870, 0.0
        %v1025 = vsel %vm801, %v870, 0.0
        %v1026 = vsel %vm802, %v875, 0.0
        %v1027 = vsel %vm803, %v875, 0.0
        %v1028 = vsel %vm804, %v880, 0.0
        %v1029 = vsel %vm805, %v880, 0.0
        %v1030 = vsel %vm806, %v885, 0.0
        %v1031 = vsel %vm807, %v885, 0.0
        %v1032 = vsel %vm808, %v890, 0.0
        %v1033 = vsel %vm809, %v890, 0.0
        %v1034 = vsel %vm810, %v895, 0.0
        %v1035 = vsel %vm811, %v895, 0.0
        %v1036 = vsel %vm812, %v900, 0.0
        %v1037 = vsel %vm813, %v900, 0.0
        %v1038 = vsel %vm814, %v905, 0.0
        %v1039 = vsel %vm815, %v905, 0.0
        %v1040 = vsel %vm816, %v910, 0.0
        %v1041 = vsel %vm817, %v910, 0.0
        %v1042 = vsel %vm818, %v915, 0.0
        %v1043 = vsel %vm819, %v915, 0.0
        %v1044 = vsel %vm820, %v920, 0.0
        %v1045 = vsel %vm821, %v920, 0.0
        %v1046 = vsel %vm822, %v925, 0.0
        %v1047 = vsel %vm823, %v925, 0.0
        %v1048 = vsel %vm824, %v930, 0.0
        %v1049 = vsel %vm825, %v930, 0.0
        %v1050 = vsel %vm826, %v935, 0.0
        %v1051 = vsel %vm827, %v935, 0.0
        %v1052 = vsel %vm828, %v940, 0.0
        %v1053 = vsel %vm829, %v940, 0.0
        %v1054 = vsel %vm830, %v945, 0.0
        %v1055 = vsel %vm831, %v945, 0.0
        %v1056 = vsel %vm832, %v950, 0.0
        %v1057 = vsel %vm833, %v950, 0.0
        %v1058 = vsel %vm834, %v955, 0.0
        %v1059 = vsel %vm835, %v955, 0.0
        %v1060 = vsel %vm836, %v960, 0.0
        %v1061 = vsel %vm837, %v960, 0.0
        %v1062 = vsel %vm838, %v965, 0.0
        %v1063 = vsel %vm839, %v965, 0.0
        %v1064 = vsel %vm840, %v970, 0.0
        %v1065 = vsel %vm841, %v970, 0.0
        %v1066 = vsel %vm842, %v975, 0.0
        %v1067 = vsel %vm843, %v975, 0.0
        %v1068 = vsel %vm844, %v980, 0.0
        %v1069 = vsel %vm845, %v980, 0.0
        %v1070 = vsel %vm846, %v985, 0.0
        %v1071 = vsel %vm847, %v985, 0.0
        %v1072 = vsel %vm848, %v990, 0.0
        %v1073 = vsel %vm849, %v990, 0.0
        %v1074 = vsel %vm850, %v995, 0.0
        %v1075 = vsel %vm851, %v995, 0.0
        %v1076 = vsel %vm852, %v1000, 0.0
        %v1077 = vsel %vm853, %v1000, 0.0
        %v1078 = vsel %vm854, %v1005, 0.0
        %v1079 = vsel %vm855, %v1005, 0.0
        %v1080 = vsel %vm856, %v1010, 0.0
        %v1081 = vsel %vm857, %v1010, 0.0
        %v1082 = vsel %vm858, %v1015, 0.0
        %v1083 = vsel %vm859, %v1015, 0.0
        %v1084 = vsel %vm860, %v1020, 0.0
        %v1085 = vsel %vm861, %v1020, 0.0
        %v1086 = vadd.f32 %v1022, %v1024
        %v1087 = vadd.f32 %v1086, %v1026
        %v1088 = vadd.f32 %v1087, %v1028
        %v1089 = vadd.f32 %v1088, %v1030
        %v1090 = vadd.f32 %v1089, %v1032
        %v1091 = vadd.f32 %v1090, %v1034
        %v1092 = vadd.f32 %v1091, %v1036
        %v1093 = vadd.f32 %v1092, %v1038
        %v1094 = vadd.f32 %v1093, %v1040
        %v1095 = vadd.f32 %v1094, %v1042
        %v1096 = vadd.f32 %v1095, %v1044
        %v1097 = vadd.f32 %v1096, %v1046
        %v1098 = vadd.f32 %v1097, %v1048
        %v1099 = vadd.f32 %v1098, %v1050
        %v1100 = vadd.f32 %v1099, %v1052
        %v1101 = vadd.f32 %v1100, %v1054
        %v1102 = vadd.f32 %v1101, %v1056
        %v1103 = vadd.f32 %v1102, %v1058
        %v1104 = vadd.f32 %v1103, %v1060
        %v1105 = vadd.f32 %v1104, %v1062
        %v1106 = vadd.f32 %v1105, %v1064
        %v1107 = vadd.f32 %v1106, %v1066
        %v1108 = vadd.f32 %v1107, %v1068
        %v1109 = vadd.f32 %v1108, %v1070
        %v1110 = vadd.f32 %v1109, %v1072
        %v1111 = vadd.f32 %v1110, %v1074
        %v1112 = vadd.f32 %v1111, %v1076
        %v1113 = vadd.f32 %v1112, %v1078
        %v1114 = vadd.f32 %v1113, %v1080
        %v1115 = vadd.f32 %v1114, %v1082
        %v1116 = vadd.f32 %v1115, %v1084
        %v1117 = vrot.slane %v1116, 4
        %v1118 = vadd.f32 %v1116, %v1117
        %v1119 = vrot.slane %v1118, 2
        %v1120 = vadd.f32 %v1118, %v1119
        %v1121 = vrot.slane %v1120, 1
        %v1122 = vadd.f32 %v1120, %v1121
        %v1123 = vadd.f32 %v1023, %v1025
        %v1124 = vadd.f32 %v1123, %v1027
        %v1125 = vadd.f32 %v1124, %v1029
        %v1126 = vadd.f32 %v1125, %v1031
        %v1127 = vadd.f32 %v1126, %v1033
        %v1128 = vadd.f32 %v1127, %v1035
        %v1129 = vadd.f32 %v1128, %v1037
        %v1130 = vadd.f32 %v1129, %v1039
        %v1131 = vadd.f32 %v1130, %v1041
        %v1132 = vadd.f32 %v1131, %v1043
        %v1133 = vadd.f32 %v1132, %v1045
        %v1134 = vadd.f32 %v1133, %v1047
        %v1135 = vadd.f32 %v1134, %v1049
        %v1136 = vadd.f32 %v1135, %v1051
        %v1137 = vadd.f32 %v1136, %v1053
        %v1138 = vadd.f32 %v1137, %v1055
        %v1139 = vadd.f32 %v1138, %v1057
        %v1140 = vadd.f32 %v1139, %v1059
        %v1141 = vadd.f32 %v1140, %v1061
        %v1142 = vadd.f32 %v1141, %v1063
        %v1143 = vadd.f32 %v1142, %v1065
        %v1144 = vadd.f32 %v1143, %v1067
        %v1145 = vadd.f32 %v1144, %v1069
        %v1146 = vadd.f32 %v1145, %v1071
        %v1147 = vadd.f32 %v1146, %v1073
        %v1148 = vadd.f32 %v1147, %v1075
        %v1149 = vadd.f32 %v1148, %v1077
        %v1150 = vadd.f32 %v1149, %v1079
        %v1151 = vadd.f32 %v1150, %v1081
        %v1152 = vadd.f32 %v1151, %v1083
        %v1153 = vadd.f32 %v1152, %v1085
        %v1154 = vrot.slane %v1153, 4
        %v1155 = vadd.f32 %v1153, %v1154
        %v1156 = vrot.slane %v1155, 2
        %v1157 = vadd.f32 %v1155, %v1156
        %v1158 = vrot.slane %v1157, 1
        %v1159 = vadd.f32 %v1157, %v1158
        %v1160 = vrcp.pop 256.0
        %v1161 = vmul.f32 %v760, %v1160
        %v1162 = vmul.f32 %v797, %v1160
        %v1163 = vadd.f32 %v1161, 0.5
        %v1164 = vadd.f32 %v1162, 0.5
        %v1165 = vfloor.f32 %v1163
        %v1166 = vfloor.f32 %v1164
        %v1167 = vmul.f32 %v1165, 256.0
        %v1168 = vmul.f32 %v1166, 256.0
        %v1169 = vsub.f32 %v760, %v1167
        %v1170 = vsub.f32 %v797, %v1168
        %vm1171 = vcmp.lt.f32.partialorder %v1169, 0.0
        %vm1172 = vcmp.lt.f32.partialorder %v1170, 0.0
        %v1173 = vsub.f32 %v1165, 1.0
        %v1174 = vsub.f32 %v1166, 1.0
        %v1175 = vsel %vm1171, %v1173, %v1165
        %v1176 = vsel %vm1172, %v1174, %v1166
        %v1177 = vrsqrt.pop %v1175
        %v1178 = vrsqrt.pop %v1176
        %v1179 = vmul.f32 %v1122, %v1177
        %v1180 = vmul.f32 %v1159, %v1178
        %v1181 = vadd.f32 %v1179, 0.0
        %v1182 = vadd.f32 %v1180, 0.0
        %v1183 = vadd.f32 %v1177, 0.0
        %v1184 = vadd.f32 %v1178, 0.0
        %vm1185 = vcmp.gt.f32.partialorder %v308, %v760
        %vm1186 = vcmp.gt.f32.partialorder %v309, %v797
        %vm1187 = vcmp.gt.f32.partialorder %v310, %v760
        %vm1188 = vcmp.gt.f32.partialorder %v311, %v797
        %vm1189 = vcmp.gt.f32.partialorder %v312, %v760
        %vm1190 = vcmp.gt.f32.partialorder %v313, %v797
        %vm1191 = vcmp.gt.f32.partialorder %v314, %v760
        %vm1192 = vcmp.gt.f32.partialorder %v315, %v797
        %vm1193 = vcmp.gt.f32.partialorder %v316, %v760
        %vm1194 = vcmp.gt.f32.partialorder %v317, %v797
        %vm1195 = vcmp.gt.f32.partialorder %v318, %v760
        %vm1196 = vcmp.gt.f32.partialorder %v319, %v797
        %vm1197 = vcmp.gt.f32.partialorder %v320, %v760
        %vm1198 = vcmp.gt.f32.partialorder %v321, %v797
        %vm1199 = vcmp.gt.f32.partialorder %v322, %v760
        %vm1200 = vcmp.gt.f32.partialorder %v323, %v797
        %vm1201 = vcmp.gt.f32.partialorder %v324, %v760
        %vm1202 = vcmp.gt.f32.partialorder %v325, %v797
        %vm1203 = vcmp.gt.f32.partialorder %v326, %v760
        %vm1204 = vcmp.gt.f32.partialorder %v327, %v797
        %vm1205 = vcmp.gt.f32.partialorder %v328, %v760
        %vm1206 = vcmp.gt.f32.partialorder %v329, %v797
        %vm1207 = vcmp.gt.f32.partialorder %v330, %v760
        %vm1208 = vcmp.gt.f32.partialorder %v331, %v797
        %vm1209 = vcmp.gt.f32.partialorder %v332, %v760
        %vm1210 = vcmp.gt.f32.partialorder %v333, %v797
        %vm1211 = vcmp.gt.f32.partialorder %v334, %v760
        %vm1212 = vcmp.gt.f32.partialorder %v335, %v797
        %vm1213 = vcmp.gt.f32.partialorder %v336, %v760
        %vm1214 = vcmp.gt.f32.partialorder %v337, %v797
        %vm1215 = vcmp.gt.f32.partialorder %v338, %v760
        %vm1216 = vcmp.gt.f32.partialorder %v339, %v797
        %vm1217 = vcmp.gt.f32.partialorder %v340, %v760
        %vm1218 = vcmp.gt.f32.partialorder %v341, %v797
        %vm1219 = vcmp.gt.f32.partialorder %v342, %v760
        %vm1220 = vcmp.gt.f32.partialorder %v343, %v797
        %vm1221 = vcmp.gt.f32.partialorder %v344, %v760
        %vm1222 = vcmp.gt.f32.partialorder %v345, %v797
        %vm1223 = vcmp.gt.f32.partialorder %v346, %v760
        %vm1224 = vcmp.gt.f32.partialorder %v347, %v797
        %vm1225 = vcmp.gt.f32.partialorder %v348, %v760
        %vm1226 = vcmp.gt.f32.partialorder %v349, %v797
        %vm1227 = vcmp.gt.f32.partialorder %v350, %v760
        %vm1228 = vcmp.gt.f32.partialorder %v351, %v797
        %vm1229 = vcmp.gt.f32.partialorder %v352, %v760
        %vm1230 = vcmp.gt.f32.partialorder %v353, %v797
        %vm1231 = vcmp.gt.f32.partialorder %v354, %v760
        %vm1232 = vcmp.gt.f32.partialorder %v355, %v797
        %vm1233 = vcmp.gt.f32.partialorder %v356, %v760
        %vm1234 = vcmp.gt.f32.partialorder %v357, %v797
        %vm1235 = vcmp.gt.f32.partialorder %v358, %v760
        %vm1236 = vcmp.gt.f32.partialorder %v359, %v797
        %vm1237 = vcmp.gt.f32.partialorder %v360, %v760
        %vm1238 = vcmp.gt.f32.partialorder %v361, %v797
        %vm1239 = vcmp.gt.f32.partialorder %v362, %v760
        %vm1240 = vcmp.gt.f32.partialorder %v363, %v797
        %vm1241 = vcmp.gt.f32.partialorder %v364, %v760
        %vm1242 = vcmp.gt.f32.partialorder %v365, %v797
        %vm1243 = vcmp.gt.f32.partialorder %v366, %v760
        %vm1244 = vcmp.gt.f32.partialorder %v367, %v797
        %vm1245 = vcmp.gt.f32.partialorder %v368, %v760
        %vm1246 = vcmp.gt.f32.partialorder %v369, %v797
        %vm1247 = vcmp.gt.f32.partialorder %v370, %v760
        %vm1248 = vcmp.gt.f32.partialorder %v371, %v797
        %vm1249 = vmand %vm564, %vm1185
        %vm1250 = vmand %vm564, %vm1186
        %vm1251 = vmand %vm565, %vm1187
        %vm1252 = vmand %vm565, %vm1188
        %vm1253 = vmand %vm566, %vm1189
        %vm1254 = vmand %vm566, %vm1190
        %vm1255 = vmand %vm567, %vm1191
        %vm1256 = vmand %vm567, %vm1192
        %vm1257 = vmand %vm568, %vm1193
        %vm1258 = vmand %vm568, %vm1194
        %vm1259 = vmand %vm569, %vm1195
        %vm1260 = vmand %vm569, %vm1196
        %vm1261 = vmand %vm570, %vm1197
        %vm1262 = vmand %vm570, %vm1198
        %vm1263 = vmand %vm571, %vm1199
        %vm1264 = vmand %vm571, %vm1200
        %vm1265 = vmand %vm572, %vm1201
        %vm1266 = vmand %vm572, %vm1202
        %vm1267 = vmand %vm573, %vm1203
        %vm1268 = vmand %vm573, %vm1204
        %vm1269 = vmand %vm574, %vm1205
        %vm1270 = vmand %vm574, %vm1206
        %vm1271 = vmand %vm575, %vm1207
        %vm1272 = vmand %vm575, %vm1208
        %vm1273 = vmand %vm576, %vm1209
        %vm1274 = vmand %vm576, %vm1210
        %vm1275 = vmand %vm577, %vm1211
        %vm1276 = vmand %vm577, %vm1212
        %vm1277 = vmand %vm578, %vm1213
        %vm1278 = vmand %vm578, %vm1214
        %vm1279 = vmand %vm579, %vm1215
        %vm1280 = vmand %vm579, %vm1216
        %vm1281 = vmand %vm580, %vm1217
        %vm1282 = vmand %vm580, %vm1218
        %vm1283 = vmand %vm581, %vm1219
        %vm1284 = vmand %vm581, %vm1220
        %vm1285 = vmand %vm582, %vm1221
        %vm1286 = vmand %vm582, %vm1222
        %vm1287 = vmand %vm583, %vm1223
        %vm1288 = vmand %vm583, %vm1224
        %vm1289 = vmand %vm584, %vm1225
        %vm1290 = vmand %vm584, %vm1226
        %vm1291 = vmand %vm585, %vm1227
        %vm1292 = vmand %vm585, %vm1228
        %vm1293 = vmand %vm586, %vm1229
        %vm1294 = vmand %vm586, %vm1230
        %vm1295 = vmand %vm587, %vm1231
        %vm1296 = vmand %vm587, %vm1232
        %vm1297 = vmand %vm588, %vm1233
        %vm1298 = vmand %vm588, %vm1234
        %vm1299 = vmand %vm589, %vm1235
        %vm1300 = vmand %vm589, %vm1236
        %vm1301 = vmand %vm590, %vm1237
        %vm1302 = vmand %vm590, %vm1238
        %vm1303 = vmand %vm591, %vm1239
        %vm1304 = vmand %vm591, %vm1240
        %vm1305 = vmand %vm592, %vm1241
        %vm1306 = vmand %vm592, %vm1242
        %vm1307 = vmand %vm593, %vm1243
        %vm1308 = vmand %vm593, %vm1244
        %vm1309 = vmand %vm594, %vm1245
        %vm1310 = vmand %vm594, %vm1246
        %vm1311 = vmand %vm595, %vm1247
        %vm1312 = vmand %vm595, %vm1248
        %v1313 = vsel %vm1249, %v308, 1e+30
        %v1314 = vsel %vm1250, %v309, 1e+30
        %v1315 = vsel %vm1251, %v310, 1e+30
        %v1316 = vsel %vm1252, %v311, 1e+30
        %v1317 = vsel %vm1253, %v312, 1e+30
        %v1318 = vsel %vm1254, %v313, 1e+30
        %v1319 = vsel %vm1255, %v314, 1e+30
        %v1320 = vsel %vm1256, %v315, 1e+30
        %v1321 = vsel %vm1257, %v316, 1e+30
        %v1322 = vsel %vm1258, %v317, 1e+30
        %v1323 = vsel %vm1259, %v318, 1e+30
        %v1324 = vsel %vm1260, %v319, 1e+30
        %v1325 = vsel %vm1261, %v320, 1e+30
        %v1326 = vsel %vm1262, %v321, 1e+30
        %v1327 = vsel %vm1263, %v322, 1e+30
        %v1328 = vsel %vm1264, %v323, 1e+30
        %v1329 = vsel %vm1265, %v324, 1e+30
        %v1330 = vsel %vm1266, %v325, 1e+30
        %v1331 = vsel %vm1267, %v326, 1e+30
        %v1332 = vsel %vm1268, %v327, 1e+30
        %v1333 = vsel %vm1269, %v328, 1e+30
        %v1334 = vsel %vm1270, %v329, 1e+30
        %v1335 = vsel %vm1271, %v330, 1e+30
        %v1336 = vsel %vm1272, %v331, 1e+30
        %v1337 = vsel %vm1273, %v332, 1e+30
        %v1338 = vsel %vm1274, %v333, 1e+30
        %v1339 = vsel %vm1275, %v334, 1e+30
        %v1340 = vsel %vm1276, %v335, 1e+30
        %v1341 = vsel %vm1277, %v336, 1e+30
        %v1342 = vsel %vm1278, %v337, 1e+30
        %v1343 = vsel %vm1279, %v338, 1e+30
        %v1344 = vsel %vm1280, %v339, 1e+30
        %v1345 = vsel %vm1281, %v340, 1e+30
        %v1346 = vsel %vm1282, %v341, 1e+30
        %v1347 = vsel %vm1283, %v342, 1e+30
        %v1348 = vsel %vm1284, %v343, 1e+30
        %v1349 = vsel %vm1285, %v344, 1e+30
        %v1350 = vsel %vm1286, %v345, 1e+30
        %v1351 = vsel %vm1287, %v346, 1e+30
        %v1352 = vsel %vm1288, %v347, 1e+30
        %v1353 = vsel %vm1289, %v348, 1e+30
        %v1354 = vsel %vm1290, %v349, 1e+30
        %v1355 = vsel %vm1291, %v350, 1e+30
        %v1356 = vsel %vm1292, %v351, 1e+30
        %v1357 = vsel %vm1293, %v352, 1e+30
        %v1358 = vsel %vm1294, %v353, 1e+30
        %v1359 = vsel %vm1295, %v354, 1e+30
        %v1360 = vsel %vm1296, %v355, 1e+30
        %v1361 = vsel %vm1297, %v356, 1e+30
        %v1362 = vsel %vm1298, %v357, 1e+30
        %v1363 = vsel %vm1299, %v358, 1e+30
        %v1364 = vsel %vm1300, %v359, 1e+30
        %v1365 = vsel %vm1301, %v360, 1e+30
        %v1366 = vsel %vm1302, %v361, 1e+30
        %v1367 = vsel %vm1303, %v362, 1e+30
        %v1368 = vsel %vm1304, %v363, 1e+30
        %v1369 = vsel %vm1305, %v364, 1e+30
        %v1370 = vsel %vm1306, %v365, 1e+30
        %v1371 = vsel %vm1307, %v366, 1e+30
        %v1372 = vsel %vm1308, %v367, 1e+30
        %v1373 = vsel %vm1309, %v368, 1e+30
        %v1374 = vsel %vm1310, %v369, 1e+30
        %v1375 = vsel %vm1311, %v370, 1e+30
        %v1376 = vsel %vm1312, %v371, 1e+30
        %v1377 = vmin.f32 %v1313, %v1317
        %v1378 = vmin.f32 %v1315, %v1319
        %v1379 = vmin.f32 %v1377, %v1321
        %v1380 = vmin.f32 %v1378, %v1323
        %v1381 = vmin.f32 %v1379, %v1325
        %v1382 = vmin.f32 %v1380, %v1327
        %v1383 = vmin.f32 %v1381, %v1329
        %v1384 = vmin.f32 %v1382, %v1331
        %v1385 = vmin.f32 %v1383, %v1333
        %v1386 = vmin.f32 %v1384, %v1335
        %v1387 = vmin.f32 %v1385, %v1337
        %v1388 = vmin.f32 %v1386, %v1339
        %v1389 = vmin.f32 %v1387, %v1341
        %v1390 = vmin.f32 %v1388, %v1343
        %v1391 = vmin.f32 %v1389, %v1345
        %v1392 = vmin.f32 %v1390, %v1347
        %v1393 = vmin.f32 %v1391, %v1349
        %v1394 = vmin.f32 %v1392, %v1351
        %v1395 = vmin.f32 %v1393, %v1353
        %v1396 = vmin.f32 %v1394, %v1355
        %v1397 = vmin.f32 %v1395, %v1357
        %v1398 = vmin.f32 %v1396, %v1359
        %v1399 = vmin.f32 %v1397, %v1361
        %v1400 = vmin.f32 %v1398, %v1363
        %v1401 = vmin.f32 %v1399, %v1365
        %v1402 = vmin.f32 %v1400, %v1367
        %v1403 = vmin.f32 %v1401, %v1369
        %v1404 = vmin.f32 %v1402, %v1371
        %v1405 = vmin.f32 %v1403, %v1373
        %v1406 = vmin.f32 %v1404, %v1375
        %v1407 = vmin.f32 %v1405, %v1406
        %v1408 = vrot.slane %v1407, 4
        %v1409 = vmin.f32 %v1407, %v1408
        %v1410 = vrot.slane %v1409, 2
        %v1411 = vmin.f32 %v1409, %v1410
        %v1412 = vrot.slane %v1411, 1
        %v1413 = vmin.f32 %v1411, %v1412
        %v1414 = vmin.f32 %v1314, %v1318
        %v1415 = vmin.f32 %v1316, %v1320
        %v1416 = vmin.f32 %v1414, %v1322
        %v1417 = vmin.f32 %v1415, %v1324
        %v1418 = vmin.f32 %v1416, %v1326
        %v1419 = vmin.f32 %v1417, %v1328
        %v1420 = vmin.f32 %v1418, %v1330
        %v1421 = vmin.f32 %v1419, %v1332
        %v1422 = vmin.f32 %v1420, %v1334
        %v1423 = vmin.f32 %v1421, %v1336
        %v1424 = vmin.f32 %v1422, %v1338
        %v1425 = vmin.f32 %v1423, %v1340
        %v1426 = vmin.f32 %v1424, %v1342
        %v1427 = vmin.f32 %v1425, %v1344
        %v1428 = vmin.f32 %v1426, %v1346
        %v1429 = vmin.f32 %v1427, %v1348
        %v1430 = vmin.f32 %v1428, %v1350
        %v1431 = vmin.f32 %v1429, %v1352
        %v1432 = vmin.f32 %v1430, %v1354
        %v1433 = vmin.f32 %v1431, %v1356
        %v1434 = vmin.f32 %v1432, %v1358
        %v1435 = vmin.f32 %v1433, %v1360
        %v1436 = vmin.f32 %v1434, %v1362
        %v1437 = vmin.f32 %v1435, %v1364
        %v1438 = vmin.f32 %v1436, %v1366
        %v1439 = vmin.f32 %v1437, %v1368
        %v1440 = vmin.f32 %v1438, %v1370
        %v1441 = vmin.f32 %v1439, %v1372
        %v1442 = vmin.f32 %v1440, %v1374
        %v1443 = vmin.f32 %v1441, %v1376
        %v1444 = vmin.f32 %v1442, %v1443
        %v1445 = vrot.slane %v1444, 4
        %v1446 = vmin.f32 %v1444, %v1445
        %v1447 = vrot.slane %v1446, 2
        %v1448 = vmin.f32 %v1446, %v1447
        %v1449 = vrot.slane %v1448, 1
        %v1450 = vmin.f32 %v1448, %v1449
        %vm1451 = vcmp.eq.f32.partialorder %v308, %v1413
        %vm1452 = vcmp.eq.f32.partialorder %v309, %v1450
        %vm1453 = vcmp.eq.f32.partialorder %v310, %v1413
        %vm1454 = vcmp.eq.f32.partialorder %v311, %v1450
        %vm1455 = vcmp.eq.f32.partialorder %v312, %v1413
        %vm1456 = vcmp.eq.f32.partialorder %v313, %v1450
        %vm1457 = vcmp.eq.f32.partialorder %v314, %v1413
        %vm1458 = vcmp.eq.f32.partialorder %v315, %v1450
        %vm1459 = vcmp.eq.f32.partialorder %v316, %v1413
        %vm1460 = vcmp.eq.f32.partialorder %v317, %v1450
        %vm1461 = vcmp.eq.f32.partialorder %v318, %v1413
        %vm1462 = vcmp.eq.f32.partialorder %v319, %v1450
        %vm1463 = vcmp.eq.f32.partialorder %v320, %v1413
        %vm1464 = vcmp.eq.f32.partialorder %v321, %v1450
        %vm1465 = vcmp.eq.f32.partialorder %v322, %v1413
        %vm1466 = vcmp.eq.f32.partialorder %v323, %v1450
        %vm1467 = vcmp.eq.f32.partialorder %v324, %v1413
        %vm1468 = vcmp.eq.f32.partialorder %v325, %v1450
        %vm1469 = vcmp.eq.f32.partialorder %v326, %v1413
        %vm1470 = vcmp.eq.f32.partialorder %v327, %v1450
        %vm1471 = vcmp.eq.f32.partialorder %v328, %v1413
        %vm1472 = vcmp.eq.f32.partialorder %v329, %v1450
        %vm1473 = vcmp.eq.f32.partialorder %v330, %v1413
        %vm1474 = vcmp.eq.f32.partialorder %v331, %v1450
        %vm1475 = vcmp.eq.f32.partialorder %v332, %v1413
        %vm1476 = vcmp.eq.f32.partialorder %v333, %v1450
        %vm1477 = vcmp.eq.f32.partialorder %v334, %v1413
        %vm1478 = vcmp.eq.f32.partialorder %v335, %v1450
        %vm1479 = vcmp.eq.f32.partialorder %v336, %v1413
        %vm1480 = vcmp.eq.f32.partialorder %v337, %v1450
        %vm1481 = vcmp.eq.f32.partialorder %v338, %v1413
        %vm1482 = vcmp.eq.f32.partialorder %v339, %v1450
        %vm1483 = vcmp.eq.f32.partialorder %v340, %v1413
        %vm1484 = vcmp.eq.f32.partialorder %v341, %v1450
        %vm1485 = vcmp.eq.f32.partialorder %v342, %v1413
        %vm1486 = vcmp.eq.f32.partialorder %v343, %v1450
        %vm1487 = vcmp.eq.f32.partialorder %v344, %v1413
        %vm1488 = vcmp.eq.f32.partialorder %v345, %v1450
        %vm1489 = vcmp.eq.f32.partialorder %v346, %v1413
        %vm1490 = vcmp.eq.f32.partialorder %v347, %v1450
        %vm1491 = vcmp.eq.f32.partialorder %v348, %v1413
        %vm1492 = vcmp.eq.f32.partialorder %v349, %v1450
        %vm1493 = vcmp.eq.f32.partialorder %v350, %v1413
        %vm1494 = vcmp.eq.f32.partialorder %v351, %v1450
        %vm1495 = vcmp.eq.f32.partialorder %v352, %v1413
        %vm1496 = vcmp.eq.f32.partialorder %v353, %v1450
        %vm1497 = vcmp.eq.f32.partialorder %v354, %v1413
        %vm1498 = vcmp.eq.f32.partialorder %v355, %v1450
        %vm1499 = vcmp.eq.f32.partialorder %v356, %v1413
        %vm1500 = vcmp.eq.f32.partialorder %v357, %v1450
        %vm1501 = vcmp.eq.f32.partialorder %v358, %v1413
        %vm1502 = vcmp.eq.f32.partialorder %v359, %v1450
        %vm1503 = vcmp.eq.f32.partialorder %v360, %v1413
        %vm1504 = vcmp.eq.f32.partialorder %v361, %v1450
        %vm1505 = vcmp.eq.f32.partialorder %v362, %v1413
        %vm1506 = vcmp.eq.f32.partialorder %v363, %v1450
        %vm1507 = vcmp.eq.f32.partialorder %v364, %v1413
        %vm1508 = vcmp.eq.f32.partialorder %v365, %v1450
        %vm1509 = vcmp.eq.f32.partialorder %v366, %v1413
        %vm1510 = vcmp.eq.f32.partialorder %v367, %v1450
        %vm1511 = vcmp.eq.f32.partialorder %v368, %v1413
        %vm1512 = vcmp.eq.f32.partialorder %v369, %v1450
        %vm1513 = vcmp.eq.f32.partialorder %v370, %v1413
        %vm1514 = vcmp.eq.f32.partialorder %v371, %v1450
        %v1515 = vsel %vm1451, %v865, 0.0
        %v1516 = vsel %vm1452, %v865, 0.0
        %v1517 = vsel %vm1453, %v870, 0.0
        %v1518 = vsel %vm1454, %v870, 0.0
        %v1519 = vsel %vm1455, %v875, 0.0
        %v1520 = vsel %vm1456, %v875, 0.0
        %v1521 = vsel %vm1457, %v880, 0.0
        %v1522 = vsel %vm1458, %v880, 0.0
        %v1523 = vsel %vm1459, %v885, 0.0
        %v1524 = vsel %vm1460, %v885, 0.0
        %v1525 = vsel %vm1461, %v890, 0.0
        %v1526 = vsel %vm1462, %v890, 0.0
        %v1527 = vsel %vm1463, %v895, 0.0
        %v1528 = vsel %vm1464, %v895, 0.0
        %v1529 = vsel %vm1465, %v900, 0.0
        %v1530 = vsel %vm1466, %v900, 0.0
        %v1531 = vsel %vm1467, %v905, 0.0
        %v1532 = vsel %vm1468, %v905, 0.0
        %v1533 = vsel %vm1469, %v910, 0.0
        %v1534 = vsel %vm1470, %v910, 0.0
        %v1535 = vsel %vm1471, %v915, 0.0
        %v1536 = vsel %vm1472, %v915, 0.0
        %v1537 = vsel %vm1473, %v920, 0.0
        %v1538 = vsel %vm1474, %v920, 0.0
        %v1539 = vsel %vm1475, %v925, 0.0
        %v1540 = vsel %vm1476, %v925, 0.0
        %v1541 = vsel %vm1477, %v930, 0.0
        %v1542 = vsel %vm1478, %v930, 0.0
        %v1543 = vsel %vm1479, %v935, 0.0
        %v1544 = vsel %vm1480, %v935, 0.0
        %v1545 = vsel %vm1481, %v940, 0.0
        %v1546 = vsel %vm1482, %v940, 0.0
        %v1547 = vsel %vm1483, %v945, 0.0
        %v1548 = vsel %vm1484, %v945, 0.0
        %v1549 = vsel %vm1485, %v950, 0.0
        %v1550 = vsel %vm1486, %v950, 0.0
        %v1551 = vsel %vm1487, %v955, 0.0
        %v1552 = vsel %vm1488, %v955, 0.0
        %v1553 = vsel %vm1489, %v960, 0.0
        %v1554 = vsel %vm1490, %v960, 0.0
        %v1555 = vsel %vm1491, %v965, 0.0
        %v1556 = vsel %vm1492, %v965, 0.0
        %v1557 = vsel %vm1493, %v970, 0.0
        %v1558 = vsel %vm1494, %v970, 0.0
        %v1559 = vsel %vm1495, %v975, 0.0
        %v1560 = vsel %vm1496, %v975, 0.0
        %v1561 = vsel %vm1497, %v980, 0.0
        %v1562 = vsel %vm1498, %v980, 0.0
        %v1563 = vsel %vm1499, %v985, 0.0
        %v1564 = vsel %vm1500, %v985, 0.0
        %v1565 = vsel %vm1501, %v990, 0.0
        %v1566 = vsel %vm1502, %v990, 0.0
        %v1567 = vsel %vm1503, %v995, 0.0
        %v1568 = vsel %vm1504, %v995, 0.0
        %v1569 = vsel %vm1505, %v1000, 0.0
        %v1570 = vsel %vm1506, %v1000, 0.0
        %v1571 = vsel %vm1507, %v1005, 0.0
        %v1572 = vsel %vm1508, %v1005, 0.0
        %v1573 = vsel %vm1509, %v1010, 0.0
        %v1574 = vsel %vm1510, %v1010, 0.0
        %v1575 = vsel %vm1511, %v1015, 0.0
        %v1576 = vsel %vm1512, %v1015, 0.0
        %v1577 = vsel %vm1513, %v1020, 0.0
        %v1578 = vsel %vm1514, %v1020, 0.0
        %v1579 = vadd.f32 %v1515, %v1517
        %v1580 = vadd.f32 %v1579, %v1519
        %v1581 = vadd.f32 %v1580, %v1521
        %v1582 = vadd.f32 %v1581, %v1523
        %v1583 = vadd.f32 %v1582, %v1525
        %v1584 = vadd.f32 %v1583, %v1527
        %v1585 = vadd.f32 %v1584, %v1529
        %v1586 = vadd.f32 %v1585, %v1531
        %v1587 = vadd.f32 %v1586, %v1533
        %v1588 = vadd.f32 %v1587, %v1535
        %v1589 = vadd.f32 %v1588, %v1537
        %v1590 = vadd.f32 %v1589, %v1539
        %v1591 = vadd.f32 %v1590, %v1541
        %v1592 = vadd.f32 %v1591, %v1543
        %v1593 = vadd.f32 %v1592, %v1545
        %v1594 = vadd.f32 %v1593, %v1547
        %v1595 = vadd.f32 %v1594, %v1549
        %v1596 = vadd.f32 %v1595, %v1551
        %v1597 = vadd.f32 %v1596, %v1553
        %v1598 = vadd.f32 %v1597, %v1555
        %v1599 = vadd.f32 %v1598, %v1557
        %v1600 = vadd.f32 %v1599, %v1559
        %v1601 = vadd.f32 %v1600, %v1561
        %v1602 = vadd.f32 %v1601, %v1563
        %v1603 = vadd.f32 %v1602, %v1565
        %v1604 = vadd.f32 %v1603, %v1567
        %v1605 = vadd.f32 %v1604, %v1569
        %v1606 = vadd.f32 %v1605, %v1571
        %v1607 = vadd.f32 %v1606, %v1573
        %v1608 = vadd.f32 %v1607, %v1575
        %v1609 = vadd.f32 %v1608, %v1577
        %v1610 = vrot.slane %v1609, 4
        %v1611 = vadd.f32 %v1609, %v1610
        %v1612 = vrot.slane %v1611, 2
        %v1613 = vadd.f32 %v1611, %v1612
        %v1614 = vrot.slane %v1613, 1
        %v1615 = vadd.f32 %v1613, %v1614
        %v1616 = vadd.f32 %v1516, %v1518
        %v1617 = vadd.f32 %v1616, %v1520
        %v1618 = vadd.f32 %v1617, %v1522
        %v1619 = vadd.f32 %v1618, %v1524
        %v1620 = vadd.f32 %v1619, %v1526
        %v1621 = vadd.f32 %v1620, %v1528
        %v1622 = vadd.f32 %v1621, %v1530
        %v1623 = vadd.f32 %v1622, %v1532
        %v1624 = vadd.f32 %v1623, %v1534
        %v1625 = vadd.f32 %v1624, %v1536
        %v1626 = vadd.f32 %v1625, %v1538
        %v1627 = vadd.f32 %v1626, %v1540
        %v1628 = vadd.f32 %v1627, %v1542
        %v1629 = vadd.f32 %v1628, %v1544
        %v1630 = vadd.f32 %v1629, %v1546
        %v1631 = vadd.f32 %v1630, %v1548
        %v1632 = vadd.f32 %v1631, %v1550
        %v1633 = vadd.f32 %v1632, %v1552
        %v1634 = vadd.f32 %v1633, %v1554
        %v1635 = vadd.f32 %v1634, %v1556
        %v1636 = vadd.f32 %v1635, %v1558
        %v1637 = vadd.f32 %v1636, %v1560
        %v1638 = vadd.f32 %v1637, %v1562
        %v1639 = vadd.f32 %v1638, %v1564
        %v1640 = vadd.f32 %v1639, %v1566
        %v1641 = vadd.f32 %v1640, %v1568
        %v1642 = vadd.f32 %v1641, %v1570
        %v1643 = vadd.f32 %v1642, %v1572
        %v1644 = vadd.f32 %v1643, %v1574
        %v1645 = vadd.f32 %v1644, %v1576
        %v1646 = vadd.f32 %v1645, %v1578
        %v1647 = vrot.slane %v1646, 4
        %v1648 = vadd.f32 %v1646, %v1647
        %v1649 = vrot.slane %v1648, 2
        %v1650 = vadd.f32 %v1648, %v1649
        %v1651 = vrot.slane %v1650, 1
        %v1652 = vadd.f32 %v1650, %v1651
        %v1653 = vmul.f32 %v1413, %v1160
        %v1654 = vmul.f32 %v1450, %v1160
        %v1655 = vadd.f32 %v1653, 0.5
        %v1656 = vadd.f32 %v1654, 0.5
        %v1657 = vfloor.f32 %v1655
        %v1658 = vfloor.f32 %v1656
        %v1659 = vmul.f32 %v1657, 256.0
        %v1660 = vmul.f32 %v1658, 256.0
        %v1661 = vsub.f32 %v1413, %v1659
        %v1662 = vsub.f32 %v1450, %v1660
        %vm1663 = vcmp.lt.f32.partialorder %v1661, 0.0
        %vm1664 = vcmp.lt.f32.partialorder %v1662, 0.0
        %v1665 = vsub.f32 %v1657, 1.0
        %v1666 = vsub.f32 %v1658, 1.0
        %v1667 = vsel %vm1663, %v1665, %v1657
        %v1668 = vsel %vm1664, %v1666, %v1658
        %v1669 = vrsqrt.pop %v1667
        %v1670 = vrsqrt.pop %v1668
        %v1671 = vmul.f32 %v1615, %v1669
        %v1672 = vmul.f32 %v1652, %v1670
        %v1673 = vadd.f32 %v1181, %v1671
        %v1674 = vadd.f32 %v1182, %v1672
        %v1675 = vadd.f32 %v1183, %v1669
        %v1676 = vadd.f32 %v1184, %v1670
        %vm1677 = vcmp.gt.f32.partialorder %v308, %v1413
        %vm1678 = vcmp.gt.f32.partialorder %v309, %v1450
        %vm1679 = vcmp.gt.f32.partialorder %v310, %v1413
        %vm1680 = vcmp.gt.f32.partialorder %v311, %v1450
        %vm1681 = vcmp.gt.f32.partialorder %v312, %v1413
        %vm1682 = vcmp.gt.f32.partialorder %v313, %v1450
        %vm1683 = vcmp.gt.f32.partialorder %v314, %v1413
        %vm1684 = vcmp.gt.f32.partialorder %v315, %v1450
        %vm1685 = vcmp.gt.f32.partialorder %v316, %v1413
        %vm1686 = vcmp.gt.f32.partialorder %v317, %v1450
        %vm1687 = vcmp.gt.f32.partialorder %v318, %v1413
        %vm1688 = vcmp.gt.f32.partialorder %v319, %v1450
        %vm1689 = vcmp.gt.f32.partialorder %v320, %v1413
        %vm1690 = vcmp.gt.f32.partialorder %v321, %v1450
        %vm1691 = vcmp.gt.f32.partialorder %v322, %v1413
        %vm1692 = vcmp.gt.f32.partialorder %v323, %v1450
        %vm1693 = vcmp.gt.f32.partialorder %v324, %v1413
        %vm1694 = vcmp.gt.f32.partialorder %v325, %v1450
        %vm1695 = vcmp.gt.f32.partialorder %v326, %v1413
        %vm1696 = vcmp.gt.f32.partialorder %v327, %v1450
        %vm1697 = vcmp.gt.f32.partialorder %v328, %v1413
        %vm1698 = vcmp.gt.f32.partialorder %v329, %v1450
        %vm1699 = vcmp.gt.f32.partialorder %v330, %v1413
        %vm1700 = vcmp.gt.f32.partialorder %v331, %v1450
        %vm1701 = vcmp.gt.f32.partialorder %v332, %v1413
        %vm1702 = vcmp.gt.f32.partialorder %v333, %v1450
        %vm1703 = vcmp.gt.f32.partialorder %v334, %v1413
        %vm1704 = vcmp.gt.f32.partialorder %v335, %v1450
        %vm1705 = vcmp.gt.f32.partialorder %v336, %v1413
        %vm1706 = vcmp.gt.f32.partialorder %v337, %v1450
        %vm1707 = vcmp.gt.f32.partialorder %v338, %v1413
        %vm1708 = vcmp.gt.f32.partialorder %v339, %v1450
        %vm1709 = vcmp.gt.f32.partialorder %v340, %v1413
        %vm1710 = vcmp.gt.f32.partialorder %v341, %v1450
        %vm1711 = vcmp.gt.f32.partialorder %v342, %v1413
        %vm1712 = vcmp.gt.f32.partialorder %v343, %v1450
        %vm1713 = vcmp.gt.f32.partialorder %v344, %v1413
        %vm1714 = vcmp.gt.f32.partialorder %v345, %v1450
        %vm1715 = vcmp.gt.f32.partialorder %v346, %v1413
        %vm1716 = vcmp.gt.f32.partialorder %v347, %v1450
        %vm1717 = vcmp.gt.f32.partialorder %v348, %v1413
        %vm1718 = vcmp.gt.f32.partialorder %v349, %v1450
        %vm1719 = vcmp.gt.f32.partialorder %v350, %v1413
        %vm1720 = vcmp.gt.f32.partialorder %v351, %v1450
        %vm1721 = vcmp.gt.f32.partialorder %v352, %v1413
        %vm1722 = vcmp.gt.f32.partialorder %v353, %v1450
        %vm1723 = vcmp.gt.f32.partialorder %v354, %v1413
        %vm1724 = vcmp.gt.f32.partialorder %v355, %v1450
        %vm1725 = vcmp.gt.f32.partialorder %v356, %v1413
        %vm1726 = vcmp.gt.f32.partialorder %v357, %v1450
        %vm1727 = vcmp.gt.f32.partialorder %v358, %v1413
        %vm1728 = vcmp.gt.f32.partialorder %v359, %v1450
        %vm1729 = vcmp.gt.f32.partialorder %v360, %v1413
        %vm1730 = vcmp.gt.f32.partialorder %v361, %v1450
        %vm1731 = vcmp.gt.f32.partialorder %v362, %v1413
        %vm1732 = vcmp.gt.f32.partialorder %v363, %v1450
        %vm1733 = vcmp.gt.f32.partialorder %v364, %v1413
        %vm1734 = vcmp.gt.f32.partialorder %v365, %v1450
        %vm1735 = vcmp.gt.f32.partialorder %v366, %v1413
        %vm1736 = vcmp.gt.f32.partialorder %v367, %v1450
        %vm1737 = vcmp.gt.f32.partialorder %v368, %v1413
        %vm1738 = vcmp.gt.f32.partialorder %v369, %v1450
        %vm1739 = vcmp.gt.f32.partialorder %v370, %v1413
        %vm1740 = vcmp.gt.f32.partialorder %v371, %v1450
        %vm1741 = vmand %vm564, %vm1677
        %vm1742 = vmand %vm564, %vm1678
        %vm1743 = vmand %vm565, %vm1679
        %vm1744 = vmand %vm565, %vm1680
        %vm1745 = vmand %vm566, %vm1681
        %vm1746 = vmand %vm566, %vm1682
        %vm1747 = vmand %vm567, %vm1683
        %vm1748 = vmand %vm567, %vm1684
        %vm1749 = vmand %vm568, %vm1685
        %vm1750 = vmand %vm568, %vm1686
        %vm1751 = vmand %vm569, %vm1687
        %vm1752 = vmand %vm569, %vm1688
        %vm1753 = vmand %vm570, %vm1689
        %vm1754 = vmand %vm570, %vm1690
        %vm1755 = vmand %vm571, %vm1691
        %vm1756 = vmand %vm571, %vm1692
        %vm1757 = vmand %vm572, %vm1693
        %vm1758 = vmand %vm572, %vm1694
        %vm1759 = vmand %vm573, %vm1695
        %vm1760 = vmand %vm573, %vm1696
        %vm1761 = vmand %vm574, %vm1697
        %vm1762 = vmand %vm574, %vm1698
        %vm1763 = vmand %vm575, %vm1699
        %vm1764 = vmand %vm575, %vm1700
        %vm1765 = vmand %vm576, %vm1701
        %vm1766 = vmand %vm576, %vm1702
        %vm1767 = vmand %vm577, %vm1703
        %vm1768 = vmand %vm577, %vm1704
        %vm1769 = vmand %vm578, %vm1705
        %vm1770 = vmand %vm578, %vm1706
        %vm1771 = vmand %vm579, %vm1707
        %vm1772 = vmand %vm579, %vm1708
        %vm1773 = vmand %vm580, %vm1709
        %vm1774 = vmand %vm580, %vm1710
        %vm1775 = vmand %vm581, %vm1711
        %vm1776 = vmand %vm581, %vm1712
        %vm1777 = vmand %vm582, %vm1713
        %vm1778 = vmand %vm582, %vm1714
        %vm1779 = vmand %vm583, %vm1715
        %vm1780 = vmand %vm583, %vm1716
        %vm1781 = vmand %vm584, %vm1717
        %vm1782 = vmand %vm584, %vm1718
        %vm1783 = vmand %vm585, %vm1719
        %vm1784 = vmand %vm585, %vm1720
        %vm1785 = vmand %vm586, %vm1721
        %vm1786 = vmand %vm586, %vm1722
        %vm1787 = vmand %vm587, %vm1723
        %vm1788 = vmand %vm587, %vm1724
        %vm1789 = vmand %vm588, %vm1725
        %vm1790 = vmand %vm588, %vm1726
        %vm1791 = vmand %vm589, %vm1727
        %vm1792 = vmand %vm589, %vm1728
        %vm1793 = vmand %vm590, %vm1729
        %vm1794 = vmand %vm590, %vm1730
        %vm1795 = vmand %vm591, %vm1731
        %vm1796 = vmand %vm591, %vm1732
        %vm1797 = vmand %vm592, %vm1733
        %vm1798 = vmand %vm592, %vm1734
        %vm1799 = vmand %vm593, %vm1735
        %vm1800 = vmand %vm593, %vm1736
        %vm1801 = vmand %vm594, %vm1737
        %vm1802 = vmand %vm594, %vm1738
        %vm1803 = vmand %vm595, %vm1739
        %vm1804 = vmand %vm595, %vm1740
        %v1805 = vsel %vm1741, %v308, 1e+30
        %v1806 = vsel %vm1742, %v309, 1e+30
        %v1807 = vsel %vm1743, %v310, 1e+30
        %v1808 = vsel %vm1744, %v311, 1e+30
        %v1809 = vsel %vm1745, %v312, 1e+30
        %v1810 = vsel %vm1746, %v313, 1e+30
        %v1811 = vsel %vm1747, %v314, 1e+30
        %v1812 = vsel %vm1748, %v315, 1e+30
        %v1813 = vsel %vm1749, %v316, 1e+30
        %v1814 = vsel %vm1750, %v317, 1e+30
        %v1815 = vsel %vm1751, %v318, 1e+30
        %v1816 = vsel %vm1752, %v319, 1e+30
        %v1817 = vsel %vm1753, %v320, 1e+30
        %v1818 = vsel %vm1754, %v321, 1e+30
        %v1819 = vsel %vm1755, %v322, 1e+30
        %v1820 = vsel %vm1756, %v323, 1e+30
        %v1821 = vsel %vm1757, %v324, 1e+30
        %v1822 = vsel %vm1758, %v325, 1e+30
        %v1823 = vsel %vm1759, %v326, 1e+30
        %v1824 = vsel %vm1760, %v327, 1e+30
        %v1825 = vsel %vm1761, %v328, 1e+30
        %v1826 = vsel %vm1762, %v329, 1e+30
        %v1827 = vsel %vm1763, %v330, 1e+30
        %v1828 = vsel %vm1764, %v331, 1e+30
        %v1829 = vsel %vm1765, %v332, 1e+30
        %v1830 = vsel %vm1766, %v333, 1e+30
        %v1831 = vsel %vm1767, %v334, 1e+30
        %v1832 = vsel %vm1768, %v335, 1e+30
        %v1833 = vsel %vm1769, %v336, 1e+30
        %v1834 = vsel %vm1770, %v337, 1e+30
        %v1835 = vsel %vm1771, %v338, 1e+30
        %v1836 = vsel %vm1772, %v339, 1e+30
        %v1837 = vsel %vm1773, %v340, 1e+30
        %v1838 = vsel %vm1774, %v341, 1e+30
        %v1839 = vsel %vm1775, %v342, 1e+30
        %v1840 = vsel %vm1776, %v343, 1e+30
        %v1841 = vsel %vm1777, %v344, 1e+30
        %v1842 = vsel %vm1778, %v345, 1e+30
        %v1843 = vsel %vm1779, %v346, 1e+30
        %v1844 = vsel %vm1780, %v347, 1e+30
        %v1845 = vsel %vm1781, %v348, 1e+30
        %v1846 = vsel %vm1782, %v349, 1e+30
        %v1847 = vsel %vm1783, %v350, 1e+30
        %v1848 = vsel %vm1784, %v351, 1e+30
        %v1849 = vsel %vm1785, %v352, 1e+30
        %v1850 = vsel %vm1786, %v353, 1e+30
        %v1851 = vsel %vm1787, %v354, 1e+30
        %v1852 = vsel %vm1788, %v355, 1e+30
        %v1853 = vsel %vm1789, %v356, 1e+30
        %v1854 = vsel %vm1790, %v357, 1e+30
        %v1855 = vsel %vm1791, %v358, 1e+30
        %v1856 = vsel %vm1792, %v359, 1e+30
        %v1857 = vsel %vm1793, %v360, 1e+30
        %v1858 = vsel %vm1794, %v361, 1e+30
        %v1859 = vsel %vm1795, %v362, 1e+30
        %v1860 = vsel %vm1796, %v363, 1e+30
        %v1861 = vsel %vm1797, %v364, 1e+30
        %v1862 = vsel %vm1798, %v365, 1e+30
        %v1863 = vsel %vm1799, %v366, 1e+30
        %v1864 = vsel %vm1800, %v367, 1e+30
        %v1865 = vsel %vm1801, %v368, 1e+30
        %v1866 = vsel %vm1802, %v369, 1e+30
        %v1867 = vsel %vm1803, %v370, 1e+30
        %v1868 = vsel %vm1804, %v371, 1e+30
        %v1869 = vmin.f32 %v1805, %v1809
        %v1870 = vmin.f32 %v1807, %v1811
        %v1871 = vmin.f32 %v1869, %v1813
        %v1872 = vmin.f32 %v1870, %v1815
        %v1873 = vmin.f32 %v1871, %v1817
        %v1874 = vmin.f32 %v1872, %v1819
        %v1875 = vmin.f32 %v1873, %v1821
        %v1876 = vmin.f32 %v1874, %v1823
        %v1877 = vmin.f32 %v1875, %v1825
        %v1878 = vmin.f32 %v1876, %v1827
        %v1879 = vmin.f32 %v1877, %v1829
        %v1880 = vmin.f32 %v1878, %v1831
        %v1881 = vmin.f32 %v1879, %v1833
        %v1882 = vmin.f32 %v1880, %v1835
        %v1883 = vmin.f32 %v1881, %v1837
        %v1884 = vmin.f32 %v1882, %v1839
        %v1885 = vmin.f32 %v1883, %v1841
        %v1886 = vmin.f32 %v1884, %v1843
        %v1887 = vmin.f32 %v1885, %v1845
        %v1888 = vmin.f32 %v1886, %v1847
        %v1889 = vmin.f32 %v1887, %v1849
        %v1890 = vmin.f32 %v1888, %v1851
        %v1891 = vmin.f32 %v1889, %v1853
        %v1892 = vmin.f32 %v1890, %v1855
        %v1893 = vmin.f32 %v1891, %v1857
        %v1894 = vmin.f32 %v1892, %v1859
        %v1895 = vmin.f32 %v1893, %v1861
        %v1896 = vmin.f32 %v1894, %v1863
        %v1897 = vmin.f32 %v1895, %v1865
        %v1898 = vmin.f32 %v1896, %v1867
        %v1899 = vmin.f32 %v1897, %v1898
        %v1900 = vrot.slane %v1899, 4
        %v1901 = vmin.f32 %v1899, %v1900
        %v1902 = vrot.slane %v1901, 2
        %v1903 = vmin.f32 %v1901, %v1902
        %v1904 = vrot.slane %v1903, 1
        %v1905 = vmin.f32 %v1903, %v1904
        %v1906 = vmin.f32 %v1806, %v1810
        %v1907 = vmin.f32 %v1808, %v1812
        %v1908 = vmin.f32 %v1906, %v1814
        %v1909 = vmin.f32 %v1907, %v1816
        %v1910 = vmin.f32 %v1908, %v1818
        %v1911 = vmin.f32 %v1909, %v1820
        %v1912 = vmin.f32 %v1910, %v1822
        %v1913 = vmin.f32 %v1911, %v1824
        %v1914 = vmin.f32 %v1912, %v1826
        %v1915 = vmin.f32 %v1913, %v1828
        %v1916 = vmin.f32 %v1914, %v1830
        %v1917 = vmin.f32 %v1915, %v1832
        %v1918 = vmin.f32 %v1916, %v1834
        %v1919 = vmin.f32 %v1917, %v1836
        %v1920 = vmin.f32 %v1918, %v1838
        %v1921 = vmin.f32 %v1919, %v1840
        %v1922 = vmin.f32 %v1920, %v1842
        %v1923 = vmin.f32 %v1921, %v1844
        %v1924 = vmin.f32 %v1922, %v1846
        %v1925 = vmin.f32 %v1923, %v1848
        %v1926 = vmin.f32 %v1924, %v1850
        %v1927 = vmin.f32 %v1925, %v1852
        %v1928 = vmin.f32 %v1926, %v1854
        %v1929 = vmin.f32 %v1927, %v1856
        %v1930 = vmin.f32 %v1928, %v1858
        %v1931 = vmin.f32 %v1929, %v1860
        %v1932 = vmin.f32 %v1930, %v1862
        %v1933 = vmin.f32 %v1931, %v1864
        %v1934 = vmin.f32 %v1932, %v1866
        %v1935 = vmin.f32 %v1933, %v1868
        %v1936 = vmin.f32 %v1934, %v1935
        %v1937 = vrot.slane %v1936, 4
        %v1938 = vmin.f32 %v1936, %v1937
        %v1939 = vrot.slane %v1938, 2
        %v1940 = vmin.f32 %v1938, %v1939
        %v1941 = vrot.slane %v1940, 1
        %v1942 = vmin.f32 %v1940, %v1941
        %vm1943 = vcmp.eq.f32.partialorder %v308, %v1905
        %vm1944 = vcmp.eq.f32.partialorder %v309, %v1942
        %vm1945 = vcmp.eq.f32.partialorder %v310, %v1905
        %vm1946 = vcmp.eq.f32.partialorder %v311, %v1942
        %vm1947 = vcmp.eq.f32.partialorder %v312, %v1905
        %vm1948 = vcmp.eq.f32.partialorder %v313, %v1942
        %vm1949 = vcmp.eq.f32.partialorder %v314, %v1905
        %vm1950 = vcmp.eq.f32.partialorder %v315, %v1942
        %vm1951 = vcmp.eq.f32.partialorder %v316, %v1905
        %vm1952 = vcmp.eq.f32.partialorder %v317, %v1942
        %vm1953 = vcmp.eq.f32.partialorder %v318, %v1905
        %vm1954 = vcmp.eq.f32.partialorder %v319, %v1942
        %vm1955 = vcmp.eq.f32.partialorder %v320, %v1905
        %vm1956 = vcmp.eq.f32.partialorder %v321, %v1942
        %vm1957 = vcmp.eq.f32.partialorder %v322, %v1905
        %vm1958 = vcmp.eq.f32.partialorder %v323, %v1942
        %vm1959 = vcmp.eq.f32.partialorder %v324, %v1905
        %vm1960 = vcmp.eq.f32.partialorder %v325, %v1942
        %vm1961 = vcmp.eq.f32.partialorder %v326, %v1905
        %vm1962 = vcmp.eq.f32.partialorder %v327, %v1942
        %vm1963 = vcmp.eq.f32.partialorder %v328, %v1905
        %vm1964 = vcmp.eq.f32.partialorder %v329, %v1942
        %vm1965 = vcmp.eq.f32.partialorder %v330, %v1905
        %vm1966 = vcmp.eq.f32.partialorder %v331, %v1942
        %vm1967 = vcmp.eq.f32.partialorder %v332, %v1905
        %vm1968 = vcmp.eq.f32.partialorder %v333, %v1942
        %vm1969 = vcmp.eq.f32.partialorder %v334, %v1905
        %vm1970 = vcmp.eq.f32.partialorder %v335, %v1942
        %vm1971 = vcmp.eq.f32.partialorder %v336, %v1905
        %vm1972 = vcmp.eq.f32.partialorder %v337, %v1942
        %vm1973 = vcmp.eq.f32.partialorder %v338, %v1905
        %vm1974 = vcmp.eq.f32.partialorder %v339, %v1942
        %vm1975 = vcmp.eq.f32.partialorder %v340, %v1905
        %vm1976 = vcmp.eq.f32.partialorder %v341, %v1942
        %vm1977 = vcmp.eq.f32.partialorder %v342, %v1905
        %vm1978 = vcmp.eq.f32.partialorder %v343, %v1942
        %vm1979 = vcmp.eq.f32.partialorder %v344, %v1905
        %vm1980 = vcmp.eq.f32.partialorder %v345, %v1942
        %vm1981 = vcmp.eq.f32.partialorder %v346, %v1905
        %vm1982 = vcmp.eq.f32.partialorder %v347, %v1942
        %vm1983 = vcmp.eq.f32.partialorder %v348, %v1905
        %vm1984 = vcmp.eq.f32.partialorder %v349, %v1942
        %vm1985 = vcmp.eq.f32.partialorder %v350, %v1905
        %vm1986 = vcmp.eq.f32.partialorder %v351, %v1942
        %vm1987 = vcmp.eq.f32.partialorder %v352, %v1905
        %vm1988 = vcmp.eq.f32.partialorder %v353, %v1942
        %vm1989 = vcmp.eq.f32.partialorder %v354, %v1905
        %vm1990 = vcmp.eq.f32.partialorder %v355, %v1942
        %vm1991 = vcmp.eq.f32.partialorder %v356, %v1905
        %vm1992 = vcmp.eq.f32.partialorder %v357, %v1942
        %vm1993 = vcmp.eq.f32.partialorder %v358, %v1905
        %vm1994 = vcmp.eq.f32.partialorder %v359, %v1942
        %vm1995 = vcmp.eq.f32.partialorder %v360, %v1905
        %vm1996 = vcmp.eq.f32.partialorder %v361, %v1942
        %vm1997 = vcmp.eq.f32.partialorder %v362, %v1905
        %vm1998 = vcmp.eq.f32.partialorder %v363, %v1942
        %vm1999 = vcmp.eq.f32.partialorder %v364, %v1905
        %vm2000 = vcmp.eq.f32.partialorder %v365, %v1942
        %vm2001 = vcmp.eq.f32.partialorder %v366, %v1905
        %vm2002 = vcmp.eq.f32.partialorder %v367, %v1942
        %vm2003 = vcmp.eq.f32.partialorder %v368, %v1905
        %vm2004 = vcmp.eq.f32.partialorder %v369, %v1942
        %vm2005 = vcmp.eq.f32.partialorder %v370, %v1905
        %vm2006 = vcmp.eq.f32.partialorder %v371, %v1942
        %v2007 = vsel %vm1943, %v865, 0.0
        %v2008 = vsel %vm1944, %v865, 0.0
        %v2009 = vsel %vm1945, %v870, 0.0
        %v2010 = vsel %vm1946, %v870, 0.0
        %v2011 = vsel %vm1947, %v875, 0.0
        %v2012 = vsel %vm1948, %v875, 0.0
        %v2013 = vsel %vm1949, %v880, 0.0
        %v2014 = vsel %vm1950, %v880, 0.0
        %v2015 = vsel %vm1951, %v885, 0.0
        %v2016 = vsel %vm1952, %v885, 0.0
        %v2017 = vsel %vm1953, %v890, 0.0
        %v2018 = vsel %vm1954, %v890, 0.0
        %v2019 = vsel %vm1955, %v895, 0.0
        %v2020 = vsel %vm1956, %v895, 0.0
        %v2021 = vsel %vm1957, %v900, 0.0
        %v2022 = vsel %vm1958, %v900, 0.0
        %v2023 = vsel %vm1959, %v905, 0.0
        %v2024 = vsel %vm1960, %v905, 0.0
        %v2025 = vsel %vm1961, %v910, 0.0
        %v2026 = vsel %vm1962, %v910, 0.0
        %v2027 = vsel %vm1963, %v915, 0.0
        %v2028 = vsel %vm1964, %v915, 0.0
        %v2029 = vsel %vm1965, %v920, 0.0
        %v2030 = vsel %vm1966, %v920, 0.0
        %v2031 = vsel %vm1967, %v925, 0.0
        %v2032 = vsel %vm1968, %v925, 0.0
        %v2033 = vsel %vm1969, %v930, 0.0
        %v2034 = vsel %vm1970, %v930, 0.0
        %v2035 = vsel %vm1971, %v935, 0.0
        %v2036 = vsel %vm1972, %v935, 0.0
        %v2037 = vsel %vm1973, %v940, 0.0
        %v2038 = vsel %vm1974, %v940, 0.0
        %v2039 = vsel %vm1975, %v945, 0.0
        %v2040 = vsel %vm1976, %v945, 0.0
        %v2041 = vsel %vm1977, %v950, 0.0
        %v2042 = vsel %vm1978, %v950, 0.0
        %v2043 = vsel %vm1979, %v955, 0.0
        %v2044 = vsel %vm1980, %v955, 0.0
        %v2045 = vsel %vm1981, %v960, 0.0
        %v2046 = vsel %vm1982, %v960, 0.0
        %v2047 = vsel %vm1983, %v965, 0.0
        %v2048 = vsel %vm1984, %v965, 0.0
        %v2049 = vsel %vm1985, %v970, 0.0
        %v2050 = vsel %vm1986, %v970, 0.0
        %v2051 = vsel %vm1987, %v975, 0.0
        %v2052 = vsel %vm1988, %v975, 0.0
        %v2053 = vsel %vm1989, %v980, 0.0
        %v2054 = vsel %vm1990, %v980, 0.0
        %v2055 = vsel %vm1991, %v985, 0.0
        %v2056 = vsel %vm1992, %v985, 0.0
        %v2057 = vsel %vm1993, %v990, 0.0
        %v2058 = vsel %vm1994, %v990, 0.0
        %v2059 = vsel %vm1995, %v995, 0.0
        %v2060 = vsel %vm1996, %v995, 0.0
        %v2061 = vsel %vm1997, %v1000, 0.0
        %v2062 = vsel %vm1998, %v1000, 0.0
        %v2063 = vsel %vm1999, %v1005, 0.0
        %v2064 = vsel %vm2000, %v1005, 0.0
        %v2065 = vsel %vm2001, %v1010, 0.0
        %v2066 = vsel %vm2002, %v1010, 0.0
        %v2067 = vsel %vm2003, %v1015, 0.0
        %v2068 = vsel %vm2004, %v1015, 0.0
        %v2069 = vsel %vm2005, %v1020, 0.0
        %v2070 = vsel %vm2006, %v1020, 0.0
        %v2071 = vadd.f32 %v2007, %v2009
        %v2072 = vadd.f32 %v2071, %v2011
        %v2073 = vadd.f32 %v2072, %v2013
        %v2074 = vadd.f32 %v2073, %v2015
        %v2075 = vadd.f32 %v2074, %v2017
        %v2076 = vadd.f32 %v2075, %v2019
        %v2077 = vadd.f32 %v2076, %v2021
        %v2078 = vadd.f32 %v2077, %v2023
        %v2079 = vadd.f32 %v2078, %v2025
        %v2080 = vadd.f32 %v2079, %v2027
        %v2081 = vadd.f32 %v2080, %v2029
        %v2082 = vadd.f32 %v2081, %v2031
        %v2083 = vadd.f32 %v2082, %v2033
        %v2084 = vadd.f32 %v2083, %v2035
        %v2085 = vadd.f32 %v2084, %v2037
        %v2086 = vadd.f32 %v2085, %v2039
        %v2087 = vadd.f32 %v2086, %v2041
        %v2088 = vadd.f32 %v2087, %v2043
        %v2089 = vadd.f32 %v2088, %v2045
        %v2090 = vadd.f32 %v2089, %v2047
        %v2091 = vadd.f32 %v2090, %v2049
        %v2092 = vadd.f32 %v2091, %v2051
        %v2093 = vadd.f32 %v2092, %v2053
        %v2094 = vadd.f32 %v2093, %v2055
        %v2095 = vadd.f32 %v2094, %v2057
        %v2096 = vadd.f32 %v2095, %v2059
        %v2097 = vadd.f32 %v2096, %v2061
        %v2098 = vadd.f32 %v2097, %v2063
        %v2099 = vadd.f32 %v2098, %v2065
        %v2100 = vadd.f32 %v2099, %v2067
        %v2101 = vadd.f32 %v2100, %v2069
        %v2102 = vrot.slane %v2101, 4
        %v2103 = vadd.f32 %v2101, %v2102
        %v2104 = vrot.slane %v2103, 2
        %v2105 = vadd.f32 %v2103, %v2104
        %v2106 = vrot.slane %v2105, 1
        %v2107 = vadd.f32 %v2105, %v2106
        %v2108 = vadd.f32 %v2008, %v2010
        %v2109 = vadd.f32 %v2108, %v2012
        %v2110 = vadd.f32 %v2109, %v2014
        %v2111 = vadd.f32 %v2110, %v2016
        %v2112 = vadd.f32 %v2111, %v2018
        %v2113 = vadd.f32 %v2112, %v2020
        %v2114 = vadd.f32 %v2113, %v2022
        %v2115 = vadd.f32 %v2114, %v2024
        %v2116 = vadd.f32 %v2115, %v2026
        %v2117 = vadd.f32 %v2116, %v2028
        %v2118 = vadd.f32 %v2117, %v2030
        %v2119 = vadd.f32 %v2118, %v2032
        %v2120 = vadd.f32 %v2119, %v2034
        %v2121 = vadd.f32 %v2120, %v2036
        %v2122 = vadd.f32 %v2121, %v2038
        %v2123 = vadd.f32 %v2122, %v2040
        %v2124 = vadd.f32 %v2123, %v2042
        %v2125 = vadd.f32 %v2124, %v2044
        %v2126 = vadd.f32 %v2125, %v2046
        %v2127 = vadd.f32 %v2126, %v2048
        %v2128 = vadd.f32 %v2127, %v2050
        %v2129 = vadd.f32 %v2128, %v2052
        %v2130 = vadd.f32 %v2129, %v2054
        %v2131 = vadd.f32 %v2130, %v2056
        %v2132 = vadd.f32 %v2131, %v2058
        %v2133 = vadd.f32 %v2132, %v2060
        %v2134 = vadd.f32 %v2133, %v2062
        %v2135 = vadd.f32 %v2134, %v2064
        %v2136 = vadd.f32 %v2135, %v2066
        %v2137 = vadd.f32 %v2136, %v2068
        %v2138 = vadd.f32 %v2137, %v2070
        %v2139 = vrot.slane %v2138, 4
        %v2140 = vadd.f32 %v2138, %v2139
        %v2141 = vrot.slane %v2140, 2
        %v2142 = vadd.f32 %v2140, %v2141
        %v2143 = vrot.slane %v2142, 1
        %v2144 = vadd.f32 %v2142, %v2143
        %v2145 = vmul.f32 %v1905, %v1160
        %v2146 = vmul.f32 %v1942, %v1160
        %v2147 = vadd.f32 %v2145, 0.5
        %v2148 = vadd.f32 %v2146, 0.5
        %v2149 = vfloor.f32 %v2147
        %v2150 = vfloor.f32 %v2148
        %v2151 = vmul.f32 %v2149, 256.0
        %v2152 = vmul.f32 %v2150, 256.0
        %v2153 = vsub.f32 %v1905, %v2151
        %v2154 = vsub.f32 %v1942, %v2152
        %vm2155 = vcmp.lt.f32.partialorder %v2153, 0.0
        %vm2156 = vcmp.lt.f32.partialorder %v2154, 0.0
        %v2157 = vsub.f32 %v2149, 1.0
        %v2158 = vsub.f32 %v2150, 1.0
        %v2159 = vsel %vm2155, %v2157, %v2149
        %v2160 = vsel %vm2156, %v2158, %v2150
        %v2161 = vrsqrt.pop %v2159
        %v2162 = vrsqrt.pop %v2160
        %v2163 = vmul.f32 %v2107, %v2161
        %v2164 = vmul.f32 %v2144, %v2162
        %v2165 = vadd.f32 %v1673, %v2163
        %v2166 = vadd.f32 %v1674, %v2164
        %v2167 = vadd.f32 %v1675, %v2161
        %v2168 = vadd.f32 %v1676, %v2162
        %v2169 = vrcp.pop %v2167
        %v2170 = vmul.f32 %v2165, %v2169
        %v2171 = vrcp.pop %v2168
        %v2172 = vmul.f32 %v2166, %v2171
        %v2175 = vcombine.low %v2170, %v2172
        %v2177 = vunpack.c.l.s4 1966171168
        %v2178 = vunpack.c.0.s8 %v2177
        %v2179 = vlaneseq
        %v2180 = vshrl.u32 %v2179, 7
        %v2181 = vsub.s32 %v2178, %v2180
        %v2182 = vrot.slane %v2175, %v2181
        %v2184 = vunpack.c.l.s4 1966171168
        %v2185 = vunpack.c.0.s8 %v2184
        %v2186 = vlaneseq
        %v2187 = vshrl.u32 %v2186, 7
        %v2188 = vsub.s32 %v2185, %v2187
        %v2189 = vrot.slane %v2182, %v2188
        %v2191 = vsel %vm275, %v242, %v2189
        %s2192 = scalar_lea.vmem %s234, 1
        %v2193 = vld [vmem:[%s2192] ss:$4 sm:$0x3]
        %s2194 = scalar_lea.vmem %s240, 256
        %v2195 = vld [vmem:[%s2194] sm:$0xff]
        %v2196 = vld [vmem:[%s2194 + $0x8] sm:$0xff]
        %v2197 = vld [vmem:[%s2194 + $0x10] sm:$0xff]
        %v2198 = vld [vmem:[%s2194 + $0x18] sm:$0xff]
        %v2199 = vld [vmem:[%s2194 + $0x20] sm:$0xff]
        %v2200 = vld [vmem:[%s2194 + $0x28] sm:$0xff]
        %v2201 = vld [vmem:[%s2194 + $0x30] sm:$0xff]
        %v2202 = vld [vmem:[%s2194 + $0x38] sm:$0xff]
        %v2203 = vld [vmem:[%s2194 + $0x40] sm:$0xff]
        %v2204 = vld [vmem:[%s2194 + $0x48] sm:$0xff]
        %v2205 = vld [vmem:[%s2194 + $0x50] sm:$0xff]
        %v2206 = vld [vmem:[%s2194 + $0x58] sm:$0xff]
        %v2207 = vld [vmem:[%s2194 + $0x60] sm:$0xff]
        %v2208 = vld [vmem:[%s2194 + $0x68] sm:$0xff]
        %v2209 = vld [vmem:[%s2194 + $0x70] sm:$0xff]
        %v2210 = vld [vmem:[%s2194 + $0x78] sm:$0xff]
        %v2211 = vld [vmem:[%s2194 + $0x80] sm:$0xff]
        %v2212 = vld [vmem:[%s2194 + $0x88] sm:$0xff]
        %v2213 = vld [vmem:[%s2194 + $0x90] sm:$0xff]
        %v2214 = vld [vmem:[%s2194 + $0x98] sm:$0xff]
        %v2215 = vld [vmem:[%s2194 + $0xa0] sm:$0xff]
        %v2216 = vld [vmem:[%s2194 + $0xa8] sm:$0xff]
        %v2217 = vld [vmem:[%s2194 + $0xb0] sm:$0xff]
        %v2218 = vld [vmem:[%s2194 + $0xb8] sm:$0xff]
        %v2219 = vld [vmem:[%s2194 + $0xc0] sm:$0xff]
        %v2220 = vld [vmem:[%s2194 + $0xc8] sm:$0xff]
        %v2221 = vld [vmem:[%s2194 + $0xd0] sm:$0xff]
        %v2222 = vld [vmem:[%s2194 + $0xd8] sm:$0xff]
        %v2223 = vld [vmem:[%s2194 + $0xe0] sm:$0xff]
        %v2224 = vld [vmem:[%s2194 + $0xe8] sm:$0xff]
        %v2225 = vld [vmem:[%s2194 + $0xf0] sm:$0xff]
        %v2226 = vld [vmem:[%s2194 + $0xf8] sm:$0xff]
        %vm2227 = vcmp.ne.f32.partialorder %v2193, 0.0
        %vm2228 = vcmp.ne.f32.partialorder %v2195, 0.0
        %vm2229 = vcmp.ne.f32.partialorder %v2196, 0.0
        %vm2230 = vcmp.ne.f32.partialorder %v2197, 0.0
        %vm2231 = vcmp.ne.f32.partialorder %v2198, 0.0
        %vm2232 = vcmp.ne.f32.partialorder %v2199, 0.0
        %vm2233 = vcmp.ne.f32.partialorder %v2200, 0.0
        %vm2234 = vcmp.ne.f32.partialorder %v2201, 0.0
        %vm2235 = vcmp.ne.f32.partialorder %v2202, 0.0
        %vm2236 = vcmp.ne.f32.partialorder %v2203, 0.0
        %vm2237 = vcmp.ne.f32.partialorder %v2204, 0.0
        %vm2238 = vcmp.ne.f32.partialorder %v2205, 0.0
        %vm2239 = vcmp.ne.f32.partialorder %v2206, 0.0
        %vm2240 = vcmp.ne.f32.partialorder %v2207, 0.0
        %vm2241 = vcmp.ne.f32.partialorder %v2208, 0.0
        %vm2242 = vcmp.ne.f32.partialorder %v2209, 0.0
        %vm2243 = vcmp.ne.f32.partialorder %v2210, 0.0
        %vm2244 = vcmp.ne.f32.partialorder %v2211, 0.0
        %vm2245 = vcmp.ne.f32.partialorder %v2212, 0.0
        %vm2246 = vcmp.ne.f32.partialorder %v2213, 0.0
        %vm2247 = vcmp.ne.f32.partialorder %v2214, 0.0
        %vm2248 = vcmp.ne.f32.partialorder %v2215, 0.0
        %vm2249 = vcmp.ne.f32.partialorder %v2216, 0.0
        %vm2250 = vcmp.ne.f32.partialorder %v2217, 0.0
        %vm2251 = vcmp.ne.f32.partialorder %v2218, 0.0
        %vm2252 = vcmp.ne.f32.partialorder %v2219, 0.0
        %vm2253 = vcmp.ne.f32.partialorder %v2220, 0.0
        %vm2254 = vcmp.ne.f32.partialorder %v2221, 0.0
        %vm2255 = vcmp.ne.f32.partialorder %v2222, 0.0
        %vm2256 = vcmp.ne.f32.partialorder %v2223, 0.0
        %vm2257 = vcmp.ne.f32.partialorder %v2224, 0.0
        %vm2258 = vcmp.ne.f32.partialorder %v2225, 0.0
        %vm2259 = vcmp.ne.f32.partialorder %v2226, 0.0
        %v2260 = vsel %vm2228, 1, 0
        %v2261 = vsel %vm2229, 1, 0
        %v2262 = vsel %vm2230, 1, 0
        %v2263 = vsel %vm2231, 1, 0
        %v2264 = vsel %vm2232, 1, 0
        %v2265 = vsel %vm2233, 1, 0
        %v2266 = vsel %vm2234, 1, 0
        %v2267 = vsel %vm2235, 1, 0
        %v2268 = vsel %vm2236, 1, 0
        %v2269 = vsel %vm2237, 1, 0
        %v2270 = vsel %vm2238, 1, 0
        %v2271 = vsel %vm2239, 1, 0
        %v2272 = vsel %vm2240, 1, 0
        %v2273 = vsel %vm2241, 1, 0
        %v2274 = vsel %vm2242, 1, 0
        %v2275 = vsel %vm2243, 1, 0
        %v2276 = vsel %vm2244, 1, 0
        %v2277 = vsel %vm2245, 1, 0
        %v2278 = vsel %vm2246, 1, 0
        %v2279 = vsel %vm2247, 1, 0
        %v2280 = vsel %vm2248, 1, 0
        %v2281 = vsel %vm2249, 1, 0
        %v2282 = vsel %vm2250, 1, 0
        %v2283 = vsel %vm2251, 1, 0
        %v2284 = vsel %vm2252, 1, 0
        %v2285 = vsel %vm2253, 1, 0
        %v2286 = vsel %vm2254, 1, 0
        %v2287 = vsel %vm2255, 1, 0
        %v2288 = vsel %vm2256, 1, 0
        %v2289 = vsel %vm2257, 1, 0
        %v2290 = vsel %vm2258, 1, 0
        %v2291 = vsel %vm2259, 1, 0
        %2292 = vset.pattern.permute.xlu0 0
        %2293 = vperm.xlu0 %2292, %v2260
        %v2294 = vpop.permute.xlu0 %2293
        %2295 = vset.pattern.permute.xlu0 0
        %2296 = vperm.xlu0 %2295, %v2261
        %v2297 = vpop.permute.xlu0 %2296
        %2298 = vset.pattern.permute.xlu0 0
        %2299 = vperm.xlu0 %2298, %v2262
        %v2300 = vpop.permute.xlu0 %2299
        %2301 = vset.pattern.permute.xlu0 0
        %2302 = vperm.xlu0 %2301, %v2263
        %v2303 = vpop.permute.xlu0 %2302
        %2304 = vset.pattern.permute.xlu0 0
        %2305 = vperm.xlu0 %2304, %v2264
        %v2306 = vpop.permute.xlu0 %2305
        %2307 = vset.pattern.permute.xlu0 0
        %2308 = vperm.xlu0 %2307, %v2265
        %v2309 = vpop.permute.xlu0 %2308
        %2310 = vset.pattern.permute.xlu0 0
        %2311 = vperm.xlu0 %2310, %v2266
        %v2312 = vpop.permute.xlu0 %2311
        %2313 = vset.pattern.permute.xlu0 0
        %2314 = vperm.xlu0 %2313, %v2267
        %v2315 = vpop.permute.xlu0 %2314
        %2316 = vset.pattern.permute.xlu0 0
        %2317 = vperm.xlu0 %2316, %v2268
        %v2318 = vpop.permute.xlu0 %2317
        %2319 = vset.pattern.permute.xlu0 0
        %2320 = vperm.xlu0 %2319, %v2269
        %v2321 = vpop.permute.xlu0 %2320
        %2322 = vset.pattern.permute.xlu0 0
        %2323 = vperm.xlu0 %2322, %v2270
        %v2324 = vpop.permute.xlu0 %2323
        %2325 = vset.pattern.permute.xlu0 0
        %2326 = vperm.xlu0 %2325, %v2271
        %v2327 = vpop.permute.xlu0 %2326
        %2328 = vset.pattern.permute.xlu0 0
        %2329 = vperm.xlu0 %2328, %v2272
        %v2330 = vpop.permute.xlu0 %2329
        %2331 = vset.pattern.permute.xlu0 0
        %2332 = vperm.xlu0 %2331, %v2273
        %v2333 = vpop.permute.xlu0 %2332
        %2334 = vset.pattern.permute.xlu0 0
        %2335 = vperm.xlu0 %2334, %v2274
        %v2336 = vpop.permute.xlu0 %2335
        %2337 = vset.pattern.permute.xlu0 0
        %2338 = vperm.xlu0 %2337, %v2275
        %v2339 = vpop.permute.xlu0 %2338
        %2340 = vset.pattern.permute.xlu0 0
        %2341 = vperm.xlu0 %2340, %v2276
        %v2342 = vpop.permute.xlu0 %2341
        %2343 = vset.pattern.permute.xlu0 0
        %2344 = vperm.xlu0 %2343, %v2277
        %v2345 = vpop.permute.xlu0 %2344
        %2346 = vset.pattern.permute.xlu0 0
        %2347 = vperm.xlu0 %2346, %v2278
        %v2348 = vpop.permute.xlu0 %2347
        %2349 = vset.pattern.permute.xlu0 0
        %2350 = vperm.xlu0 %2349, %v2279
        %v2351 = vpop.permute.xlu0 %2350
        %2352 = vset.pattern.permute.xlu0 0
        %2353 = vperm.xlu0 %2352, %v2280
        %v2354 = vpop.permute.xlu0 %2353
        %2355 = vset.pattern.permute.xlu0 0
        %2356 = vperm.xlu0 %2355, %v2281
        %v2357 = vpop.permute.xlu0 %2356
        %2358 = vset.pattern.permute.xlu0 0
        %2359 = vperm.xlu0 %2358, %v2282
        %v2360 = vpop.permute.xlu0 %2359
        %2361 = vset.pattern.permute.xlu0 0
        %2362 = vperm.xlu0 %2361, %v2283
        %v2363 = vpop.permute.xlu0 %2362
        %2364 = vset.pattern.permute.xlu0 0
        %2365 = vperm.xlu0 %2364, %v2284
        %v2366 = vpop.permute.xlu0 %2365
        %2367 = vset.pattern.permute.xlu0 0
        %2368 = vperm.xlu0 %2367, %v2285
        %v2369 = vpop.permute.xlu0 %2368
        %2370 = vset.pattern.permute.xlu0 0
        %2371 = vperm.xlu0 %2370, %v2286
        %v2372 = vpop.permute.xlu0 %2371
        %2373 = vset.pattern.permute.xlu0 0
        %2374 = vperm.xlu0 %2373, %v2287
        %v2375 = vpop.permute.xlu0 %2374
        %2376 = vset.pattern.permute.xlu0 0
        %2377 = vperm.xlu0 %2376, %v2288
        %v2378 = vpop.permute.xlu0 %2377
        %2379 = vset.pattern.permute.xlu0 0
        %2380 = vperm.xlu0 %2379, %v2289
        %v2381 = vpop.permute.xlu0 %2380
        %2382 = vset.pattern.permute.xlu0 0
        %2383 = vperm.xlu0 %2382, %v2290
        %v2384 = vpop.permute.xlu0 %2383
        %2385 = vset.pattern.permute.xlu0 0
        %2386 = vperm.xlu0 %2385, %v2291
        %v2387 = vpop.permute.xlu0 %2386
        %vm2388 = vcmp.eq.s32.totalorder %v2294, 1
        %vm2389 = vcmp.eq.s32.totalorder %v2297, 1
        %vm2390 = vcmp.eq.s32.totalorder %v2300, 1
        %vm2391 = vcmp.eq.s32.totalorder %v2303, 1
        %vm2392 = vcmp.eq.s32.totalorder %v2306, 1
        %vm2393 = vcmp.eq.s32.totalorder %v2309, 1
        %vm2394 = vcmp.eq.s32.totalorder %v2312, 1
        %vm2395 = vcmp.eq.s32.totalorder %v2315, 1
        %vm2396 = vcmp.eq.s32.totalorder %v2318, 1
        %vm2397 = vcmp.eq.s32.totalorder %v2321, 1
        %vm2398 = vcmp.eq.s32.totalorder %v2324, 1
        %vm2399 = vcmp.eq.s32.totalorder %v2327, 1
        %vm2400 = vcmp.eq.s32.totalorder %v2330, 1
        %vm2401 = vcmp.eq.s32.totalorder %v2333, 1
        %vm2402 = vcmp.eq.s32.totalorder %v2336, 1
        %vm2403 = vcmp.eq.s32.totalorder %v2339, 1
        %vm2404 = vcmp.eq.s32.totalorder %v2342, 1
        %vm2405 = vcmp.eq.s32.totalorder %v2345, 1
        %vm2406 = vcmp.eq.s32.totalorder %v2348, 1
        %vm2407 = vcmp.eq.s32.totalorder %v2351, 1
        %vm2408 = vcmp.eq.s32.totalorder %v2354, 1
        %vm2409 = vcmp.eq.s32.totalorder %v2357, 1
        %vm2410 = vcmp.eq.s32.totalorder %v2360, 1
        %vm2411 = vcmp.eq.s32.totalorder %v2363, 1
        %vm2412 = vcmp.eq.s32.totalorder %v2366, 1
        %vm2413 = vcmp.eq.s32.totalorder %v2369, 1
        %vm2414 = vcmp.eq.s32.totalorder %v2372, 1
        %vm2415 = vcmp.eq.s32.totalorder %v2375, 1
        %vm2416 = vcmp.eq.s32.totalorder %v2378, 1
        %vm2417 = vcmp.eq.s32.totalorder %v2381, 1
        %vm2418 = vcmp.eq.s32.totalorder %v2384, 1
        %vm2419 = vcmp.eq.s32.totalorder %v2387, 1
        %vm2420 = vmand %vm2388, %vm372
        %vm2421 = vmand %vm2388, %vm373
        %vm2422 = vmand %vm2389, %vm374
        %vm2423 = vmand %vm2389, %vm375
        %vm2424 = vmand %vm2390, %vm376
        %vm2425 = vmand %vm2390, %vm377
        %vm2426 = vmand %vm2391, %vm378
        %vm2427 = vmand %vm2391, %vm379
        %vm2428 = vmand %vm2392, %vm380
        %vm2429 = vmand %vm2392, %vm381
        %vm2430 = vmand %vm2393, %vm382
        %vm2431 = vmand %vm2393, %vm383
        %vm2432 = vmand %vm2394, %vm384
        %vm2433 = vmand %vm2394, %vm385
        %vm2434 = vmand %vm2395, %vm386
        %vm2435 = vmand %vm2395, %vm387
        %vm2436 = vmand %vm2396, %vm388
        %vm2437 = vmand %vm2396, %vm389
        %vm2438 = vmand %vm2397, %vm390
        %vm2439 = vmand %vm2397, %vm391
        %vm2440 = vmand %vm2398, %vm392
        %vm2441 = vmand %vm2398, %vm393
        %vm2442 = vmand %vm2399, %vm394
        %vm2443 = vmand %vm2399, %vm395
        %vm2444 = vmand %vm2400, %vm396
        %vm2445 = vmand %vm2400, %vm397
        %vm2446 = vmand %vm2401, %vm398
        %vm2447 = vmand %vm2401, %vm399
        %vm2448 = vmand %vm2402, %vm400
        %vm2449 = vmand %vm2402, %vm401
        %vm2450 = vmand %vm2403, %vm402
        %vm2451 = vmand %vm2403, %vm403
        %vm2452 = vmand %vm2404, %vm404
        %vm2453 = vmand %vm2404, %vm405
        %vm2454 = vmand %vm2405, %vm406
        %vm2455 = vmand %vm2405, %vm407
        %vm2456 = vmand %vm2406, %vm408
        %vm2457 = vmand %vm2406, %vm409
        %vm2458 = vmand %vm2407, %vm410
        %vm2459 = vmand %vm2407, %vm411
        %vm2460 = vmand %vm2408, %vm412
        %vm2461 = vmand %vm2408, %vm413
        %vm2462 = vmand %vm2409, %vm414
        %vm2463 = vmand %vm2409, %vm415
        %vm2464 = vmand %vm2410, %vm416
        %vm2465 = vmand %vm2410, %vm417
        %vm2466 = vmand %vm2411, %vm418
        %vm2467 = vmand %vm2411, %vm419
        %vm2468 = vmand %vm2412, %vm420
        %vm2469 = vmand %vm2412, %vm421
        %vm2470 = vmand %vm2413, %vm422
        %vm2471 = vmand %vm2413, %vm423
        %vm2472 = vmand %vm2414, %vm424
        %vm2473 = vmand %vm2414, %vm425
        %vm2474 = vmand %vm2415, %vm426
        %vm2475 = vmand %vm2415, %vm427
        %vm2476 = vmand %vm2416, %vm428
        %vm2477 = vmand %vm2416, %vm429
        %vm2478 = vmand %vm2417, %vm430
        %vm2479 = vmand %vm2417, %vm431
        %vm2480 = vmand %vm2418, %vm432
        %vm2481 = vmand %vm2418, %vm433
        %vm2482 = vmand %vm2419, %vm434
        %vm2483 = vmand %vm2419, %vm435
        %v2484 = vsel %vm2420, %v308, 1e+30
        %v2485 = vsel %vm2421, %v309, 1e+30
        %v2486 = vsel %vm2422, %v310, 1e+30
        %v2487 = vsel %vm2423, %v311, 1e+30
        %v2488 = vsel %vm2424, %v312, 1e+30
        %v2489 = vsel %vm2425, %v313, 1e+30
        %v2490 = vsel %vm2426, %v314, 1e+30
        %v2491 = vsel %vm2427, %v315, 1e+30
        %v2492 = vsel %vm2428, %v316, 1e+30
        %v2493 = vsel %vm2429, %v317, 1e+30
        %v2494 = vsel %vm2430, %v318, 1e+30
        %v2495 = vsel %vm2431, %v319, 1e+30
        %v2496 = vsel %vm2432, %v320, 1e+30
        %v2497 = vsel %vm2433, %v321, 1e+30
        %v2498 = vsel %vm2434, %v322, 1e+30
        %v2499 = vsel %vm2435, %v323, 1e+30
        %v2500 = vsel %vm2436, %v324, 1e+30
        %v2501 = vsel %vm2437, %v325, 1e+30
        %v2502 = vsel %vm2438, %v326, 1e+30
        %v2503 = vsel %vm2439, %v327, 1e+30
        %v2504 = vsel %vm2440, %v328, 1e+30
        %v2505 = vsel %vm2441, %v329, 1e+30
        %v2506 = vsel %vm2442, %v330, 1e+30
        %v2507 = vsel %vm2443, %v331, 1e+30
        %v2508 = vsel %vm2444, %v332, 1e+30
        %v2509 = vsel %vm2445, %v333, 1e+30
        %v2510 = vsel %vm2446, %v334, 1e+30
        %v2511 = vsel %vm2447, %v335, 1e+30
        %v2512 = vsel %vm2448, %v336, 1e+30
        %v2513 = vsel %vm2449, %v337, 1e+30
        %v2514 = vsel %vm2450, %v338, 1e+30
        %v2515 = vsel %vm2451, %v339, 1e+30
        %v2516 = vsel %vm2452, %v340, 1e+30
        %v2517 = vsel %vm2453, %v341, 1e+30
        %v2518 = vsel %vm2454, %v342, 1e+30
        %v2519 = vsel %vm2455, %v343, 1e+30
        %v2520 = vsel %vm2456, %v344, 1e+30
        %v2521 = vsel %vm2457, %v345, 1e+30
        %v2522 = vsel %vm2458, %v346, 1e+30
        %v2523 = vsel %vm2459, %v347, 1e+30
        %v2524 = vsel %vm2460, %v348, 1e+30
        %v2525 = vsel %vm2461, %v349, 1e+30
        %v2526 = vsel %vm2462, %v350, 1e+30
        %v2527 = vsel %vm2463, %v351, 1e+30
        %v2528 = vsel %vm2464, %v352, 1e+30
        %v2529 = vsel %vm2465, %v353, 1e+30
        %v2530 = vsel %vm2466, %v354, 1e+30
        %v2531 = vsel %vm2467, %v355, 1e+30
        %v2532 = vsel %vm2468, %v356, 1e+30
        %v2533 = vsel %vm2469, %v357, 1e+30
        %v2534 = vsel %vm2470, %v358, 1e+30
        %v2535 = vsel %vm2471, %v359, 1e+30
        %v2536 = vsel %vm2472, %v360, 1e+30
        %v2537 = vsel %vm2473, %v361, 1e+30
        %v2538 = vsel %vm2474, %v362, 1e+30
        %v2539 = vsel %vm2475, %v363, 1e+30
        %v2540 = vsel %vm2476, %v364, 1e+30
        %v2541 = vsel %vm2477, %v365, 1e+30
        %v2542 = vsel %vm2478, %v366, 1e+30
        %v2543 = vsel %vm2479, %v367, 1e+30
        %v2544 = vsel %vm2480, %v368, 1e+30
        %v2545 = vsel %vm2481, %v369, 1e+30
        %v2546 = vsel %vm2482, %v370, 1e+30
        %v2547 = vsel %vm2483, %v371, 1e+30
        %v2548 = vmin.f32 %v2484, %v2488
        %v2549 = vmin.f32 %v2486, %v2490
        %v2550 = vmin.f32 %v2548, %v2492
        %v2551 = vmin.f32 %v2549, %v2494
        %v2552 = vmin.f32 %v2550, %v2496
        %v2553 = vmin.f32 %v2551, %v2498
        %v2554 = vmin.f32 %v2552, %v2500
        %v2555 = vmin.f32 %v2553, %v2502
        %v2556 = vmin.f32 %v2554, %v2504
        %v2557 = vmin.f32 %v2555, %v2506
        %v2558 = vmin.f32 %v2556, %v2508
        %v2559 = vmin.f32 %v2557, %v2510
        %v2560 = vmin.f32 %v2558, %v2512
        %v2561 = vmin.f32 %v2559, %v2514
        %v2562 = vmin.f32 %v2560, %v2516
        %v2563 = vmin.f32 %v2561, %v2518
        %v2564 = vmin.f32 %v2562, %v2520
        %v2565 = vmin.f32 %v2563, %v2522
        %v2566 = vmin.f32 %v2564, %v2524
        %v2567 = vmin.f32 %v2565, %v2526
        %v2568 = vmin.f32 %v2566, %v2528
        %v2569 = vmin.f32 %v2567, %v2530
        %v2570 = vmin.f32 %v2568, %v2532
        %v2571 = vmin.f32 %v2569, %v2534
        %v2572 = vmin.f32 %v2570, %v2536
        %v2573 = vmin.f32 %v2571, %v2538
        %v2574 = vmin.f32 %v2572, %v2540
        %v2575 = vmin.f32 %v2573, %v2542
        %v2576 = vmin.f32 %v2574, %v2544
        %v2577 = vmin.f32 %v2575, %v2546
        %v2578 = vmin.f32 %v2576, %v2577
        %v2579 = vrot.slane %v2578, 4
        %v2580 = vmin.f32 %v2578, %v2579
        %v2581 = vrot.slane %v2580, 2
        %v2582 = vmin.f32 %v2580, %v2581
        %v2583 = vrot.slane %v2582, 1
        %v2584 = vmin.f32 %v2582, %v2583
        %v2585 = vmin.f32 %v2485, %v2489
        %v2586 = vmin.f32 %v2487, %v2491
        %v2587 = vmin.f32 %v2585, %v2493
        %v2588 = vmin.f32 %v2586, %v2495
        %v2589 = vmin.f32 %v2587, %v2497
        %v2590 = vmin.f32 %v2588, %v2499
        %v2591 = vmin.f32 %v2589, %v2501
        %v2592 = vmin.f32 %v2590, %v2503
        %v2593 = vmin.f32 %v2591, %v2505
        %v2594 = vmin.f32 %v2592, %v2507
        %v2595 = vmin.f32 %v2593, %v2509
        %v2596 = vmin.f32 %v2594, %v2511
        %v2597 = vmin.f32 %v2595, %v2513
        %v2598 = vmin.f32 %v2596, %v2515
        %v2599 = vmin.f32 %v2597, %v2517
        %v2600 = vmin.f32 %v2598, %v2519
        %v2601 = vmin.f32 %v2599, %v2521
        %v2602 = vmin.f32 %v2600, %v2523
        %v2603 = vmin.f32 %v2601, %v2525
        %v2604 = vmin.f32 %v2602, %v2527
        %v2605 = vmin.f32 %v2603, %v2529
        %v2606 = vmin.f32 %v2604, %v2531
        %v2607 = vmin.f32 %v2605, %v2533
        %v2608 = vmin.f32 %v2606, %v2535
        %v2609 = vmin.f32 %v2607, %v2537
        %v2610 = vmin.f32 %v2608, %v2539
        %v2611 = vmin.f32 %v2609, %v2541
        %v2612 = vmin.f32 %v2610, %v2543
        %v2613 = vmin.f32 %v2611, %v2545
        %v2614 = vmin.f32 %v2612, %v2547
        %v2615 = vmin.f32 %v2613, %v2614
        %v2616 = vrot.slane %v2615, 4
        %v2617 = vmin.f32 %v2615, %v2616
        %v2618 = vrot.slane %v2617, 2
        %v2619 = vmin.f32 %v2617, %v2618
        %v2620 = vrot.slane %v2619, 1
        %v2621 = vmin.f32 %v2619, %v2620
        %vm2622 = vcmp.eq.f32.partialorder %v308, %v2584
        %vm2623 = vcmp.eq.f32.partialorder %v309, %v2621
        %vm2624 = vcmp.eq.f32.partialorder %v310, %v2584
        %vm2625 = vcmp.eq.f32.partialorder %v311, %v2621
        %vm2626 = vcmp.eq.f32.partialorder %v312, %v2584
        %vm2627 = vcmp.eq.f32.partialorder %v313, %v2621
        %vm2628 = vcmp.eq.f32.partialorder %v314, %v2584
        %vm2629 = vcmp.eq.f32.partialorder %v315, %v2621
        %vm2630 = vcmp.eq.f32.partialorder %v316, %v2584
        %vm2631 = vcmp.eq.f32.partialorder %v317, %v2621
        %vm2632 = vcmp.eq.f32.partialorder %v318, %v2584
        %vm2633 = vcmp.eq.f32.partialorder %v319, %v2621
        %vm2634 = vcmp.eq.f32.partialorder %v320, %v2584
        %vm2635 = vcmp.eq.f32.partialorder %v321, %v2621
        %vm2636 = vcmp.eq.f32.partialorder %v322, %v2584
        %vm2637 = vcmp.eq.f32.partialorder %v323, %v2621
        %vm2638 = vcmp.eq.f32.partialorder %v324, %v2584
        %vm2639 = vcmp.eq.f32.partialorder %v325, %v2621
        %vm2640 = vcmp.eq.f32.partialorder %v326, %v2584
        %vm2641 = vcmp.eq.f32.partialorder %v327, %v2621
        %vm2642 = vcmp.eq.f32.partialorder %v328, %v2584
        %vm2643 = vcmp.eq.f32.partialorder %v329, %v2621
        %vm2644 = vcmp.eq.f32.partialorder %v330, %v2584
        %vm2645 = vcmp.eq.f32.partialorder %v331, %v2621
        %vm2646 = vcmp.eq.f32.partialorder %v332, %v2584
        %vm2647 = vcmp.eq.f32.partialorder %v333, %v2621
        %vm2648 = vcmp.eq.f32.partialorder %v334, %v2584
        %vm2649 = vcmp.eq.f32.partialorder %v335, %v2621
        %vm2650 = vcmp.eq.f32.partialorder %v336, %v2584
        %vm2651 = vcmp.eq.f32.partialorder %v337, %v2621
        %vm2652 = vcmp.eq.f32.partialorder %v338, %v2584
        %vm2653 = vcmp.eq.f32.partialorder %v339, %v2621
        %vm2654 = vcmp.eq.f32.partialorder %v340, %v2584
        %vm2655 = vcmp.eq.f32.partialorder %v341, %v2621
        %vm2656 = vcmp.eq.f32.partialorder %v342, %v2584
        %vm2657 = vcmp.eq.f32.partialorder %v343, %v2621
        %vm2658 = vcmp.eq.f32.partialorder %v344, %v2584
        %vm2659 = vcmp.eq.f32.partialorder %v345, %v2621
        %vm2660 = vcmp.eq.f32.partialorder %v346, %v2584
        %vm2661 = vcmp.eq.f32.partialorder %v347, %v2621
        %vm2662 = vcmp.eq.f32.partialorder %v348, %v2584
        %vm2663 = vcmp.eq.f32.partialorder %v349, %v2621
        %vm2664 = vcmp.eq.f32.partialorder %v350, %v2584
        %vm2665 = vcmp.eq.f32.partialorder %v351, %v2621
        %vm2666 = vcmp.eq.f32.partialorder %v352, %v2584
        %vm2667 = vcmp.eq.f32.partialorder %v353, %v2621
        %vm2668 = vcmp.eq.f32.partialorder %v354, %v2584
        %vm2669 = vcmp.eq.f32.partialorder %v355, %v2621
        %vm2670 = vcmp.eq.f32.partialorder %v356, %v2584
        %vm2671 = vcmp.eq.f32.partialorder %v357, %v2621
        %vm2672 = vcmp.eq.f32.partialorder %v358, %v2584
        %vm2673 = vcmp.eq.f32.partialorder %v359, %v2621
        %vm2674 = vcmp.eq.f32.partialorder %v360, %v2584
        %vm2675 = vcmp.eq.f32.partialorder %v361, %v2621
        %vm2676 = vcmp.eq.f32.partialorder %v362, %v2584
        %vm2677 = vcmp.eq.f32.partialorder %v363, %v2621
        %vm2678 = vcmp.eq.f32.partialorder %v364, %v2584
        %vm2679 = vcmp.eq.f32.partialorder %v365, %v2621
        %vm2680 = vcmp.eq.f32.partialorder %v366, %v2584
        %vm2681 = vcmp.eq.f32.partialorder %v367, %v2621
        %vm2682 = vcmp.eq.f32.partialorder %v368, %v2584
        %vm2683 = vcmp.eq.f32.partialorder %v369, %v2621
        %vm2684 = vcmp.eq.f32.partialorder %v370, %v2584
        %vm2685 = vcmp.eq.f32.partialorder %v371, %v2621
        %2687 = vset.pattern.permute.xlu0 0
        %2688 = vperm.xlu0 %2687, %v2195
        %v2689 = vpop.permute.xlu0 %2688
        %2692 = vset.pattern.permute.xlu0 0
        %2693 = vperm.xlu0 %2692, %v2196
        %v2694 = vpop.permute.xlu0 %2693
        %2697 = vset.pattern.permute.xlu0 0
        %2698 = vperm.xlu0 %2697, %v2197
        %v2699 = vpop.permute.xlu0 %2698
        %2702 = vset.pattern.permute.xlu0 0
        %2703 = vperm.xlu0 %2702, %v2198
        %v2704 = vpop.permute.xlu0 %2703
        %2707 = vset.pattern.permute.xlu0 0
        %2708 = vperm.xlu0 %2707, %v2199
        %v2709 = vpop.permute.xlu0 %2708
        %2712 = vset.pattern.permute.xlu0 0
        %2713 = vperm.xlu0 %2712, %v2200
        %v2714 = vpop.permute.xlu0 %2713
        %2717 = vset.pattern.permute.xlu0 0
        %2718 = vperm.xlu0 %2717, %v2201
        %v2719 = vpop.permute.xlu0 %2718
        %2722 = vset.pattern.permute.xlu0 0
        %2723 = vperm.xlu0 %2722, %v2202
        %v2724 = vpop.permute.xlu0 %2723
        %2727 = vset.pattern.permute.xlu0 0
        %2728 = vperm.xlu0 %2727, %v2203
        %v2729 = vpop.permute.xlu0 %2728
        %2732 = vset.pattern.permute.xlu0 0
        %2733 = vperm.xlu0 %2732, %v2204
        %v2734 = vpop.permute.xlu0 %2733
        %2737 = vset.pattern.permute.xlu0 0
        %2738 = vperm.xlu0 %2737, %v2205
        %v2739 = vpop.permute.xlu0 %2738
        %2742 = vset.pattern.permute.xlu0 0
        %2743 = vperm.xlu0 %2742, %v2206
        %v2744 = vpop.permute.xlu0 %2743
        %2747 = vset.pattern.permute.xlu0 0
        %2748 = vperm.xlu0 %2747, %v2207
        %v2749 = vpop.permute.xlu0 %2748
        %2752 = vset.pattern.permute.xlu0 0
        %2753 = vperm.xlu0 %2752, %v2208
        %v2754 = vpop.permute.xlu0 %2753
        %2757 = vset.pattern.permute.xlu0 0
        %2758 = vperm.xlu0 %2757, %v2209
        %v2759 = vpop.permute.xlu0 %2758
        %2762 = vset.pattern.permute.xlu0 0
        %2763 = vperm.xlu0 %2762, %v2210
        %v2764 = vpop.permute.xlu0 %2763
        %2767 = vset.pattern.permute.xlu0 0
        %2768 = vperm.xlu0 %2767, %v2211
        %v2769 = vpop.permute.xlu0 %2768
        %2772 = vset.pattern.permute.xlu0 0
        %2773 = vperm.xlu0 %2772, %v2212
        %v2774 = vpop.permute.xlu0 %2773
        %2777 = vset.pattern.permute.xlu0 0
        %2778 = vperm.xlu0 %2777, %v2213
        %v2779 = vpop.permute.xlu0 %2778
        %2782 = vset.pattern.permute.xlu0 0
        %2783 = vperm.xlu0 %2782, %v2214
        %v2784 = vpop.permute.xlu0 %2783
        %2787 = vset.pattern.permute.xlu0 0
        %2788 = vperm.xlu0 %2787, %v2215
        %v2789 = vpop.permute.xlu0 %2788
        %2792 = vset.pattern.permute.xlu0 0
        %2793 = vperm.xlu0 %2792, %v2216
        %v2794 = vpop.permute.xlu0 %2793
        %2797 = vset.pattern.permute.xlu0 0
        %2798 = vperm.xlu0 %2797, %v2217
        %v2799 = vpop.permute.xlu0 %2798
        %2802 = vset.pattern.permute.xlu0 0
        %2803 = vperm.xlu0 %2802, %v2218
        %v2804 = vpop.permute.xlu0 %2803
        %2807 = vset.pattern.permute.xlu0 0
        %2808 = vperm.xlu0 %2807, %v2219
        %v2809 = vpop.permute.xlu0 %2808
        %2812 = vset.pattern.permute.xlu0 0
        %2813 = vperm.xlu0 %2812, %v2220
        %v2814 = vpop.permute.xlu0 %2813
        %2817 = vset.pattern.permute.xlu0 0
        %2818 = vperm.xlu0 %2817, %v2221
        %v2819 = vpop.permute.xlu0 %2818
        %2822 = vset.pattern.permute.xlu0 0
        %2823 = vperm.xlu0 %2822, %v2222
        %v2824 = vpop.permute.xlu0 %2823
        %2827 = vset.pattern.permute.xlu0 0
        %2828 = vperm.xlu0 %2827, %v2223
        %v2829 = vpop.permute.xlu0 %2828
        %2832 = vset.pattern.permute.xlu0 0
        %2833 = vperm.xlu0 %2832, %v2224
        %v2834 = vpop.permute.xlu0 %2833
        %2837 = vset.pattern.permute.xlu0 0
        %2838 = vperm.xlu0 %2837, %v2225
        %v2839 = vpop.permute.xlu0 %2838
        %2842 = vset.pattern.permute.xlu0 0
        %2843 = vperm.xlu0 %2842, %v2226
        %v2844 = vpop.permute.xlu0 %2843
        %v2846 = vsel %vm2622, %v2689, 0.0
        %v2847 = vsel %vm2623, %v2689, 0.0
        %v2848 = vsel %vm2624, %v2694, 0.0
        %v2849 = vsel %vm2625, %v2694, 0.0
        %v2850 = vsel %vm2626, %v2699, 0.0
        %v2851 = vsel %vm2627, %v2699, 0.0
        %v2852 = vsel %vm2628, %v2704, 0.0
        %v2853 = vsel %vm2629, %v2704, 0.0
        %v2854 = vsel %vm2630, %v2709, 0.0
        %v2855 = vsel %vm2631, %v2709, 0.0
        %v2856 = vsel %vm2632, %v2714, 0.0
        %v2857 = vsel %vm2633, %v2714, 0.0
        %v2858 = vsel %vm2634, %v2719, 0.0
        %v2859 = vsel %vm2635, %v2719, 0.0
        %v2860 = vsel %vm2636, %v2724, 0.0
        %v2861 = vsel %vm2637, %v2724, 0.0
        %v2862 = vsel %vm2638, %v2729, 0.0
        %v2863 = vsel %vm2639, %v2729, 0.0
        %v2864 = vsel %vm2640, %v2734, 0.0
        %v2865 = vsel %vm2641, %v2734, 0.0
        %v2866 = vsel %vm2642, %v2739, 0.0
        %v2867 = vsel %vm2643, %v2739, 0.0
        %v2868 = vsel %vm2644, %v2744, 0.0
        %v2869 = vsel %vm2645, %v2744, 0.0
        %v2870 = vsel %vm2646, %v2749, 0.0
        %v2871 = vsel %vm2647, %v2749, 0.0
        %v2872 = vsel %vm2648, %v2754, 0.0
        %v2873 = vsel %vm2649, %v2754, 0.0
        %v2874 = vsel %vm2650, %v2759, 0.0
        %v2875 = vsel %vm2651, %v2759, 0.0
        %v2876 = vsel %vm2652, %v2764, 0.0
        %v2877 = vsel %vm2653, %v2764, 0.0
        %v2878 = vsel %vm2654, %v2769, 0.0
        %v2879 = vsel %vm2655, %v2769, 0.0
        %v2880 = vsel %vm2656, %v2774, 0.0
        %v2881 = vsel %vm2657, %v2774, 0.0
        %v2882 = vsel %vm2658, %v2779, 0.0
        %v2883 = vsel %vm2659, %v2779, 0.0
        %v2884 = vsel %vm2660, %v2784, 0.0
        %v2885 = vsel %vm2661, %v2784, 0.0
        %v2886 = vsel %vm2662, %v2789, 0.0
        %v2887 = vsel %vm2663, %v2789, 0.0
        %v2888 = vsel %vm2664, %v2794, 0.0
        %v2889 = vsel %vm2665, %v2794, 0.0
        %v2890 = vsel %vm2666, %v2799, 0.0
        %v2891 = vsel %vm2667, %v2799, 0.0
        %v2892 = vsel %vm2668, %v2804, 0.0
        %v2893 = vsel %vm2669, %v2804, 0.0
        %v2894 = vsel %vm2670, %v2809, 0.0
        %v2895 = vsel %vm2671, %v2809, 0.0
        %v2896 = vsel %vm2672, %v2814, 0.0
        %v2897 = vsel %vm2673, %v2814, 0.0
        %v2898 = vsel %vm2674, %v2819, 0.0
        %v2899 = vsel %vm2675, %v2819, 0.0
        %v2900 = vsel %vm2676, %v2824, 0.0
        %v2901 = vsel %vm2677, %v2824, 0.0
        %v2902 = vsel %vm2678, %v2829, 0.0
        %v2903 = vsel %vm2679, %v2829, 0.0
        %v2904 = vsel %vm2680, %v2834, 0.0
        %v2905 = vsel %vm2681, %v2834, 0.0
        %v2906 = vsel %vm2682, %v2839, 0.0
        %v2907 = vsel %vm2683, %v2839, 0.0
        %v2908 = vsel %vm2684, %v2844, 0.0
        %v2909 = vsel %vm2685, %v2844, 0.0
        %v2910 = vadd.f32 %v2846, %v2848
        %v2911 = vadd.f32 %v2910, %v2850
        %v2912 = vadd.f32 %v2911, %v2852
        %v2913 = vadd.f32 %v2912, %v2854
        %v2914 = vadd.f32 %v2913, %v2856
        %v2915 = vadd.f32 %v2914, %v2858
        %v2916 = vadd.f32 %v2915, %v2860
        %v2917 = vadd.f32 %v2916, %v2862
        %v2918 = vadd.f32 %v2917, %v2864
        %v2919 = vadd.f32 %v2918, %v2866
        %v2920 = vadd.f32 %v2919, %v2868
        %v2921 = vadd.f32 %v2920, %v2870
        %v2922 = vadd.f32 %v2921, %v2872
        %v2923 = vadd.f32 %v2922, %v2874
        %v2924 = vadd.f32 %v2923, %v2876
        %v2925 = vadd.f32 %v2924, %v2878
        %v2926 = vadd.f32 %v2925, %v2880
        %v2927 = vadd.f32 %v2926, %v2882
        %v2928 = vadd.f32 %v2927, %v2884
        %v2929 = vadd.f32 %v2928, %v2886
        %v2930 = vadd.f32 %v2929, %v2888
        %v2931 = vadd.f32 %v2930, %v2890
        %v2932 = vadd.f32 %v2931, %v2892
        %v2933 = vadd.f32 %v2932, %v2894
        %v2934 = vadd.f32 %v2933, %v2896
        %v2935 = vadd.f32 %v2934, %v2898
        %v2936 = vadd.f32 %v2935, %v2900
        %v2937 = vadd.f32 %v2936, %v2902
        %v2938 = vadd.f32 %v2937, %v2904
        %v2939 = vadd.f32 %v2938, %v2906
        %v2940 = vadd.f32 %v2939, %v2908
        %v2941 = vrot.slane %v2940, 4
        %v2942 = vadd.f32 %v2940, %v2941
        %v2943 = vrot.slane %v2942, 2
        %v2944 = vadd.f32 %v2942, %v2943
        %v2945 = vrot.slane %v2944, 1
        %v2946 = vadd.f32 %v2944, %v2945
        %v2947 = vadd.f32 %v2847, %v2849
        %v2948 = vadd.f32 %v2947, %v2851
        %v2949 = vadd.f32 %v2948, %v2853
        %v2950 = vadd.f32 %v2949, %v2855
        %v2951 = vadd.f32 %v2950, %v2857
        %v2952 = vadd.f32 %v2951, %v2859
        %v2953 = vadd.f32 %v2952, %v2861
        %v2954 = vadd.f32 %v2953, %v2863
        %v2955 = vadd.f32 %v2954, %v2865
        %v2956 = vadd.f32 %v2955, %v2867
        %v2957 = vadd.f32 %v2956, %v2869
        %v2958 = vadd.f32 %v2957, %v2871
        %v2959 = vadd.f32 %v2958, %v2873
        %v2960 = vadd.f32 %v2959, %v2875
        %v2961 = vadd.f32 %v2960, %v2877
        %v2962 = vadd.f32 %v2961, %v2879
        %v2963 = vadd.f32 %v2962, %v2881
        %v2964 = vadd.f32 %v2963, %v2883
        %v2965 = vadd.f32 %v2964, %v2885
        %v2966 = vadd.f32 %v2965, %v2887
        %v2967 = vadd.f32 %v2966, %v2889
        %v2968 = vadd.f32 %v2967, %v2891
        %v2969 = vadd.f32 %v2968, %v2893
        %v2970 = vadd.f32 %v2969, %v2895
        %v2971 = vadd.f32 %v2970, %v2897
        %v2972 = vadd.f32 %v2971, %v2899
        %v2973 = vadd.f32 %v2972, %v2901
        %v2974 = vadd.f32 %v2973, %v2903
        %v2975 = vadd.f32 %v2974, %v2905
        %v2976 = vadd.f32 %v2975, %v2907
        %v2977 = vadd.f32 %v2976, %v2909
        %v2978 = vrot.slane %v2977, 4
        %v2979 = vadd.f32 %v2977, %v2978
        %v2980 = vrot.slane %v2979, 2
        %v2981 = vadd.f32 %v2979, %v2980
        %v2982 = vrot.slane %v2981, 1
        %v2983 = vadd.f32 %v2981, %v2982
        %v2984 = vmul.f32 %v2584, %v1160
        %v2985 = vmul.f32 %v2621, %v1160
        %v2986 = vadd.f32 %v2984, 0.5
        %v2987 = vadd.f32 %v2985, 0.5
        %v2988 = vfloor.f32 %v2986
        %v2989 = vfloor.f32 %v2987
        %v2990 = vmul.f32 %v2988, 256.0
        %v2991 = vmul.f32 %v2989, 256.0
        %v2992 = vsub.f32 %v2584, %v2990
        %v2993 = vsub.f32 %v2621, %v2991
        %vm2994 = vcmp.lt.f32.partialorder %v2992, 0.0
        %vm2995 = vcmp.lt.f32.partialorder %v2993, 0.0
        %v2996 = vsub.f32 %v2988, 1.0
        %v2997 = vsub.f32 %v2989, 1.0
        %v2998 = vsel %vm2994, %v2996, %v2988
        %v2999 = vsel %vm2995, %v2997, %v2989
        %v3000 = vrsqrt.pop %v2998
        %v3001 = vrsqrt.pop %v2999
        %v3002 = vmul.f32 %v2946, %v3000
        %v3003 = vmul.f32 %v2983, %v3001
        %v3004 = vadd.f32 %v3002, 0.0
        %v3005 = vadd.f32 %v3003, 0.0
        %v3006 = vadd.f32 %v3000, 0.0
        %v3007 = vadd.f32 %v3001, 0.0
        %vm3008 = vcmp.gt.f32.partialorder %v308, %v2584
        %vm3009 = vcmp.gt.f32.partialorder %v309, %v2621
        %vm3010 = vcmp.gt.f32.partialorder %v310, %v2584
        %vm3011 = vcmp.gt.f32.partialorder %v311, %v2621
        %vm3012 = vcmp.gt.f32.partialorder %v312, %v2584
        %vm3013 = vcmp.gt.f32.partialorder %v313, %v2621
        %vm3014 = vcmp.gt.f32.partialorder %v314, %v2584
        %vm3015 = vcmp.gt.f32.partialorder %v315, %v2621
        %vm3016 = vcmp.gt.f32.partialorder %v316, %v2584
        %vm3017 = vcmp.gt.f32.partialorder %v317, %v2621
        %vm3018 = vcmp.gt.f32.partialorder %v318, %v2584
        %vm3019 = vcmp.gt.f32.partialorder %v319, %v2621
        %vm3020 = vcmp.gt.f32.partialorder %v320, %v2584
        %vm3021 = vcmp.gt.f32.partialorder %v321, %v2621
        %vm3022 = vcmp.gt.f32.partialorder %v322, %v2584
        %vm3023 = vcmp.gt.f32.partialorder %v323, %v2621
        %vm3024 = vcmp.gt.f32.partialorder %v324, %v2584
        %vm3025 = vcmp.gt.f32.partialorder %v325, %v2621
        %vm3026 = vcmp.gt.f32.partialorder %v326, %v2584
        %vm3027 = vcmp.gt.f32.partialorder %v327, %v2621
        %vm3028 = vcmp.gt.f32.partialorder %v328, %v2584
        %vm3029 = vcmp.gt.f32.partialorder %v329, %v2621
        %vm3030 = vcmp.gt.f32.partialorder %v330, %v2584
        %vm3031 = vcmp.gt.f32.partialorder %v331, %v2621
        %vm3032 = vcmp.gt.f32.partialorder %v332, %v2584
        %vm3033 = vcmp.gt.f32.partialorder %v333, %v2621
        %vm3034 = vcmp.gt.f32.partialorder %v334, %v2584
        %vm3035 = vcmp.gt.f32.partialorder %v335, %v2621
        %vm3036 = vcmp.gt.f32.partialorder %v336, %v2584
        %vm3037 = vcmp.gt.f32.partialorder %v337, %v2621
        %vm3038 = vcmp.gt.f32.partialorder %v338, %v2584
        %vm3039 = vcmp.gt.f32.partialorder %v339, %v2621
        %vm3040 = vcmp.gt.f32.partialorder %v340, %v2584
        %vm3041 = vcmp.gt.f32.partialorder %v341, %v2621
        %vm3042 = vcmp.gt.f32.partialorder %v342, %v2584
        %vm3043 = vcmp.gt.f32.partialorder %v343, %v2621
        %vm3044 = vcmp.gt.f32.partialorder %v344, %v2584
        %vm3045 = vcmp.gt.f32.partialorder %v345, %v2621
        %vm3046 = vcmp.gt.f32.partialorder %v346, %v2584
        %vm3047 = vcmp.gt.f32.partialorder %v347, %v2621
        %vm3048 = vcmp.gt.f32.partialorder %v348, %v2584
        %vm3049 = vcmp.gt.f32.partialorder %v349, %v2621
        %vm3050 = vcmp.gt.f32.partialorder %v350, %v2584
        %vm3051 = vcmp.gt.f32.partialorder %v351, %v2621
        %vm3052 = vcmp.gt.f32.partialorder %v352, %v2584
        %vm3053 = vcmp.gt.f32.partialorder %v353, %v2621
        %vm3054 = vcmp.gt.f32.partialorder %v354, %v2584
        %vm3055 = vcmp.gt.f32.partialorder %v355, %v2621
        %vm3056 = vcmp.gt.f32.partialorder %v356, %v2584
        %vm3057 = vcmp.gt.f32.partialorder %v357, %v2621
        %vm3058 = vcmp.gt.f32.partialorder %v358, %v2584
        %vm3059 = vcmp.gt.f32.partialorder %v359, %v2621
        %vm3060 = vcmp.gt.f32.partialorder %v360, %v2584
        %vm3061 = vcmp.gt.f32.partialorder %v361, %v2621
        %vm3062 = vcmp.gt.f32.partialorder %v362, %v2584
        %vm3063 = vcmp.gt.f32.partialorder %v363, %v2621
        %vm3064 = vcmp.gt.f32.partialorder %v364, %v2584
        %vm3065 = vcmp.gt.f32.partialorder %v365, %v2621
        %vm3066 = vcmp.gt.f32.partialorder %v366, %v2584
        %vm3067 = vcmp.gt.f32.partialorder %v367, %v2621
        %vm3068 = vcmp.gt.f32.partialorder %v368, %v2584
        %vm3069 = vcmp.gt.f32.partialorder %v369, %v2621
        %vm3070 = vcmp.gt.f32.partialorder %v370, %v2584
        %vm3071 = vcmp.gt.f32.partialorder %v371, %v2621
        %vm3072 = vmand %vm2388, %vm3008
        %vm3073 = vmand %vm2388, %vm3009
        %vm3074 = vmand %vm2389, %vm3010
        %vm3075 = vmand %vm2389, %vm3011
        %vm3076 = vmand %vm2390, %vm3012
        %vm3077 = vmand %vm2390, %vm3013
        %vm3078 = vmand %vm2391, %vm3014
        %vm3079 = vmand %vm2391, %vm3015
        %vm3080 = vmand %vm2392, %vm3016
        %vm3081 = vmand %vm2392, %vm3017
        %vm3082 = vmand %vm2393, %vm3018
        %vm3083 = vmand %vm2393, %vm3019
        %vm3084 = vmand %vm2394, %vm3020
        %vm3085 = vmand %vm2394, %vm3021
        %vm3086 = vmand %vm2395, %vm3022
        %vm3087 = vmand %vm2395, %vm3023
        %vm3088 = vmand %vm2396, %vm3024
        %vm3089 = vmand %vm2396, %vm3025
        %vm3090 = vmand %vm2397, %vm3026
        %vm3091 = vmand %vm2397, %vm3027
        %vm3092 = vmand %vm2398, %vm3028
        %vm3093 = vmand %vm2398, %vm3029
        %vm3094 = vmand %vm2399, %vm3030
        %vm3095 = vmand %vm2399, %vm3031
        %vm3096 = vmand %vm2400, %vm3032
        %vm3097 = vmand %vm2400, %vm3033
        %vm3098 = vmand %vm2401, %vm3034
        %vm3099 = vmand %vm2401, %vm3035
        %vm3100 = vmand %vm2402, %vm3036
        %vm3101 = vmand %vm2402, %vm3037
        %vm3102 = vmand %vm2403, %vm3038
        %vm3103 = vmand %vm2403, %vm3039
        %vm3104 = vmand %vm2404, %vm3040
        %vm3105 = vmand %vm2404, %vm3041
        %vm3106 = vmand %vm2405, %vm3042
        %vm3107 = vmand %vm2405, %vm3043
        %vm3108 = vmand %vm2406, %vm3044
        %vm3109 = vmand %vm2406, %vm3045
        %vm3110 = vmand %vm2407, %vm3046
        %vm3111 = vmand %vm2407, %vm3047
        %vm3112 = vmand %vm2408, %vm3048
        %vm3113 = vmand %vm2408, %vm3049
        %vm3114 = vmand %vm2409, %vm3050
        %vm3115 = vmand %vm2409, %vm3051
        %vm3116 = vmand %vm2410, %vm3052
        %vm3117 = vmand %vm2410, %vm3053
        %vm3118 = vmand %vm2411, %vm3054
        %vm3119 = vmand %vm2411, %vm3055
        %vm3120 = vmand %vm2412, %vm3056
        %vm3121 = vmand %vm2412, %vm3057
        %vm3122 = vmand %vm2413, %vm3058
        %vm3123 = vmand %vm2413, %vm3059
        %vm3124 = vmand %vm2414, %vm3060
        %vm3125 = vmand %vm2414, %vm3061
        %vm3126 = vmand %vm2415, %vm3062
        %vm3127 = vmand %vm2415, %vm3063
        %vm3128 = vmand %vm2416, %vm3064
        %vm3129 = vmand %vm2416, %vm3065
        %vm3130 = vmand %vm2417, %vm3066
        %vm3131 = vmand %vm2417, %vm3067
        %vm3132 = vmand %vm2418, %vm3068
        %vm3133 = vmand %vm2418, %vm3069
        %vm3134 = vmand %vm2419, %vm3070
        %vm3135 = vmand %vm2419, %vm3071
        %v3136 = vsel %vm3072, %v308, 1e+30
        %v3137 = vsel %vm3073, %v309, 1e+30
        %v3138 = vsel %vm3074, %v310, 1e+30
        %v3139 = vsel %vm3075, %v311, 1e+30
        %v3140 = vsel %vm3076, %v312, 1e+30
        %v3141 = vsel %vm3077, %v313, 1e+30
        %v3142 = vsel %vm3078, %v314, 1e+30
        %v3143 = vsel %vm3079, %v315, 1e+30
        %v3144 = vsel %vm3080, %v316, 1e+30
        %v3145 = vsel %vm3081, %v317, 1e+30
        %v3146 = vsel %vm3082, %v318, 1e+30
        %v3147 = vsel %vm3083, %v319, 1e+30
        %v3148 = vsel %vm3084, %v320, 1e+30
        %v3149 = vsel %vm3085, %v321, 1e+30
        %v3150 = vsel %vm3086, %v322, 1e+30
        %v3151 = vsel %vm3087, %v323, 1e+30
        %v3152 = vsel %vm3088, %v324, 1e+30
        %v3153 = vsel %vm3089, %v325, 1e+30
        %v3154 = vsel %vm3090, %v326, 1e+30
        %v3155 = vsel %vm3091, %v327, 1e+30
        %v3156 = vsel %vm3092, %v328, 1e+30
        %v3157 = vsel %vm3093, %v329, 1e+30
        %v3158 = vsel %vm3094, %v330, 1e+30
        %v3159 = vsel %vm3095, %v331, 1e+30
        %v3160 = vsel %vm3096, %v332, 1e+30
        %v3161 = vsel %vm3097, %v333, 1e+30
        %v3162 = vsel %vm3098, %v334, 1e+30
        %v3163 = vsel %vm3099, %v335, 1e+30
        %v3164 = vsel %vm3100, %v336, 1e+30
        %v3165 = vsel %vm3101, %v337, 1e+30
        %v3166 = vsel %vm3102, %v338, 1e+30
        %v3167 = vsel %vm3103, %v339, 1e+30
        %v3168 = vsel %vm3104, %v340, 1e+30
        %v3169 = vsel %vm3105, %v341, 1e+30
        %v3170 = vsel %vm3106, %v342, 1e+30
        %v3171 = vsel %vm3107, %v343, 1e+30
        %v3172 = vsel %vm3108, %v344, 1e+30
        %v3173 = vsel %vm3109, %v345, 1e+30
        %v3174 = vsel %vm3110, %v346, 1e+30
        %v3175 = vsel %vm3111, %v347, 1e+30
        %v3176 = vsel %vm3112, %v348, 1e+30
        %v3177 = vsel %vm3113, %v349, 1e+30
        %v3178 = vsel %vm3114, %v350, 1e+30
        %v3179 = vsel %vm3115, %v351, 1e+30
        %v3180 = vsel %vm3116, %v352, 1e+30
        %v3181 = vsel %vm3117, %v353, 1e+30
        %v3182 = vsel %vm3118, %v354, 1e+30
        %v3183 = vsel %vm3119, %v355, 1e+30
        %v3184 = vsel %vm3120, %v356, 1e+30
        %v3185 = vsel %vm3121, %v357, 1e+30
        %v3186 = vsel %vm3122, %v358, 1e+30
        %v3187 = vsel %vm3123, %v359, 1e+30
        %v3188 = vsel %vm3124, %v360, 1e+30
        %v3189 = vsel %vm3125, %v361, 1e+30
        %v3190 = vsel %vm3126, %v362, 1e+30
        %v3191 = vsel %vm3127, %v363, 1e+30
        %v3192 = vsel %vm3128, %v364, 1e+30
        %v3193 = vsel %vm3129, %v365, 1e+30
        %v3194 = vsel %vm3130, %v366, 1e+30
        %v3195 = vsel %vm3131, %v367, 1e+30
        %v3196 = vsel %vm3132, %v368, 1e+30
        %v3197 = vsel %vm3133, %v369, 1e+30
        %v3198 = vsel %vm3134, %v370, 1e+30
        %v3199 = vsel %vm3135, %v371, 1e+30
        %v3200 = vmin.f32 %v3136, %v3140
        %v3201 = vmin.f32 %v3138, %v3142
        %v3202 = vmin.f32 %v3200, %v3144
        %v3203 = vmin.f32 %v3201, %v3146
        %v3204 = vmin.f32 %v3202, %v3148
        %v3205 = vmin.f32 %v3203, %v3150
        %v3206 = vmin.f32 %v3204, %v3152
        %v3207 = vmin.f32 %v3205, %v3154
        %v3208 = vmin.f32 %v3206, %v3156
        %v3209 = vmin.f32 %v3207, %v3158
        %v3210 = vmin.f32 %v3208, %v3160
        %v3211 = vmin.f32 %v3209, %v3162
        %v3212 = vmin.f32 %v3210, %v3164
        %v3213 = vmin.f32 %v3211, %v3166
        %v3214 = vmin.f32 %v3212, %v3168
        %v3215 = vmin.f32 %v3213, %v3170
        %v3216 = vmin.f32 %v3214, %v3172
        %v3217 = vmin.f32 %v3215, %v3174
        %v3218 = vmin.f32 %v3216, %v3176
        %v3219 = vmin.f32 %v3217, %v3178
        %v3220 = vmin.f32 %v3218, %v3180
        %v3221 = vmin.f32 %v3219, %v3182
        %v3222 = vmin.f32 %v3220, %v3184
        %v3223 = vmin.f32 %v3221, %v3186
        %v3224 = vmin.f32 %v3222, %v3188
        %v3225 = vmin.f32 %v3223, %v3190
        %v3226 = vmin.f32 %v3224, %v3192
        %v3227 = vmin.f32 %v3225, %v3194
        %v3228 = vmin.f32 %v3226, %v3196
        %v3229 = vmin.f32 %v3227, %v3198
        %v3230 = vmin.f32 %v3228, %v3229
        %v3231 = vrot.slane %v3230, 4
        %v3232 = vmin.f32 %v3230, %v3231
        %v3233 = vrot.slane %v3232, 2
        %v3234 = vmin.f32 %v3232, %v3233
        %v3235 = vrot.slane %v3234, 1
        %v3236 = vmin.f32 %v3234, %v3235
        %v3237 = vmin.f32 %v3137, %v3141
        %v3238 = vmin.f32 %v3139, %v3143
        %v3239 = vmin.f32 %v3237, %v3145
        %v3240 = vmin.f32 %v3238, %v3147
        %v3241 = vmin.f32 %v3239, %v3149
        %v3242 = vmin.f32 %v3240, %v3151
        %v3243 = vmin.f32 %v3241, %v3153
        %v3244 = vmin.f32 %v3242, %v3155
        %v3245 = vmin.f32 %v3243, %v3157
        %v3246 = vmin.f32 %v3244, %v3159
        %v3247 = vmin.f32 %v3245, %v3161
        %v3248 = vmin.f32 %v3246, %v3163
        %v3249 = vmin.f32 %v3247, %v3165
        %v3250 = vmin.f32 %v3248, %v3167
        %v3251 = vmin.f32 %v3249, %v3169
        %v3252 = vmin.f32 %v3250, %v3171
        %v3253 = vmin.f32 %v3251, %v3173
        %v3254 = vmin.f32 %v3252, %v3175
        %v3255 = vmin.f32 %v3253, %v3177
        %v3256 = vmin.f32 %v3254, %v3179
        %v3257 = vmin.f32 %v3255, %v3181
        %v3258 = vmin.f32 %v3256, %v3183
        %v3259 = vmin.f32 %v3257, %v3185
        %v3260 = vmin.f32 %v3258, %v3187
        %v3261 = vmin.f32 %v3259, %v3189
        %v3262 = vmin.f32 %v3260, %v3191
        %v3263 = vmin.f32 %v3261, %v3193
        %v3264 = vmin.f32 %v3262, %v3195
        %v3265 = vmin.f32 %v3263, %v3197
        %v3266 = vmin.f32 %v3264, %v3199
        %v3267 = vmin.f32 %v3265, %v3266
        %v3268 = vrot.slane %v3267, 4
        %v3269 = vmin.f32 %v3267, %v3268
        %v3270 = vrot.slane %v3269, 2
        %v3271 = vmin.f32 %v3269, %v3270
        %v3272 = vrot.slane %v3271, 1
        %v3273 = vmin.f32 %v3271, %v3272
        %vm3274 = vcmp.eq.f32.partialorder %v308, %v3236
        %vm3275 = vcmp.eq.f32.partialorder %v309, %v3273
        %vm3276 = vcmp.eq.f32.partialorder %v310, %v3236
        %vm3277 = vcmp.eq.f32.partialorder %v311, %v3273
        %vm3278 = vcmp.eq.f32.partialorder %v312, %v3236
        %vm3279 = vcmp.eq.f32.partialorder %v313, %v3273
        %vm3280 = vcmp.eq.f32.partialorder %v314, %v3236
        %vm3281 = vcmp.eq.f32.partialorder %v315, %v3273
        %vm3282 = vcmp.eq.f32.partialorder %v316, %v3236
        %vm3283 = vcmp.eq.f32.partialorder %v317, %v3273
        %vm3284 = vcmp.eq.f32.partialorder %v318, %v3236
        %vm3285 = vcmp.eq.f32.partialorder %v319, %v3273
        %vm3286 = vcmp.eq.f32.partialorder %v320, %v3236
        %vm3287 = vcmp.eq.f32.partialorder %v321, %v3273
        %vm3288 = vcmp.eq.f32.partialorder %v322, %v3236
        %vm3289 = vcmp.eq.f32.partialorder %v323, %v3273
        %vm3290 = vcmp.eq.f32.partialorder %v324, %v3236
        %vm3291 = vcmp.eq.f32.partialorder %v325, %v3273
        %vm3292 = vcmp.eq.f32.partialorder %v326, %v3236
        %vm3293 = vcmp.eq.f32.partialorder %v327, %v3273
        %vm3294 = vcmp.eq.f32.partialorder %v328, %v3236
        %vm3295 = vcmp.eq.f32.partialorder %v329, %v3273
        %vm3296 = vcmp.eq.f32.partialorder %v330, %v3236
        %vm3297 = vcmp.eq.f32.partialorder %v331, %v3273
        %vm3298 = vcmp.eq.f32.partialorder %v332, %v3236
        %vm3299 = vcmp.eq.f32.partialorder %v333, %v3273
        %vm3300 = vcmp.eq.f32.partialorder %v334, %v3236
        %vm3301 = vcmp.eq.f32.partialorder %v335, %v3273
        %vm3302 = vcmp.eq.f32.partialorder %v336, %v3236
        %vm3303 = vcmp.eq.f32.partialorder %v337, %v3273
        %vm3304 = vcmp.eq.f32.partialorder %v338, %v3236
        %vm3305 = vcmp.eq.f32.partialorder %v339, %v3273
        %vm3306 = vcmp.eq.f32.partialorder %v340, %v3236
        %vm3307 = vcmp.eq.f32.partialorder %v341, %v3273
        %vm3308 = vcmp.eq.f32.partialorder %v342, %v3236
        %vm3309 = vcmp.eq.f32.partialorder %v343, %v3273
        %vm3310 = vcmp.eq.f32.partialorder %v344, %v3236
        %vm3311 = vcmp.eq.f32.partialorder %v345, %v3273
        %vm3312 = vcmp.eq.f32.partialorder %v346, %v3236
        %vm3313 = vcmp.eq.f32.partialorder %v347, %v3273
        %vm3314 = vcmp.eq.f32.partialorder %v348, %v3236
        %vm3315 = vcmp.eq.f32.partialorder %v349, %v3273
        %vm3316 = vcmp.eq.f32.partialorder %v350, %v3236
        %vm3317 = vcmp.eq.f32.partialorder %v351, %v3273
        %vm3318 = vcmp.eq.f32.partialorder %v352, %v3236
        %vm3319 = vcmp.eq.f32.partialorder %v353, %v3273
        %vm3320 = vcmp.eq.f32.partialorder %v354, %v3236
        %vm3321 = vcmp.eq.f32.partialorder %v355, %v3273
        %vm3322 = vcmp.eq.f32.partialorder %v356, %v3236
        %vm3323 = vcmp.eq.f32.partialorder %v357, %v3273
        %vm3324 = vcmp.eq.f32.partialorder %v358, %v3236
        %vm3325 = vcmp.eq.f32.partialorder %v359, %v3273
        %vm3326 = vcmp.eq.f32.partialorder %v360, %v3236
        %vm3327 = vcmp.eq.f32.partialorder %v361, %v3273
        %vm3328 = vcmp.eq.f32.partialorder %v362, %v3236
        %vm3329 = vcmp.eq.f32.partialorder %v363, %v3273
        %vm3330 = vcmp.eq.f32.partialorder %v364, %v3236
        %vm3331 = vcmp.eq.f32.partialorder %v365, %v3273
        %vm3332 = vcmp.eq.f32.partialorder %v366, %v3236
        %vm3333 = vcmp.eq.f32.partialorder %v367, %v3273
        %vm3334 = vcmp.eq.f32.partialorder %v368, %v3236
        %vm3335 = vcmp.eq.f32.partialorder %v369, %v3273
        %vm3336 = vcmp.eq.f32.partialorder %v370, %v3236
        %vm3337 = vcmp.eq.f32.partialorder %v371, %v3273
        %v3338 = vsel %vm3274, %v2689, 0.0
        %v3339 = vsel %vm3275, %v2689, 0.0
        %v3340 = vsel %vm3276, %v2694, 0.0
        %v3341 = vsel %vm3277, %v2694, 0.0
        %v3342 = vsel %vm3278, %v2699, 0.0
        %v3343 = vsel %vm3279, %v2699, 0.0
        %v3344 = vsel %vm3280, %v2704, 0.0
        %v3345 = vsel %vm3281, %v2704, 0.0
        %v3346 = vsel %vm3282, %v2709, 0.0
        %v3347 = vsel %vm3283, %v2709, 0.0
        %v3348 = vsel %vm3284, %v2714, 0.0
        %v3349 = vsel %vm3285, %v2714, 0.0
        %v3350 = vsel %vm3286, %v2719, 0.0
        %v3351 = vsel %vm3287, %v2719, 0.0
        %v3352 = vsel %vm3288, %v2724, 0.0
        %v3353 = vsel %vm3289, %v2724, 0.0
        %v3354 = vsel %vm3290, %v2729, 0.0
        %v3355 = vsel %vm3291, %v2729, 0.0
        %v3356 = vsel %vm3292, %v2734, 0.0
        %v3357 = vsel %vm3293, %v2734, 0.0
        %v3358 = vsel %vm3294, %v2739, 0.0
        %v3359 = vsel %vm3295, %v2739, 0.0
        %v3360 = vsel %vm3296, %v2744, 0.0
        %v3361 = vsel %vm3297, %v2744, 0.0
        %v3362 = vsel %vm3298, %v2749, 0.0
        %v3363 = vsel %vm3299, %v2749, 0.0
        %v3364 = vsel %vm3300, %v2754, 0.0
        %v3365 = vsel %vm3301, %v2754, 0.0
        %v3366 = vsel %vm3302, %v2759, 0.0
        %v3367 = vsel %vm3303, %v2759, 0.0
        %v3368 = vsel %vm3304, %v2764, 0.0
        %v3369 = vsel %vm3305, %v2764, 0.0
        %v3370 = vsel %vm3306, %v2769, 0.0
        %v3371 = vsel %vm3307, %v2769, 0.0
        %v3372 = vsel %vm3308, %v2774, 0.0
        %v3373 = vsel %vm3309, %v2774, 0.0
        %v3374 = vsel %vm3310, %v2779, 0.0
        %v3375 = vsel %vm3311, %v2779, 0.0
        %v3376 = vsel %vm3312, %v2784, 0.0
        %v3377 = vsel %vm3313, %v2784, 0.0
        %v3378 = vsel %vm3314, %v2789, 0.0
        %v3379 = vsel %vm3315, %v2789, 0.0
        %v3380 = vsel %vm3316, %v2794, 0.0
        %v3381 = vsel %vm3317, %v2794, 0.0
        %v3382 = vsel %vm3318, %v2799, 0.0
        %v3383 = vsel %vm3319, %v2799, 0.0
        %v3384 = vsel %vm3320, %v2804, 0.0
        %v3385 = vsel %vm3321, %v2804, 0.0
        %v3386 = vsel %vm3322, %v2809, 0.0
        %v3387 = vsel %vm3323, %v2809, 0.0
        %v3388 = vsel %vm3324, %v2814, 0.0
        %v3389 = vsel %vm3325, %v2814, 0.0
        %v3390 = vsel %vm3326, %v2819, 0.0
        %v3391 = vsel %vm3327, %v2819, 0.0
        %v3392 = vsel %vm3328, %v2824, 0.0
        %v3393 = vsel %vm3329, %v2824, 0.0
        %v3394 = vsel %vm3330, %v2829, 0.0
        %v3395 = vsel %vm3331, %v2829, 0.0
        %v3396 = vsel %vm3332, %v2834, 0.0
        %v3397 = vsel %vm3333, %v2834, 0.0
        %v3398 = vsel %vm3334, %v2839, 0.0
        %v3399 = vsel %vm3335, %v2839, 0.0
        %v3400 = vsel %vm3336, %v2844, 0.0
        %v3401 = vsel %vm3337, %v2844, 0.0
        %v3402 = vadd.f32 %v3338, %v3340
        %v3403 = vadd.f32 %v3402, %v3342
        %v3404 = vadd.f32 %v3403, %v3344
        %v3405 = vadd.f32 %v3404, %v3346
        %v3406 = vadd.f32 %v3405, %v3348
        %v3407 = vadd.f32 %v3406, %v3350
        %v3408 = vadd.f32 %v3407, %v3352
        %v3409 = vadd.f32 %v3408, %v3354
        %v3410 = vadd.f32 %v3409, %v3356
        %v3411 = vadd.f32 %v3410, %v3358
        %v3412 = vadd.f32 %v3411, %v3360
        %v3413 = vadd.f32 %v3412, %v3362
        %v3414 = vadd.f32 %v3413, %v3364
        %v3415 = vadd.f32 %v3414, %v3366
        %v3416 = vadd.f32 %v3415, %v3368
        %v3417 = vadd.f32 %v3416, %v3370
        %v3418 = vadd.f32 %v3417, %v3372
        %v3419 = vadd.f32 %v3418, %v3374
        %v3420 = vadd.f32 %v3419, %v3376
        %v3421 = vadd.f32 %v3420, %v3378
        %v3422 = vadd.f32 %v3421, %v3380
        %v3423 = vadd.f32 %v3422, %v3382
        %v3424 = vadd.f32 %v3423, %v3384
        %v3425 = vadd.f32 %v3424, %v3386
        %v3426 = vadd.f32 %v3425, %v3388
        %v3427 = vadd.f32 %v3426, %v3390
        %v3428 = vadd.f32 %v3427, %v3392
        %v3429 = vadd.f32 %v3428, %v3394
        %v3430 = vadd.f32 %v3429, %v3396
        %v3431 = vadd.f32 %v3430, %v3398
        %v3432 = vadd.f32 %v3431, %v3400
        %v3433 = vrot.slane %v3432, 4
        %v3434 = vadd.f32 %v3432, %v3433
        %v3435 = vrot.slane %v3434, 2
        %v3436 = vadd.f32 %v3434, %v3435
        %v3437 = vrot.slane %v3436, 1
        %v3438 = vadd.f32 %v3436, %v3437
        %v3439 = vadd.f32 %v3339, %v3341
        %v3440 = vadd.f32 %v3439, %v3343
        %v3441 = vadd.f32 %v3440, %v3345
        %v3442 = vadd.f32 %v3441, %v3347
        %v3443 = vadd.f32 %v3442, %v3349
        %v3444 = vadd.f32 %v3443, %v3351
        %v3445 = vadd.f32 %v3444, %v3353
        %v3446 = vadd.f32 %v3445, %v3355
        %v3447 = vadd.f32 %v3446, %v3357
        %v3448 = vadd.f32 %v3447, %v3359
        %v3449 = vadd.f32 %v3448, %v3361
        %v3450 = vadd.f32 %v3449, %v3363
        %v3451 = vadd.f32 %v3450, %v3365
        %v3452 = vadd.f32 %v3451, %v3367
        %v3453 = vadd.f32 %v3452, %v3369
        %v3454 = vadd.f32 %v3453, %v3371
        %v3455 = vadd.f32 %v3454, %v3373
        %v3456 = vadd.f32 %v3455, %v3375
        %v3457 = vadd.f32 %v3456, %v3377
        %v3458 = vadd.f32 %v3457, %v3379
        %v3459 = vadd.f32 %v3458, %v3381
        %v3460 = vadd.f32 %v3459, %v3383
        %v3461 = vadd.f32 %v3460, %v3385
        %v3462 = vadd.f32 %v3461, %v3387
        %v3463 = vadd.f32 %v3462, %v3389
        %v3464 = vadd.f32 %v3463, %v3391
        %v3465 = vadd.f32 %v3464, %v3393
        %v3466 = vadd.f32 %v3465, %v3395
        %v3467 = vadd.f32 %v3466, %v3397
        %v3468 = vadd.f32 %v3467, %v3399
        %v3469 = vadd.f32 %v3468, %v3401
        %v3470 = vrot.slane %v3469, 4
        %v3471 = vadd.f32 %v3469, %v3470
        %v3472 = vrot.slane %v3471, 2
        %v3473 = vadd.f32 %v3471, %v3472
        %v3474 = vrot.slane %v3473, 1
        %v3475 = vadd.f32 %v3473, %v3474
        %v3476 = vmul.f32 %v3236, %v1160
        %v3477 = vmul.f32 %v3273, %v1160
        %v3478 = vadd.f32 %v3476, 0.5
        %v3479 = vadd.f32 %v3477, 0.5
        %v3480 = vfloor.f32 %v3478
        %v3481 = vfloor.f32 %v3479
        %v3482 = vmul.f32 %v3480, 256.0
        %v3483 = vmul.f32 %v3481, 256.0
        %v3484 = vsub.f32 %v3236, %v3482
        %v3485 = vsub.f32 %v3273, %v3483
        %vm3486 = vcmp.lt.f32.partialorder %v3484, 0.0
        %vm3487 = vcmp.lt.f32.partialorder %v3485, 0.0
        %v3488 = vsub.f32 %v3480, 1.0
        %v3489 = vsub.f32 %v3481, 1.0
        %v3490 = vsel %vm3486, %v3488, %v3480
        %v3491 = vsel %vm3487, %v3489, %v3481
        %v3492 = vrsqrt.pop %v3490
        %v3493 = vrsqrt.pop %v3491
        %v3494 = vmul.f32 %v3438, %v3492
        %v3495 = vmul.f32 %v3475, %v3493
        %v3496 = vadd.f32 %v3004, %v3494
        %v3497 = vadd.f32 %v3005, %v3495
        %v3498 = vadd.f32 %v3006, %v3492
        %v3499 = vadd.f32 %v3007, %v3493
        %vm3500 = vcmp.gt.f32.partialorder %v308, %v3236
        %vm3501 = vcmp.gt.f32.partialorder %v309, %v3273
        %vm3502 = vcmp.gt.f32.partialorder %v310, %v3236
        %vm3503 = vcmp.gt.f32.partialorder %v311, %v3273
        %vm3504 = vcmp.gt.f32.partialorder %v312, %v3236
        %vm3505 = vcmp.gt.f32.partialorder %v313, %v3273
        %vm3506 = vcmp.gt.f32.partialorder %v314, %v3236
        %vm3507 = vcmp.gt.f32.partialorder %v315, %v3273
        %vm3508 = vcmp.gt.f32.partialorder %v316, %v3236
        %vm3509 = vcmp.gt.f32.partialorder %v317, %v3273
        %vm3510 = vcmp.gt.f32.partialorder %v318, %v3236
        %vm3511 = vcmp.gt.f32.partialorder %v319, %v3273
        %vm3512 = vcmp.gt.f32.partialorder %v320, %v3236
        %vm3513 = vcmp.gt.f32.partialorder %v321, %v3273
        %vm3514 = vcmp.gt.f32.partialorder %v322, %v3236
        %vm3515 = vcmp.gt.f32.partialorder %v323, %v3273
        %vm3516 = vcmp.gt.f32.partialorder %v324, %v3236
        %vm3517 = vcmp.gt.f32.partialorder %v325, %v3273
        %vm3518 = vcmp.gt.f32.partialorder %v326, %v3236
        %vm3519 = vcmp.gt.f32.partialorder %v327, %v3273
        %vm3520 = vcmp.gt.f32.partialorder %v328, %v3236
        %vm3521 = vcmp.gt.f32.partialorder %v329, %v3273
        %vm3522 = vcmp.gt.f32.partialorder %v330, %v3236
        %vm3523 = vcmp.gt.f32.partialorder %v331, %v3273
        %vm3524 = vcmp.gt.f32.partialorder %v332, %v3236
        %vm3525 = vcmp.gt.f32.partialorder %v333, %v3273
        %vm3526 = vcmp.gt.f32.partialorder %v334, %v3236
        %vm3527 = vcmp.gt.f32.partialorder %v335, %v3273
        %vm3528 = vcmp.gt.f32.partialorder %v336, %v3236
        %vm3529 = vcmp.gt.f32.partialorder %v337, %v3273
        %vm3530 = vcmp.gt.f32.partialorder %v338, %v3236
        %vm3531 = vcmp.gt.f32.partialorder %v339, %v3273
        %vm3532 = vcmp.gt.f32.partialorder %v340, %v3236
        %vm3533 = vcmp.gt.f32.partialorder %v341, %v3273
        %vm3534 = vcmp.gt.f32.partialorder %v342, %v3236
        %vm3535 = vcmp.gt.f32.partialorder %v343, %v3273
        %vm3536 = vcmp.gt.f32.partialorder %v344, %v3236
        %vm3537 = vcmp.gt.f32.partialorder %v345, %v3273
        %vm3538 = vcmp.gt.f32.partialorder %v346, %v3236
        %vm3539 = vcmp.gt.f32.partialorder %v347, %v3273
        %vm3540 = vcmp.gt.f32.partialorder %v348, %v3236
        %vm3541 = vcmp.gt.f32.partialorder %v349, %v3273
        %vm3542 = vcmp.gt.f32.partialorder %v350, %v3236
        %vm3543 = vcmp.gt.f32.partialorder %v351, %v3273
        %vm3544 = vcmp.gt.f32.partialorder %v352, %v3236
        %vm3545 = vcmp.gt.f32.partialorder %v353, %v3273
        %vm3546 = vcmp.gt.f32.partialorder %v354, %v3236
        %vm3547 = vcmp.gt.f32.partialorder %v355, %v3273
        %vm3548 = vcmp.gt.f32.partialorder %v356, %v3236
        %vm3549 = vcmp.gt.f32.partialorder %v357, %v3273
        %vm3550 = vcmp.gt.f32.partialorder %v358, %v3236
        %vm3551 = vcmp.gt.f32.partialorder %v359, %v3273
        %vm3552 = vcmp.gt.f32.partialorder %v360, %v3236
        %vm3553 = vcmp.gt.f32.partialorder %v361, %v3273
        %vm3554 = vcmp.gt.f32.partialorder %v362, %v3236
        %vm3555 = vcmp.gt.f32.partialorder %v363, %v3273
        %vm3556 = vcmp.gt.f32.partialorder %v364, %v3236
        %vm3557 = vcmp.gt.f32.partialorder %v365, %v3273
        %vm3558 = vcmp.gt.f32.partialorder %v366, %v3236
        %vm3559 = vcmp.gt.f32.partialorder %v367, %v3273
        %vm3560 = vcmp.gt.f32.partialorder %v368, %v3236
        %vm3561 = vcmp.gt.f32.partialorder %v369, %v3273
        %vm3562 = vcmp.gt.f32.partialorder %v370, %v3236
        %vm3563 = vcmp.gt.f32.partialorder %v371, %v3273
        %vm3564 = vmand %vm2388, %vm3500
        %vm3565 = vmand %vm2388, %vm3501
        %vm3566 = vmand %vm2389, %vm3502
        %vm3567 = vmand %vm2389, %vm3503
        %vm3568 = vmand %vm2390, %vm3504
        %vm3569 = vmand %vm2390, %vm3505
        %vm3570 = vmand %vm2391, %vm3506
        %vm3571 = vmand %vm2391, %vm3507
        %vm3572 = vmand %vm2392, %vm3508
        %vm3573 = vmand %vm2392, %vm3509
        %vm3574 = vmand %vm2393, %vm3510
        %vm3575 = vmand %vm2393, %vm3511
        %vm3576 = vmand %vm2394, %vm3512
        %vm3577 = vmand %vm2394, %vm3513
        %vm3578 = vmand %vm2395, %vm3514
        %vm3579 = vmand %vm2395, %vm3515
        %vm3580 = vmand %vm2396, %vm3516
        %vm3581 = vmand %vm2396, %vm3517
        %vm3582 = vmand %vm2397, %vm3518
        %vm3583 = vmand %vm2397, %vm3519
        %vm3584 = vmand %vm2398, %vm3520
        %vm3585 = vmand %vm2398, %vm3521
        %vm3586 = vmand %vm2399, %vm3522
        %vm3587 = vmand %vm2399, %vm3523
        %vm3588 = vmand %vm2400, %vm3524
        %vm3589 = vmand %vm2400, %vm3525
        %vm3590 = vmand %vm2401, %vm3526
        %vm3591 = vmand %vm2401, %vm3527
        %vm3592 = vmand %vm2402, %vm3528
        %vm3593 = vmand %vm2402, %vm3529
        %vm3594 = vmand %vm2403, %vm3530
        %vm3595 = vmand %vm2403, %vm3531
        %vm3596 = vmand %vm2404, %vm3532
        %vm3597 = vmand %vm2404, %vm3533
        %vm3598 = vmand %vm2405, %vm3534
        %vm3599 = vmand %vm2405, %vm3535
        %vm3600 = vmand %vm2406, %vm3536
        %vm3601 = vmand %vm2406, %vm3537
        %vm3602 = vmand %vm2407, %vm3538
        %vm3603 = vmand %vm2407, %vm3539
        %vm3604 = vmand %vm2408, %vm3540
        %vm3605 = vmand %vm2408, %vm3541
        %vm3606 = vmand %vm2409, %vm3542
        %vm3607 = vmand %vm2409, %vm3543
        %vm3608 = vmand %vm2410, %vm3544
        %vm3609 = vmand %vm2410, %vm3545
        %vm3610 = vmand %vm2411, %vm3546
        %vm3611 = vmand %vm2411, %vm3547
        %vm3612 = vmand %vm2412, %vm3548
        %vm3613 = vmand %vm2412, %vm3549
        %vm3614 = vmand %vm2413, %vm3550
        %vm3615 = vmand %vm2413, %vm3551
        %vm3616 = vmand %vm2414, %vm3552
        %vm3617 = vmand %vm2414, %vm3553
        %vm3618 = vmand %vm2415, %vm3554
        %vm3619 = vmand %vm2415, %vm3555
        %vm3620 = vmand %vm2416, %vm3556
        %vm3621 = vmand %vm2416, %vm3557
        %vm3622 = vmand %vm2417, %vm3558
        %vm3623 = vmand %vm2417, %vm3559
        %vm3624 = vmand %vm2418, %vm3560
        %vm3625 = vmand %vm2418, %vm3561
        %vm3626 = vmand %vm2419, %vm3562
        %vm3627 = vmand %vm2419, %vm3563
        %v3628 = vsel %vm3564, %v308, 1e+30
        %v3629 = vsel %vm3565, %v309, 1e+30
        %v3630 = vsel %vm3566, %v310, 1e+30
        %v3631 = vsel %vm3567, %v311, 1e+30
        %v3632 = vsel %vm3568, %v312, 1e+30
        %v3633 = vsel %vm3569, %v313, 1e+30
        %v3634 = vsel %vm3570, %v314, 1e+30
        %v3635 = vsel %vm3571, %v315, 1e+30
        %v3636 = vsel %vm3572, %v316, 1e+30
        %v3637 = vsel %vm3573, %v317, 1e+30
        %v3638 = vsel %vm3574, %v318, 1e+30
        %v3639 = vsel %vm3575, %v319, 1e+30
        %v3640 = vsel %vm3576, %v320, 1e+30
        %v3641 = vsel %vm3577, %v321, 1e+30
        %v3642 = vsel %vm3578, %v322, 1e+30
        %v3643 = vsel %vm3579, %v323, 1e+30
        %v3644 = vsel %vm3580, %v324, 1e+30
        %v3645 = vsel %vm3581, %v325, 1e+30
        %v3646 = vsel %vm3582, %v326, 1e+30
        %v3647 = vsel %vm3583, %v327, 1e+30
        %v3648 = vsel %vm3584, %v328, 1e+30
        %v3649 = vsel %vm3585, %v329, 1e+30
        %v3650 = vsel %vm3586, %v330, 1e+30
        %v3651 = vsel %vm3587, %v331, 1e+30
        %v3652 = vsel %vm3588, %v332, 1e+30
        %v3653 = vsel %vm3589, %v333, 1e+30
        %v3654 = vsel %vm3590, %v334, 1e+30
        %v3655 = vsel %vm3591, %v335, 1e+30
        %v3656 = vsel %vm3592, %v336, 1e+30
        %v3657 = vsel %vm3593, %v337, 1e+30
        %v3658 = vsel %vm3594, %v338, 1e+30
        %v3659 = vsel %vm3595, %v339, 1e+30
        %v3660 = vsel %vm3596, %v340, 1e+30
        %v3661 = vsel %vm3597, %v341, 1e+30
        %v3662 = vsel %vm3598, %v342, 1e+30
        %v3663 = vsel %vm3599, %v343, 1e+30
        %v3664 = vsel %vm3600, %v344, 1e+30
        %v3665 = vsel %vm3601, %v345, 1e+30
        %v3666 = vsel %vm3602, %v346, 1e+30
        %v3667 = vsel %vm3603, %v347, 1e+30
        %v3668 = vsel %vm3604, %v348, 1e+30
        %v3669 = vsel %vm3605, %v349, 1e+30
        %v3670 = vsel %vm3606, %v350, 1e+30
        %v3671 = vsel %vm3607, %v351, 1e+30
        %v3672 = vsel %vm3608, %v352, 1e+30
        %v3673 = vsel %vm3609, %v353, 1e+30
        %v3674 = vsel %vm3610, %v354, 1e+30
        %v3675 = vsel %vm3611, %v355, 1e+30
        %v3676 = vsel %vm3612, %v356, 1e+30
        %v3677 = vsel %vm3613, %v357, 1e+30
        %v3678 = vsel %vm3614, %v358, 1e+30
        %v3679 = vsel %vm3615, %v359, 1e+30
        %v3680 = vsel %vm3616, %v360, 1e+30
        %v3681 = vsel %vm3617, %v361, 1e+30
        %v3682 = vsel %vm3618, %v362, 1e+30
        %v3683 = vsel %vm3619, %v363, 1e+30
        %v3684 = vsel %vm3620, %v364, 1e+30
        %v3685 = vsel %vm3621, %v365, 1e+30
        %v3686 = vsel %vm3622, %v366, 1e+30
        %v3687 = vsel %vm3623, %v367, 1e+30
        %v3688 = vsel %vm3624, %v368, 1e+30
        %v3689 = vsel %vm3625, %v369, 1e+30
        %v3690 = vsel %vm3626, %v370, 1e+30
        %v3691 = vsel %vm3627, %v371, 1e+30
        %v3692 = vmin.f32 %v3628, %v3632
        %v3693 = vmin.f32 %v3630, %v3634
        %v3694 = vmin.f32 %v3692, %v3636
        %v3695 = vmin.f32 %v3693, %v3638
        %v3696 = vmin.f32 %v3694, %v3640
        %v3697 = vmin.f32 %v3695, %v3642
        %v3698 = vmin.f32 %v3696, %v3644
        %v3699 = vmin.f32 %v3697, %v3646
        %v3700 = vmin.f32 %v3698, %v3648
        %v3701 = vmin.f32 %v3699, %v3650
        %v3702 = vmin.f32 %v3700, %v3652
        %v3703 = vmin.f32 %v3701, %v3654
        %v3704 = vmin.f32 %v3702, %v3656
        %v3705 = vmin.f32 %v3703, %v3658
        %v3706 = vmin.f32 %v3704, %v3660
        %v3707 = vmin.f32 %v3705, %v3662
        %v3708 = vmin.f32 %v3706, %v3664
        %v3709 = vmin.f32 %v3707, %v3666
        %v3710 = vmin.f32 %v3708, %v3668
        %v3711 = vmin.f32 %v3709, %v3670
        %v3712 = vmin.f32 %v3710, %v3672
        %v3713 = vmin.f32 %v3711, %v3674
        %v3714 = vmin.f32 %v3712, %v3676
        %v3715 = vmin.f32 %v3713, %v3678
        %v3716 = vmin.f32 %v3714, %v3680
        %v3717 = vmin.f32 %v3715, %v3682
        %v3718 = vmin.f32 %v3716, %v3684
        %v3719 = vmin.f32 %v3717, %v3686
        %v3720 = vmin.f32 %v3718, %v3688
        %v3721 = vmin.f32 %v3719, %v3690
        %v3722 = vmin.f32 %v3720, %v3721
        %v3723 = vrot.slane %v3722, 4
        %v3724 = vmin.f32 %v3722, %v3723
        %v3725 = vrot.slane %v3724, 2
        %v3726 = vmin.f32 %v3724, %v3725
        %v3727 = vrot.slane %v3726, 1
        %v3728 = vmin.f32 %v3726, %v3727
        %v3729 = vmin.f32 %v3629, %v3633
        %v3730 = vmin.f32 %v3631, %v3635
        %v3731 = vmin.f32 %v3729, %v3637
        %v3732 = vmin.f32 %v3730, %v3639
        %v3733 = vmin.f32 %v3731, %v3641
        %v3734 = vmin.f32 %v3732, %v3643
        %v3735 = vmin.f32 %v3733, %v3645
        %v3736 = vmin.f32 %v3734, %v3647
        %v3737 = vmin.f32 %v3735, %v3649
        %v3738 = vmin.f32 %v3736, %v3651
        %v3739 = vmin.f32 %v3737, %v3653
        %v3740 = vmin.f32 %v3738, %v3655
        %v3741 = vmin.f32 %v3739, %v3657
        %v3742 = vmin.f32 %v3740, %v3659
        %v3743 = vmin.f32 %v3741, %v3661
        %v3744 = vmin.f32 %v3742, %v3663
        %v3745 = vmin.f32 %v3743, %v3665
        %v3746 = vmin.f32 %v3744, %v3667
        %v3747 = vmin.f32 %v3745, %v3669
        %v3748 = vmin.f32 %v3746, %v3671
        %v3749 = vmin.f32 %v3747, %v3673
        %v3750 = vmin.f32 %v3748, %v3675
        %v3751 = vmin.f32 %v3749, %v3677
        %v3752 = vmin.f32 %v3750, %v3679
        %v3753 = vmin.f32 %v3751, %v3681
        %v3754 = vmin.f32 %v3752, %v3683
        %v3755 = vmin.f32 %v3753, %v3685
        %v3756 = vmin.f32 %v3754, %v3687
        %v3757 = vmin.f32 %v3755, %v3689
        %v3758 = vmin.f32 %v3756, %v3691
        %v3759 = vmin.f32 %v3757, %v3758
        %v3760 = vrot.slane %v3759, 4
        %v3761 = vmin.f32 %v3759, %v3760
        %v3762 = vrot.slane %v3761, 2
        %v3763 = vmin.f32 %v3761, %v3762
        %v3764 = vrot.slane %v3763, 1
        %v3765 = vmin.f32 %v3763, %v3764
        %vm3766 = vcmp.eq.f32.partialorder %v308, %v3728
        %vm3767 = vcmp.eq.f32.partialorder %v309, %v3765
        %vm3768 = vcmp.eq.f32.partialorder %v310, %v3728
        %vm3769 = vcmp.eq.f32.partialorder %v311, %v3765
        %vm3770 = vcmp.eq.f32.partialorder %v312, %v3728
        %vm3771 = vcmp.eq.f32.partialorder %v313, %v3765
        %vm3772 = vcmp.eq.f32.partialorder %v314, %v3728
        %vm3773 = vcmp.eq.f32.partialorder %v315, %v3765
        %vm3774 = vcmp.eq.f32.partialorder %v316, %v3728
        %vm3775 = vcmp.eq.f32.partialorder %v317, %v3765
        %vm3776 = vcmp.eq.f32.partialorder %v318, %v3728
        %vm3777 = vcmp.eq.f32.partialorder %v319, %v3765
        %vm3778 = vcmp.eq.f32.partialorder %v320, %v3728
        %vm3779 = vcmp.eq.f32.partialorder %v321, %v3765
        %vm3780 = vcmp.eq.f32.partialorder %v322, %v3728
        %vm3781 = vcmp.eq.f32.partialorder %v323, %v3765
        %vm3782 = vcmp.eq.f32.partialorder %v324, %v3728
        %vm3783 = vcmp.eq.f32.partialorder %v325, %v3765
        %vm3784 = vcmp.eq.f32.partialorder %v326, %v3728
        %vm3785 = vcmp.eq.f32.partialorder %v327, %v3765
        %vm3786 = vcmp.eq.f32.partialorder %v328, %v3728
        %vm3787 = vcmp.eq.f32.partialorder %v329, %v3765
        %vm3788 = vcmp.eq.f32.partialorder %v330, %v3728
        %vm3789 = vcmp.eq.f32.partialorder %v331, %v3765
        %vm3790 = vcmp.eq.f32.partialorder %v332, %v3728
        %vm3791 = vcmp.eq.f32.partialorder %v333, %v3765
        %vm3792 = vcmp.eq.f32.partialorder %v334, %v3728
        %vm3793 = vcmp.eq.f32.partialorder %v335, %v3765
        %vm3794 = vcmp.eq.f32.partialorder %v336, %v3728
        %vm3795 = vcmp.eq.f32.partialorder %v337, %v3765
        %vm3796 = vcmp.eq.f32.partialorder %v338, %v3728
        %vm3797 = vcmp.eq.f32.partialorder %v339, %v3765
        %vm3798 = vcmp.eq.f32.partialorder %v340, %v3728
        %vm3799 = vcmp.eq.f32.partialorder %v341, %v3765
        %vm3800 = vcmp.eq.f32.partialorder %v342, %v3728
        %vm3801 = vcmp.eq.f32.partialorder %v343, %v3765
        %vm3802 = vcmp.eq.f32.partialorder %v344, %v3728
        %vm3803 = vcmp.eq.f32.partialorder %v345, %v3765
        %vm3804 = vcmp.eq.f32.partialorder %v346, %v3728
        %vm3805 = vcmp.eq.f32.partialorder %v347, %v3765
        %vm3806 = vcmp.eq.f32.partialorder %v348, %v3728
        %vm3807 = vcmp.eq.f32.partialorder %v349, %v3765
        %vm3808 = vcmp.eq.f32.partialorder %v350, %v3728
        %vm3809 = vcmp.eq.f32.partialorder %v351, %v3765
        %vm3810 = vcmp.eq.f32.partialorder %v352, %v3728
        %vm3811 = vcmp.eq.f32.partialorder %v353, %v3765
        %vm3812 = vcmp.eq.f32.partialorder %v354, %v3728
        %vm3813 = vcmp.eq.f32.partialorder %v355, %v3765
        %vm3814 = vcmp.eq.f32.partialorder %v356, %v3728
        %vm3815 = vcmp.eq.f32.partialorder %v357, %v3765
        %vm3816 = vcmp.eq.f32.partialorder %v358, %v3728
        %vm3817 = vcmp.eq.f32.partialorder %v359, %v3765
        %vm3818 = vcmp.eq.f32.partialorder %v360, %v3728
        %vm3819 = vcmp.eq.f32.partialorder %v361, %v3765
        %vm3820 = vcmp.eq.f32.partialorder %v362, %v3728
        %vm3821 = vcmp.eq.f32.partialorder %v363, %v3765
        %vm3822 = vcmp.eq.f32.partialorder %v364, %v3728
        %vm3823 = vcmp.eq.f32.partialorder %v365, %v3765
        %vm3824 = vcmp.eq.f32.partialorder %v366, %v3728
        %vm3825 = vcmp.eq.f32.partialorder %v367, %v3765
        %vm3826 = vcmp.eq.f32.partialorder %v368, %v3728
        %vm3827 = vcmp.eq.f32.partialorder %v369, %v3765
        %vm3828 = vcmp.eq.f32.partialorder %v370, %v3728
        %vm3829 = vcmp.eq.f32.partialorder %v371, %v3765
        %v3830 = vsel %vm3766, %v2689, 0.0
        %v3831 = vsel %vm3767, %v2689, 0.0
        %v3832 = vsel %vm3768, %v2694, 0.0
        %v3833 = vsel %vm3769, %v2694, 0.0
        %v3834 = vsel %vm3770, %v2699, 0.0
        %v3835 = vsel %vm3771, %v2699, 0.0
        %v3836 = vsel %vm3772, %v2704, 0.0
        %v3837 = vsel %vm3773, %v2704, 0.0
        %v3838 = vsel %vm3774, %v2709, 0.0
        %v3839 = vsel %vm3775, %v2709, 0.0
        %v3840 = vsel %vm3776, %v2714, 0.0
        %v3841 = vsel %vm3777, %v2714, 0.0
        %v3842 = vsel %vm3778, %v2719, 0.0
        %v3843 = vsel %vm3779, %v2719, 0.0
        %v3844 = vsel %vm3780, %v2724, 0.0
        %v3845 = vsel %vm3781, %v2724, 0.0
        %v3846 = vsel %vm3782, %v2729, 0.0
        %v3847 = vsel %vm3783, %v2729, 0.0
        %v3848 = vsel %vm3784, %v2734, 0.0
        %v3849 = vsel %vm3785, %v2734, 0.0
        %v3850 = vsel %vm3786, %v2739, 0.0
        %v3851 = vsel %vm3787, %v2739, 0.0
        %v3852 = vsel %vm3788, %v2744, 0.0
        %v3853 = vsel %vm3789, %v2744, 0.0
        %v3854 = vsel %vm3790, %v2749, 0.0
        %v3855 = vsel %vm3791, %v2749, 0.0
        %v3856 = vsel %vm3792, %v2754, 0.0
        %v3857 = vsel %vm3793, %v2754, 0.0
        %v3858 = vsel %vm3794, %v2759, 0.0
        %v3859 = vsel %vm3795, %v2759, 0.0
        %v3860 = vsel %vm3796, %v2764, 0.0
        %v3861 = vsel %vm3797, %v2764, 0.0
        %v3862 = vsel %vm3798, %v2769, 0.0
        %v3863 = vsel %vm3799, %v2769, 0.0
        %v3864 = vsel %vm3800, %v2774, 0.0
        %v3865 = vsel %vm3801, %v2774, 0.0
        %v3866 = vsel %vm3802, %v2779, 0.0
        %v3867 = vsel %vm3803, %v2779, 0.0
        %v3868 = vsel %vm3804, %v2784, 0.0
        %v3869 = vsel %vm3805, %v2784, 0.0
        %v3870 = vsel %vm3806, %v2789, 0.0
        %v3871 = vsel %vm3807, %v2789, 0.0
        %v3872 = vsel %vm3808, %v2794, 0.0
        %v3873 = vsel %vm3809, %v2794, 0.0
        %v3874 = vsel %vm3810, %v2799, 0.0
        %v3875 = vsel %vm3811, %v2799, 0.0
        %v3876 = vsel %vm3812, %v2804, 0.0
        %v3877 = vsel %vm3813, %v2804, 0.0
        %v3878 = vsel %vm3814, %v2809, 0.0
        %v3879 = vsel %vm3815, %v2809, 0.0
        %v3880 = vsel %vm3816, %v2814, 0.0
        %v3881 = vsel %vm3817, %v2814, 0.0
        %v3882 = vsel %vm3818, %v2819, 0.0
        %v3883 = vsel %vm3819, %v2819, 0.0
        %v3884 = vsel %vm3820, %v2824, 0.0
        %v3885 = vsel %vm3821, %v2824, 0.0
        %v3886 = vsel %vm3822, %v2829, 0.0
        %v3887 = vsel %vm3823, %v2829, 0.0
        %v3888 = vsel %vm3824, %v2834, 0.0
        %v3889 = vsel %vm3825, %v2834, 0.0
        %v3890 = vsel %vm3826, %v2839, 0.0
        %v3891 = vsel %vm3827, %v2839, 0.0
        %v3892 = vsel %vm3828, %v2844, 0.0
        %v3893 = vsel %vm3829, %v2844, 0.0
        %v3894 = vadd.f32 %v3830, %v3832
        %v3895 = vadd.f32 %v3894, %v3834
        %v3896 = vadd.f32 %v3895, %v3836
        %v3897 = vadd.f32 %v3896, %v3838
        %v3898 = vadd.f32 %v3897, %v3840
        %v3899 = vadd.f32 %v3898, %v3842
        %v3900 = vadd.f32 %v3899, %v3844
        %v3901 = vadd.f32 %v3900, %v3846
        %v3902 = vadd.f32 %v3901, %v3848
        %v3903 = vadd.f32 %v3902, %v3850
        %v3904 = vadd.f32 %v3903, %v3852
        %v3905 = vadd.f32 %v3904, %v3854
        %v3906 = vadd.f32 %v3905, %v3856
        %v3907 = vadd.f32 %v3906, %v3858
        %v3908 = vadd.f32 %v3907, %v3860
        %v3909 = vadd.f32 %v3908, %v3862
        %v3910 = vadd.f32 %v3909, %v3864
        %v3911 = vadd.f32 %v3910, %v3866
        %v3912 = vadd.f32 %v3911, %v3868
        %v3913 = vadd.f32 %v3912, %v3870
        %v3914 = vadd.f32 %v3913, %v3872
        %v3915 = vadd.f32 %v3914, %v3874
        %v3916 = vadd.f32 %v3915, %v3876
        %v3917 = vadd.f32 %v3916, %v3878
        %v3918 = vadd.f32 %v3917, %v3880
        %v3919 = vadd.f32 %v3918, %v3882
        %v3920 = vadd.f32 %v3919, %v3884
        %v3921 = vadd.f32 %v3920, %v3886
        %v3922 = vadd.f32 %v3921, %v3888
        %v3923 = vadd.f32 %v3922, %v3890
        %v3924 = vadd.f32 %v3923, %v3892
        %v3925 = vrot.slane %v3924, 4
        %v3926 = vadd.f32 %v3924, %v3925
        %v3927 = vrot.slane %v3926, 2
        %v3928 = vadd.f32 %v3926, %v3927
        %v3929 = vrot.slane %v3928, 1
        %v3930 = vadd.f32 %v3928, %v3929
        %v3931 = vadd.f32 %v3831, %v3833
        %v3932 = vadd.f32 %v3931, %v3835
        %v3933 = vadd.f32 %v3932, %v3837
        %v3934 = vadd.f32 %v3933, %v3839
        %v3935 = vadd.f32 %v3934, %v3841
        %v3936 = vadd.f32 %v3935, %v3843
        %v3937 = vadd.f32 %v3936, %v3845
        %v3938 = vadd.f32 %v3937, %v3847
        %v3939 = vadd.f32 %v3938, %v3849
        %v3940 = vadd.f32 %v3939, %v3851
        %v3941 = vadd.f32 %v3940, %v3853
        %v3942 = vadd.f32 %v3941, %v3855
        %v3943 = vadd.f32 %v3942, %v3857
        %v3944 = vadd.f32 %v3943, %v3859
        %v3945 = vadd.f32 %v3944, %v3861
        %v3946 = vadd.f32 %v3945, %v3863
        %v3947 = vadd.f32 %v3946, %v3865
        %v3948 = vadd.f32 %v3947, %v3867
        %v3949 = vadd.f32 %v3948, %v3869
        %v3950 = vadd.f32 %v3949, %v3871
        %v3951 = vadd.f32 %v3950, %v3873
        %v3952 = vadd.f32 %v3951, %v3875
        %v3953 = vadd.f32 %v3952, %v3877
        %v3954 = vadd.f32 %v3953, %v3879
        %v3955 = vadd.f32 %v3954, %v3881
        %v3956 = vadd.f32 %v3955, %v3883
        %v3957 = vadd.f32 %v3956, %v3885
        %v3958 = vadd.f32 %v3957, %v3887
        %v3959 = vadd.f32 %v3958, %v3889
        %v3960 = vadd.f32 %v3959, %v3891
        %v3961 = vadd.f32 %v3960, %v3893
        %v3962 = vrot.slane %v3961, 4
        %v3963 = vadd.f32 %v3961, %v3962
        %v3964 = vrot.slane %v3963, 2
        %v3965 = vadd.f32 %v3963, %v3964
        %v3966 = vrot.slane %v3965, 1
        %v3967 = vadd.f32 %v3965, %v3966
        %v3968 = vmul.f32 %v3728, %v1160
        %v3969 = vmul.f32 %v3765, %v1160
        %v3970 = vadd.f32 %v3968, 0.5
        %v3971 = vadd.f32 %v3969, 0.5
        %v3972 = vfloor.f32 %v3970
        %v3973 = vfloor.f32 %v3971
        %v3974 = vmul.f32 %v3972, 256.0
        %v3975 = vmul.f32 %v3973, 256.0
        %v3976 = vsub.f32 %v3728, %v3974
        %v3977 = vsub.f32 %v3765, %v3975
        %vm3978 = vcmp.lt.f32.partialorder %v3976, 0.0
        %vm3979 = vcmp.lt.f32.partialorder %v3977, 0.0
        %v3980 = vsub.f32 %v3972, 1.0
        %v3981 = vsub.f32 %v3973, 1.0
        %v3982 = vsel %vm3978, %v3980, %v3972
        %v3983 = vsel %vm3979, %v3981, %v3973
        %v3984 = vrsqrt.pop %v3982
        %v3985 = vrsqrt.pop %v3983
        %v3986 = vmul.f32 %v3930, %v3984
        %v3987 = vmul.f32 %v3967, %v3985
        %v3988 = vadd.f32 %v3496, %v3986
        %v3989 = vadd.f32 %v3497, %v3987
        %v3990 = vadd.f32 %v3498, %v3984
        %v3991 = vadd.f32 %v3499, %v3985
        %v3992 = vrcp.pop %v3990
        %v3993 = vmul.f32 %v3988, %v3992
        %v3994 = vrcp.pop %v3991
        %v3995 = vmul.f32 %v3989, %v3994
        %v3998 = vcombine.low %v3993, %v3995
        %v4000 = vunpack.c.l.s4 1966171168
        %v4001 = vunpack.c.0.s8 %v4000
        %v4002 = vlaneseq
        %v4003 = vshrl.u32 %v4002, 7
        %v4004 = vsub.s32 %v4001, %v4003
        %v4005 = vrot.slane %v3998, %v4004
        %v4007 = vunpack.c.l.s4 1966171168
        %v4008 = vunpack.c.0.s8 %v4007
        %v4009 = vlaneseq
        %v4010 = vshrl.u32 %v4009, 7
        %v4011 = vsub.s32 %v4008, %v4010
        %v4012 = vrot.slane %v4005, %v4011
        %v4014 = vsel %vm2227, %v2193, %v4012
        %s4015 = scalar_lea.vmem %s234, 2
        %v4016 = vld [vmem:[%s4015] ss:$4 sm:$0x3]
        %s4017 = scalar_lea.vmem %s240, 512
        %v4018 = vld [vmem:[%s4017] sm:$0xff]
        %v4019 = vld [vmem:[%s4017 + $0x8] sm:$0xff]
        %v4020 = vld [vmem:[%s4017 + $0x10] sm:$0xff]
        %v4021 = vld [vmem:[%s4017 + $0x18] sm:$0xff]
        %v4022 = vld [vmem:[%s4017 + $0x20] sm:$0xff]
        %v4023 = vld [vmem:[%s4017 + $0x28] sm:$0xff]
        %v4024 = vld [vmem:[%s4017 + $0x30] sm:$0xff]
        %v4025 = vld [vmem:[%s4017 + $0x38] sm:$0xff]
        %v4026 = vld [vmem:[%s4017 + $0x40] sm:$0xff]
        %v4027 = vld [vmem:[%s4017 + $0x48] sm:$0xff]
        %v4028 = vld [vmem:[%s4017 + $0x50] sm:$0xff]
        %v4029 = vld [vmem:[%s4017 + $0x58] sm:$0xff]
        %v4030 = vld [vmem:[%s4017 + $0x60] sm:$0xff]
        %v4031 = vld [vmem:[%s4017 + $0x68] sm:$0xff]
        %v4032 = vld [vmem:[%s4017 + $0x70] sm:$0xff]
        %v4033 = vld [vmem:[%s4017 + $0x78] sm:$0xff]
        %v4034 = vld [vmem:[%s4017 + $0x80] sm:$0xff]
        %v4035 = vld [vmem:[%s4017 + $0x88] sm:$0xff]
        %v4036 = vld [vmem:[%s4017 + $0x90] sm:$0xff]
        %v4037 = vld [vmem:[%s4017 + $0x98] sm:$0xff]
        %v4038 = vld [vmem:[%s4017 + $0xa0] sm:$0xff]
        %v4039 = vld [vmem:[%s4017 + $0xa8] sm:$0xff]
        %v4040 = vld [vmem:[%s4017 + $0xb0] sm:$0xff]
        %v4041 = vld [vmem:[%s4017 + $0xb8] sm:$0xff]
        %v4042 = vld [vmem:[%s4017 + $0xc0] sm:$0xff]
        %v4043 = vld [vmem:[%s4017 + $0xc8] sm:$0xff]
        %v4044 = vld [vmem:[%s4017 + $0xd0] sm:$0xff]
        %v4045 = vld [vmem:[%s4017 + $0xd8] sm:$0xff]
        %v4046 = vld [vmem:[%s4017 + $0xe0] sm:$0xff]
        %v4047 = vld [vmem:[%s4017 + $0xe8] sm:$0xff]
        %v4048 = vld [vmem:[%s4017 + $0xf0] sm:$0xff]
        %v4049 = vld [vmem:[%s4017 + $0xf8] sm:$0xff]
        %vm4050 = vcmp.ne.f32.partialorder %v4016, 0.0
        %vm4051 = vcmp.ne.f32.partialorder %v4018, 0.0
        %vm4052 = vcmp.ne.f32.partialorder %v4019, 0.0
        %vm4053 = vcmp.ne.f32.partialorder %v4020, 0.0
        %vm4054 = vcmp.ne.f32.partialorder %v4021, 0.0
        %vm4055 = vcmp.ne.f32.partialorder %v4022, 0.0
        %vm4056 = vcmp.ne.f32.partialorder %v4023, 0.0
        %vm4057 = vcmp.ne.f32.partialorder %v4024, 0.0
        %vm4058 = vcmp.ne.f32.partialorder %v4025, 0.0
        %vm4059 = vcmp.ne.f32.partialorder %v4026, 0.0
        %vm4060 = vcmp.ne.f32.partialorder %v4027, 0.0
        %vm4061 = vcmp.ne.f32.partialorder %v4028, 0.0
        %vm4062 = vcmp.ne.f32.partialorder %v4029, 0.0
        %vm4063 = vcmp.ne.f32.partialorder %v4030, 0.0
        %vm4064 = vcmp.ne.f32.partialorder %v4031, 0.0
        %vm4065 = vcmp.ne.f32.partialorder %v4032, 0.0
        %vm4066 = vcmp.ne.f32.partialorder %v4033, 0.0
        %vm4067 = vcmp.ne.f32.partialorder %v4034, 0.0
        %vm4068 = vcmp.ne.f32.partialorder %v4035, 0.0
        %vm4069 = vcmp.ne.f32.partialorder %v4036, 0.0
        %vm4070 = vcmp.ne.f32.partialorder %v4037, 0.0
        %vm4071 = vcmp.ne.f32.partialorder %v4038, 0.0
        %vm4072 = vcmp.ne.f32.partialorder %v4039, 0.0
        %vm4073 = vcmp.ne.f32.partialorder %v4040, 0.0
        %vm4074 = vcmp.ne.f32.partialorder %v4041, 0.0
        %vm4075 = vcmp.ne.f32.partialorder %v4042, 0.0
        %vm4076 = vcmp.ne.f32.partialorder %v4043, 0.0
        %vm4077 = vcmp.ne.f32.partialorder %v4044, 0.0
        %vm4078 = vcmp.ne.f32.partialorder %v4045, 0.0
        %vm4079 = vcmp.ne.f32.partialorder %v4046, 0.0
        %vm4080 = vcmp.ne.f32.partialorder %v4047, 0.0
        %vm4081 = vcmp.ne.f32.partialorder %v4048, 0.0
        %vm4082 = vcmp.ne.f32.partialorder %v4049, 0.0
        %v4083 = vsel %vm4051, 1, 0
        %v4084 = vsel %vm4052, 1, 0
        %v4085 = vsel %vm4053, 1, 0
        %v4086 = vsel %vm4054, 1, 0
        %v4087 = vsel %vm4055, 1, 0
        %v4088 = vsel %vm4056, 1, 0
        %v4089 = vsel %vm4057, 1, 0
        %v4090 = vsel %vm4058, 1, 0
        %v4091 = vsel %vm4059, 1, 0
        %v4092 = vsel %vm4060, 1, 0
        %v4093 = vsel %vm4061, 1, 0
        %v4094 = vsel %vm4062, 1, 0
        %v4095 = vsel %vm4063, 1, 0
        %v4096 = vsel %vm4064, 1, 0
        %v4097 = vsel %vm4065, 1, 0
        %v4098 = vsel %vm4066, 1, 0
        %v4099 = vsel %vm4067, 1, 0
        %v4100 = vsel %vm4068, 1, 0
        %v4101 = vsel %vm4069, 1, 0
        %v4102 = vsel %vm4070, 1, 0
        %v4103 = vsel %vm4071, 1, 0
        %v4104 = vsel %vm4072, 1, 0
        %v4105 = vsel %vm4073, 1, 0
        %v4106 = vsel %vm4074, 1, 0
        %v4107 = vsel %vm4075, 1, 0
        %v4108 = vsel %vm4076, 1, 0
        %v4109 = vsel %vm4077, 1, 0
        %v4110 = vsel %vm4078, 1, 0
        %v4111 = vsel %vm4079, 1, 0
        %v4112 = vsel %vm4080, 1, 0
        %v4113 = vsel %vm4081, 1, 0
        %v4114 = vsel %vm4082, 1, 0
        %4115 = vset.pattern.permute.xlu0 0
        %4116 = vperm.xlu0 %4115, %v4083
        %v4117 = vpop.permute.xlu0 %4116
        %4118 = vset.pattern.permute.xlu0 0
        %4119 = vperm.xlu0 %4118, %v4084
        %v4120 = vpop.permute.xlu0 %4119
        %4121 = vset.pattern.permute.xlu0 0
        %4122 = vperm.xlu0 %4121, %v4085
        %v4123 = vpop.permute.xlu0 %4122
        %4124 = vset.pattern.permute.xlu0 0
        %4125 = vperm.xlu0 %4124, %v4086
        %v4126 = vpop.permute.xlu0 %4125
        %4127 = vset.pattern.permute.xlu0 0
        %4128 = vperm.xlu0 %4127, %v4087
        %v4129 = vpop.permute.xlu0 %4128
        %4130 = vset.pattern.permute.xlu0 0
        %4131 = vperm.xlu0 %4130, %v4088
        %v4132 = vpop.permute.xlu0 %4131
        %4133 = vset.pattern.permute.xlu0 0
        %4134 = vperm.xlu0 %4133, %v4089
        %v4135 = vpop.permute.xlu0 %4134
        %4136 = vset.pattern.permute.xlu0 0
        %4137 = vperm.xlu0 %4136, %v4090
        %v4138 = vpop.permute.xlu0 %4137
        %4139 = vset.pattern.permute.xlu0 0
        %4140 = vperm.xlu0 %4139, %v4091
        %v4141 = vpop.permute.xlu0 %4140
        %4142 = vset.pattern.permute.xlu0 0
        %4143 = vperm.xlu0 %4142, %v4092
        %v4144 = vpop.permute.xlu0 %4143
        %4145 = vset.pattern.permute.xlu0 0
        %4146 = vperm.xlu0 %4145, %v4093
        %v4147 = vpop.permute.xlu0 %4146
        %4148 = vset.pattern.permute.xlu0 0
        %4149 = vperm.xlu0 %4148, %v4094
        %v4150 = vpop.permute.xlu0 %4149
        %4151 = vset.pattern.permute.xlu0 0
        %4152 = vperm.xlu0 %4151, %v4095
        %v4153 = vpop.permute.xlu0 %4152
        %4154 = vset.pattern.permute.xlu0 0
        %4155 = vperm.xlu0 %4154, %v4096
        %v4156 = vpop.permute.xlu0 %4155
        %4157 = vset.pattern.permute.xlu0 0
        %4158 = vperm.xlu0 %4157, %v4097
        %v4159 = vpop.permute.xlu0 %4158
        %4160 = vset.pattern.permute.xlu0 0
        %4161 = vperm.xlu0 %4160, %v4098
        %v4162 = vpop.permute.xlu0 %4161
        %4163 = vset.pattern.permute.xlu0 0
        %4164 = vperm.xlu0 %4163, %v4099
        %v4165 = vpop.permute.xlu0 %4164
        %4166 = vset.pattern.permute.xlu0 0
        %4167 = vperm.xlu0 %4166, %v4100
        %v4168 = vpop.permute.xlu0 %4167
        %4169 = vset.pattern.permute.xlu0 0
        %4170 = vperm.xlu0 %4169, %v4101
        %v4171 = vpop.permute.xlu0 %4170
        %4172 = vset.pattern.permute.xlu0 0
        %4173 = vperm.xlu0 %4172, %v4102
        %v4174 = vpop.permute.xlu0 %4173
        %4175 = vset.pattern.permute.xlu0 0
        %4176 = vperm.xlu0 %4175, %v4103
        %v4177 = vpop.permute.xlu0 %4176
        %4178 = vset.pattern.permute.xlu0 0
        %4179 = vperm.xlu0 %4178, %v4104
        %v4180 = vpop.permute.xlu0 %4179
        %4181 = vset.pattern.permute.xlu0 0
        %4182 = vperm.xlu0 %4181, %v4105
        %v4183 = vpop.permute.xlu0 %4182
        %4184 = vset.pattern.permute.xlu0 0
        %4185 = vperm.xlu0 %4184, %v4106
        %v4186 = vpop.permute.xlu0 %4185
        %4187 = vset.pattern.permute.xlu0 0
        %4188 = vperm.xlu0 %4187, %v4107
        %v4189 = vpop.permute.xlu0 %4188
        %4190 = vset.pattern.permute.xlu0 0
        %4191 = vperm.xlu0 %4190, %v4108
        %v4192 = vpop.permute.xlu0 %4191
        %4193 = vset.pattern.permute.xlu0 0
        %4194 = vperm.xlu0 %4193, %v4109
        %v4195 = vpop.permute.xlu0 %4194
        %4196 = vset.pattern.permute.xlu0 0
        %4197 = vperm.xlu0 %4196, %v4110
        %v4198 = vpop.permute.xlu0 %4197
        %4199 = vset.pattern.permute.xlu0 0
        %4200 = vperm.xlu0 %4199, %v4111
        %v4201 = vpop.permute.xlu0 %4200
        %4202 = vset.pattern.permute.xlu0 0
        %4203 = vperm.xlu0 %4202, %v4112
        %v4204 = vpop.permute.xlu0 %4203
        %4205 = vset.pattern.permute.xlu0 0
        %4206 = vperm.xlu0 %4205, %v4113
        %v4207 = vpop.permute.xlu0 %4206
        %4208 = vset.pattern.permute.xlu0 0
        %4209 = vperm.xlu0 %4208, %v4114
        %v4210 = vpop.permute.xlu0 %4209
        %vm4211 = vcmp.eq.s32.totalorder %v4117, 1
        %vm4212 = vcmp.eq.s32.totalorder %v4120, 1
        %vm4213 = vcmp.eq.s32.totalorder %v4123, 1
        %vm4214 = vcmp.eq.s32.totalorder %v4126, 1
        %vm4215 = vcmp.eq.s32.totalorder %v4129, 1
        %vm4216 = vcmp.eq.s32.totalorder %v4132, 1
        %vm4217 = vcmp.eq.s32.totalorder %v4135, 1
        %vm4218 = vcmp.eq.s32.totalorder %v4138, 1
        %vm4219 = vcmp.eq.s32.totalorder %v4141, 1
        %vm4220 = vcmp.eq.s32.totalorder %v4144, 1
        %vm4221 = vcmp.eq.s32.totalorder %v4147, 1
        %vm4222 = vcmp.eq.s32.totalorder %v4150, 1
        %vm4223 = vcmp.eq.s32.totalorder %v4153, 1
        %vm4224 = vcmp.eq.s32.totalorder %v4156, 1
        %vm4225 = vcmp.eq.s32.totalorder %v4159, 1
        %vm4226 = vcmp.eq.s32.totalorder %v4162, 1
        %vm4227 = vcmp.eq.s32.totalorder %v4165, 1
        %vm4228 = vcmp.eq.s32.totalorder %v4168, 1
        %vm4229 = vcmp.eq.s32.totalorder %v4171, 1
        %vm4230 = vcmp.eq.s32.totalorder %v4174, 1
        %vm4231 = vcmp.eq.s32.totalorder %v4177, 1
        %vm4232 = vcmp.eq.s32.totalorder %v4180, 1
        %vm4233 = vcmp.eq.s32.totalorder %v4183, 1
        %vm4234 = vcmp.eq.s32.totalorder %v4186, 1
        %vm4235 = vcmp.eq.s32.totalorder %v4189, 1
        %vm4236 = vcmp.eq.s32.totalorder %v4192, 1
        %vm4237 = vcmp.eq.s32.totalorder %v4195, 1
        %vm4238 = vcmp.eq.s32.totalorder %v4198, 1
        %vm4239 = vcmp.eq.s32.totalorder %v4201, 1
        %vm4240 = vcmp.eq.s32.totalorder %v4204, 1
        %vm4241 = vcmp.eq.s32.totalorder %v4207, 1
        %vm4242 = vcmp.eq.s32.totalorder %v4210, 1
        %vm4243 = vmand %vm4211, %vm372
        %vm4244 = vmand %vm4211, %vm373
        %vm4245 = vmand %vm4212, %vm374
        %vm4246 = vmand %vm4212, %vm375
        %vm4247 = vmand %vm4213, %vm376
        %vm4248 = vmand %vm4213, %vm377
        %vm4249 = vmand %vm4214, %vm378
        %vm4250 = vmand %vm4214, %vm379
        %vm4251 = vmand %vm4215, %vm380
        %vm4252 = vmand %vm4215, %vm381
        %vm4253 = vmand %vm4216, %vm382
        %vm4254 = vmand %vm4216, %vm383
        %vm4255 = vmand %vm4217, %vm384
        %vm4256 = vmand %vm4217, %vm385
        %vm4257 = vmand %vm4218, %vm386
        %vm4258 = vmand %vm4218, %vm387
        %vm4259 = vmand %vm4219, %vm388
        %vm4260 = vmand %vm4219, %vm389
        %vm4261 = vmand %vm4220, %vm390
        %vm4262 = vmand %vm4220, %vm391
        %vm4263 = vmand %vm4221, %vm392
        %vm4264 = vmand %vm4221, %vm393
        %vm4265 = vmand %vm4222, %vm394
        %vm4266 = vmand %vm4222, %vm395
        %vm4267 = vmand %vm4223, %vm396
        %vm4268 = vmand %vm4223, %vm397
        %vm4269 = vmand %vm4224, %vm398
        %vm4270 = vmand %vm4224, %vm399
        %vm4271 = vmand %vm4225, %vm400
        %vm4272 = vmand %vm4225, %vm401
        %vm4273 = vmand %vm4226, %vm402
        %vm4274 = vmand %vm4226, %vm403
        %vm4275 = vmand %vm4227, %vm404
        %vm4276 = vmand %vm4227, %vm405
        %vm4277 = vmand %vm4228, %vm406
        %vm4278 = vmand %vm4228, %vm407
        %vm4279 = vmand %vm4229, %vm408
        %vm4280 = vmand %vm4229, %vm409
        %vm4281 = vmand %vm4230, %vm410
        %vm4282 = vmand %vm4230, %vm411
        %vm4283 = vmand %vm4231, %vm412
        %vm4284 = vmand %vm4231, %vm413
        %vm4285 = vmand %vm4232, %vm414
        %vm4286 = vmand %vm4232, %vm415
        %vm4287 = vmand %vm4233, %vm416
        %vm4288 = vmand %vm4233, %vm417
        %vm4289 = vmand %vm4234, %vm418
        %vm4290 = vmand %vm4234, %vm419
        %vm4291 = vmand %vm4235, %vm420
        %vm4292 = vmand %vm4235, %vm421
        %vm4293 = vmand %vm4236, %vm422
        %vm4294 = vmand %vm4236, %vm423
        %vm4295 = vmand %vm4237, %vm424
        %vm4296 = vmand %vm4237, %vm425
        %vm4297 = vmand %vm4238, %vm426
        %vm4298 = vmand %vm4238, %vm427
        %vm4299 = vmand %vm4239, %vm428
        %vm4300 = vmand %vm4239, %vm429
        %vm4301 = vmand %vm4240, %vm430
        %vm4302 = vmand %vm4240, %vm431
        %vm4303 = vmand %vm4241, %vm432
        %vm4304 = vmand %vm4241, %vm433
        %vm4305 = vmand %vm4242, %vm434
        %vm4306 = vmand %vm4242, %vm435
        %v4307 = vsel %vm4243, %v308, 1e+30
        %v4308 = vsel %vm4244, %v309, 1e+30
        %v4309 = vsel %vm4245, %v310, 1e+30
        %v4310 = vsel %vm4246, %v311, 1e+30
        %v4311 = vsel %vm4247, %v312, 1e+30
        %v4312 = vsel %vm4248, %v313, 1e+30
        %v4313 = vsel %vm4249, %v314, 1e+30
        %v4314 = vsel %vm4250, %v315, 1e+30
        %v4315 = vsel %vm4251, %v316, 1e+30
        %v4316 = vsel %vm4252, %v317, 1e+30
        %v4317 = vsel %vm4253, %v318, 1e+30
        %v4318 = vsel %vm4254, %v319, 1e+30
        %v4319 = vsel %vm4255, %v320, 1e+30
        %v4320 = vsel %vm4256, %v321, 1e+30
        %v4321 = vsel %vm4257, %v322, 1e+30
        %v4322 = vsel %vm4258, %v323, 1e+30
        %v4323 = vsel %vm4259, %v324, 1e+30
        %v4324 = vsel %vm4260, %v325, 1e+30
        %v4325 = vsel %vm4261, %v326, 1e+30
        %v4326 = vsel %vm4262, %v327, 1e+30
        %v4327 = vsel %vm4263, %v328, 1e+30
        %v4328 = vsel %vm4264, %v329, 1e+30
        %v4329 = vsel %vm4265, %v330, 1e+30
        %v4330 = vsel %vm4266, %v331, 1e+30
        %v4331 = vsel %vm4267, %v332, 1e+30
        %v4332 = vsel %vm4268, %v333, 1e+30
        %v4333 = vsel %vm4269, %v334, 1e+30
        %v4334 = vsel %vm4270, %v335, 1e+30
        %v4335 = vsel %vm4271, %v336, 1e+30
        %v4336 = vsel %vm4272, %v337, 1e+30
        %v4337 = vsel %vm4273, %v338, 1e+30
        %v4338 = vsel %vm4274, %v339, 1e+30
        %v4339 = vsel %vm4275, %v340, 1e+30
        %v4340 = vsel %vm4276, %v341, 1e+30
        %v4341 = vsel %vm4277, %v342, 1e+30
        %v4342 = vsel %vm4278, %v343, 1e+30
        %v4343 = vsel %vm4279, %v344, 1e+30
        %v4344 = vsel %vm4280, %v345, 1e+30
        %v4345 = vsel %vm4281, %v346, 1e+30
        %v4346 = vsel %vm4282, %v347, 1e+30
        %v4347 = vsel %vm4283, %v348, 1e+30
        %v4348 = vsel %vm4284, %v349, 1e+30
        %v4349 = vsel %vm4285, %v350, 1e+30
        %v4350 = vsel %vm4286, %v351, 1e+30
        %v4351 = vsel %vm4287, %v352, 1e+30
        %v4352 = vsel %vm4288, %v353, 1e+30
        %v4353 = vsel %vm4289, %v354, 1e+30
        %v4354 = vsel %vm4290, %v355, 1e+30
        %v4355 = vsel %vm4291, %v356, 1e+30
        %v4356 = vsel %vm4292, %v357, 1e+30
        %v4357 = vsel %vm4293, %v358, 1e+30
        %v4358 = vsel %vm4294, %v359, 1e+30
        %v4359 = vsel %vm4295, %v360, 1e+30
        %v4360 = vsel %vm4296, %v361, 1e+30
        %v4361 = vsel %vm4297, %v362, 1e+30
        %v4362 = vsel %vm4298, %v363, 1e+30
        %v4363 = vsel %vm4299, %v364, 1e+30
        %v4364 = vsel %vm4300, %v365, 1e+30
        %v4365 = vsel %vm4301, %v366, 1e+30
        %v4366 = vsel %vm4302, %v367, 1e+30
        %v4367 = vsel %vm4303, %v368, 1e+30
        %v4368 = vsel %vm4304, %v369, 1e+30
        %v4369 = vsel %vm4305, %v370, 1e+30
        %v4370 = vsel %vm4306, %v371, 1e+30
        %v4371 = vmin.f32 %v4307, %v4311
        %v4372 = vmin.f32 %v4309, %v4313
        %v4373 = vmin.f32 %v4371, %v4315
        %v4374 = vmin.f32 %v4372, %v4317
        %v4375 = vmin.f32 %v4373, %v4319
        %v4376 = vmin.f32 %v4374, %v4321
        %v4377 = vmin.f32 %v4375, %v4323
        %v4378 = vmin.f32 %v4376, %v4325
        %v4379 = vmin.f32 %v4377, %v4327
        %v4380 = vmin.f32 %v4378, %v4329
        %v4381 = vmin.f32 %v4379, %v4331
        %v4382 = vmin.f32 %v4380, %v4333
        %v4383 = vmin.f32 %v4381, %v4335
        %v4384 = vmin.f32 %v4382, %v4337
        %v4385 = vmin.f32 %v4383, %v4339
        %v4386 = vmin.f32 %v4384, %v4341
        %v4387 = vmin.f32 %v4385, %v4343
        %v4388 = vmin.f32 %v4386, %v4345
        %v4389 = vmin.f32 %v4387, %v4347
        %v4390 = vmin.f32 %v4388, %v4349
        %v4391 = vmin.f32 %v4389, %v4351
        %v4392 = vmin.f32 %v4390, %v4353
        %v4393 = vmin.f32 %v4391, %v4355
        %v4394 = vmin.f32 %v4392, %v4357
        %v4395 = vmin.f32 %v4393, %v4359
        %v4396 = vmin.f32 %v4394, %v4361
        %v4397 = vmin.f32 %v4395, %v4363
        %v4398 = vmin.f32 %v4396, %v4365
        %v4399 = vmin.f32 %v4397, %v4367
        %v4400 = vmin.f32 %v4398, %v4369
        %v4401 = vmin.f32 %v4399, %v4400
        %v4402 = vrot.slane %v4401, 4
        %v4403 = vmin.f32 %v4401, %v4402
        %v4404 = vrot.slane %v4403, 2
        %v4405 = vmin.f32 %v4403, %v4404
        %v4406 = vrot.slane %v4405, 1
        %v4407 = vmin.f32 %v4405, %v4406
        %v4408 = vmin.f32 %v4308, %v4312
        %v4409 = vmin.f32 %v4310, %v4314
        %v4410 = vmin.f32 %v4408, %v4316
        %v4411 = vmin.f32 %v4409, %v4318
        %v4412 = vmin.f32 %v4410, %v4320
        %v4413 = vmin.f32 %v4411, %v4322
        %v4414 = vmin.f32 %v4412, %v4324
        %v4415 = vmin.f32 %v4413, %v4326
        %v4416 = vmin.f32 %v4414, %v4328
        %v4417 = vmin.f32 %v4415, %v4330
        %v4418 = vmin.f32 %v4416, %v4332
        %v4419 = vmin.f32 %v4417, %v4334
        %v4420 = vmin.f32 %v4418, %v4336
        %v4421 = vmin.f32 %v4419, %v4338
        %v4422 = vmin.f32 %v4420, %v4340
        %v4423 = vmin.f32 %v4421, %v4342
        %v4424 = vmin.f32 %v4422, %v4344
        %v4425 = vmin.f32 %v4423, %v4346
        %v4426 = vmin.f32 %v4424, %v4348
        %v4427 = vmin.f32 %v4425, %v4350
        %v4428 = vmin.f32 %v4426, %v4352
        %v4429 = vmin.f32 %v4427, %v4354
        %v4430 = vmin.f32 %v4428, %v4356
        %v4431 = vmin.f32 %v4429, %v4358
        %v4432 = vmin.f32 %v4430, %v4360
        %v4433 = vmin.f32 %v4431, %v4362
        %v4434 = vmin.f32 %v4432, %v4364
        %v4435 = vmin.f32 %v4433, %v4366
        %v4436 = vmin.f32 %v4434, %v4368
        %v4437 = vmin.f32 %v4435, %v4370
        %v4438 = vmin.f32 %v4436, %v4437
        %v4439 = vrot.slane %v4438, 4
        %v4440 = vmin.f32 %v4438, %v4439
        %v4441 = vrot.slane %v4440, 2
        %v4442 = vmin.f32 %v4440, %v4441
        %v4443 = vrot.slane %v4442, 1
        %v4444 = vmin.f32 %v4442, %v4443
        %vm4445 = vcmp.eq.f32.partialorder %v308, %v4407
        %vm4446 = vcmp.eq.f32.partialorder %v309, %v4444
        %vm4447 = vcmp.eq.f32.partialorder %v310, %v4407
        %vm4448 = vcmp.eq.f32.partialorder %v311, %v4444
        %vm4449 = vcmp.eq.f32.partialorder %v312, %v4407
        %vm4450 = vcmp.eq.f32.partialorder %v313, %v4444
        %vm4451 = vcmp.eq.f32.partialorder %v314, %v4407
        %vm4452 = vcmp.eq.f32.partialorder %v315, %v4444
        %vm4453 = vcmp.eq.f32.partialorder %v316, %v4407
        %vm4454 = vcmp.eq.f32.partialorder %v317, %v4444
        %vm4455 = vcmp.eq.f32.partialorder %v318, %v4407
        %vm4456 = vcmp.eq.f32.partialorder %v319, %v4444
        %vm4457 = vcmp.eq.f32.partialorder %v320, %v4407
        %vm4458 = vcmp.eq.f32.partialorder %v321, %v4444
        %vm4459 = vcmp.eq.f32.partialorder %v322, %v4407
        %vm4460 = vcmp.eq.f32.partialorder %v323, %v4444
        %vm4461 = vcmp.eq.f32.partialorder %v324, %v4407
        %vm4462 = vcmp.eq.f32.partialorder %v325, %v4444
        %vm4463 = vcmp.eq.f32.partialorder %v326, %v4407
        %vm4464 = vcmp.eq.f32.partialorder %v327, %v4444
        %vm4465 = vcmp.eq.f32.partialorder %v328, %v4407
        %vm4466 = vcmp.eq.f32.partialorder %v329, %v4444
        %vm4467 = vcmp.eq.f32.partialorder %v330, %v4407
        %vm4468 = vcmp.eq.f32.partialorder %v331, %v4444
        %vm4469 = vcmp.eq.f32.partialorder %v332, %v4407
        %vm4470 = vcmp.eq.f32.partialorder %v333, %v4444
        %vm4471 = vcmp.eq.f32.partialorder %v334, %v4407
        %vm4472 = vcmp.eq.f32.partialorder %v335, %v4444
        %vm4473 = vcmp.eq.f32.partialorder %v336, %v4407
        %vm4474 = vcmp.eq.f32.partialorder %v337, %v4444
        %vm4475 = vcmp.eq.f32.partialorder %v338, %v4407
        %vm4476 = vcmp.eq.f32.partialorder %v339, %v4444
        %vm4477 = vcmp.eq.f32.partialorder %v340, %v4407
        %vm4478 = vcmp.eq.f32.partialorder %v341, %v4444
        %vm4479 = vcmp.eq.f32.partialorder %v342, %v4407
        %vm4480 = vcmp.eq.f32.partialorder %v343, %v4444
        %vm4481 = vcmp.eq.f32.partialorder %v344, %v4407
        %vm4482 = vcmp.eq.f32.partialorder %v345, %v4444
        %vm4483 = vcmp.eq.f32.partialorder %v346, %v4407
        %vm4484 = vcmp.eq.f32.partialorder %v347, %v4444
        %vm4485 = vcmp.eq.f32.partialorder %v348, %v4407
        %vm4486 = vcmp.eq.f32.partialorder %v349, %v4444
        %vm4487 = vcmp.eq.f32.partialorder %v350, %v4407
        %vm4488 = vcmp.eq.f32.partialorder %v351, %v4444
        %vm4489 = vcmp.eq.f32.partialorder %v352, %v4407
        %vm4490 = vcmp.eq.f32.partialorder %v353, %v4444
        %vm4491 = vcmp.eq.f32.partialorder %v354, %v4407
        %vm4492 = vcmp.eq.f32.partialorder %v355, %v4444
        %vm4493 = vcmp.eq.f32.partialorder %v356, %v4407
        %vm4494 = vcmp.eq.f32.partialorder %v357, %v4444
        %vm4495 = vcmp.eq.f32.partialorder %v358, %v4407
        %vm4496 = vcmp.eq.f32.partialorder %v359, %v4444
        %vm4497 = vcmp.eq.f32.partialorder %v360, %v4407
        %vm4498 = vcmp.eq.f32.partialorder %v361, %v4444
        %vm4499 = vcmp.eq.f32.partialorder %v362, %v4407
        %vm4500 = vcmp.eq.f32.partialorder %v363, %v4444
        %vm4501 = vcmp.eq.f32.partialorder %v364, %v4407
        %vm4502 = vcmp.eq.f32.partialorder %v365, %v4444
        %vm4503 = vcmp.eq.f32.partialorder %v366, %v4407
        %vm4504 = vcmp.eq.f32.partialorder %v367, %v4444
        %vm4505 = vcmp.eq.f32.partialorder %v368, %v4407
        %vm4506 = vcmp.eq.f32.partialorder %v369, %v4444
        %vm4507 = vcmp.eq.f32.partialorder %v370, %v4407
        %vm4508 = vcmp.eq.f32.partialorder %v371, %v4444
        %4510 = vset.pattern.permute.xlu0 0
        %4511 = vperm.xlu0 %4510, %v4018
        %v4512 = vpop.permute.xlu0 %4511
        %4515 = vset.pattern.permute.xlu0 0
        %4516 = vperm.xlu0 %4515, %v4019
        %v4517 = vpop.permute.xlu0 %4516
        %4520 = vset.pattern.permute.xlu0 0
        %4521 = vperm.xlu0 %4520, %v4020
        %v4522 = vpop.permute.xlu0 %4521
        %4525 = vset.pattern.permute.xlu0 0
        %4526 = vperm.xlu0 %4525, %v4021
        %v4527 = vpop.permute.xlu0 %4526
        %4530 = vset.pattern.permute.xlu0 0
        %4531 = vperm.xlu0 %4530, %v4022
        %v4532 = vpop.permute.xlu0 %4531
        %4535 = vset.pattern.permute.xlu0 0
        %4536 = vperm.xlu0 %4535, %v4023
        %v4537 = vpop.permute.xlu0 %4536
        %4540 = vset.pattern.permute.xlu0 0
        %4541 = vperm.xlu0 %4540, %v4024
        %v4542 = vpop.permute.xlu0 %4541
        %4545 = vset.pattern.permute.xlu0 0
        %4546 = vperm.xlu0 %4545, %v4025
        %v4547 = vpop.permute.xlu0 %4546
        %4550 = vset.pattern.permute.xlu0 0
        %4551 = vperm.xlu0 %4550, %v4026
        %v4552 = vpop.permute.xlu0 %4551
        %4555 = vset.pattern.permute.xlu0 0
        %4556 = vperm.xlu0 %4555, %v4027
        %v4557 = vpop.permute.xlu0 %4556
        %4560 = vset.pattern.permute.xlu0 0
        %4561 = vperm.xlu0 %4560, %v4028
        %v4562 = vpop.permute.xlu0 %4561
        %4565 = vset.pattern.permute.xlu0 0
        %4566 = vperm.xlu0 %4565, %v4029
        %v4567 = vpop.permute.xlu0 %4566
        %4570 = vset.pattern.permute.xlu0 0
        %4571 = vperm.xlu0 %4570, %v4030
        %v4572 = vpop.permute.xlu0 %4571
        %4575 = vset.pattern.permute.xlu0 0
        %4576 = vperm.xlu0 %4575, %v4031
        %v4577 = vpop.permute.xlu0 %4576
        %4580 = vset.pattern.permute.xlu0 0
        %4581 = vperm.xlu0 %4580, %v4032
        %v4582 = vpop.permute.xlu0 %4581
        %4585 = vset.pattern.permute.xlu0 0
        %4586 = vperm.xlu0 %4585, %v4033
        %v4587 = vpop.permute.xlu0 %4586
        %4590 = vset.pattern.permute.xlu0 0
        %4591 = vperm.xlu0 %4590, %v4034
        %v4592 = vpop.permute.xlu0 %4591
        %4595 = vset.pattern.permute.xlu0 0
        %4596 = vperm.xlu0 %4595, %v4035
        %v4597 = vpop.permute.xlu0 %4596
        %4600 = vset.pattern.permute.xlu0 0
        %4601 = vperm.xlu0 %4600, %v4036
        %v4602 = vpop.permute.xlu0 %4601
        %4605 = vset.pattern.permute.xlu0 0
        %4606 = vperm.xlu0 %4605, %v4037
        %v4607 = vpop.permute.xlu0 %4606
        %4610 = vset.pattern.permute.xlu0 0
        %4611 = vperm.xlu0 %4610, %v4038
        %v4612 = vpop.permute.xlu0 %4611
        %4615 = vset.pattern.permute.xlu0 0
        %4616 = vperm.xlu0 %4615, %v4039
        %v4617 = vpop.permute.xlu0 %4616
        %4620 = vset.pattern.permute.xlu0 0
        %4621 = vperm.xlu0 %4620, %v4040
        %v4622 = vpop.permute.xlu0 %4621
        %4625 = vset.pattern.permute.xlu0 0
        %4626 = vperm.xlu0 %4625, %v4041
        %v4627 = vpop.permute.xlu0 %4626
        %4630 = vset.pattern.permute.xlu0 0
        %4631 = vperm.xlu0 %4630, %v4042
        %v4632 = vpop.permute.xlu0 %4631
        %4635 = vset.pattern.permute.xlu0 0
        %4636 = vperm.xlu0 %4635, %v4043
        %v4637 = vpop.permute.xlu0 %4636
        %4640 = vset.pattern.permute.xlu0 0
        %4641 = vperm.xlu0 %4640, %v4044
        %v4642 = vpop.permute.xlu0 %4641
        %4645 = vset.pattern.permute.xlu0 0
        %4646 = vperm.xlu0 %4645, %v4045
        %v4647 = vpop.permute.xlu0 %4646
        %4650 = vset.pattern.permute.xlu0 0
        %4651 = vperm.xlu0 %4650, %v4046
        %v4652 = vpop.permute.xlu0 %4651
        %4655 = vset.pattern.permute.xlu0 0
        %4656 = vperm.xlu0 %4655, %v4047
        %v4657 = vpop.permute.xlu0 %4656
        %4660 = vset.pattern.permute.xlu0 0
        %4661 = vperm.xlu0 %4660, %v4048
        %v4662 = vpop.permute.xlu0 %4661
        %4665 = vset.pattern.permute.xlu0 0
        %4666 = vperm.xlu0 %4665, %v4049
        %v4667 = vpop.permute.xlu0 %4666
        %v4669 = vsel %vm4445, %v4512, 0.0
        %v4670 = vsel %vm4446, %v4512, 0.0
        %v4671 = vsel %vm4447, %v4517, 0.0
        %v4672 = vsel %vm4448, %v4517, 0.0
        %v4673 = vsel %vm4449, %v4522, 0.0
        %v4674 = vsel %vm4450, %v4522, 0.0
        %v4675 = vsel %vm4451, %v4527, 0.0
        %v4676 = vsel %vm4452, %v4527, 0.0
        %v4677 = vsel %vm4453, %v4532, 0.0
        %v4678 = vsel %vm4454, %v4532, 0.0
        %v4679 = vsel %vm4455, %v4537, 0.0
        %v4680 = vsel %vm4456, %v4537, 0.0
        %v4681 = vsel %vm4457, %v4542, 0.0
        %v4682 = vsel %vm4458, %v4542, 0.0
        %v4683 = vsel %vm4459, %v4547, 0.0
        %v4684 = vsel %vm4460, %v4547, 0.0
        %v4685 = vsel %vm4461, %v4552, 0.0
        %v4686 = vsel %vm4462, %v4552, 0.0
        %v4687 = vsel %vm4463, %v4557, 0.0
        %v4688 = vsel %vm4464, %v4557, 0.0
        %v4689 = vsel %vm4465, %v4562, 0.0
        %v4690 = vsel %vm4466, %v4562, 0.0
        %v4691 = vsel %vm4467, %v4567, 0.0
        %v4692 = vsel %vm4468, %v4567, 0.0
        %v4693 = vsel %vm4469, %v4572, 0.0
        %v4694 = vsel %vm4470, %v4572, 0.0
        %v4695 = vsel %vm4471, %v4577, 0.0
        %v4696 = vsel %vm4472, %v4577, 0.0
        %v4697 = vsel %vm4473, %v4582, 0.0
        %v4698 = vsel %vm4474, %v4582, 0.0
        %v4699 = vsel %vm4475, %v4587, 0.0
        %v4700 = vsel %vm4476, %v4587, 0.0
        %v4701 = vsel %vm4477, %v4592, 0.0
        %v4702 = vsel %vm4478, %v4592, 0.0
        %v4703 = vsel %vm4479, %v4597, 0.0
        %v4704 = vsel %vm4480, %v4597, 0.0
        %v4705 = vsel %vm4481, %v4602, 0.0
        %v4706 = vsel %vm4482, %v4602, 0.0
        %v4707 = vsel %vm4483, %v4607, 0.0
        %v4708 = vsel %vm4484, %v4607, 0.0
        %v4709 = vsel %vm4485, %v4612, 0.0
        %v4710 = vsel %vm4486, %v4612, 0.0
        %v4711 = vsel %vm4487, %v4617, 0.0
        %v4712 = vsel %vm4488, %v4617, 0.0
        %v4713 = vsel %vm4489, %v4622, 0.0
        %v4714 = vsel %vm4490, %v4622, 0.0
        %v4715 = vsel %vm4491, %v4627, 0.0
        %v4716 = vsel %vm4492, %v4627, 0.0
        %v4717 = vsel %vm4493, %v4632, 0.0
        %v4718 = vsel %vm4494, %v4632, 0.0
        %v4719 = vsel %vm4495, %v4637, 0.0
        %v4720 = vsel %vm4496, %v4637, 0.0
        %v4721 = vsel %vm4497, %v4642, 0.0
        %v4722 = vsel %vm4498, %v4642, 0.0
        %v4723 = vsel %vm4499, %v4647, 0.0
        %v4724 = vsel %vm4500, %v4647, 0.0
        %v4725 = vsel %vm4501, %v4652, 0.0
        %v4726 = vsel %vm4502, %v4652, 0.0
        %v4727 = vsel %vm4503, %v4657, 0.0
        %v4728 = vsel %vm4504, %v4657, 0.0
        %v4729 = vsel %vm4505, %v4662, 0.0
        %v4730 = vsel %vm4506, %v4662, 0.0
        %v4731 = vsel %vm4507, %v4667, 0.0
        %v4732 = vsel %vm4508, %v4667, 0.0
        %v4733 = vadd.f32 %v4669, %v4671
        %v4734 = vadd.f32 %v4733, %v4673
        %v4735 = vadd.f32 %v4734, %v4675
        %v4736 = vadd.f32 %v4735, %v4677
        %v4737 = vadd.f32 %v4736, %v4679
        %v4738 = vadd.f32 %v4737, %v4681
        %v4739 = vadd.f32 %v4738, %v4683
        %v4740 = vadd.f32 %v4739, %v4685
        %v4741 = vadd.f32 %v4740, %v4687
        %v4742 = vadd.f32 %v4741, %v4689
        %v4743 = vadd.f32 %v4742, %v4691
        %v4744 = vadd.f32 %v4743, %v4693
        %v4745 = vadd.f32 %v4744, %v4695
        %v4746 = vadd.f32 %v4745, %v4697
        %v4747 = vadd.f32 %v4746, %v4699
        %v4748 = vadd.f32 %v4747, %v4701
        %v4749 = vadd.f32 %v4748, %v4703
        %v4750 = vadd.f32 %v4749, %v4705
        %v4751 = vadd.f32 %v4750, %v4707
        %v4752 = vadd.f32 %v4751, %v4709
        %v4753 = vadd.f32 %v4752, %v4711
        %v4754 = vadd.f32 %v4753, %v4713
        %v4755 = vadd.f32 %v4754, %v4715
        %v4756 = vadd.f32 %v4755, %v4717
        %v4757 = vadd.f32 %v4756, %v4719
        %v4758 = vadd.f32 %v4757, %v4721
        %v4759 = vadd.f32 %v4758, %v4723
        %v4760 = vadd.f32 %v4759, %v4725
        %v4761 = vadd.f32 %v4760, %v4727
        %v4762 = vadd.f32 %v4761, %v4729
        %v4763 = vadd.f32 %v4762, %v4731
        %v4764 = vrot.slane %v4763, 4
        %v4765 = vadd.f32 %v4763, %v4764
        %v4766 = vrot.slane %v4765, 2
        %v4767 = vadd.f32 %v4765, %v4766
        %v4768 = vrot.slane %v4767, 1
        %v4769 = vadd.f32 %v4767, %v4768
        %v4770 = vadd.f32 %v4670, %v4672
        %v4771 = vadd.f32 %v4770, %v4674
        %v4772 = vadd.f32 %v4771, %v4676
        %v4773 = vadd.f32 %v4772, %v4678
        %v4774 = vadd.f32 %v4773, %v4680
        %v4775 = vadd.f32 %v4774, %v4682
        %v4776 = vadd.f32 %v4775, %v4684
        %v4777 = vadd.f32 %v4776, %v4686
        %v4778 = vadd.f32 %v4777, %v4688
        %v4779 = vadd.f32 %v4778, %v4690
        %v4780 = vadd.f32 %v4779, %v4692
        %v4781 = vadd.f32 %v4780, %v4694
        %v4782 = vadd.f32 %v4781, %v4696
        %v4783 = vadd.f32 %v4782, %v4698
        %v4784 = vadd.f32 %v4783, %v4700
        %v4785 = vadd.f32 %v4784, %v4702
        %v4786 = vadd.f32 %v4785, %v4704
        %v4787 = vadd.f32 %v4786, %v4706
        %v4788 = vadd.f32 %v4787, %v4708
        %v4789 = vadd.f32 %v4788, %v4710
        %v4790 = vadd.f32 %v4789, %v4712
        %v4791 = vadd.f32 %v4790, %v4714
        %v4792 = vadd.f32 %v4791, %v4716
        %v4793 = vadd.f32 %v4792, %v4718
        %v4794 = vadd.f32 %v4793, %v4720
        %v4795 = vadd.f32 %v4794, %v4722
        %v4796 = vadd.f32 %v4795, %v4724
        %v4797 = vadd.f32 %v4796, %v4726
        %v4798 = vadd.f32 %v4797, %v4728
        %v4799 = vadd.f32 %v4798, %v4730
        %v4800 = vadd.f32 %v4799, %v4732
        %v4801 = vrot.slane %v4800, 4
        %v4802 = vadd.f32 %v4800, %v4801
        %v4803 = vrot.slane %v4802, 2
        %v4804 = vadd.f32 %v4802, %v4803
        %v4805 = vrot.slane %v4804, 1
        %v4806 = vadd.f32 %v4804, %v4805
        %v4807 = vmul.f32 %v4407, %v1160
        %v4808 = vmul.f32 %v4444, %v1160
        %v4809 = vadd.f32 %v4807, 0.5
        %v4810 = vadd.f32 %v4808, 0.5
        %v4811 = vfloor.f32 %v4809
        %v4812 = vfloor.f32 %v4810
        %v4813 = vmul.f32 %v4811, 256.0
        %v4814 = vmul.f32 %v4812, 256.0
        %v4815 = vsub.f32 %v4407, %v4813
        %v4816 = vsub.f32 %v4444, %v4814
        %vm4817 = vcmp.lt.f32.partialorder %v4815, 0.0
        %vm4818 = vcmp.lt.f32.partialorder %v4816, 0.0
        %v4819 = vsub.f32 %v4811, 1.0
        %v4820 = vsub.f32 %v4812, 1.0
        %v4821 = vsel %vm4817, %v4819, %v4811
        %v4822 = vsel %vm4818, %v4820, %v4812
        %v4823 = vrsqrt.pop %v4821
        %v4824 = vrsqrt.pop %v4822
        %v4825 = vmul.f32 %v4769, %v4823
        %v4826 = vmul.f32 %v4806, %v4824
        %v4827 = vadd.f32 %v4825, 0.0
        %v4828 = vadd.f32 %v4826, 0.0
        %v4829 = vadd.f32 %v4823, 0.0
        %v4830 = vadd.f32 %v4824, 0.0
        %vm4831 = vcmp.gt.f32.partialorder %v308, %v4407
        %vm4832 = vcmp.gt.f32.partialorder %v309, %v4444
        %vm4833 = vcmp.gt.f32.partialorder %v310, %v4407
        %vm4834 = vcmp.gt.f32.partialorder %v311, %v4444
        %vm4835 = vcmp.gt.f32.partialorder %v312, %v4407
        %vm4836 = vcmp.gt.f32.partialorder %v313, %v4444
        %vm4837 = vcmp.gt.f32.partialorder %v314, %v4407
        %vm4838 = vcmp.gt.f32.partialorder %v315, %v4444
        %vm4839 = vcmp.gt.f32.partialorder %v316, %v4407
        %vm4840 = vcmp.gt.f32.partialorder %v317, %v4444
        %vm4841 = vcmp.gt.f32.partialorder %v318, %v4407
        %vm4842 = vcmp.gt.f32.partialorder %v319, %v4444
        %vm4843 = vcmp.gt.f32.partialorder %v320, %v4407
        %vm4844 = vcmp.gt.f32.partialorder %v321, %v4444
        %vm4845 = vcmp.gt.f32.partialorder %v322, %v4407
        %vm4846 = vcmp.gt.f32.partialorder %v323, %v4444
        %vm4847 = vcmp.gt.f32.partialorder %v324, %v4407
        %vm4848 = vcmp.gt.f32.partialorder %v325, %v4444
        %vm4849 = vcmp.gt.f32.partialorder %v326, %v4407
        %vm4850 = vcmp.gt.f32.partialorder %v327, %v4444
        %vm4851 = vcmp.gt.f32.partialorder %v328, %v4407
        %vm4852 = vcmp.gt.f32.partialorder %v329, %v4444
        %vm4853 = vcmp.gt.f32.partialorder %v330, %v4407
        %vm4854 = vcmp.gt.f32.partialorder %v331, %v4444
        %vm4855 = vcmp.gt.f32.partialorder %v332, %v4407
        %vm4856 = vcmp.gt.f32.partialorder %v333, %v4444
        %vm4857 = vcmp.gt.f32.partialorder %v334, %v4407
        %vm4858 = vcmp.gt.f32.partialorder %v335, %v4444
        %vm4859 = vcmp.gt.f32.partialorder %v336, %v4407
        %vm4860 = vcmp.gt.f32.partialorder %v337, %v4444
        %vm4861 = vcmp.gt.f32.partialorder %v338, %v4407
        %vm4862 = vcmp.gt.f32.partialorder %v339, %v4444
        %vm4863 = vcmp.gt.f32.partialorder %v340, %v4407
        %vm4864 = vcmp.gt.f32.partialorder %v341, %v4444
        %vm4865 = vcmp.gt.f32.partialorder %v342, %v4407
        %vm4866 = vcmp.gt.f32.partialorder %v343, %v4444
        %vm4867 = vcmp.gt.f32.partialorder %v344, %v4407
        %vm4868 = vcmp.gt.f32.partialorder %v345, %v4444
        %vm4869 = vcmp.gt.f32.partialorder %v346, %v4407
        %vm4870 = vcmp.gt.f32.partialorder %v347, %v4444
        %vm4871 = vcmp.gt.f32.partialorder %v348, %v4407
        %vm4872 = vcmp.gt.f32.partialorder %v349, %v4444
        %vm4873 = vcmp.gt.f32.partialorder %v350, %v4407
        %vm4874 = vcmp.gt.f32.partialorder %v351, %v4444
        %vm4875 = vcmp.gt.f32.partialorder %v352, %v4407
        %vm4876 = vcmp.gt.f32.partialorder %v353, %v4444
        %vm4877 = vcmp.gt.f32.partialorder %v354, %v4407
        %vm4878 = vcmp.gt.f32.partialorder %v355, %v4444
        %vm4879 = vcmp.gt.f32.partialorder %v356, %v4407
        %vm4880 = vcmp.gt.f32.partialorder %v357, %v4444
        %vm4881 = vcmp.gt.f32.partialorder %v358, %v4407
        %vm4882 = vcmp.gt.f32.partialorder %v359, %v4444
        %vm4883 = vcmp.gt.f32.partialorder %v360, %v4407
        %vm4884 = vcmp.gt.f32.partialorder %v361, %v4444
        %vm4885 = vcmp.gt.f32.partialorder %v362, %v4407
        %vm4886 = vcmp.gt.f32.partialorder %v363, %v4444
        %vm4887 = vcmp.gt.f32.partialorder %v364, %v4407
        %vm4888 = vcmp.gt.f32.partialorder %v365, %v4444
        %vm4889 = vcmp.gt.f32.partialorder %v366, %v4407
        %vm4890 = vcmp.gt.f32.partialorder %v367, %v4444
        %vm4891 = vcmp.gt.f32.partialorder %v368, %v4407
        %vm4892 = vcmp.gt.f32.partialorder %v369, %v4444
        %vm4893 = vcmp.gt.f32.partialorder %v370, %v4407
        %vm4894 = vcmp.gt.f32.partialorder %v371, %v4444
        %vm4895 = vmand %vm4211, %vm4831
        %vm4896 = vmand %vm4211, %vm4832
        %vm4897 = vmand %vm4212, %vm4833
        %vm4898 = vmand %vm4212, %vm4834
        %vm4899 = vmand %vm4213, %vm4835
        %vm4900 = vmand %vm4213, %vm4836
        %vm4901 = vmand %vm4214, %vm4837
        %vm4902 = vmand %vm4214, %vm4838
        %vm4903 = vmand %vm4215, %vm4839
        %vm4904 = vmand %vm4215, %vm4840
        %vm4905 = vmand %vm4216, %vm4841
        %vm4906 = vmand %vm4216, %vm4842
        %vm4907 = vmand %vm4217, %vm4843
        %vm4908 = vmand %vm4217, %vm4844
        %vm4909 = vmand %vm4218, %vm4845
        %vm4910 = vmand %vm4218, %vm4846
        %vm4911 = vmand %vm4219, %vm4847
        %vm4912 = vmand %vm4219, %vm4848
        %vm4913 = vmand %vm4220, %vm4849
        %vm4914 = vmand %vm4220, %vm4850
        %vm4915 = vmand %vm4221, %vm4851
        %vm4916 = vmand %vm4221, %vm4852
        %vm4917 = vmand %vm4222, %vm4853
        %vm4918 = vmand %vm4222, %vm4854
        %vm4919 = vmand %vm4223, %vm4855
        %vm4920 = vmand %vm4223, %vm4856
        %vm4921 = vmand %vm4224, %vm4857
        %vm4922 = vmand %vm4224, %vm4858
        %vm4923 = vmand %vm4225, %vm4859
        %vm4924 = vmand %vm4225, %vm4860
        %vm4925 = vmand %vm4226, %vm4861
        %vm4926 = vmand %vm4226, %vm4862
        %vm4927 = vmand %vm4227, %vm4863
        %vm4928 = vmand %vm4227, %vm4864
        %vm4929 = vmand %vm4228, %vm4865
        %vm4930 = vmand %vm4228, %vm4866
        %vm4931 = vmand %vm4229, %vm4867
        %vm4932 = vmand %vm4229, %vm4868
        %vm4933 = vmand %vm4230, %vm4869
        %vm4934 = vmand %vm4230, %vm4870
        %vm4935 = vmand %vm4231, %vm4871
        %vm4936 = vmand %vm4231, %vm4872
        %vm4937 = vmand %vm4232, %vm4873
        %vm4938 = vmand %vm4232, %vm4874
        %vm4939 = vmand %vm4233, %vm4875
        %vm4940 = vmand %vm4233, %vm4876
        %vm4941 = vmand %vm4234, %vm4877
        %vm4942 = vmand %vm4234, %vm4878
        %vm4943 = vmand %vm4235, %vm4879
        %vm4944 = vmand %vm4235, %vm4880
        %vm4945 = vmand %vm4236, %vm4881
        %vm4946 = vmand %vm4236, %vm4882
        %vm4947 = vmand %vm4237, %vm4883
        %vm4948 = vmand %vm4237, %vm4884
        %vm4949 = vmand %vm4238, %vm4885
        %vm4950 = vmand %vm4238, %vm4886
        %vm4951 = vmand %vm4239, %vm4887
        %vm4952 = vmand %vm4239, %vm4888
        %vm4953 = vmand %vm4240, %vm4889
        %vm4954 = vmand %vm4240, %vm4890
        %vm4955 = vmand %vm4241, %vm4891
        %vm4956 = vmand %vm4241, %vm4892
        %vm4957 = vmand %vm4242, %vm4893
        %vm4958 = vmand %vm4242, %vm4894
        %v4959 = vsel %vm4895, %v308, 1e+30
        %v4960 = vsel %vm4896, %v309, 1e+30
        %v4961 = vsel %vm4897, %v310, 1e+30
        %v4962 = vsel %vm4898, %v311, 1e+30
        %v4963 = vsel %vm4899, %v312, 1e+30
        %v4964 = vsel %vm4900, %v313, 1e+30
        %v4965 = vsel %vm4901, %v314, 1e+30
        %v4966 = vsel %vm4902, %v315, 1e+30
        %v4967 = vsel %vm4903, %v316, 1e+30
        %v4968 = vsel %vm4904, %v317, 1e+30
        %v4969 = vsel %vm4905, %v318, 1e+30
        %v4970 = vsel %vm4906, %v319, 1e+30
        %v4971 = vsel %vm4907, %v320, 1e+30
        %v4972 = vsel %vm4908, %v321, 1e+30
        %v4973 = vsel %vm4909, %v322, 1e+30
        %v4974 = vsel %vm4910, %v323, 1e+30
        %v4975 = vsel %vm4911, %v324, 1e+30
        %v4976 = vsel %vm4912, %v325, 1e+30
        %v4977 = vsel %vm4913, %v326, 1e+30
        %v4978 = vsel %vm4914, %v327, 1e+30
        %v4979 = vsel %vm4915, %v328, 1e+30
        %v4980 = vsel %vm4916, %v329, 1e+30
        %v4981 = vsel %vm4917, %v330, 1e+30
        %v4982 = vsel %vm4918, %v331, 1e+30
        %v4983 = vsel %vm4919, %v332, 1e+30
        %v4984 = vsel %vm4920, %v333, 1e+30
        %v4985 = vsel %vm4921, %v334, 1e+30
        %v4986 = vsel %vm4922, %v335, 1e+30
        %v4987 = vsel %vm4923, %v336, 1e+30
        %v4988 = vsel %vm4924, %v337, 1e+30
        %v4989 = vsel %vm4925, %v338, 1e+30
        %v4990 = vsel %vm4926, %v339, 1e+30
        %v4991 = vsel %vm4927, %v340, 1e+30
        %v4992 = vsel %vm4928, %v341, 1e+30
        %v4993 = vsel %vm4929, %v342, 1e+30
        %v4994 = vsel %vm4930, %v343, 1e+30
        %v4995 = vsel %vm4931, %v344, 1e+30
        %v4996 = vsel %vm4932, %v345, 1e+30
        %v4997 = vsel %vm4933, %v346, 1e+30
        %v4998 = vsel %vm4934, %v347, 1e+30
        %v4999 = vsel %vm4935, %v348, 1e+30
        %v5000 = vsel %vm4936, %v349, 1e+30
        %v5001 = vsel %vm4937, %v350, 1e+30
        %v5002 = vsel %vm4938, %v351, 1e+30
        %v5003 = vsel %vm4939, %v352, 1e+30
        %v5004 = vsel %vm4940, %v353, 1e+30
        %v5005 = vsel %vm4941, %v354, 1e+30
        %v5006 = vsel %vm4942, %v355, 1e+30
        %v5007 = vsel %vm4943, %v356, 1e+30
        %v5008 = vsel %vm4944, %v357, 1e+30
        %v5009 = vsel %vm4945, %v358, 1e+30
        %v5010 = vsel %vm4946, %v359, 1e+30
        %v5011 = vsel %vm4947, %v360, 1e+30
        %v5012 = vsel %vm4948, %v361, 1e+30
        %v5013 = vsel %vm4949, %v362, 1e+30
        %v5014 = vsel %vm4950, %v363, 1e+30
        %v5015 = vsel %vm4951, %v364, 1e+30
        %v5016 = vsel %vm4952, %v365, 1e+30
        %v5017 = vsel %vm4953, %v366, 1e+30
        %v5018 = vsel %vm4954, %v367, 1e+30
        %v5019 = vsel %vm4955, %v368, 1e+30
        %v5020 = vsel %vm4956, %v369, 1e+30
        %v5021 = vsel %vm4957, %v370, 1e+30
        %v5022 = vsel %vm4958, %v371, 1e+30
        %v5023 = vmin.f32 %v4959, %v4963
        %v5024 = vmin.f32 %v4961, %v4965
        %v5025 = vmin.f32 %v5023, %v4967
        %v5026 = vmin.f32 %v5024, %v4969
        %v5027 = vmin.f32 %v5025, %v4971
        %v5028 = vmin.f32 %v5026, %v4973
        %v5029 = vmin.f32 %v5027, %v4975
        %v5030 = vmin.f32 %v5028, %v4977
        %v5031 = vmin.f32 %v5029, %v4979
        %v5032 = vmin.f32 %v5030, %v4981
        %v5033 = vmin.f32 %v5031, %v4983
        %v5034 = vmin.f32 %v5032, %v4985
        %v5035 = vmin.f32 %v5033, %v4987
        %v5036 = vmin.f32 %v5034, %v4989
        %v5037 = vmin.f32 %v5035, %v4991
        %v5038 = vmin.f32 %v5036, %v4993
        %v5039 = vmin.f32 %v5037, %v4995
        %v5040 = vmin.f32 %v5038, %v4997
        %v5041 = vmin.f32 %v5039, %v4999
        %v5042 = vmin.f32 %v5040, %v5001
        %v5043 = vmin.f32 %v5041, %v5003
        %v5044 = vmin.f32 %v5042, %v5005
        %v5045 = vmin.f32 %v5043, %v5007
        %v5046 = vmin.f32 %v5044, %v5009
        %v5047 = vmin.f32 %v5045, %v5011
        %v5048 = vmin.f32 %v5046, %v5013
        %v5049 = vmin.f32 %v5047, %v5015
        %v5050 = vmin.f32 %v5048, %v5017
        %v5051 = vmin.f32 %v5049, %v5019
        %v5052 = vmin.f32 %v5050, %v5021
        %v5053 = vmin.f32 %v5051, %v5052
        %v5054 = vrot.slane %v5053, 4
        %v5055 = vmin.f32 %v5053, %v5054
        %v5056 = vrot.slane %v5055, 2
        %v5057 = vmin.f32 %v5055, %v5056
        %v5058 = vrot.slane %v5057, 1
        %v5059 = vmin.f32 %v5057, %v5058
        %v5060 = vmin.f32 %v4960, %v4964
        %v5061 = vmin.f32 %v4962, %v4966
        %v5062 = vmin.f32 %v5060, %v4968
        %v5063 = vmin.f32 %v5061, %v4970
        %v5064 = vmin.f32 %v5062, %v4972
        %v5065 = vmin.f32 %v5063, %v4974
        %v5066 = vmin.f32 %v5064, %v4976
        %v5067 = vmin.f32 %v5065, %v4978
        %v5068 = vmin.f32 %v5066, %v4980
        %v5069 = vmin.f32 %v5067, %v4982
        %v5070 = vmin.f32 %v5068, %v4984
        %v5071 = vmin.f32 %v5069, %v4986
        %v5072 = vmin.f32 %v5070, %v4988
        %v5073 = vmin.f32 %v5071, %v4990
        %v5074 = vmin.f32 %v5072, %v4992
        %v5075 = vmin.f32 %v5073, %v4994
        %v5076 = vmin.f32 %v5074, %v4996
        %v5077 = vmin.f32 %v5075, %v4998
        %v5078 = vmin.f32 %v5076, %v5000
        %v5079 = vmin.f32 %v5077, %v5002
        %v5080 = vmin.f32 %v5078, %v5004
        %v5081 = vmin.f32 %v5079, %v5006
        %v5082 = vmin.f32 %v5080, %v5008
        %v5083 = vmin.f32 %v5081, %v5010
        %v5084 = vmin.f32 %v5082, %v5012
        %v5085 = vmin.f32 %v5083, %v5014
        %v5086 = vmin.f32 %v5084, %v5016
        %v5087 = vmin.f32 %v5085, %v5018
        %v5088 = vmin.f32 %v5086, %v5020
        %v5089 = vmin.f32 %v5087, %v5022
        %v5090 = vmin.f32 %v5088, %v5089
        %v5091 = vrot.slane %v5090, 4
        %v5092 = vmin.f32 %v5090, %v5091
        %v5093 = vrot.slane %v5092, 2
        %v5094 = vmin.f32 %v5092, %v5093
        %v5095 = vrot.slane %v5094, 1
        %v5096 = vmin.f32 %v5094, %v5095
        %vm5097 = vcmp.eq.f32.partialorder %v308, %v5059
        %vm5098 = vcmp.eq.f32.partialorder %v309, %v5096
        %vm5099 = vcmp.eq.f32.partialorder %v310, %v5059
        %vm5100 = vcmp.eq.f32.partialorder %v311, %v5096
        %vm5101 = vcmp.eq.f32.partialorder %v312, %v5059
        %vm5102 = vcmp.eq.f32.partialorder %v313, %v5096
        %vm5103 = vcmp.eq.f32.partialorder %v314, %v5059
        %vm5104 = vcmp.eq.f32.partialorder %v315, %v5096
        %vm5105 = vcmp.eq.f32.partialorder %v316, %v5059
        %vm5106 = vcmp.eq.f32.partialorder %v317, %v5096
        %vm5107 = vcmp.eq.f32.partialorder %v318, %v5059
        %vm5108 = vcmp.eq.f32.partialorder %v319, %v5096
        %vm5109 = vcmp.eq.f32.partialorder %v320, %v5059
        %vm5110 = vcmp.eq.f32.partialorder %v321, %v5096
        %vm5111 = vcmp.eq.f32.partialorder %v322, %v5059
        %vm5112 = vcmp.eq.f32.partialorder %v323, %v5096
        %vm5113 = vcmp.eq.f32.partialorder %v324, %v5059
        %vm5114 = vcmp.eq.f32.partialorder %v325, %v5096
        %vm5115 = vcmp.eq.f32.partialorder %v326, %v5059
        %vm5116 = vcmp.eq.f32.partialorder %v327, %v5096
        %vm5117 = vcmp.eq.f32.partialorder %v328, %v5059
        %vm5118 = vcmp.eq.f32.partialorder %v329, %v5096
        %vm5119 = vcmp.eq.f32.partialorder %v330, %v5059
        %vm5120 = vcmp.eq.f32.partialorder %v331, %v5096
        %vm5121 = vcmp.eq.f32.partialorder %v332, %v5059
        %vm5122 = vcmp.eq.f32.partialorder %v333, %v5096
        %vm5123 = vcmp.eq.f32.partialorder %v334, %v5059
        %vm5124 = vcmp.eq.f32.partialorder %v335, %v5096
        %vm5125 = vcmp.eq.f32.partialorder %v336, %v5059
        %vm5126 = vcmp.eq.f32.partialorder %v337, %v5096
        %vm5127 = vcmp.eq.f32.partialorder %v338, %v5059
        %vm5128 = vcmp.eq.f32.partialorder %v339, %v5096
        %vm5129 = vcmp.eq.f32.partialorder %v340, %v5059
        %vm5130 = vcmp.eq.f32.partialorder %v341, %v5096
        %vm5131 = vcmp.eq.f32.partialorder %v342, %v5059
        %vm5132 = vcmp.eq.f32.partialorder %v343, %v5096
        %vm5133 = vcmp.eq.f32.partialorder %v344, %v5059
        %vm5134 = vcmp.eq.f32.partialorder %v345, %v5096
        %vm5135 = vcmp.eq.f32.partialorder %v346, %v5059
        %vm5136 = vcmp.eq.f32.partialorder %v347, %v5096
        %vm5137 = vcmp.eq.f32.partialorder %v348, %v5059
        %vm5138 = vcmp.eq.f32.partialorder %v349, %v5096
        %vm5139 = vcmp.eq.f32.partialorder %v350, %v5059
        %vm5140 = vcmp.eq.f32.partialorder %v351, %v5096
        %vm5141 = vcmp.eq.f32.partialorder %v352, %v5059
        %vm5142 = vcmp.eq.f32.partialorder %v353, %v5096
        %vm5143 = vcmp.eq.f32.partialorder %v354, %v5059
        %vm5144 = vcmp.eq.f32.partialorder %v355, %v5096
        %vm5145 = vcmp.eq.f32.partialorder %v356, %v5059
        %vm5146 = vcmp.eq.f32.partialorder %v357, %v5096
        %vm5147 = vcmp.eq.f32.partialorder %v358, %v5059
        %vm5148 = vcmp.eq.f32.partialorder %v359, %v5096
        %vm5149 = vcmp.eq.f32.partialorder %v360, %v5059
        %vm5150 = vcmp.eq.f32.partialorder %v361, %v5096
        %vm5151 = vcmp.eq.f32.partialorder %v362, %v5059
        %vm5152 = vcmp.eq.f32.partialorder %v363, %v5096
        %vm5153 = vcmp.eq.f32.partialorder %v364, %v5059
        %vm5154 = vcmp.eq.f32.partialorder %v365, %v5096
        %vm5155 = vcmp.eq.f32.partialorder %v366, %v5059
        %vm5156 = vcmp.eq.f32.partialorder %v367, %v5096
        %vm5157 = vcmp.eq.f32.partialorder %v368, %v5059
        %vm5158 = vcmp.eq.f32.partialorder %v369, %v5096
        %vm5159 = vcmp.eq.f32.partialorder %v370, %v5059
        %vm5160 = vcmp.eq.f32.partialorder %v371, %v5096
        %v5161 = vsel %vm5097, %v4512, 0.0
        %v5162 = vsel %vm5098, %v4512, 0.0
        %v5163 = vsel %vm5099, %v4517, 0.0
        %v5164 = vsel %vm5100, %v4517, 0.0
        %v5165 = vsel %vm5101, %v4522, 0.0
        %v5166 = vsel %vm5102, %v4522, 0.0
        %v5167 = vsel %vm5103, %v4527, 0.0
        %v5168 = vsel %vm5104, %v4527, 0.0
        %v5169 = vsel %vm5105, %v4532, 0.0
        %v5170 = vsel %vm5106, %v4532, 0.0
        %v5171 = vsel %vm5107, %v4537, 0.0
        %v5172 = vsel %vm5108, %v4537, 0.0
        %v5173 = vsel %vm5109, %v4542, 0.0
        %v5174 = vsel %vm5110, %v4542, 0.0
        %v5175 = vsel %vm5111, %v4547, 0.0
        %v5176 = vsel %vm5112, %v4547, 0.0
        %v5177 = vsel %vm5113, %v4552, 0.0
        %v5178 = vsel %vm5114, %v4552, 0.0
        %v5179 = vsel %vm5115, %v4557, 0.0
        %v5180 = vsel %vm5116, %v4557, 0.0
        %v5181 = vsel %vm5117, %v4562, 0.0
        %v5182 = vsel %vm5118, %v4562, 0.0
        %v5183 = vsel %vm5119, %v4567, 0.0
        %v5184 = vsel %vm5120, %v4567, 0.0
        %v5185 = vsel %vm5121, %v4572, 0.0
        %v5186 = vsel %vm5122, %v4572, 0.0
        %v5187 = vsel %vm5123, %v4577, 0.0
        %v5188 = vsel %vm5124, %v4577, 0.0
        %v5189 = vsel %vm5125, %v4582, 0.0
        %v5190 = vsel %vm5126, %v4582, 0.0
        %v5191 = vsel %vm5127, %v4587, 0.0
        %v5192 = vsel %vm5128, %v4587, 0.0
        %v5193 = vsel %vm5129, %v4592, 0.0
        %v5194 = vsel %vm5130, %v4592, 0.0
        %v5195 = vsel %vm5131, %v4597, 0.0
        %v5196 = vsel %vm5132, %v4597, 0.0
        %v5197 = vsel %vm5133, %v4602, 0.0
        %v5198 = vsel %vm5134, %v4602, 0.0
        %v5199 = vsel %vm5135, %v4607, 0.0
        %v5200 = vsel %vm5136, %v4607, 0.0
        %v5201 = vsel %vm5137, %v4612, 0.0
        %v5202 = vsel %vm5138, %v4612, 0.0
        %v5203 = vsel %vm5139, %v4617, 0.0
        %v5204 = vsel %vm5140, %v4617, 0.0
        %v5205 = vsel %vm5141, %v4622, 0.0
        %v5206 = vsel %vm5142, %v4622, 0.0
        %v5207 = vsel %vm5143, %v4627, 0.0
        %v5208 = vsel %vm5144, %v4627, 0.0
        %v5209 = vsel %vm5145, %v4632, 0.0
        %v5210 = vsel %vm5146, %v4632, 0.0
        %v5211 = vsel %vm5147, %v4637, 0.0
        %v5212 = vsel %vm5148, %v4637, 0.0
        %v5213 = vsel %vm5149, %v4642, 0.0
        %v5214 = vsel %vm5150, %v4642, 0.0
        %v5215 = vsel %vm5151, %v4647, 0.0
        %v5216 = vsel %vm5152, %v4647, 0.0
        %v5217 = vsel %vm5153, %v4652, 0.0
        %v5218 = vsel %vm5154, %v4652, 0.0
        %v5219 = vsel %vm5155, %v4657, 0.0
        %v5220 = vsel %vm5156, %v4657, 0.0
        %v5221 = vsel %vm5157, %v4662, 0.0
        %v5222 = vsel %vm5158, %v4662, 0.0
        %v5223 = vsel %vm5159, %v4667, 0.0
        %v5224 = vsel %vm5160, %v4667, 0.0
        %v5225 = vadd.f32 %v5161, %v5163
        %v5226 = vadd.f32 %v5225, %v5165
        %v5227 = vadd.f32 %v5226, %v5167
        %v5228 = vadd.f32 %v5227, %v5169
        %v5229 = vadd.f32 %v5228, %v5171
        %v5230 = vadd.f32 %v5229, %v5173
        %v5231 = vadd.f32 %v5230, %v5175
        %v5232 = vadd.f32 %v5231, %v5177
        %v5233 = vadd.f32 %v5232, %v5179
        %v5234 = vadd.f32 %v5233, %v5181
        %v5235 = vadd.f32 %v5234, %v5183
        %v5236 = vadd.f32 %v5235, %v5185
        %v5237 = vadd.f32 %v5236, %v5187
        %v5238 = vadd.f32 %v5237, %v5189
        %v5239 = vadd.f32 %v5238, %v5191
        %v5240 = vadd.f32 %v5239, %v5193
        %v5241 = vadd.f32 %v5240, %v5195
        %v5242 = vadd.f32 %v5241, %v5197
        %v5243 = vadd.f32 %v5242, %v5199
        %v5244 = vadd.f32 %v5243, %v5201
        %v5245 = vadd.f32 %v5244, %v5203
        %v5246 = vadd.f32 %v5245, %v5205
        %v5247 = vadd.f32 %v5246, %v5207
        %v5248 = vadd.f32 %v5247, %v5209
        %v5249 = vadd.f32 %v5248, %v5211
        %v5250 = vadd.f32 %v5249, %v5213
        %v5251 = vadd.f32 %v5250, %v5215
        %v5252 = vadd.f32 %v5251, %v5217
        %v5253 = vadd.f32 %v5252, %v5219
        %v5254 = vadd.f32 %v5253, %v5221
        %v5255 = vadd.f32 %v5254, %v5223
        %v5256 = vrot.slane %v5255, 4
        %v5257 = vadd.f32 %v5255, %v5256
        %v5258 = vrot.slane %v5257, 2
        %v5259 = vadd.f32 %v5257, %v5258
        %v5260 = vrot.slane %v5259, 1
        %v5261 = vadd.f32 %v5259, %v5260
        %v5262 = vadd.f32 %v5162, %v5164
        %v5263 = vadd.f32 %v5262, %v5166
        %v5264 = vadd.f32 %v5263, %v5168
        %v5265 = vadd.f32 %v5264, %v5170
        %v5266 = vadd.f32 %v5265, %v5172
        %v5267 = vadd.f32 %v5266, %v5174
        %v5268 = vadd.f32 %v5267, %v5176
        %v5269 = vadd.f32 %v5268, %v5178
        %v5270 = vadd.f32 %v5269, %v5180
        %v5271 = vadd.f32 %v5270, %v5182
        %v5272 = vadd.f32 %v5271, %v5184
        %v5273 = vadd.f32 %v5272, %v5186
        %v5274 = vadd.f32 %v5273, %v5188
        %v5275 = vadd.f32 %v5274, %v5190
        %v5276 = vadd.f32 %v5275, %v5192
        %v5277 = vadd.f32 %v5276, %v5194
        %v5278 = vadd.f32 %v5277, %v5196
        %v5279 = vadd.f32 %v5278, %v5198
        %v5280 = vadd.f32 %v5279, %v5200
        %v5281 = vadd.f32 %v5280, %v5202
        %v5282 = vadd.f32 %v5281, %v5204
        %v5283 = vadd.f32 %v5282, %v5206
        %v5284 = vadd.f32 %v5283, %v5208
        %v5285 = vadd.f32 %v5284, %v5210
        %v5286 = vadd.f32 %v5285, %v5212
        %v5287 = vadd.f32 %v5286, %v5214
        %v5288 = vadd.f32 %v5287, %v5216
        %v5289 = vadd.f32 %v5288, %v5218
        %v5290 = vadd.f32 %v5289, %v5220
        %v5291 = vadd.f32 %v5290, %v5222
        %v5292 = vadd.f32 %v5291, %v5224
        %v5293 = vrot.slane %v5292, 4
        %v5294 = vadd.f32 %v5292, %v5293
        %v5295 = vrot.slane %v5294, 2
        %v5296 = vadd.f32 %v5294, %v5295
        %v5297 = vrot.slane %v5296, 1
        %v5298 = vadd.f32 %v5296, %v5297
        %v5299 = vmul.f32 %v5059, %v1160
        %v5300 = vmul.f32 %v5096, %v1160
        %v5301 = vadd.f32 %v5299, 0.5
        %v5302 = vadd.f32 %v5300, 0.5
        %v5303 = vfloor.f32 %v5301
        %v5304 = vfloor.f32 %v5302
        %v5305 = vmul.f32 %v5303, 256.0
        %v5306 = vmul.f32 %v5304, 256.0
        %v5307 = vsub.f32 %v5059, %v5305
        %v5308 = vsub.f32 %v5096, %v5306
        %vm5309 = vcmp.lt.f32.partialorder %v5307, 0.0
        %vm5310 = vcmp.lt.f32.partialorder %v5308, 0.0
        %v5311 = vsub.f32 %v5303, 1.0
        %v5312 = vsub.f32 %v5304, 1.0
        %v5313 = vsel %vm5309, %v5311, %v5303
        %v5314 = vsel %vm5310, %v5312, %v5304
        %v5315 = vrsqrt.pop %v5313
        %v5316 = vrsqrt.pop %v5314
        %v5317 = vmul.f32 %v5261, %v5315
        %v5318 = vmul.f32 %v5298, %v5316
        %v5319 = vadd.f32 %v4827, %v5317
        %v5320 = vadd.f32 %v4828, %v5318
        %v5321 = vadd.f32 %v4829, %v5315
        %v5322 = vadd.f32 %v4830, %v5316
        %vm5323 = vcmp.gt.f32.partialorder %v308, %v5059
        %vm5324 = vcmp.gt.f32.partialorder %v309, %v5096
        %vm5325 = vcmp.gt.f32.partialorder %v310, %v5059
        %vm5326 = vcmp.gt.f32.partialorder %v311, %v5096
        %vm5327 = vcmp.gt.f32.partialorder %v312, %v5059
        %vm5328 = vcmp.gt.f32.partialorder %v313, %v5096
        %vm5329 = vcmp.gt.f32.partialorder %v314, %v5059
        %vm5330 = vcmp.gt.f32.partialorder %v315, %v5096
        %vm5331 = vcmp.gt.f32.partialorder %v316, %v5059
        %vm5332 = vcmp.gt.f32.partialorder %v317, %v5096
        %vm5333 = vcmp.gt.f32.partialorder %v318, %v5059
        %vm5334 = vcmp.gt.f32.partialorder %v319, %v5096
        %vm5335 = vcmp.gt.f32.partialorder %v320, %v5059
        %vm5336 = vcmp.gt.f32.partialorder %v321, %v5096
        %vm5337 = vcmp.gt.f32.partialorder %v322, %v5059
        %vm5338 = vcmp.gt.f32.partialorder %v323, %v5096
        %vm5339 = vcmp.gt.f32.partialorder %v324, %v5059
        %vm5340 = vcmp.gt.f32.partialorder %v325, %v5096
        %vm5341 = vcmp.gt.f32.partialorder %v326, %v5059
        %vm5342 = vcmp.gt.f32.partialorder %v327, %v5096
        %vm5343 = vcmp.gt.f32.partialorder %v328, %v5059
        %vm5344 = vcmp.gt.f32.partialorder %v329, %v5096
        %vm5345 = vcmp.gt.f32.partialorder %v330, %v5059
        %vm5346 = vcmp.gt.f32.partialorder %v331, %v5096
        %vm5347 = vcmp.gt.f32.partialorder %v332, %v5059
        %vm5348 = vcmp.gt.f32.partialorder %v333, %v5096
        %vm5349 = vcmp.gt.f32.partialorder %v334, %v5059
        %vm5350 = vcmp.gt.f32.partialorder %v335, %v5096
        %vm5351 = vcmp.gt.f32.partialorder %v336, %v5059
        %vm5352 = vcmp.gt.f32.partialorder %v337, %v5096
        %vm5353 = vcmp.gt.f32.partialorder %v338, %v5059
        %vm5354 = vcmp.gt.f32.partialorder %v339, %v5096
        %vm5355 = vcmp.gt.f32.partialorder %v340, %v5059
        %vm5356 = vcmp.gt.f32.partialorder %v341, %v5096
        %vm5357 = vcmp.gt.f32.partialorder %v342, %v5059
        %vm5358 = vcmp.gt.f32.partialorder %v343, %v5096
        %vm5359 = vcmp.gt.f32.partialorder %v344, %v5059
        %vm5360 = vcmp.gt.f32.partialorder %v345, %v5096
        %vm5361 = vcmp.gt.f32.partialorder %v346, %v5059
        %vm5362 = vcmp.gt.f32.partialorder %v347, %v5096
        %vm5363 = vcmp.gt.f32.partialorder %v348, %v5059
        %vm5364 = vcmp.gt.f32.partialorder %v349, %v5096
        %vm5365 = vcmp.gt.f32.partialorder %v350, %v5059
        %vm5366 = vcmp.gt.f32.partialorder %v351, %v5096
        %vm5367 = vcmp.gt.f32.partialorder %v352, %v5059
        %vm5368 = vcmp.gt.f32.partialorder %v353, %v5096
        %vm5369 = vcmp.gt.f32.partialorder %v354, %v5059
        %vm5370 = vcmp.gt.f32.partialorder %v355, %v5096
        %vm5371 = vcmp.gt.f32.partialorder %v356, %v5059
        %vm5372 = vcmp.gt.f32.partialorder %v357, %v5096
        %vm5373 = vcmp.gt.f32.partialorder %v358, %v5059
        %vm5374 = vcmp.gt.f32.partialorder %v359, %v5096
        %vm5375 = vcmp.gt.f32.partialorder %v360, %v5059
        %vm5376 = vcmp.gt.f32.partialorder %v361, %v5096
        %vm5377 = vcmp.gt.f32.partialorder %v362, %v5059
        %vm5378 = vcmp.gt.f32.partialorder %v363, %v5096
        %vm5379 = vcmp.gt.f32.partialorder %v364, %v5059
        %vm5380 = vcmp.gt.f32.partialorder %v365, %v5096
        %vm5381 = vcmp.gt.f32.partialorder %v366, %v5059
        %vm5382 = vcmp.gt.f32.partialorder %v367, %v5096
        %vm5383 = vcmp.gt.f32.partialorder %v368, %v5059
        %vm5384 = vcmp.gt.f32.partialorder %v369, %v5096
        %vm5385 = vcmp.gt.f32.partialorder %v370, %v5059
        %vm5386 = vcmp.gt.f32.partialorder %v371, %v5096
        %vm5387 = vmand %vm4211, %vm5323
        %vm5388 = vmand %vm4211, %vm5324
        %vm5389 = vmand %vm4212, %vm5325
        %vm5390 = vmand %vm4212, %vm5326
        %vm5391 = vmand %vm4213, %vm5327
        %vm5392 = vmand %vm4213, %vm5328
        %vm5393 = vmand %vm4214, %vm5329
        %vm5394 = vmand %vm4214, %vm5330
        %vm5395 = vmand %vm4215, %vm5331
        %vm5396 = vmand %vm4215, %vm5332
        %vm5397 = vmand %vm4216, %vm5333
        %vm5398 = vmand %vm4216, %vm5334
        %vm5399 = vmand %vm4217, %vm5335
        %vm5400 = vmand %vm4217, %vm5336
        %vm5401 = vmand %vm4218, %vm5337
        %vm5402 = vmand %vm4218, %vm5338
        %vm5403 = vmand %vm4219, %vm5339
        %vm5404 = vmand %vm4219, %vm5340
        %vm5405 = vmand %vm4220, %vm5341
        %vm5406 = vmand %vm4220, %vm5342
        %vm5407 = vmand %vm4221, %vm5343
        %vm5408 = vmand %vm4221, %vm5344
        %vm5409 = vmand %vm4222, %vm5345
        %vm5410 = vmand %vm4222, %vm5346
        %vm5411 = vmand %vm4223, %vm5347
        %vm5412 = vmand %vm4223, %vm5348
        %vm5413 = vmand %vm4224, %vm5349
        %vm5414 = vmand %vm4224, %vm5350
        %vm5415 = vmand %vm4225, %vm5351
        %vm5416 = vmand %vm4225, %vm5352
        %vm5417 = vmand %vm4226, %vm5353
        %vm5418 = vmand %vm4226, %vm5354
        %vm5419 = vmand %vm4227, %vm5355
        %vm5420 = vmand %vm4227, %vm5356
        %vm5421 = vmand %vm4228, %vm5357
        %vm5422 = vmand %vm4228, %vm5358
        %vm5423 = vmand %vm4229, %vm5359
        %vm5424 = vmand %vm4229, %vm5360
        %vm5425 = vmand %vm4230, %vm5361
        %vm5426 = vmand %vm4230, %vm5362
        %vm5427 = vmand %vm4231, %vm5363
        %vm5428 = vmand %vm4231, %vm5364
        %vm5429 = vmand %vm4232, %vm5365
        %vm5430 = vmand %vm4232, %vm5366
        %vm5431 = vmand %vm4233, %vm5367
        %vm5432 = vmand %vm4233, %vm5368
        %vm5433 = vmand %vm4234, %vm5369
        %vm5434 = vmand %vm4234, %vm5370
        %vm5435 = vmand %vm4235, %vm5371
        %vm5436 = vmand %vm4235, %vm5372
        %vm5437 = vmand %vm4236, %vm5373
        %vm5438 = vmand %vm4236, %vm5374
        %vm5439 = vmand %vm4237, %vm5375
        %vm5440 = vmand %vm4237, %vm5376
        %vm5441 = vmand %vm4238, %vm5377
        %vm5442 = vmand %vm4238, %vm5378
        %vm5443 = vmand %vm4239, %vm5379
        %vm5444 = vmand %vm4239, %vm5380
        %vm5445 = vmand %vm4240, %vm5381
        %vm5446 = vmand %vm4240, %vm5382
        %vm5447 = vmand %vm4241, %vm5383
        %vm5448 = vmand %vm4241, %vm5384
        %vm5449 = vmand %vm4242, %vm5385
        %vm5450 = vmand %vm4242, %vm5386
        %v5451 = vsel %vm5387, %v308, 1e+30
        %v5452 = vsel %vm5388, %v309, 1e+30
        %v5453 = vsel %vm5389, %v310, 1e+30
        %v5454 = vsel %vm5390, %v311, 1e+30
        %v5455 = vsel %vm5391, %v312, 1e+30
        %v5456 = vsel %vm5392, %v313, 1e+30
        %v5457 = vsel %vm5393, %v314, 1e+30
        %v5458 = vsel %vm5394, %v315, 1e+30
        %v5459 = vsel %vm5395, %v316, 1e+30
        %v5460 = vsel %vm5396, %v317, 1e+30
        %v5461 = vsel %vm5397, %v318, 1e+30
        %v5462 = vsel %vm5398, %v319, 1e+30
        %v5463 = vsel %vm5399, %v320, 1e+30
        %v5464 = vsel %vm5400, %v321, 1e+30
        %v5465 = vsel %vm5401, %v322, 1e+30
        %v5466 = vsel %vm5402, %v323, 1e+30
        %v5467 = vsel %vm5403, %v324, 1e+30
        %v5468 = vsel %vm5404, %v325, 1e+30
        %v5469 = vsel %vm5405, %v326, 1e+30
        %v5470 = vsel %vm5406, %v327, 1e+30
        %v5471 = vsel %vm5407, %v328, 1e+30
        %v5472 = vsel %vm5408, %v329, 1e+30
        %v5473 = vsel %vm5409, %v330, 1e+30
        %v5474 = vsel %vm5410, %v331, 1e+30
        %v5475 = vsel %vm5411, %v332, 1e+30
        %v5476 = vsel %vm5412, %v333, 1e+30
        %v5477 = vsel %vm5413, %v334, 1e+30
        %v5478 = vsel %vm5414, %v335, 1e+30
        %v5479 = vsel %vm5415, %v336, 1e+30
        %v5480 = vsel %vm5416, %v337, 1e+30
        %v5481 = vsel %vm5417, %v338, 1e+30
        %v5482 = vsel %vm5418, %v339, 1e+30
        %v5483 = vsel %vm5419, %v340, 1e+30
        %v5484 = vsel %vm5420, %v341, 1e+30
        %v5485 = vsel %vm5421, %v342, 1e+30
        %v5486 = vsel %vm5422, %v343, 1e+30
        %v5487 = vsel %vm5423, %v344, 1e+30
        %v5488 = vsel %vm5424, %v345, 1e+30
        %v5489 = vsel %vm5425, %v346, 1e+30
        %v5490 = vsel %vm5426, %v347, 1e+30
        %v5491 = vsel %vm5427, %v348, 1e+30
        %v5492 = vsel %vm5428, %v349, 1e+30
        %v5493 = vsel %vm5429, %v350, 1e+30
        %v5494 = vsel %vm5430, %v351, 1e+30
        %v5495 = vsel %vm5431, %v352, 1e+30
        %v5496 = vsel %vm5432, %v353, 1e+30
        %v5497 = vsel %vm5433, %v354, 1e+30
        %v5498 = vsel %vm5434, %v355, 1e+30
        %v5499 = vsel %vm5435, %v356, 1e+30
        %v5500 = vsel %vm5436, %v357, 1e+30
        %v5501 = vsel %vm5437, %v358, 1e+30
        %v5502 = vsel %vm5438, %v359, 1e+30
        %v5503 = vsel %vm5439, %v360, 1e+30
        %v5504 = vsel %vm5440, %v361, 1e+30
        %v5505 = vsel %vm5441, %v362, 1e+30
        %v5506 = vsel %vm5442, %v363, 1e+30
        %v5507 = vsel %vm5443, %v364, 1e+30
        %v5508 = vsel %vm5444, %v365, 1e+30
        %v5509 = vsel %vm5445, %v366, 1e+30
        %v5510 = vsel %vm5446, %v367, 1e+30
        %v5511 = vsel %vm5447, %v368, 1e+30
        %v5512 = vsel %vm5448, %v369, 1e+30
        %v5513 = vsel %vm5449, %v370, 1e+30
        %v5514 = vsel %vm5450, %v371, 1e+30
        %v5515 = vmin.f32 %v5451, %v5455
        %v5516 = vmin.f32 %v5453, %v5457
        %v5517 = vmin.f32 %v5515, %v5459
        %v5518 = vmin.f32 %v5516, %v5461
        %v5519 = vmin.f32 %v5517, %v5463
        %v5520 = vmin.f32 %v5518, %v5465
        %v5521 = vmin.f32 %v5519, %v5467
        %v5522 = vmin.f32 %v5520, %v5469
        %v5523 = vmin.f32 %v5521, %v5471
        %v5524 = vmin.f32 %v5522, %v5473
        %v5525 = vmin.f32 %v5523, %v5475
        %v5526 = vmin.f32 %v5524, %v5477
        %v5527 = vmin.f32 %v5525, %v5479
        %v5528 = vmin.f32 %v5526, %v5481
        %v5529 = vmin.f32 %v5527, %v5483
        %v5530 = vmin.f32 %v5528, %v5485
        %v5531 = vmin.f32 %v5529, %v5487
        %v5532 = vmin.f32 %v5530, %v5489
        %v5533 = vmin.f32 %v5531, %v5491
        %v5534 = vmin.f32 %v5532, %v5493
        %v5535 = vmin.f32 %v5533, %v5495
        %v5536 = vmin.f32 %v5534, %v5497
        %v5537 = vmin.f32 %v5535, %v5499
        %v5538 = vmin.f32 %v5536, %v5501
        %v5539 = vmin.f32 %v5537, %v5503
        %v5540 = vmin.f32 %v5538, %v5505
        %v5541 = vmin.f32 %v5539, %v5507
        %v5542 = vmin.f32 %v5540, %v5509
        %v5543 = vmin.f32 %v5541, %v5511
        %v5544 = vmin.f32 %v5542, %v5513
        %v5545 = vmin.f32 %v5543, %v5544
        %v5546 = vrot.slane %v5545, 4
        %v5547 = vmin.f32 %v5545, %v5546
        %v5548 = vrot.slane %v5547, 2
        %v5549 = vmin.f32 %v5547, %v5548
        %v5550 = vrot.slane %v5549, 1
        %v5551 = vmin.f32 %v5549, %v5550
        %v5552 = vmin.f32 %v5452, %v5456
        %v5553 = vmin.f32 %v5454, %v5458
        %v5554 = vmin.f32 %v5552, %v5460
        %v5555 = vmin.f32 %v5553, %v5462
        %v5556 = vmin.f32 %v5554, %v5464
        %v5557 = vmin.f32 %v5555, %v5466
        %v5558 = vmin.f32 %v5556, %v5468
        %v5559 = vmin.f32 %v5557, %v5470
        %v5560 = vmin.f32 %v5558, %v5472
        %v5561 = vmin.f32 %v5559, %v5474
        %v5562 = vmin.f32 %v5560, %v5476
        %v5563 = vmin.f32 %v5561, %v5478
        %v5564 = vmin.f32 %v5562, %v5480
        %v5565 = vmin.f32 %v5563, %v5482
        %v5566 = vmin.f32 %v5564, %v5484
        %v5567 = vmin.f32 %v5565, %v5486
        %v5568 = vmin.f32 %v5566, %v5488
        %v5569 = vmin.f32 %v5567, %v5490
        %v5570 = vmin.f32 %v5568, %v5492
        %v5571 = vmin.f32 %v5569, %v5494
        %v5572 = vmin.f32 %v5570, %v5496
        %v5573 = vmin.f32 %v5571, %v5498
        %v5574 = vmin.f32 %v5572, %v5500
        %v5575 = vmin.f32 %v5573, %v5502
        %v5576 = vmin.f32 %v5574, %v5504
        %v5577 = vmin.f32 %v5575, %v5506
        %v5578 = vmin.f32 %v5576, %v5508
        %v5579 = vmin.f32 %v5577, %v5510
        %v5580 = vmin.f32 %v5578, %v5512
        %v5581 = vmin.f32 %v5579, %v5514
        %v5582 = vmin.f32 %v5580, %v5581
        %v5583 = vrot.slane %v5582, 4
        %v5584 = vmin.f32 %v5582, %v5583
        %v5585 = vrot.slane %v5584, 2
        %v5586 = vmin.f32 %v5584, %v5585
        %v5587 = vrot.slane %v5586, 1
        %v5588 = vmin.f32 %v5586, %v5587
        %vm5589 = vcmp.eq.f32.partialorder %v308, %v5551
        %vm5590 = vcmp.eq.f32.partialorder %v309, %v5588
        %vm5591 = vcmp.eq.f32.partialorder %v310, %v5551
        %vm5592 = vcmp.eq.f32.partialorder %v311, %v5588
        %vm5593 = vcmp.eq.f32.partialorder %v312, %v5551
        %vm5594 = vcmp.eq.f32.partialorder %v313, %v5588
        %vm5595 = vcmp.eq.f32.partialorder %v314, %v5551
        %vm5596 = vcmp.eq.f32.partialorder %v315, %v5588
        %vm5597 = vcmp.eq.f32.partialorder %v316, %v5551
        %vm5598 = vcmp.eq.f32.partialorder %v317, %v5588
        %vm5599 = vcmp.eq.f32.partialorder %v318, %v5551
        %vm5600 = vcmp.eq.f32.partialorder %v319, %v5588
        %vm5601 = vcmp.eq.f32.partialorder %v320, %v5551
        %vm5602 = vcmp.eq.f32.partialorder %v321, %v5588
        %vm5603 = vcmp.eq.f32.partialorder %v322, %v5551
        %vm5604 = vcmp.eq.f32.partialorder %v323, %v5588
        %vm5605 = vcmp.eq.f32.partialorder %v324, %v5551
        %vm5606 = vcmp.eq.f32.partialorder %v325, %v5588
        %vm5607 = vcmp.eq.f32.partialorder %v326, %v5551
        %vm5608 = vcmp.eq.f32.partialorder %v327, %v5588
        %vm5609 = vcmp.eq.f32.partialorder %v328, %v5551
        %vm5610 = vcmp.eq.f32.partialorder %v329, %v5588
        %vm5611 = vcmp.eq.f32.partialorder %v330, %v5551
        %vm5612 = vcmp.eq.f32.partialorder %v331, %v5588
        %vm5613 = vcmp.eq.f32.partialorder %v332, %v5551
        %vm5614 = vcmp.eq.f32.partialorder %v333, %v5588
        %vm5615 = vcmp.eq.f32.partialorder %v334, %v5551
        %vm5616 = vcmp.eq.f32.partialorder %v335, %v5588
        %vm5617 = vcmp.eq.f32.partialorder %v336, %v5551
        %vm5618 = vcmp.eq.f32.partialorder %v337, %v5588
        %vm5619 = vcmp.eq.f32.partialorder %v338, %v5551
        %vm5620 = vcmp.eq.f32.partialorder %v339, %v5588
        %vm5621 = vcmp.eq.f32.partialorder %v340, %v5551
        %vm5622 = vcmp.eq.f32.partialorder %v341, %v5588
        %vm5623 = vcmp.eq.f32.partialorder %v342, %v5551
        %vm5624 = vcmp.eq.f32.partialorder %v343, %v5588
        %vm5625 = vcmp.eq.f32.partialorder %v344, %v5551
        %vm5626 = vcmp.eq.f32.partialorder %v345, %v5588
        %vm5627 = vcmp.eq.f32.partialorder %v346, %v5551
        %vm5628 = vcmp.eq.f32.partialorder %v347, %v5588
        %vm5629 = vcmp.eq.f32.partialorder %v348, %v5551
        %vm5630 = vcmp.eq.f32.partialorder %v349, %v5588
        %vm5631 = vcmp.eq.f32.partialorder %v350, %v5551
        %vm5632 = vcmp.eq.f32.partialorder %v351, %v5588
        %vm5633 = vcmp.eq.f32.partialorder %v352, %v5551
        %vm5634 = vcmp.eq.f32.partialorder %v353, %v5588
        %vm5635 = vcmp.eq.f32.partialorder %v354, %v5551
        %vm5636 = vcmp.eq.f32.partialorder %v355, %v5588
        %vm5637 = vcmp.eq.f32.partialorder %v356, %v5551
        %vm5638 = vcmp.eq.f32.partialorder %v357, %v5588
        %vm5639 = vcmp.eq.f32.partialorder %v358, %v5551
        %vm5640 = vcmp.eq.f32.partialorder %v359, %v5588
        %vm5641 = vcmp.eq.f32.partialorder %v360, %v5551
        %vm5642 = vcmp.eq.f32.partialorder %v361, %v5588
        %vm5643 = vcmp.eq.f32.partialorder %v362, %v5551
        %vm5644 = vcmp.eq.f32.partialorder %v363, %v5588
        %vm5645 = vcmp.eq.f32.partialorder %v364, %v5551
        %vm5646 = vcmp.eq.f32.partialorder %v365, %v5588
        %vm5647 = vcmp.eq.f32.partialorder %v366, %v5551
        %vm5648 = vcmp.eq.f32.partialorder %v367, %v5588
        %vm5649 = vcmp.eq.f32.partialorder %v368, %v5551
        %vm5650 = vcmp.eq.f32.partialorder %v369, %v5588
        %vm5651 = vcmp.eq.f32.partialorder %v370, %v5551
        %vm5652 = vcmp.eq.f32.partialorder %v371, %v5588
        %v5653 = vsel %vm5589, %v4512, 0.0
        %v5654 = vsel %vm5590, %v4512, 0.0
        %v5655 = vsel %vm5591, %v4517, 0.0
        %v5656 = vsel %vm5592, %v4517, 0.0
        %v5657 = vsel %vm5593, %v4522, 0.0
        %v5658 = vsel %vm5594, %v4522, 0.0
        %v5659 = vsel %vm5595, %v4527, 0.0
        %v5660 = vsel %vm5596, %v4527, 0.0
        %v5661 = vsel %vm5597, %v4532, 0.0
        %v5662 = vsel %vm5598, %v4532, 0.0
        %v5663 = vsel %vm5599, %v4537, 0.0
        %v5664 = vsel %vm5600, %v4537, 0.0
        %v5665 = vsel %vm5601, %v4542, 0.0
        %v5666 = vsel %vm5602, %v4542, 0.0
        %v5667 = vsel %vm5603, %v4547, 0.0
        %v5668 = vsel %vm5604, %v4547, 0.0
        %v5669 = vsel %vm5605, %v4552, 0.0
        %v5670 = vsel %vm5606, %v4552, 0.0
        %v5671 = vsel %vm5607, %v4557, 0.0
        %v5672 = vsel %vm5608, %v4557, 0.0
        %v5673 = vsel %vm5609, %v4562, 0.0
        %v5674 = vsel %vm5610, %v4562, 0.0
        %v5675 = vsel %vm5611, %v4567, 0.0
        %v5676 = vsel %vm5612, %v4567, 0.0
        %v5677 = vsel %vm5613, %v4572, 0.0
        %v5678 = vsel %vm5614, %v4572, 0.0
        %v5679 = vsel %vm5615, %v4577, 0.0
        %v5680 = vsel %vm5616, %v4577, 0.0
        %v5681 = vsel %vm5617, %v4582, 0.0
        %v5682 = vsel %vm5618, %v4582, 0.0
        %v5683 = vsel %vm5619, %v4587, 0.0
        %v5684 = vsel %vm5620, %v4587, 0.0
        %v5685 = vsel %vm5621, %v4592, 0.0
        %v5686 = vsel %vm5622, %v4592, 0.0
        %v5687 = vsel %vm5623, %v4597, 0.0
        %v5688 = vsel %vm5624, %v4597, 0.0
        %v5689 = vsel %vm5625, %v4602, 0.0
        %v5690 = vsel %vm5626, %v4602, 0.0
        %v5691 = vsel %vm5627, %v4607, 0.0
        %v5692 = vsel %vm5628, %v4607, 0.0
        %v5693 = vsel %vm5629, %v4612, 0.0
        %v5694 = vsel %vm5630, %v4612, 0.0
        %v5695 = vsel %vm5631, %v4617, 0.0
        %v5696 = vsel %vm5632, %v4617, 0.0
        %v5697 = vsel %vm5633, %v4622, 0.0
        %v5698 = vsel %vm5634, %v4622, 0.0
        %v5699 = vsel %vm5635, %v4627, 0.0
        %v5700 = vsel %vm5636, %v4627, 0.0
        %v5701 = vsel %vm5637, %v4632, 0.0
        %v5702 = vsel %vm5638, %v4632, 0.0
        %v5703 = vsel %vm5639, %v4637, 0.0
        %v5704 = vsel %vm5640, %v4637, 0.0
        %v5705 = vsel %vm5641, %v4642, 0.0
        %v5706 = vsel %vm5642, %v4642, 0.0
        %v5707 = vsel %vm5643, %v4647, 0.0
        %v5708 = vsel %vm5644, %v4647, 0.0
        %v5709 = vsel %vm5645, %v4652, 0.0
        %v5710 = vsel %vm5646, %v4652, 0.0
        %v5711 = vsel %vm5647, %v4657, 0.0
        %v5712 = vsel %vm5648, %v4657, 0.0
        %v5713 = vsel %vm5649, %v4662, 0.0
        %v5714 = vsel %vm5650, %v4662, 0.0
        %v5715 = vsel %vm5651, %v4667, 0.0
        %v5716 = vsel %vm5652, %v4667, 0.0
        %v5717 = vadd.f32 %v5653, %v5655
        %v5718 = vadd.f32 %v5717, %v5657
        %v5719 = vadd.f32 %v5718, %v5659
        %v5720 = vadd.f32 %v5719, %v5661
        %v5721 = vadd.f32 %v5720, %v5663
        %v5722 = vadd.f32 %v5721, %v5665
        %v5723 = vadd.f32 %v5722, %v5667
        %v5724 = vadd.f32 %v5723, %v5669
        %v5725 = vadd.f32 %v5724, %v5671
        %v5726 = vadd.f32 %v5725, %v5673
        %v5727 = vadd.f32 %v5726, %v5675
        %v5728 = vadd.f32 %v5727, %v5677
        %v5729 = vadd.f32 %v5728, %v5679
        %v5730 = vadd.f32 %v5729, %v5681
        %v5731 = vadd.f32 %v5730, %v5683
        %v5732 = vadd.f32 %v5731, %v5685
        %v5733 = vadd.f32 %v5732, %v5687
        %v5734 = vadd.f32 %v5733, %v5689
        %v5735 = vadd.f32 %v5734, %v5691
        %v5736 = vadd.f32 %v5735, %v5693
        %v5737 = vadd.f32 %v5736, %v5695
        %v5738 = vadd.f32 %v5737, %v5697
        %v5739 = vadd.f32 %v5738, %v5699
        %v5740 = vadd.f32 %v5739, %v5701
        %v5741 = vadd.f32 %v5740, %v5703
        %v5742 = vadd.f32 %v5741, %v5705
        %v5743 = vadd.f32 %v5742, %v5707
        %v5744 = vadd.f32 %v5743, %v5709
        %v5745 = vadd.f32 %v5744, %v5711
        %v5746 = vadd.f32 %v5745, %v5713
        %v5747 = vadd.f32 %v5746, %v5715
        %v5748 = vrot.slane %v5747, 4
        %v5749 = vadd.f32 %v5747, %v5748
        %v5750 = vrot.slane %v5749, 2
        %v5751 = vadd.f32 %v5749, %v5750
        %v5752 = vrot.slane %v5751, 1
        %v5753 = vadd.f32 %v5751, %v5752
        %v5754 = vadd.f32 %v5654, %v5656
        %v5755 = vadd.f32 %v5754, %v5658
        %v5756 = vadd.f32 %v5755, %v5660
        %v5757 = vadd.f32 %v5756, %v5662
        %v5758 = vadd.f32 %v5757, %v5664
        %v5759 = vadd.f32 %v5758, %v5666
        %v5760 = vadd.f32 %v5759, %v5668
        %v5761 = vadd.f32 %v5760, %v5670
        %v5762 = vadd.f32 %v5761, %v5672
        %v5763 = vadd.f32 %v5762, %v5674
        %v5764 = vadd.f32 %v5763, %v5676
        %v5765 = vadd.f32 %v5764, %v5678
        %v5766 = vadd.f32 %v5765, %v5680
        %v5767 = vadd.f32 %v5766, %v5682
        %v5768 = vadd.f32 %v5767, %v5684
        %v5769 = vadd.f32 %v5768, %v5686
        %v5770 = vadd.f32 %v5769, %v5688
        %v5771 = vadd.f32 %v5770, %v5690
        %v5772 = vadd.f32 %v5771, %v5692
        %v5773 = vadd.f32 %v5772, %v5694
        %v5774 = vadd.f32 %v5773, %v5696
        %v5775 = vadd.f32 %v5774, %v5698
        %v5776 = vadd.f32 %v5775, %v5700
        %v5777 = vadd.f32 %v5776, %v5702
        %v5778 = vadd.f32 %v5777, %v5704
        %v5779 = vadd.f32 %v5778, %v5706
        %v5780 = vadd.f32 %v5779, %v5708
        %v5781 = vadd.f32 %v5780, %v5710
        %v5782 = vadd.f32 %v5781, %v5712
        %v5783 = vadd.f32 %v5782, %v5714
        %v5784 = vadd.f32 %v5783, %v5716
        %v5785 = vrot.slane %v5784, 4
        %v5786 = vadd.f32 %v5784, %v5785
        %v5787 = vrot.slane %v5786, 2
        %v5788 = vadd.f32 %v5786, %v5787
        %v5789 = vrot.slane %v5788, 1
        %v5790 = vadd.f32 %v5788, %v5789
        %v5791 = vmul.f32 %v5551, %v1160
        %v5792 = vmul.f32 %v5588, %v1160
        %v5793 = vadd.f32 %v5791, 0.5
        %v5794 = vadd.f32 %v5792, 0.5
        %v5795 = vfloor.f32 %v5793
        %v5796 = vfloor.f32 %v5794
        %v5797 = vmul.f32 %v5795, 256.0
        %v5798 = vmul.f32 %v5796, 256.0
        %v5799 = vsub.f32 %v5551, %v5797
        %v5800 = vsub.f32 %v5588, %v5798
        %vm5801 = vcmp.lt.f32.partialorder %v5799, 0.0
        %vm5802 = vcmp.lt.f32.partialorder %v5800, 0.0
        %v5803 = vsub.f32 %v5795, 1.0
        %v5804 = vsub.f32 %v5796, 1.0
        %v5805 = vsel %vm5801, %v5803, %v5795
        %v5806 = vsel %vm5802, %v5804, %v5796
        %v5807 = vrsqrt.pop %v5805
        %v5808 = vrsqrt.pop %v5806
        %v5809 = vmul.f32 %v5753, %v5807
        %v5810 = vmul.f32 %v5790, %v5808
        %v5811 = vadd.f32 %v5319, %v5809
        %v5812 = vadd.f32 %v5320, %v5810
        %v5813 = vadd.f32 %v5321, %v5807
        %v5814 = vadd.f32 %v5322, %v5808
        %v5815 = vrcp.pop %v5813
        %v5816 = vmul.f32 %v5811, %v5815
        %v5817 = vrcp.pop %v5814
        %v5818 = vmul.f32 %v5812, %v5817
        %v5821 = vcombine.low %v5816, %v5818
        %v5823 = vunpack.c.l.s4 1966171168
        %v5824 = vunpack.c.0.s8 %v5823
        %v5825 = vlaneseq
        %v5826 = vshrl.u32 %v5825, 7
        %v5827 = vsub.s32 %v5824, %v5826
        %v5828 = vrot.slane %v5821, %v5827
        %v5830 = vunpack.c.l.s4 1966171168
        %v5831 = vunpack.c.0.s8 %v5830
        %v5832 = vlaneseq
        %v5833 = vshrl.u32 %v5832, 7
        %v5834 = vsub.s32 %v5831, %v5833
        %v5835 = vrot.slane %v5828, %v5834
        %v5837 = vsel %vm4050, %v4016, %v5835
        %s5838 = scalar_lea.vmem %s234, 3
        %v5839 = vld [vmem:[%s5838] ss:$4 sm:$0x3]
        %s5840 = scalar_lea.vmem %s240, 768
        %v5841 = vld [vmem:[%s5840] sm:$0xff]
        %v5842 = vld [vmem:[%s5840 + $0x8] sm:$0xff]
        %v5843 = vld [vmem:[%s5840 + $0x10] sm:$0xff]
        %v5844 = vld [vmem:[%s5840 + $0x18] sm:$0xff]
        %v5845 = vld [vmem:[%s5840 + $0x20] sm:$0xff]
        %v5846 = vld [vmem:[%s5840 + $0x28] sm:$0xff]
        %v5847 = vld [vmem:[%s5840 + $0x30] sm:$0xff]
        %v5848 = vld [vmem:[%s5840 + $0x38] sm:$0xff]
        %v5849 = vld [vmem:[%s5840 + $0x40] sm:$0xff]
        %v5850 = vld [vmem:[%s5840 + $0x48] sm:$0xff]
        %v5851 = vld [vmem:[%s5840 + $0x50] sm:$0xff]
        %v5852 = vld [vmem:[%s5840 + $0x58] sm:$0xff]
        %v5853 = vld [vmem:[%s5840 + $0x60] sm:$0xff]
        %v5854 = vld [vmem:[%s5840 + $0x68] sm:$0xff]
        %v5855 = vld [vmem:[%s5840 + $0x70] sm:$0xff]
        %v5856 = vld [vmem:[%s5840 + $0x78] sm:$0xff]
        %v5857 = vld [vmem:[%s5840 + $0x80] sm:$0xff]
        %v5858 = vld [vmem:[%s5840 + $0x88] sm:$0xff]
        %v5859 = vld [vmem:[%s5840 + $0x90] sm:$0xff]
        %v5860 = vld [vmem:[%s5840 + $0x98] sm:$0xff]
        %v5861 = vld [vmem:[%s5840 + $0xa0] sm:$0xff]
        %v5862 = vld [vmem:[%s5840 + $0xa8] sm:$0xff]
        %v5863 = vld [vmem:[%s5840 + $0xb0] sm:$0xff]
        %v5864 = vld [vmem:[%s5840 + $0xb8] sm:$0xff]
        %v5865 = vld [vmem:[%s5840 + $0xc0] sm:$0xff]
        %v5866 = vld [vmem:[%s5840 + $0xc8] sm:$0xff]
        %v5867 = vld [vmem:[%s5840 + $0xd0] sm:$0xff]
        %v5868 = vld [vmem:[%s5840 + $0xd8] sm:$0xff]
        %v5869 = vld [vmem:[%s5840 + $0xe0] sm:$0xff]
        %v5870 = vld [vmem:[%s5840 + $0xe8] sm:$0xff]
        %v5871 = vld [vmem:[%s5840 + $0xf0] sm:$0xff]
        %v5872 = vld [vmem:[%s5840 + $0xf8] sm:$0xff]
        %vm5873 = vcmp.ne.f32.partialorder %v5839, 0.0
        %vm5874 = vcmp.ne.f32.partialorder %v5841, 0.0
        %vm5875 = vcmp.ne.f32.partialorder %v5842, 0.0
        %vm5876 = vcmp.ne.f32.partialorder %v5843, 0.0
        %vm5877 = vcmp.ne.f32.partialorder %v5844, 0.0
        %vm5878 = vcmp.ne.f32.partialorder %v5845, 0.0
        %vm5879 = vcmp.ne.f32.partialorder %v5846, 0.0
        %vm5880 = vcmp.ne.f32.partialorder %v5847, 0.0
        %vm5881 = vcmp.ne.f32.partialorder %v5848, 0.0
        %vm5882 = vcmp.ne.f32.partialorder %v5849, 0.0
        %vm5883 = vcmp.ne.f32.partialorder %v5850, 0.0
        %vm5884 = vcmp.ne.f32.partialorder %v5851, 0.0
        %vm5885 = vcmp.ne.f32.partialorder %v5852, 0.0
        %vm5886 = vcmp.ne.f32.partialorder %v5853, 0.0
        %vm5887 = vcmp.ne.f32.partialorder %v5854, 0.0
        %vm5888 = vcmp.ne.f32.partialorder %v5855, 0.0
        %vm5889 = vcmp.ne.f32.partialorder %v5856, 0.0
        %vm5890 = vcmp.ne.f32.partialorder %v5857, 0.0
        %vm5891 = vcmp.ne.f32.partialorder %v5858, 0.0
        %vm5892 = vcmp.ne.f32.partialorder %v5859, 0.0
        %vm5893 = vcmp.ne.f32.partialorder %v5860, 0.0
        %vm5894 = vcmp.ne.f32.partialorder %v5861, 0.0
        %vm5895 = vcmp.ne.f32.partialorder %v5862, 0.0
        %vm5896 = vcmp.ne.f32.partialorder %v5863, 0.0
        %vm5897 = vcmp.ne.f32.partialorder %v5864, 0.0
        %vm5898 = vcmp.ne.f32.partialorder %v5865, 0.0
        %vm5899 = vcmp.ne.f32.partialorder %v5866, 0.0
        %vm5900 = vcmp.ne.f32.partialorder %v5867, 0.0
        %vm5901 = vcmp.ne.f32.partialorder %v5868, 0.0
        %vm5902 = vcmp.ne.f32.partialorder %v5869, 0.0
        %vm5903 = vcmp.ne.f32.partialorder %v5870, 0.0
        %vm5904 = vcmp.ne.f32.partialorder %v5871, 0.0
        %vm5905 = vcmp.ne.f32.partialorder %v5872, 0.0
        %v5906 = vsel %vm5874, 1, 0
        %v5907 = vsel %vm5875, 1, 0
        %v5908 = vsel %vm5876, 1, 0
        %v5909 = vsel %vm5877, 1, 0
        %v5910 = vsel %vm5878, 1, 0
        %v5911 = vsel %vm5879, 1, 0
        %v5912 = vsel %vm5880, 1, 0
        %v5913 = vsel %vm5881, 1, 0
        %v5914 = vsel %vm5882, 1, 0
        %v5915 = vsel %vm5883, 1, 0
        %v5916 = vsel %vm5884, 1, 0
        %v5917 = vsel %vm5885, 1, 0
        %v5918 = vsel %vm5886, 1, 0
        %v5919 = vsel %vm5887, 1, 0
        %v5920 = vsel %vm5888, 1, 0
        %v5921 = vsel %vm5889, 1, 0
        %v5922 = vsel %vm5890, 1, 0
        %v5923 = vsel %vm5891, 1, 0
        %v5924 = vsel %vm5892, 1, 0
        %v5925 = vsel %vm5893, 1, 0
        %v5926 = vsel %vm5894, 1, 0
        %v5927 = vsel %vm5895, 1, 0
        %v5928 = vsel %vm5896, 1, 0
        %v5929 = vsel %vm5897, 1, 0
        %v5930 = vsel %vm5898, 1, 0
        %v5931 = vsel %vm5899, 1, 0
        %v5932 = vsel %vm5900, 1, 0
        %v5933 = vsel %vm5901, 1, 0
        %v5934 = vsel %vm5902, 1, 0
        %v5935 = vsel %vm5903, 1, 0
        %v5936 = vsel %vm5904, 1, 0
        %v5937 = vsel %vm5905, 1, 0
        %5938 = vset.pattern.permute.xlu0 0
        %5939 = vperm.xlu0 %5938, %v5906
        %v5940 = vpop.permute.xlu0 %5939
        %5941 = vset.pattern.permute.xlu0 0
        %5942 = vperm.xlu0 %5941, %v5907
        %v5943 = vpop.permute.xlu0 %5942
        %5944 = vset.pattern.permute.xlu0 0
        %5945 = vperm.xlu0 %5944, %v5908
        %v5946 = vpop.permute.xlu0 %5945
        %5947 = vset.pattern.permute.xlu0 0
        %5948 = vperm.xlu0 %5947, %v5909
        %v5949 = vpop.permute.xlu0 %5948
        %5950 = vset.pattern.permute.xlu0 0
        %5951 = vperm.xlu0 %5950, %v5910
        %v5952 = vpop.permute.xlu0 %5951
        %5953 = vset.pattern.permute.xlu0 0
        %5954 = vperm.xlu0 %5953, %v5911
        %v5955 = vpop.permute.xlu0 %5954
        %5956 = vset.pattern.permute.xlu0 0
        %5957 = vperm.xlu0 %5956, %v5912
        %v5958 = vpop.permute.xlu0 %5957
        %5959 = vset.pattern.permute.xlu0 0
        %5960 = vperm.xlu0 %5959, %v5913
        %v5961 = vpop.permute.xlu0 %5960
        %5962 = vset.pattern.permute.xlu0 0
        %5963 = vperm.xlu0 %5962, %v5914
        %v5964 = vpop.permute.xlu0 %5963
        %5965 = vset.pattern.permute.xlu0 0
        %5966 = vperm.xlu0 %5965, %v5915
        %v5967 = vpop.permute.xlu0 %5966
        %5968 = vset.pattern.permute.xlu0 0
        %5969 = vperm.xlu0 %5968, %v5916
        %v5970 = vpop.permute.xlu0 %5969
        %5971 = vset.pattern.permute.xlu0 0
        %5972 = vperm.xlu0 %5971, %v5917
        %v5973 = vpop.permute.xlu0 %5972
        %5974 = vset.pattern.permute.xlu0 0
        %5975 = vperm.xlu0 %5974, %v5918
        %v5976 = vpop.permute.xlu0 %5975
        %5977 = vset.pattern.permute.xlu0 0
        %5978 = vperm.xlu0 %5977, %v5919
        %v5979 = vpop.permute.xlu0 %5978
        %5980 = vset.pattern.permute.xlu0 0
        %5981 = vperm.xlu0 %5980, %v5920
        %v5982 = vpop.permute.xlu0 %5981
        %5983 = vset.pattern.permute.xlu0 0
        %5984 = vperm.xlu0 %5983, %v5921
        %v5985 = vpop.permute.xlu0 %5984
        %5986 = vset.pattern.permute.xlu0 0
        %5987 = vperm.xlu0 %5986, %v5922
        %v5988 = vpop.permute.xlu0 %5987
        %5989 = vset.pattern.permute.xlu0 0
        %5990 = vperm.xlu0 %5989, %v5923
        %v5991 = vpop.permute.xlu0 %5990
        %5992 = vset.pattern.permute.xlu0 0
        %5993 = vperm.xlu0 %5992, %v5924
        %v5994 = vpop.permute.xlu0 %5993
        %5995 = vset.pattern.permute.xlu0 0
        %5996 = vperm.xlu0 %5995, %v5925
        %v5997 = vpop.permute.xlu0 %5996
        %5998 = vset.pattern.permute.xlu0 0
        %5999 = vperm.xlu0 %5998, %v5926
        %v6000 = vpop.permute.xlu0 %5999
        %6001 = vset.pattern.permute.xlu0 0
        %6002 = vperm.xlu0 %6001, %v5927
        %v6003 = vpop.permute.xlu0 %6002
        %6004 = vset.pattern.permute.xlu0 0
        %6005 = vperm.xlu0 %6004, %v5928
        %v6006 = vpop.permute.xlu0 %6005
        %6007 = vset.pattern.permute.xlu0 0
        %6008 = vperm.xlu0 %6007, %v5929
        %v6009 = vpop.permute.xlu0 %6008
        %6010 = vset.pattern.permute.xlu0 0
        %6011 = vperm.xlu0 %6010, %v5930
        %v6012 = vpop.permute.xlu0 %6011
        %6013 = vset.pattern.permute.xlu0 0
        %6014 = vperm.xlu0 %6013, %v5931
        %v6015 = vpop.permute.xlu0 %6014
        %6016 = vset.pattern.permute.xlu0 0
        %6017 = vperm.xlu0 %6016, %v5932
        %v6018 = vpop.permute.xlu0 %6017
        %6019 = vset.pattern.permute.xlu0 0
        %6020 = vperm.xlu0 %6019, %v5933
        %v6021 = vpop.permute.xlu0 %6020
        %6022 = vset.pattern.permute.xlu0 0
        %6023 = vperm.xlu0 %6022, %v5934
        %v6024 = vpop.permute.xlu0 %6023
        %6025 = vset.pattern.permute.xlu0 0
        %6026 = vperm.xlu0 %6025, %v5935
        %v6027 = vpop.permute.xlu0 %6026
        %6028 = vset.pattern.permute.xlu0 0
        %6029 = vperm.xlu0 %6028, %v5936
        %v6030 = vpop.permute.xlu0 %6029
        %6031 = vset.pattern.permute.xlu0 0
        %6032 = vperm.xlu0 %6031, %v5937
        %v6033 = vpop.permute.xlu0 %6032
        %vm6034 = vcmp.eq.s32.totalorder %v5940, 1
        %vm6035 = vcmp.eq.s32.totalorder %v5943, 1
        %vm6036 = vcmp.eq.s32.totalorder %v5946, 1
        %vm6037 = vcmp.eq.s32.totalorder %v5949, 1
        %vm6038 = vcmp.eq.s32.totalorder %v5952, 1
        %vm6039 = vcmp.eq.s32.totalorder %v5955, 1
        %vm6040 = vcmp.eq.s32.totalorder %v5958, 1
        %vm6041 = vcmp.eq.s32.totalorder %v5961, 1
        %vm6042 = vcmp.eq.s32.totalorder %v5964, 1
        %vm6043 = vcmp.eq.s32.totalorder %v5967, 1
        %vm6044 = vcmp.eq.s32.totalorder %v5970, 1
        %vm6045 = vcmp.eq.s32.totalorder %v5973, 1
        %vm6046 = vcmp.eq.s32.totalorder %v5976, 1
        %vm6047 = vcmp.eq.s32.totalorder %v5979, 1
        %vm6048 = vcmp.eq.s32.totalorder %v5982, 1
        %vm6049 = vcmp.eq.s32.totalorder %v5985, 1
        %vm6050 = vcmp.eq.s32.totalorder %v5988, 1
        %vm6051 = vcmp.eq.s32.totalorder %v5991, 1
        %vm6052 = vcmp.eq.s32.totalorder %v5994, 1
        %vm6053 = vcmp.eq.s32.totalorder %v5997, 1
        %vm6054 = vcmp.eq.s32.totalorder %v6000, 1
        %vm6055 = vcmp.eq.s32.totalorder %v6003, 1
        %vm6056 = vcmp.eq.s32.totalorder %v6006, 1
        %vm6057 = vcmp.eq.s32.totalorder %v6009, 1
        %vm6058 = vcmp.eq.s32.totalorder %v6012, 1
        %vm6059 = vcmp.eq.s32.totalorder %v6015, 1
        %vm6060 = vcmp.eq.s32.totalorder %v6018, 1
        %vm6061 = vcmp.eq.s32.totalorder %v6021, 1
        %vm6062 = vcmp.eq.s32.totalorder %v6024, 1
        %vm6063 = vcmp.eq.s32.totalorder %v6027, 1
        %vm6064 = vcmp.eq.s32.totalorder %v6030, 1
        %vm6065 = vcmp.eq.s32.totalorder %v6033, 1
        %vm6066 = vmand %vm6034, %vm372
        %vm6067 = vmand %vm6034, %vm373
        %vm6068 = vmand %vm6035, %vm374
        %vm6069 = vmand %vm6035, %vm375
        %vm6070 = vmand %vm6036, %vm376
        %vm6071 = vmand %vm6036, %vm377
        %vm6072 = vmand %vm6037, %vm378
        %vm6073 = vmand %vm6037, %vm379
        %vm6074 = vmand %vm6038, %vm380
        %vm6075 = vmand %vm6038, %vm381
        %vm6076 = vmand %vm6039, %vm382
        %vm6077 = vmand %vm6039, %vm383
        %vm6078 = vmand %vm6040, %vm384
        %vm6079 = vmand %vm6040, %vm385
        %vm6080 = vmand %vm6041, %vm386
        %vm6081 = vmand %vm6041, %vm387
        %vm6082 = vmand %vm6042, %vm388
        %vm6083 = vmand %vm6042, %vm389
        %vm6084 = vmand %vm6043, %vm390
        %vm6085 = vmand %vm6043, %vm391
        %vm6086 = vmand %vm6044, %vm392
        %vm6087 = vmand %vm6044, %vm393
        %vm6088 = vmand %vm6045, %vm394
        %vm6089 = vmand %vm6045, %vm395
        %vm6090 = vmand %vm6046, %vm396
        %vm6091 = vmand %vm6046, %vm397
        %vm6092 = vmand %vm6047, %vm398
        %vm6093 = vmand %vm6047, %vm399
        %vm6094 = vmand %vm6048, %vm400
        %vm6095 = vmand %vm6048, %vm401
        %vm6096 = vmand %vm6049, %vm402
        %vm6097 = vmand %vm6049, %vm403
        %vm6098 = vmand %vm6050, %vm404
        %vm6099 = vmand %vm6050, %vm405
        %vm6100 = vmand %vm6051, %vm406
        %vm6101 = vmand %vm6051, %vm407
        %vm6102 = vmand %vm6052, %vm408
        %vm6103 = vmand %vm6052, %vm409
        %vm6104 = vmand %vm6053, %vm410
        %vm6105 = vmand %vm6053, %vm411
        %vm6106 = vmand %vm6054, %vm412
        %vm6107 = vmand %vm6054, %vm413
        %vm6108 = vmand %vm6055, %vm414
        %vm6109 = vmand %vm6055, %vm415
        %vm6110 = vmand %vm6056, %vm416
        %vm6111 = vmand %vm6056, %vm417
        %vm6112 = vmand %vm6057, %vm418
        %vm6113 = vmand %vm6057, %vm419
        %vm6114 = vmand %vm6058, %vm420
        %vm6115 = vmand %vm6058, %vm421
        %vm6116 = vmand %vm6059, %vm422
        %vm6117 = vmand %vm6059, %vm423
        %vm6118 = vmand %vm6060, %vm424
        %vm6119 = vmand %vm6060, %vm425
        %vm6120 = vmand %vm6061, %vm426
        %vm6121 = vmand %vm6061, %vm427
        %vm6122 = vmand %vm6062, %vm428
        %vm6123 = vmand %vm6062, %vm429
        %vm6124 = vmand %vm6063, %vm430
        %vm6125 = vmand %vm6063, %vm431
        %vm6126 = vmand %vm6064, %vm432
        %vm6127 = vmand %vm6064, %vm433
        %vm6128 = vmand %vm6065, %vm434
        %vm6129 = vmand %vm6065, %vm435
        %v6130 = vsel %vm6066, %v308, 1e+30
        %v6131 = vsel %vm6067, %v309, 1e+30
        %v6132 = vsel %vm6068, %v310, 1e+30
        %v6133 = vsel %vm6069, %v311, 1e+30
        %v6134 = vsel %vm6070, %v312, 1e+30
        %v6135 = vsel %vm6071, %v313, 1e+30
        %v6136 = vsel %vm6072, %v314, 1e+30
        %v6137 = vsel %vm6073, %v315, 1e+30
        %v6138 = vsel %vm6074, %v316, 1e+30
        %v6139 = vsel %vm6075, %v317, 1e+30
        %v6140 = vsel %vm6076, %v318, 1e+30
        %v6141 = vsel %vm6077, %v319, 1e+30
        %v6142 = vsel %vm6078, %v320, 1e+30
        %v6143 = vsel %vm6079, %v321, 1e+30
        %v6144 = vsel %vm6080, %v322, 1e+30
        %v6145 = vsel %vm6081, %v323, 1e+30
        %v6146 = vsel %vm6082, %v324, 1e+30
        %v6147 = vsel %vm6083, %v325, 1e+30
        %v6148 = vsel %vm6084, %v326, 1e+30
        %v6149 = vsel %vm6085, %v327, 1e+30
        %v6150 = vsel %vm6086, %v328, 1e+30
        %v6151 = vsel %vm6087, %v329, 1e+30
        %v6152 = vsel %vm6088, %v330, 1e+30
        %v6153 = vsel %vm6089, %v331, 1e+30
        %v6154 = vsel %vm6090, %v332, 1e+30
        %v6155 = vsel %vm6091, %v333, 1e+30
        %v6156 = vsel %vm6092, %v334, 1e+30
        %v6157 = vsel %vm6093, %v335, 1e+30
        %v6158 = vsel %vm6094, %v336, 1e+30
        %v6159 = vsel %vm6095, %v337, 1e+30
        %v6160 = vsel %vm6096, %v338, 1e+30
        %v6161 = vsel %vm6097, %v339, 1e+30
        %v6162 = vsel %vm6098, %v340, 1e+30
        %v6163 = vsel %vm6099, %v341, 1e+30
        %v6164 = vsel %vm6100, %v342, 1e+30
        %v6165 = vsel %vm6101, %v343, 1e+30
        %v6166 = vsel %vm6102, %v344, 1e+30
        %v6167 = vsel %vm6103, %v345, 1e+30
        %v6168 = vsel %vm6104, %v346, 1e+30
        %v6169 = vsel %vm6105, %v347, 1e+30
        %v6170 = vsel %vm6106, %v348, 1e+30
        %v6171 = vsel %vm6107, %v349, 1e+30
        %v6172 = vsel %vm6108, %v350, 1e+30
        %v6173 = vsel %vm6109, %v351, 1e+30
        %v6174 = vsel %vm6110, %v352, 1e+30
        %v6175 = vsel %vm6111, %v353, 1e+30
        %v6176 = vsel %vm6112, %v354, 1e+30
        %v6177 = vsel %vm6113, %v355, 1e+30
        %v6178 = vsel %vm6114, %v356, 1e+30
        %v6179 = vsel %vm6115, %v357, 1e+30
        %v6180 = vsel %vm6116, %v358, 1e+30
        %v6181 = vsel %vm6117, %v359, 1e+30
        %v6182 = vsel %vm6118, %v360, 1e+30
        %v6183 = vsel %vm6119, %v361, 1e+30
        %v6184 = vsel %vm6120, %v362, 1e+30
        %v6185 = vsel %vm6121, %v363, 1e+30
        %v6186 = vsel %vm6122, %v364, 1e+30
        %v6187 = vsel %vm6123, %v365, 1e+30
        %v6188 = vsel %vm6124, %v366, 1e+30
        %v6189 = vsel %vm6125, %v367, 1e+30
        %v6190 = vsel %vm6126, %v368, 1e+30
        %v6191 = vsel %vm6127, %v369, 1e+30
        %v6192 = vsel %vm6128, %v370, 1e+30
        %v6193 = vsel %vm6129, %v371, 1e+30
        %v6194 = vmin.f32 %v6130, %v6134
        %v6195 = vmin.f32 %v6132, %v6136
        %v6196 = vmin.f32 %v6194, %v6138
        %v6197 = vmin.f32 %v6195, %v6140
        %v6198 = vmin.f32 %v6196, %v6142
        %v6199 = vmin.f32 %v6197, %v6144
        %v6200 = vmin.f32 %v6198, %v6146
        %v6201 = vmin.f32 %v6199, %v6148
        %v6202 = vmin.f32 %v6200, %v6150
        %v6203 = vmin.f32 %v6201, %v6152
        %v6204 = vmin.f32 %v6202, %v6154
        %v6205 = vmin.f32 %v6203, %v6156
        %v6206 = vmin.f32 %v6204, %v6158
        %v6207 = vmin.f32 %v6205, %v6160
        %v6208 = vmin.f32 %v6206, %v6162
        %v6209 = vmin.f32 %v6207, %v6164
        %v6210 = vmin.f32 %v6208, %v6166
        %v6211 = vmin.f32 %v6209, %v6168
        %v6212 = vmin.f32 %v6210, %v6170
        %v6213 = vmin.f32 %v6211, %v6172
        %v6214 = vmin.f32 %v6212, %v6174
        %v6215 = vmin.f32 %v6213, %v6176
        %v6216 = vmin.f32 %v6214, %v6178
        %v6217 = vmin.f32 %v6215, %v6180
        %v6218 = vmin.f32 %v6216, %v6182
        %v6219 = vmin.f32 %v6217, %v6184
        %v6220 = vmin.f32 %v6218, %v6186
        %v6221 = vmin.f32 %v6219, %v6188
        %v6222 = vmin.f32 %v6220, %v6190
        %v6223 = vmin.f32 %v6221, %v6192
        %v6224 = vmin.f32 %v6222, %v6223
        %v6225 = vrot.slane %v6224, 4
        %v6226 = vmin.f32 %v6224, %v6225
        %v6227 = vrot.slane %v6226, 2
        %v6228 = vmin.f32 %v6226, %v6227
        %v6229 = vrot.slane %v6228, 1
        %v6230 = vmin.f32 %v6228, %v6229
        %v6231 = vmin.f32 %v6131, %v6135
        %v6232 = vmin.f32 %v6133, %v6137
        %v6233 = vmin.f32 %v6231, %v6139
        %v6234 = vmin.f32 %v6232, %v6141
        %v6235 = vmin.f32 %v6233, %v6143
        %v6236 = vmin.f32 %v6234, %v6145
        %v6237 = vmin.f32 %v6235, %v6147
        %v6238 = vmin.f32 %v6236, %v6149
        %v6239 = vmin.f32 %v6237, %v6151
        %v6240 = vmin.f32 %v6238, %v6153
        %v6241 = vmin.f32 %v6239, %v6155
        %v6242 = vmin.f32 %v6240, %v6157
        %v6243 = vmin.f32 %v6241, %v6159
        %v6244 = vmin.f32 %v6242, %v6161
        %v6245 = vmin.f32 %v6243, %v6163
        %v6246 = vmin.f32 %v6244, %v6165
        %v6247 = vmin.f32 %v6245, %v6167
        %v6248 = vmin.f32 %v6246, %v6169
        %v6249 = vmin.f32 %v6247, %v6171
        %v6250 = vmin.f32 %v6248, %v6173
        %v6251 = vmin.f32 %v6249, %v6175
        %v6252 = vmin.f32 %v6250, %v6177
        %v6253 = vmin.f32 %v6251, %v6179
        %v6254 = vmin.f32 %v6252, %v6181
        %v6255 = vmin.f32 %v6253, %v6183
        %v6256 = vmin.f32 %v6254, %v6185
        %v6257 = vmin.f32 %v6255, %v6187
        %v6258 = vmin.f32 %v6256, %v6189
        %v6259 = vmin.f32 %v6257, %v6191
        %v6260 = vmin.f32 %v6258, %v6193
        %v6261 = vmin.f32 %v6259, %v6260
        %v6262 = vrot.slane %v6261, 4
        %v6263 = vmin.f32 %v6261, %v6262
        %v6264 = vrot.slane %v6263, 2
        %v6265 = vmin.f32 %v6263, %v6264
        %v6266 = vrot.slane %v6265, 1
        %v6267 = vmin.f32 %v6265, %v6266
        %vm6268 = vcmp.eq.f32.partialorder %v308, %v6230
        %vm6269 = vcmp.eq.f32.partialorder %v309, %v6267
        %vm6270 = vcmp.eq.f32.partialorder %v310, %v6230
        %vm6271 = vcmp.eq.f32.partialorder %v311, %v6267
        %vm6272 = vcmp.eq.f32.partialorder %v312, %v6230
        %vm6273 = vcmp.eq.f32.partialorder %v313, %v6267
        %vm6274 = vcmp.eq.f32.partialorder %v314, %v6230
        %vm6275 = vcmp.eq.f32.partialorder %v315, %v6267
        %vm6276 = vcmp.eq.f32.partialorder %v316, %v6230
        %vm6277 = vcmp.eq.f32.partialorder %v317, %v6267
        %vm6278 = vcmp.eq.f32.partialorder %v318, %v6230
        %vm6279 = vcmp.eq.f32.partialorder %v319, %v6267
        %vm6280 = vcmp.eq.f32.partialorder %v320, %v6230
        %vm6281 = vcmp.eq.f32.partialorder %v321, %v6267
        %vm6282 = vcmp.eq.f32.partialorder %v322, %v6230
        %vm6283 = vcmp.eq.f32.partialorder %v323, %v6267
        %vm6284 = vcmp.eq.f32.partialorder %v324, %v6230
        %vm6285 = vcmp.eq.f32.partialorder %v325, %v6267
        %vm6286 = vcmp.eq.f32.partialorder %v326, %v6230
        %vm6287 = vcmp.eq.f32.partialorder %v327, %v6267
        %vm6288 = vcmp.eq.f32.partialorder %v328, %v6230
        %vm6289 = vcmp.eq.f32.partialorder %v329, %v6267
        %vm6290 = vcmp.eq.f32.partialorder %v330, %v6230
        %vm6291 = vcmp.eq.f32.partialorder %v331, %v6267
        %vm6292 = vcmp.eq.f32.partialorder %v332, %v6230
        %vm6293 = vcmp.eq.f32.partialorder %v333, %v6267
        %vm6294 = vcmp.eq.f32.partialorder %v334, %v6230
        %vm6295 = vcmp.eq.f32.partialorder %v335, %v6267
        %vm6296 = vcmp.eq.f32.partialorder %v336, %v6230
        %vm6297 = vcmp.eq.f32.partialorder %v337, %v6267
        %vm6298 = vcmp.eq.f32.partialorder %v338, %v6230
        %vm6299 = vcmp.eq.f32.partialorder %v339, %v6267
        %vm6300 = vcmp.eq.f32.partialorder %v340, %v6230
        %vm6301 = vcmp.eq.f32.partialorder %v341, %v6267
        %vm6302 = vcmp.eq.f32.partialorder %v342, %v6230
        %vm6303 = vcmp.eq.f32.partialorder %v343, %v6267
        %vm6304 = vcmp.eq.f32.partialorder %v344, %v6230
        %vm6305 = vcmp.eq.f32.partialorder %v345, %v6267
        %vm6306 = vcmp.eq.f32.partialorder %v346, %v6230
        %vm6307 = vcmp.eq.f32.partialorder %v347, %v6267
        %vm6308 = vcmp.eq.f32.partialorder %v348, %v6230
        %vm6309 = vcmp.eq.f32.partialorder %v349, %v6267
        %vm6310 = vcmp.eq.f32.partialorder %v350, %v6230
        %vm6311 = vcmp.eq.f32.partialorder %v351, %v6267
        %vm6312 = vcmp.eq.f32.partialorder %v352, %v6230
        %vm6313 = vcmp.eq.f32.partialorder %v353, %v6267
        %vm6314 = vcmp.eq.f32.partialorder %v354, %v6230
        %vm6315 = vcmp.eq.f32.partialorder %v355, %v6267
        %vm6316 = vcmp.eq.f32.partialorder %v356, %v6230
        %vm6317 = vcmp.eq.f32.partialorder %v357, %v6267
        %vm6318 = vcmp.eq.f32.partialorder %v358, %v6230
        %vm6319 = vcmp.eq.f32.partialorder %v359, %v6267
        %vm6320 = vcmp.eq.f32.partialorder %v360, %v6230
        %vm6321 = vcmp.eq.f32.partialorder %v361, %v6267
        %vm6322 = vcmp.eq.f32.partialorder %v362, %v6230
        %vm6323 = vcmp.eq.f32.partialorder %v363, %v6267
        %vm6324 = vcmp.eq.f32.partialorder %v364, %v6230
        %vm6325 = vcmp.eq.f32.partialorder %v365, %v6267
        %vm6326 = vcmp.eq.f32.partialorder %v366, %v6230
        %vm6327 = vcmp.eq.f32.partialorder %v367, %v6267
        %vm6328 = vcmp.eq.f32.partialorder %v368, %v6230
        %vm6329 = vcmp.eq.f32.partialorder %v369, %v6267
        %vm6330 = vcmp.eq.f32.partialorder %v370, %v6230
        %vm6331 = vcmp.eq.f32.partialorder %v371, %v6267
        %6333 = vset.pattern.permute.xlu0 0
        %6334 = vperm.xlu0 %6333, %v5841
        %v6335 = vpop.permute.xlu0 %6334
        %6338 = vset.pattern.permute.xlu0 0
        %6339 = vperm.xlu0 %6338, %v5842
        %v6340 = vpop.permute.xlu0 %6339
        %6343 = vset.pattern.permute.xlu0 0
        %6344 = vperm.xlu0 %6343, %v5843
        %v6345 = vpop.permute.xlu0 %6344
        %6348 = vset.pattern.permute.xlu0 0
        %6349 = vperm.xlu0 %6348, %v5844
        %v6350 = vpop.permute.xlu0 %6349
        %6353 = vset.pattern.permute.xlu0 0
        %6354 = vperm.xlu0 %6353, %v5845
        %v6355 = vpop.permute.xlu0 %6354
        %6358 = vset.pattern.permute.xlu0 0
        %6359 = vperm.xlu0 %6358, %v5846
        %v6360 = vpop.permute.xlu0 %6359
        %6363 = vset.pattern.permute.xlu0 0
        %6364 = vperm.xlu0 %6363, %v5847
        %v6365 = vpop.permute.xlu0 %6364
        %6368 = vset.pattern.permute.xlu0 0
        %6369 = vperm.xlu0 %6368, %v5848
        %v6370 = vpop.permute.xlu0 %6369
        %6373 = vset.pattern.permute.xlu0 0
        %6374 = vperm.xlu0 %6373, %v5849
        %v6375 = vpop.permute.xlu0 %6374
        %6378 = vset.pattern.permute.xlu0 0
        %6379 = vperm.xlu0 %6378, %v5850
        %v6380 = vpop.permute.xlu0 %6379
        %6383 = vset.pattern.permute.xlu0 0
        %6384 = vperm.xlu0 %6383, %v5851
        %v6385 = vpop.permute.xlu0 %6384
        %6388 = vset.pattern.permute.xlu0 0
        %6389 = vperm.xlu0 %6388, %v5852
        %v6390 = vpop.permute.xlu0 %6389
        %6393 = vset.pattern.permute.xlu0 0
        %6394 = vperm.xlu0 %6393, %v5853
        %v6395 = vpop.permute.xlu0 %6394
        %6398 = vset.pattern.permute.xlu0 0
        %6399 = vperm.xlu0 %6398, %v5854
        %v6400 = vpop.permute.xlu0 %6399
        %6403 = vset.pattern.permute.xlu0 0
        %6404 = vperm.xlu0 %6403, %v5855
        %v6405 = vpop.permute.xlu0 %6404
        %6408 = vset.pattern.permute.xlu0 0
        %6409 = vperm.xlu0 %6408, %v5856
        %v6410 = vpop.permute.xlu0 %6409
        %6413 = vset.pattern.permute.xlu0 0
        %6414 = vperm.xlu0 %6413, %v5857
        %v6415 = vpop.permute.xlu0 %6414
        %6418 = vset.pattern.permute.xlu0 0
        %6419 = vperm.xlu0 %6418, %v5858
        %v6420 = vpop.permute.xlu0 %6419
        %6423 = vset.pattern.permute.xlu0 0
        %6424 = vperm.xlu0 %6423, %v5859
        %v6425 = vpop.permute.xlu0 %6424
        %6428 = vset.pattern.permute.xlu0 0
        %6429 = vperm.xlu0 %6428, %v5860
        %v6430 = vpop.permute.xlu0 %6429
        %6433 = vset.pattern.permute.xlu0 0
        %6434 = vperm.xlu0 %6433, %v5861
        %v6435 = vpop.permute.xlu0 %6434
        %6438 = vset.pattern.permute.xlu0 0
        %6439 = vperm.xlu0 %6438, %v5862
        %v6440 = vpop.permute.xlu0 %6439
        %6443 = vset.pattern.permute.xlu0 0
        %6444 = vperm.xlu0 %6443, %v5863
        %v6445 = vpop.permute.xlu0 %6444
        %6448 = vset.pattern.permute.xlu0 0
        %6449 = vperm.xlu0 %6448, %v5864
        %v6450 = vpop.permute.xlu0 %6449
        %6453 = vset.pattern.permute.xlu0 0
        %6454 = vperm.xlu0 %6453, %v5865
        %v6455 = vpop.permute.xlu0 %6454
        %6458 = vset.pattern.permute.xlu0 0
        %6459 = vperm.xlu0 %6458, %v5866
        %v6460 = vpop.permute.xlu0 %6459
        %6463 = vset.pattern.permute.xlu0 0
        %6464 = vperm.xlu0 %6463, %v5867
        %v6465 = vpop.permute.xlu0 %6464
        %6468 = vset.pattern.permute.xlu0 0
        %6469 = vperm.xlu0 %6468, %v5868
        %v6470 = vpop.permute.xlu0 %6469
        %6473 = vset.pattern.permute.xlu0 0
        %6474 = vperm.xlu0 %6473, %v5869
        %v6475 = vpop.permute.xlu0 %6474
        %6478 = vset.pattern.permute.xlu0 0
        %6479 = vperm.xlu0 %6478, %v5870
        %v6480 = vpop.permute.xlu0 %6479
        %6483 = vset.pattern.permute.xlu0 0
        %6484 = vperm.xlu0 %6483, %v5871
        %v6485 = vpop.permute.xlu0 %6484
        %6488 = vset.pattern.permute.xlu0 0
        %6489 = vperm.xlu0 %6488, %v5872
        %v6490 = vpop.permute.xlu0 %6489
        %v6492 = vsel %vm6268, %v6335, 0.0
        %v6493 = vsel %vm6269, %v6335, 0.0
        %v6494 = vsel %vm6270, %v6340, 0.0
        %v6495 = vsel %vm6271, %v6340, 0.0
        %v6496 = vsel %vm6272, %v6345, 0.0
        %v6497 = vsel %vm6273, %v6345, 0.0
        %v6498 = vsel %vm6274, %v6350, 0.0
        %v6499 = vsel %vm6275, %v6350, 0.0
        %v6500 = vsel %vm6276, %v6355, 0.0
        %v6501 = vsel %vm6277, %v6355, 0.0
        %v6502 = vsel %vm6278, %v6360, 0.0
        %v6503 = vsel %vm6279, %v6360, 0.0
        %v6504 = vsel %vm6280, %v6365, 0.0
        %v6505 = vsel %vm6281, %v6365, 0.0
        %v6506 = vsel %vm6282, %v6370, 0.0
        %v6507 = vsel %vm6283, %v6370, 0.0
        %v6508 = vsel %vm6284, %v6375, 0.0
        %v6509 = vsel %vm6285, %v6375, 0.0
        %v6510 = vsel %vm6286, %v6380, 0.0
        %v6511 = vsel %vm6287, %v6380, 0.0
        %v6512 = vsel %vm6288, %v6385, 0.0
        %v6513 = vsel %vm6289, %v6385, 0.0
        %v6514 = vsel %vm6290, %v6390, 0.0
        %v6515 = vsel %vm6291, %v6390, 0.0
        %v6516 = vsel %vm6292, %v6395, 0.0
        %v6517 = vsel %vm6293, %v6395, 0.0
        %v6518 = vsel %vm6294, %v6400, 0.0
        %v6519 = vsel %vm6295, %v6400, 0.0
        %v6520 = vsel %vm6296, %v6405, 0.0
        %v6521 = vsel %vm6297, %v6405, 0.0
        %v6522 = vsel %vm6298, %v6410, 0.0
        %v6523 = vsel %vm6299, %v6410, 0.0
        %v6524 = vsel %vm6300, %v6415, 0.0
        %v6525 = vsel %vm6301, %v6415, 0.0
        %v6526 = vsel %vm6302, %v6420, 0.0
        %v6527 = vsel %vm6303, %v6420, 0.0
        %v6528 = vsel %vm6304, %v6425, 0.0
        %v6529 = vsel %vm6305, %v6425, 0.0
        %v6530 = vsel %vm6306, %v6430, 0.0
        %v6531 = vsel %vm6307, %v6430, 0.0
        %v6532 = vsel %vm6308, %v6435, 0.0
        %v6533 = vsel %vm6309, %v6435, 0.0
        %v6534 = vsel %vm6310, %v6440, 0.0
        %v6535 = vsel %vm6311, %v6440, 0.0
        %v6536 = vsel %vm6312, %v6445, 0.0
        %v6537 = vsel %vm6313, %v6445, 0.0
        %v6538 = vsel %vm6314, %v6450, 0.0
        %v6539 = vsel %vm6315, %v6450, 0.0
        %v6540 = vsel %vm6316, %v6455, 0.0
        %v6541 = vsel %vm6317, %v6455, 0.0
        %v6542 = vsel %vm6318, %v6460, 0.0
        %v6543 = vsel %vm6319, %v6460, 0.0
        %v6544 = vsel %vm6320, %v6465, 0.0
        %v6545 = vsel %vm6321, %v6465, 0.0
        %v6546 = vsel %vm6322, %v6470, 0.0
        %v6547 = vsel %vm6323, %v6470, 0.0
        %v6548 = vsel %vm6324, %v6475, 0.0
        %v6549 = vsel %vm6325, %v6475, 0.0
        %v6550 = vsel %vm6326, %v6480, 0.0
        %v6551 = vsel %vm6327, %v6480, 0.0
        %v6552 = vsel %vm6328, %v6485, 0.0
        %v6553 = vsel %vm6329, %v6485, 0.0
        %v6554 = vsel %vm6330, %v6490, 0.0
        %v6555 = vsel %vm6331, %v6490, 0.0
        %v6556 = vadd.f32 %v6492, %v6494
        %v6557 = vadd.f32 %v6556, %v6496
        %v6558 = vadd.f32 %v6557, %v6498
        %v6559 = vadd.f32 %v6558, %v6500
        %v6560 = vadd.f32 %v6559, %v6502
        %v6561 = vadd.f32 %v6560, %v6504
        %v6562 = vadd.f32 %v6561, %v6506
        %v6563 = vadd.f32 %v6562, %v6508
        %v6564 = vadd.f32 %v6563, %v6510
        %v6565 = vadd.f32 %v6564, %v6512
        %v6566 = vadd.f32 %v6565, %v6514
        %v6567 = vadd.f32 %v6566, %v6516
        %v6568 = vadd.f32 %v6567, %v6518
        %v6569 = vadd.f32 %v6568, %v6520
        %v6570 = vadd.f32 %v6569, %v6522
        %v6571 = vadd.f32 %v6570, %v6524
        %v6572 = vadd.f32 %v6571, %v6526
        %v6573 = vadd.f32 %v6572, %v6528
        %v6574 = vadd.f32 %v6573, %v6530
        %v6575 = vadd.f32 %v6574, %v6532
        %v6576 = vadd.f32 %v6575, %v6534
        %v6577 = vadd.f32 %v6576, %v6536
        %v6578 = vadd.f32 %v6577, %v6538
        %v6579 = vadd.f32 %v6578, %v6540
        %v6580 = vadd.f32 %v6579, %v6542
        %v6581 = vadd.f32 %v6580, %v6544
        %v6582 = vadd.f32 %v6581, %v6546
        %v6583 = vadd.f32 %v6582, %v6548
        %v6584 = vadd.f32 %v6583, %v6550
        %v6585 = vadd.f32 %v6584, %v6552
        %v6586 = vadd.f32 %v6585, %v6554
        %v6587 = vrot.slane %v6586, 4
        %v6588 = vadd.f32 %v6586, %v6587
        %v6589 = vrot.slane %v6588, 2
        %v6590 = vadd.f32 %v6588, %v6589
        %v6591 = vrot.slane %v6590, 1
        %v6592 = vadd.f32 %v6590, %v6591
        %v6593 = vadd.f32 %v6493, %v6495
        %v6594 = vadd.f32 %v6593, %v6497
        %v6595 = vadd.f32 %v6594, %v6499
        %v6596 = vadd.f32 %v6595, %v6501
        %v6597 = vadd.f32 %v6596, %v6503
        %v6598 = vadd.f32 %v6597, %v6505
        %v6599 = vadd.f32 %v6598, %v6507
        %v6600 = vadd.f32 %v6599, %v6509
        %v6601 = vadd.f32 %v6600, %v6511
        %v6602 = vadd.f32 %v6601, %v6513
        %v6603 = vadd.f32 %v6602, %v6515
        %v6604 = vadd.f32 %v6603, %v6517
        %v6605 = vadd.f32 %v6604, %v6519
        %v6606 = vadd.f32 %v6605, %v6521
        %v6607 = vadd.f32 %v6606, %v6523
        %v6608 = vadd.f32 %v6607, %v6525
        %v6609 = vadd.f32 %v6608, %v6527
        %v6610 = vadd.f32 %v6609, %v6529
        %v6611 = vadd.f32 %v6610, %v6531
        %v6612 = vadd.f32 %v6611, %v6533
        %v6613 = vadd.f32 %v6612, %v6535
        %v6614 = vadd.f32 %v6613, %v6537
        %v6615 = vadd.f32 %v6614, %v6539
        %v6616 = vadd.f32 %v6615, %v6541
        %v6617 = vadd.f32 %v6616, %v6543
        %v6618 = vadd.f32 %v6617, %v6545
        %v6619 = vadd.f32 %v6618, %v6547
        %v6620 = vadd.f32 %v6619, %v6549
        %v6621 = vadd.f32 %v6620, %v6551
        %v6622 = vadd.f32 %v6621, %v6553
        %v6623 = vadd.f32 %v6622, %v6555
        %v6624 = vrot.slane %v6623, 4
        %v6625 = vadd.f32 %v6623, %v6624
        %v6626 = vrot.slane %v6625, 2
        %v6627 = vadd.f32 %v6625, %v6626
        %v6628 = vrot.slane %v6627, 1
        %v6629 = vadd.f32 %v6627, %v6628
        %v6630 = vmul.f32 %v6230, %v1160
        %v6631 = vmul.f32 %v6267, %v1160
        %v6632 = vadd.f32 %v6630, 0.5
        %v6633 = vadd.f32 %v6631, 0.5
        %v6634 = vfloor.f32 %v6632
        %v6635 = vfloor.f32 %v6633
        %v6636 = vmul.f32 %v6634, 256.0
        %v6637 = vmul.f32 %v6635, 256.0
        %v6638 = vsub.f32 %v6230, %v6636
        %v6639 = vsub.f32 %v6267, %v6637
        %vm6640 = vcmp.lt.f32.partialorder %v6638, 0.0
        %vm6641 = vcmp.lt.f32.partialorder %v6639, 0.0
        %v6642 = vsub.f32 %v6634, 1.0
        %v6643 = vsub.f32 %v6635, 1.0
        %v6644 = vsel %vm6640, %v6642, %v6634
        %v6645 = vsel %vm6641, %v6643, %v6635
        %v6646 = vrsqrt.pop %v6644
        %v6647 = vrsqrt.pop %v6645
        %v6648 = vmul.f32 %v6592, %v6646
        %v6649 = vmul.f32 %v6629, %v6647
        %v6650 = vadd.f32 %v6648, 0.0
        %v6651 = vadd.f32 %v6649, 0.0
        %v6652 = vadd.f32 %v6646, 0.0
        %v6653 = vadd.f32 %v6647, 0.0
        %vm6654 = vcmp.gt.f32.partialorder %v308, %v6230
        %vm6655 = vcmp.gt.f32.partialorder %v309, %v6267
        %vm6656 = vcmp.gt.f32.partialorder %v310, %v6230
        %vm6657 = vcmp.gt.f32.partialorder %v311, %v6267
        %vm6658 = vcmp.gt.f32.partialorder %v312, %v6230
        %vm6659 = vcmp.gt.f32.partialorder %v313, %v6267
        %vm6660 = vcmp.gt.f32.partialorder %v314, %v6230
        %vm6661 = vcmp.gt.f32.partialorder %v315, %v6267
        %vm6662 = vcmp.gt.f32.partialorder %v316, %v6230
        %vm6663 = vcmp.gt.f32.partialorder %v317, %v6267
        %vm6664 = vcmp.gt.f32.partialorder %v318, %v6230
        %vm6665 = vcmp.gt.f32.partialorder %v319, %v6267
        %vm6666 = vcmp.gt.f32.partialorder %v320, %v6230
        %vm6667 = vcmp.gt.f32.partialorder %v321, %v6267
        %vm6668 = vcmp.gt.f32.partialorder %v322, %v6230
        %vm6669 = vcmp.gt.f32.partialorder %v323, %v6267
        %vm6670 = vcmp.gt.f32.partialorder %v324, %v6230
        %vm6671 = vcmp.gt.f32.partialorder %v325, %v6267
        %vm6672 = vcmp.gt.f32.partialorder %v326, %v6230
        %vm6673 = vcmp.gt.f32.partialorder %v327, %v6267
        %vm6674 = vcmp.gt.f32.partialorder %v328, %v6230
        %vm6675 = vcmp.gt.f32.partialorder %v329, %v6267
        %vm6676 = vcmp.gt.f32.partialorder %v330, %v6230
        %vm6677 = vcmp.gt.f32.partialorder %v331, %v6267
        %vm6678 = vcmp.gt.f32.partialorder %v332, %v6230
        %vm6679 = vcmp.gt.f32.partialorder %v333, %v6267
        %vm6680 = vcmp.gt.f32.partialorder %v334, %v6230
        %vm6681 = vcmp.gt.f32.partialorder %v335, %v6267
        %vm6682 = vcmp.gt.f32.partialorder %v336, %v6230
        %vm6683 = vcmp.gt.f32.partialorder %v337, %v6267
        %vm6684 = vcmp.gt.f32.partialorder %v338, %v6230
        %vm6685 = vcmp.gt.f32.partialorder %v339, %v6267
        %vm6686 = vcmp.gt.f32.partialorder %v340, %v6230
        %vm6687 = vcmp.gt.f32.partialorder %v341, %v6267
        %vm6688 = vcmp.gt.f32.partialorder %v342, %v6230
        %vm6689 = vcmp.gt.f32.partialorder %v343, %v6267
        %vm6690 = vcmp.gt.f32.partialorder %v344, %v6230
        %vm6691 = vcmp.gt.f32.partialorder %v345, %v6267
        %vm6692 = vcmp.gt.f32.partialorder %v346, %v6230
        %vm6693 = vcmp.gt.f32.partialorder %v347, %v6267
        %vm6694 = vcmp.gt.f32.partialorder %v348, %v6230
        %vm6695 = vcmp.gt.f32.partialorder %v349, %v6267
        %vm6696 = vcmp.gt.f32.partialorder %v350, %v6230
        %vm6697 = vcmp.gt.f32.partialorder %v351, %v6267
        %vm6698 = vcmp.gt.f32.partialorder %v352, %v6230
        %vm6699 = vcmp.gt.f32.partialorder %v353, %v6267
        %vm6700 = vcmp.gt.f32.partialorder %v354, %v6230
        %vm6701 = vcmp.gt.f32.partialorder %v355, %v6267
        %vm6702 = vcmp.gt.f32.partialorder %v356, %v6230
        %vm6703 = vcmp.gt.f32.partialorder %v357, %v6267
        %vm6704 = vcmp.gt.f32.partialorder %v358, %v6230
        %vm6705 = vcmp.gt.f32.partialorder %v359, %v6267
        %vm6706 = vcmp.gt.f32.partialorder %v360, %v6230
        %vm6707 = vcmp.gt.f32.partialorder %v361, %v6267
        %vm6708 = vcmp.gt.f32.partialorder %v362, %v6230
        %vm6709 = vcmp.gt.f32.partialorder %v363, %v6267
        %vm6710 = vcmp.gt.f32.partialorder %v364, %v6230
        %vm6711 = vcmp.gt.f32.partialorder %v365, %v6267
        %vm6712 = vcmp.gt.f32.partialorder %v366, %v6230
        %vm6713 = vcmp.gt.f32.partialorder %v367, %v6267
        %vm6714 = vcmp.gt.f32.partialorder %v368, %v6230
        %vm6715 = vcmp.gt.f32.partialorder %v369, %v6267
        %vm6716 = vcmp.gt.f32.partialorder %v370, %v6230
        %vm6717 = vcmp.gt.f32.partialorder %v371, %v6267
        %vm6718 = vmand %vm6034, %vm6654
        %vm6719 = vmand %vm6034, %vm6655
        %vm6720 = vmand %vm6035, %vm6656
        %vm6721 = vmand %vm6035, %vm6657
        %vm6722 = vmand %vm6036, %vm6658
        %vm6723 = vmand %vm6036, %vm6659
        %vm6724 = vmand %vm6037, %vm6660
        %vm6725 = vmand %vm6037, %vm6661
        %vm6726 = vmand %vm6038, %vm6662
        %vm6727 = vmand %vm6038, %vm6663
        %vm6728 = vmand %vm6039, %vm6664
        %vm6729 = vmand %vm6039, %vm6665
        %vm6730 = vmand %vm6040, %vm6666
        %vm6731 = vmand %vm6040, %vm6667
        %vm6732 = vmand %vm6041, %vm6668
        %vm6733 = vmand %vm6041, %vm6669
        %vm6734 = vmand %vm6042, %vm6670
        %vm6735 = vmand %vm6042, %vm6671
        %vm6736 = vmand %vm6043, %vm6672
        %vm6737 = vmand %vm6043, %vm6673
        %vm6738 = vmand %vm6044, %vm6674
        %vm6739 = vmand %vm6044, %vm6675
        %vm6740 = vmand %vm6045, %vm6676
        %vm6741 = vmand %vm6045, %vm6677
        %vm6742 = vmand %vm6046, %vm6678
        %vm6743 = vmand %vm6046, %vm6679
        %vm6744 = vmand %vm6047, %vm6680
        %vm6745 = vmand %vm6047, %vm6681
        %vm6746 = vmand %vm6048, %vm6682
        %vm6747 = vmand %vm6048, %vm6683
        %vm6748 = vmand %vm6049, %vm6684
        %vm6749 = vmand %vm6049, %vm6685
        %vm6750 = vmand %vm6050, %vm6686
        %vm6751 = vmand %vm6050, %vm6687
        %vm6752 = vmand %vm6051, %vm6688
        %vm6753 = vmand %vm6051, %vm6689
        %vm6754 = vmand %vm6052, %vm6690
        %vm6755 = vmand %vm6052, %vm6691
        %vm6756 = vmand %vm6053, %vm6692
        %vm6757 = vmand %vm6053, %vm6693
        %vm6758 = vmand %vm6054, %vm6694
        %vm6759 = vmand %vm6054, %vm6695
        %vm6760 = vmand %vm6055, %vm6696
        %vm6761 = vmand %vm6055, %vm6697
        %vm6762 = vmand %vm6056, %vm6698
        %vm6763 = vmand %vm6056, %vm6699
        %vm6764 = vmand %vm6057, %vm6700
        %vm6765 = vmand %vm6057, %vm6701
        %vm6766 = vmand %vm6058, %vm6702
        %vm6767 = vmand %vm6058, %vm6703
        %vm6768 = vmand %vm6059, %vm6704
        %vm6769 = vmand %vm6059, %vm6705
        %vm6770 = vmand %vm6060, %vm6706
        %vm6771 = vmand %vm6060, %vm6707
        %vm6772 = vmand %vm6061, %vm6708
        %vm6773 = vmand %vm6061, %vm6709
        %vm6774 = vmand %vm6062, %vm6710
        %vm6775 = vmand %vm6062, %vm6711
        %vm6776 = vmand %vm6063, %vm6712
        %vm6777 = vmand %vm6063, %vm6713
        %vm6778 = vmand %vm6064, %vm6714
        %vm6779 = vmand %vm6064, %vm6715
        %vm6780 = vmand %vm6065, %vm6716
        %vm6781 = vmand %vm6065, %vm6717
        %v6782 = vsel %vm6718, %v308, 1e+30
        %v6783 = vsel %vm6719, %v309, 1e+30
        %v6784 = vsel %vm6720, %v310, 1e+30
        %v6785 = vsel %vm6721, %v311, 1e+30
        %v6786 = vsel %vm6722, %v312, 1e+30
        %v6787 = vsel %vm6723, %v313, 1e+30
        %v6788 = vsel %vm6724, %v314, 1e+30
        %v6789 = vsel %vm6725, %v315, 1e+30
        %v6790 = vsel %vm6726, %v316, 1e+30
        %v6791 = vsel %vm6727, %v317, 1e+30
        %v6792 = vsel %vm6728, %v318, 1e+30
        %v6793 = vsel %vm6729, %v319, 1e+30
        %v6794 = vsel %vm6730, %v320, 1e+30
        %v6795 = vsel %vm6731, %v321, 1e+30
        %v6796 = vsel %vm6732, %v322, 1e+30
        %v6797 = vsel %vm6733, %v323, 1e+30
        %v6798 = vsel %vm6734, %v324, 1e+30
        %v6799 = vsel %vm6735, %v325, 1e+30
        %v6800 = vsel %vm6736, %v326, 1e+30
        %v6801 = vsel %vm6737, %v327, 1e+30
        %v6802 = vsel %vm6738, %v328, 1e+30
        %v6803 = vsel %vm6739, %v329, 1e+30
        %v6804 = vsel %vm6740, %v330, 1e+30
        %v6805 = vsel %vm6741, %v331, 1e+30
        %v6806 = vsel %vm6742, %v332, 1e+30
        %v6807 = vsel %vm6743, %v333, 1e+30
        %v6808 = vsel %vm6744, %v334, 1e+30
        %v6809 = vsel %vm6745, %v335, 1e+30
        %v6810 = vsel %vm6746, %v336, 1e+30
        %v6811 = vsel %vm6747, %v337, 1e+30
        %v6812 = vsel %vm6748, %v338, 1e+30
        %v6813 = vsel %vm6749, %v339, 1e+30
        %v6814 = vsel %vm6750, %v340, 1e+30
        %v6815 = vsel %vm6751, %v341, 1e+30
        %v6816 = vsel %vm6752, %v342, 1e+30
        %v6817 = vsel %vm6753, %v343, 1e+30
        %v6818 = vsel %vm6754, %v344, 1e+30
        %v6819 = vsel %vm6755, %v345, 1e+30
        %v6820 = vsel %vm6756, %v346, 1e+30
        %v6821 = vsel %vm6757, %v347, 1e+30
        %v6822 = vsel %vm6758, %v348, 1e+30
        %v6823 = vsel %vm6759, %v349, 1e+30
        %v6824 = vsel %vm6760, %v350, 1e+30
        %v6825 = vsel %vm6761, %v351, 1e+30
        %v6826 = vsel %vm6762, %v352, 1e+30
        %v6827 = vsel %vm6763, %v353, 1e+30
        %v6828 = vsel %vm6764, %v354, 1e+30
        %v6829 = vsel %vm6765, %v355, 1e+30
        %v6830 = vsel %vm6766, %v356, 1e+30
        %v6831 = vsel %vm6767, %v357, 1e+30
        %v6832 = vsel %vm6768, %v358, 1e+30
        %v6833 = vsel %vm6769, %v359, 1e+30
        %v6834 = vsel %vm6770, %v360, 1e+30
        %v6835 = vsel %vm6771, %v361, 1e+30
        %v6836 = vsel %vm6772, %v362, 1e+30
        %v6837 = vsel %vm6773, %v363, 1e+30
        %v6838 = vsel %vm6774, %v364, 1e+30
        %v6839 = vsel %vm6775, %v365, 1e+30
        %v6840 = vsel %vm6776, %v366, 1e+30
        %v6841 = vsel %vm6777, %v367, 1e+30
        %v6842 = vsel %vm6778, %v368, 1e+30
        %v6843 = vsel %vm6779, %v369, 1e+30
        %v6844 = vsel %vm6780, %v370, 1e+30
        %v6845 = vsel %vm6781, %v371, 1e+30
        %v6846 = vmin.f32 %v6782, %v6786
        %v6847 = vmin.f32 %v6784, %v6788
        %v6848 = vmin.f32 %v6846, %v6790
        %v6849 = vmin.f32 %v6847, %v6792
        %v6850 = vmin.f32 %v6848, %v6794
        %v6851 = vmin.f32 %v6849, %v6796
        %v6852 = vmin.f32 %v6850, %v6798
        %v6853 = vmin.f32 %v6851, %v6800
        %v6854 = vmin.f32 %v6852, %v6802
        %v6855 = vmin.f32 %v6853, %v6804
        %v6856 = vmin.f32 %v6854, %v6806
        %v6857 = vmin.f32 %v6855, %v6808
        %v6858 = vmin.f32 %v6856, %v6810
        %v6859 = vmin.f32 %v6857, %v6812
        %v6860 = vmin.f32 %v6858, %v6814
        %v6861 = vmin.f32 %v6859, %v6816
        %v6862 = vmin.f32 %v6860, %v6818
        %v6863 = vmin.f32 %v6861, %v6820
        %v6864 = vmin.f32 %v6862, %v6822
        %v6865 = vmin.f32 %v6863, %v6824
        %v6866 = vmin.f32 %v6864, %v6826
        %v6867 = vmin.f32 %v6865, %v6828
        %v6868 = vmin.f32 %v6866, %v6830
        %v6869 = vmin.f32 %v6867, %v6832
        %v6870 = vmin.f32 %v6868, %v6834
        %v6871 = vmin.f32 %v6869, %v6836
        %v6872 = vmin.f32 %v6870, %v6838
        %v6873 = vmin.f32 %v6871, %v6840
        %v6874 = vmin.f32 %v6872, %v6842
        %v6875 = vmin.f32 %v6873, %v6844
        %v6876 = vmin.f32 %v6874, %v6875
        %v6877 = vrot.slane %v6876, 4
        %v6878 = vmin.f32 %v6876, %v6877
        %v6879 = vrot.slane %v6878, 2
        %v6880 = vmin.f32 %v6878, %v6879
        %v6881 = vrot.slane %v6880, 1
        %v6882 = vmin.f32 %v6880, %v6881
        %v6883 = vmin.f32 %v6783, %v6787
        %v6884 = vmin.f32 %v6785, %v6789
        %v6885 = vmin.f32 %v6883, %v6791
        %v6886 = vmin.f32 %v6884, %v6793
        %v6887 = vmin.f32 %v6885, %v6795
        %v6888 = vmin.f32 %v6886, %v6797
        %v6889 = vmin.f32 %v6887, %v6799
        %v6890 = vmin.f32 %v6888, %v6801
        %v6891 = vmin.f32 %v6889, %v6803
        %v6892 = vmin.f32 %v6890, %v6805
        %v6893 = vmin.f32 %v6891, %v6807
        %v6894 = vmin.f32 %v6892, %v6809
        %v6895 = vmin.f32 %v6893, %v6811
        %v6896 = vmin.f32 %v6894, %v6813
        %v6897 = vmin.f32 %v6895, %v6815
        %v6898 = vmin.f32 %v6896, %v6817
        %v6899 = vmin.f32 %v6897, %v6819
        %v6900 = vmin.f32 %v6898, %v6821
        %v6901 = vmin.f32 %v6899, %v6823
        %v6902 = vmin.f32 %v6900, %v6825
        %v6903 = vmin.f32 %v6901, %v6827
        %v6904 = vmin.f32 %v6902, %v6829
        %v6905 = vmin.f32 %v6903, %v6831
        %v6906 = vmin.f32 %v6904, %v6833
        %v6907 = vmin.f32 %v6905, %v6835
        %v6908 = vmin.f32 %v6906, %v6837
        %v6909 = vmin.f32 %v6907, %v6839
        %v6910 = vmin.f32 %v6908, %v6841
        %v6911 = vmin.f32 %v6909, %v6843
        %v6912 = vmin.f32 %v6910, %v6845
        %v6913 = vmin.f32 %v6911, %v6912
        %v6914 = vrot.slane %v6913, 4
        %v6915 = vmin.f32 %v6913, %v6914
        %v6916 = vrot.slane %v6915, 2
        %v6917 = vmin.f32 %v6915, %v6916
        %v6918 = vrot.slane %v6917, 1
        %v6919 = vmin.f32 %v6917, %v6918
        %vm6920 = vcmp.eq.f32.partialorder %v308, %v6882
        %vm6921 = vcmp.eq.f32.partialorder %v309, %v6919
        %vm6922 = vcmp.eq.f32.partialorder %v310, %v6882
        %vm6923 = vcmp.eq.f32.partialorder %v311, %v6919
        %vm6924 = vcmp.eq.f32.partialorder %v312, %v6882
        %vm6925 = vcmp.eq.f32.partialorder %v313, %v6919
        %vm6926 = vcmp.eq.f32.partialorder %v314, %v6882
        %vm6927 = vcmp.eq.f32.partialorder %v315, %v6919
        %vm6928 = vcmp.eq.f32.partialorder %v316, %v6882
        %vm6929 = vcmp.eq.f32.partialorder %v317, %v6919
        %vm6930 = vcmp.eq.f32.partialorder %v318, %v6882
        %vm6931 = vcmp.eq.f32.partialorder %v319, %v6919
        %vm6932 = vcmp.eq.f32.partialorder %v320, %v6882
        %vm6933 = vcmp.eq.f32.partialorder %v321, %v6919
        %vm6934 = vcmp.eq.f32.partialorder %v322, %v6882
        %vm6935 = vcmp.eq.f32.partialorder %v323, %v6919
        %vm6936 = vcmp.eq.f32.partialorder %v324, %v6882
        %vm6937 = vcmp.eq.f32.partialorder %v325, %v6919
        %vm6938 = vcmp.eq.f32.partialorder %v326, %v6882
        %vm6939 = vcmp.eq.f32.partialorder %v327, %v6919
        %vm6940 = vcmp.eq.f32.partialorder %v328, %v6882
        %vm6941 = vcmp.eq.f32.partialorder %v329, %v6919
        %vm6942 = vcmp.eq.f32.partialorder %v330, %v6882
        %vm6943 = vcmp.eq.f32.partialorder %v331, %v6919
        %vm6944 = vcmp.eq.f32.partialorder %v332, %v6882
        %vm6945 = vcmp.eq.f32.partialorder %v333, %v6919
        %vm6946 = vcmp.eq.f32.partialorder %v334, %v6882
        %vm6947 = vcmp.eq.f32.partialorder %v335, %v6919
        %vm6948 = vcmp.eq.f32.partialorder %v336, %v6882
        %vm6949 = vcmp.eq.f32.partialorder %v337, %v6919
        %vm6950 = vcmp.eq.f32.partialorder %v338, %v6882
        %vm6951 = vcmp.eq.f32.partialorder %v339, %v6919
        %vm6952 = vcmp.eq.f32.partialorder %v340, %v6882
        %vm6953 = vcmp.eq.f32.partialorder %v341, %v6919
        %vm6954 = vcmp.eq.f32.partialorder %v342, %v6882
        %vm6955 = vcmp.eq.f32.partialorder %v343, %v6919
        %vm6956 = vcmp.eq.f32.partialorder %v344, %v6882
        %vm6957 = vcmp.eq.f32.partialorder %v345, %v6919
        %vm6958 = vcmp.eq.f32.partialorder %v346, %v6882
        %vm6959 = vcmp.eq.f32.partialorder %v347, %v6919
        %vm6960 = vcmp.eq.f32.partialorder %v348, %v6882
        %vm6961 = vcmp.eq.f32.partialorder %v349, %v6919
        %vm6962 = vcmp.eq.f32.partialorder %v350, %v6882
        %vm6963 = vcmp.eq.f32.partialorder %v351, %v6919
        %vm6964 = vcmp.eq.f32.partialorder %v352, %v6882
        %vm6965 = vcmp.eq.f32.partialorder %v353, %v6919
        %vm6966 = vcmp.eq.f32.partialorder %v354, %v6882
        %vm6967 = vcmp.eq.f32.partialorder %v355, %v6919
        %vm6968 = vcmp.eq.f32.partialorder %v356, %v6882
        %vm6969 = vcmp.eq.f32.partialorder %v357, %v6919
        %vm6970 = vcmp.eq.f32.partialorder %v358, %v6882
        %vm6971 = vcmp.eq.f32.partialorder %v359, %v6919
        %vm6972 = vcmp.eq.f32.partialorder %v360, %v6882
        %vm6973 = vcmp.eq.f32.partialorder %v361, %v6919
        %vm6974 = vcmp.eq.f32.partialorder %v362, %v6882
        %vm6975 = vcmp.eq.f32.partialorder %v363, %v6919
        %vm6976 = vcmp.eq.f32.partialorder %v364, %v6882
        %vm6977 = vcmp.eq.f32.partialorder %v365, %v6919
        %vm6978 = vcmp.eq.f32.partialorder %v366, %v6882
        %vm6979 = vcmp.eq.f32.partialorder %v367, %v6919
        %vm6980 = vcmp.eq.f32.partialorder %v368, %v6882
        %vm6981 = vcmp.eq.f32.partialorder %v369, %v6919
        %vm6982 = vcmp.eq.f32.partialorder %v370, %v6882
        %vm6983 = vcmp.eq.f32.partialorder %v371, %v6919
        %v6984 = vsel %vm6920, %v6335, 0.0
        %v6985 = vsel %vm6921, %v6335, 0.0
        %v6986 = vsel %vm6922, %v6340, 0.0
        %v6987 = vsel %vm6923, %v6340, 0.0
        %v6988 = vsel %vm6924, %v6345, 0.0
        %v6989 = vsel %vm6925, %v6345, 0.0
        %v6990 = vsel %vm6926, %v6350, 0.0
        %v6991 = vsel %vm6927, %v6350, 0.0
        %v6992 = vsel %vm6928, %v6355, 0.0
        %v6993 = vsel %vm6929, %v6355, 0.0
        %v6994 = vsel %vm6930, %v6360, 0.0
        %v6995 = vsel %vm6931, %v6360, 0.0
        %v6996 = vsel %vm6932, %v6365, 0.0
        %v6997 = vsel %vm6933, %v6365, 0.0
        %v6998 = vsel %vm6934, %v6370, 0.0
        %v6999 = vsel %vm6935, %v6370, 0.0
        %v7000 = vsel %vm6936, %v6375, 0.0
        %v7001 = vsel %vm6937, %v6375, 0.0
        %v7002 = vsel %vm6938, %v6380, 0.0
        %v7003 = vsel %vm6939, %v6380, 0.0
        %v7004 = vsel %vm6940, %v6385, 0.0
        %v7005 = vsel %vm6941, %v6385, 0.0
        %v7006 = vsel %vm6942, %v6390, 0.0
        %v7007 = vsel %vm6943, %v6390, 0.0
        %v7008 = vsel %vm6944, %v6395, 0.0
        %v7009 = vsel %vm6945, %v6395, 0.0
        %v7010 = vsel %vm6946, %v6400, 0.0
        %v7011 = vsel %vm6947, %v6400, 0.0
        %v7012 = vsel %vm6948, %v6405, 0.0
        %v7013 = vsel %vm6949, %v6405, 0.0
        %v7014 = vsel %vm6950, %v6410, 0.0
        %v7015 = vsel %vm6951, %v6410, 0.0
        %v7016 = vsel %vm6952, %v6415, 0.0
        %v7017 = vsel %vm6953, %v6415, 0.0
        %v7018 = vsel %vm6954, %v6420, 0.0
        %v7019 = vsel %vm6955, %v6420, 0.0
        %v7020 = vsel %vm6956, %v6425, 0.0
        %v7021 = vsel %vm6957, %v6425, 0.0
        %v7022 = vsel %vm6958, %v6430, 0.0
        %v7023 = vsel %vm6959, %v6430, 0.0
        %v7024 = vsel %vm6960, %v6435, 0.0
        %v7025 = vsel %vm6961, %v6435, 0.0
        %v7026 = vsel %vm6962, %v6440, 0.0
        %v7027 = vsel %vm6963, %v6440, 0.0
        %v7028 = vsel %vm6964, %v6445, 0.0
        %v7029 = vsel %vm6965, %v6445, 0.0
        %v7030 = vsel %vm6966, %v6450, 0.0
        %v7031 = vsel %vm6967, %v6450, 0.0
        %v7032 = vsel %vm6968, %v6455, 0.0
        %v7033 = vsel %vm6969, %v6455, 0.0
        %v7034 = vsel %vm6970, %v6460, 0.0
        %v7035 = vsel %vm6971, %v6460, 0.0
        %v7036 = vsel %vm6972, %v6465, 0.0
        %v7037 = vsel %vm6973, %v6465, 0.0
        %v7038 = vsel %vm6974, %v6470, 0.0
        %v7039 = vsel %vm6975, %v6470, 0.0
        %v7040 = vsel %vm6976, %v6475, 0.0
        %v7041 = vsel %vm6977, %v6475, 0.0
        %v7042 = vsel %vm6978, %v6480, 0.0
        %v7043 = vsel %vm6979, %v6480, 0.0
        %v7044 = vsel %vm6980, %v6485, 0.0
        %v7045 = vsel %vm6981, %v6485, 0.0
        %v7046 = vsel %vm6982, %v6490, 0.0
        %v7047 = vsel %vm6983, %v6490, 0.0
        %v7048 = vadd.f32 %v6984, %v6986
        %v7049 = vadd.f32 %v7048, %v6988
        %v7050 = vadd.f32 %v7049, %v6990
        %v7051 = vadd.f32 %v7050, %v6992
        %v7052 = vadd.f32 %v7051, %v6994
        %v7053 = vadd.f32 %v7052, %v6996
        %v7054 = vadd.f32 %v7053, %v6998
        %v7055 = vadd.f32 %v7054, %v7000
        %v7056 = vadd.f32 %v7055, %v7002
        %v7057 = vadd.f32 %v7056, %v7004
        %v7058 = vadd.f32 %v7057, %v7006
        %v7059 = vadd.f32 %v7058, %v7008
        %v7060 = vadd.f32 %v7059, %v7010
        %v7061 = vadd.f32 %v7060, %v7012
        %v7062 = vadd.f32 %v7061, %v7014
        %v7063 = vadd.f32 %v7062, %v7016
        %v7064 = vadd.f32 %v7063, %v7018
        %v7065 = vadd.f32 %v7064, %v7020
        %v7066 = vadd.f32 %v7065, %v7022
        %v7067 = vadd.f32 %v7066, %v7024
        %v7068 = vadd.f32 %v7067, %v7026
        %v7069 = vadd.f32 %v7068, %v7028
        %v7070 = vadd.f32 %v7069, %v7030
        %v7071 = vadd.f32 %v7070, %v7032
        %v7072 = vadd.f32 %v7071, %v7034
        %v7073 = vadd.f32 %v7072, %v7036
        %v7074 = vadd.f32 %v7073, %v7038
        %v7075 = vadd.f32 %v7074, %v7040
        %v7076 = vadd.f32 %v7075, %v7042
        %v7077 = vadd.f32 %v7076, %v7044
        %v7078 = vadd.f32 %v7077, %v7046
        %v7079 = vrot.slane %v7078, 4
        %v7080 = vadd.f32 %v7078, %v7079
        %v7081 = vrot.slane %v7080, 2
        %v7082 = vadd.f32 %v7080, %v7081
        %v7083 = vrot.slane %v7082, 1
        %v7084 = vadd.f32 %v7082, %v7083
        %v7085 = vadd.f32 %v6985, %v6987
        %v7086 = vadd.f32 %v7085, %v6989
        %v7087 = vadd.f32 %v7086, %v6991
        %v7088 = vadd.f32 %v7087, %v6993
        %v7089 = vadd.f32 %v7088, %v6995
        %v7090 = vadd.f32 %v7089, %v6997
        %v7091 = vadd.f32 %v7090, %v6999
        %v7092 = vadd.f32 %v7091, %v7001
        %v7093 = vadd.f32 %v7092, %v7003
        %v7094 = vadd.f32 %v7093, %v7005
        %v7095 = vadd.f32 %v7094, %v7007
        %v7096 = vadd.f32 %v7095, %v7009
        %v7097 = vadd.f32 %v7096, %v7011
        %v7098 = vadd.f32 %v7097, %v7013
        %v7099 = vadd.f32 %v7098, %v7015
        %v7100 = vadd.f32 %v7099, %v7017
        %v7101 = vadd.f32 %v7100, %v7019
        %v7102 = vadd.f32 %v7101, %v7021
        %v7103 = vadd.f32 %v7102, %v7023
        %v7104 = vadd.f32 %v7103, %v7025
        %v7105 = vadd.f32 %v7104, %v7027
        %v7106 = vadd.f32 %v7105, %v7029
        %v7107 = vadd.f32 %v7106, %v7031
        %v7108 = vadd.f32 %v7107, %v7033
        %v7109 = vadd.f32 %v7108, %v7035
        %v7110 = vadd.f32 %v7109, %v7037
        %v7111 = vadd.f32 %v7110, %v7039
        %v7112 = vadd.f32 %v7111, %v7041
        %v7113 = vadd.f32 %v7112, %v7043
        %v7114 = vadd.f32 %v7113, %v7045
        %v7115 = vadd.f32 %v7114, %v7047
        %v7116 = vrot.slane %v7115, 4
        %v7117 = vadd.f32 %v7115, %v7116
        %v7118 = vrot.slane %v7117, 2
        %v7119 = vadd.f32 %v7117, %v7118
        %v7120 = vrot.slane %v7119, 1
        %v7121 = vadd.f32 %v7119, %v7120
        %v7122 = vmul.f32 %v6882, %v1160
        %v7123 = vmul.f32 %v6919, %v1160
        %v7124 = vadd.f32 %v7122, 0.5
        %v7125 = vadd.f32 %v7123, 0.5
        %v7126 = vfloor.f32 %v7124
        %v7127 = vfloor.f32 %v7125
        %v7128 = vmul.f32 %v7126, 256.0
        %v7129 = vmul.f32 %v7127, 256.0
        %v7130 = vsub.f32 %v6882, %v7128
        %v7131 = vsub.f32 %v6919, %v7129
        %vm7132 = vcmp.lt.f32.partialorder %v7130, 0.0
        %vm7133 = vcmp.lt.f32.partialorder %v7131, 0.0
        %v7134 = vsub.f32 %v7126, 1.0
        %v7135 = vsub.f32 %v7127, 1.0
        %v7136 = vsel %vm7132, %v7134, %v7126
        %v7137 = vsel %vm7133, %v7135, %v7127
        %v7138 = vrsqrt.pop %v7136
        %v7139 = vrsqrt.pop %v7137
        %v7140 = vmul.f32 %v7084, %v7138
        %v7141 = vmul.f32 %v7121, %v7139
        %v7142 = vadd.f32 %v6650, %v7140
        %v7143 = vadd.f32 %v6651, %v7141
        %v7144 = vadd.f32 %v6652, %v7138
        %v7145 = vadd.f32 %v6653, %v7139
        %vm7146 = vcmp.gt.f32.partialorder %v308, %v6882
        %vm7147 = vcmp.gt.f32.partialorder %v309, %v6919
        %vm7148 = vcmp.gt.f32.partialorder %v310, %v6882
        %vm7149 = vcmp.gt.f32.partialorder %v311, %v6919
        %vm7150 = vcmp.gt.f32.partialorder %v312, %v6882
        %vm7151 = vcmp.gt.f32.partialorder %v313, %v6919
        %vm7152 = vcmp.gt.f32.partialorder %v314, %v6882
        %vm7153 = vcmp.gt.f32.partialorder %v315, %v6919
        %vm7154 = vcmp.gt.f32.partialorder %v316, %v6882
        %vm7155 = vcmp.gt.f32.partialorder %v317, %v6919
        %vm7156 = vcmp.gt.f32.partialorder %v318, %v6882
        %vm7157 = vcmp.gt.f32.partialorder %v319, %v6919
        %vm7158 = vcmp.gt.f32.partialorder %v320, %v6882
        %vm7159 = vcmp.gt.f32.partialorder %v321, %v6919
        %vm7160 = vcmp.gt.f32.partialorder %v322, %v6882
        %vm7161 = vcmp.gt.f32.partialorder %v323, %v6919
        %vm7162 = vcmp.gt.f32.partialorder %v324, %v6882
        %vm7163 = vcmp.gt.f32.partialorder %v325, %v6919
        %vm7164 = vcmp.gt.f32.partialorder %v326, %v6882
        %vm7165 = vcmp.gt.f32.partialorder %v327, %v6919
        %vm7166 = vcmp.gt.f32.partialorder %v328, %v6882
        %vm7167 = vcmp.gt.f32.partialorder %v329, %v6919
        %vm7168 = vcmp.gt.f32.partialorder %v330, %v6882
        %vm7169 = vcmp.gt.f32.partialorder %v331, %v6919
        %vm7170 = vcmp.gt.f32.partialorder %v332, %v6882
        %vm7171 = vcmp.gt.f32.partialorder %v333, %v6919
        %vm7172 = vcmp.gt.f32.partialorder %v334, %v6882
        %vm7173 = vcmp.gt.f32.partialorder %v335, %v6919
        %vm7174 = vcmp.gt.f32.partialorder %v336, %v6882
        %vm7175 = vcmp.gt.f32.partialorder %v337, %v6919
        %vm7176 = vcmp.gt.f32.partialorder %v338, %v6882
        %vm7177 = vcmp.gt.f32.partialorder %v339, %v6919
        %vm7178 = vcmp.gt.f32.partialorder %v340, %v6882
        %vm7179 = vcmp.gt.f32.partialorder %v341, %v6919
        %vm7180 = vcmp.gt.f32.partialorder %v342, %v6882
        %vm7181 = vcmp.gt.f32.partialorder %v343, %v6919
        %vm7182 = vcmp.gt.f32.partialorder %v344, %v6882
        %vm7183 = vcmp.gt.f32.partialorder %v345, %v6919
        %vm7184 = vcmp.gt.f32.partialorder %v346, %v6882
        %vm7185 = vcmp.gt.f32.partialorder %v347, %v6919
        %vm7186 = vcmp.gt.f32.partialorder %v348, %v6882
        %vm7187 = vcmp.gt.f32.partialorder %v349, %v6919
        %vm7188 = vcmp.gt.f32.partialorder %v350, %v6882
        %vm7189 = vcmp.gt.f32.partialorder %v351, %v6919
        %vm7190 = vcmp.gt.f32.partialorder %v352, %v6882
        %vm7191 = vcmp.gt.f32.partialorder %v353, %v6919
        %vm7192 = vcmp.gt.f32.partialorder %v354, %v6882
        %vm7193 = vcmp.gt.f32.partialorder %v355, %v6919
        %vm7194 = vcmp.gt.f32.partialorder %v356, %v6882
        %vm7195 = vcmp.gt.f32.partialorder %v357, %v6919
        %vm7196 = vcmp.gt.f32.partialorder %v358, %v6882
        %vm7197 = vcmp.gt.f32.partialorder %v359, %v6919
        %vm7198 = vcmp.gt.f32.partialorder %v360, %v6882
        %vm7199 = vcmp.gt.f32.partialorder %v361, %v6919
        %vm7200 = vcmp.gt.f32.partialorder %v362, %v6882
        %vm7201 = vcmp.gt.f32.partialorder %v363, %v6919
        %vm7202 = vcmp.gt.f32.partialorder %v364, %v6882
        %vm7203 = vcmp.gt.f32.partialorder %v365, %v6919
        %vm7204 = vcmp.gt.f32.partialorder %v366, %v6882
        %vm7205 = vcmp.gt.f32.partialorder %v367, %v6919
        %vm7206 = vcmp.gt.f32.partialorder %v368, %v6882
        %vm7207 = vcmp.gt.f32.partialorder %v369, %v6919
        %vm7208 = vcmp.gt.f32.partialorder %v370, %v6882
        %vm7209 = vcmp.gt.f32.partialorder %v371, %v6919
        %vm7210 = vmand %vm6034, %vm7146
        %vm7211 = vmand %vm6034, %vm7147
        %vm7212 = vmand %vm6035, %vm7148
        %vm7213 = vmand %vm6035, %vm7149
        %vm7214 = vmand %vm6036, %vm7150
        %vm7215 = vmand %vm6036, %vm7151
        %vm7216 = vmand %vm6037, %vm7152
        %vm7217 = vmand %vm6037, %vm7153
        %vm7218 = vmand %vm6038, %vm7154
        %vm7219 = vmand %vm6038, %vm7155
        %vm7220 = vmand %vm6039, %vm7156
        %vm7221 = vmand %vm6039, %vm7157
        %vm7222 = vmand %vm6040, %vm7158
        %vm7223 = vmand %vm6040, %vm7159
        %vm7224 = vmand %vm6041, %vm7160
        %vm7225 = vmand %vm6041, %vm7161
        %vm7226 = vmand %vm6042, %vm7162
        %vm7227 = vmand %vm6042, %vm7163
        %vm7228 = vmand %vm6043, %vm7164
        %vm7229 = vmand %vm6043, %vm7165
        %vm7230 = vmand %vm6044, %vm7166
        %vm7231 = vmand %vm6044, %vm7167
        %vm7232 = vmand %vm6045, %vm7168
        %vm7233 = vmand %vm6045, %vm7169
        %vm7234 = vmand %vm6046, %vm7170
        %vm7235 = vmand %vm6046, %vm7171
        %vm7236 = vmand %vm6047, %vm7172
        %vm7237 = vmand %vm6047, %vm7173
        %vm7238 = vmand %vm6048, %vm7174
        %vm7239 = vmand %vm6048, %vm7175
        %vm7240 = vmand %vm6049, %vm7176
        %vm7241 = vmand %vm6049, %vm7177
        %vm7242 = vmand %vm6050, %vm7178
        %vm7243 = vmand %vm6050, %vm7179
        %vm7244 = vmand %vm6051, %vm7180
        %vm7245 = vmand %vm6051, %vm7181
        %vm7246 = vmand %vm6052, %vm7182
        %vm7247 = vmand %vm6052, %vm7183
        %vm7248 = vmand %vm6053, %vm7184
        %vm7249 = vmand %vm6053, %vm7185
        %vm7250 = vmand %vm6054, %vm7186
        %vm7251 = vmand %vm6054, %vm7187
        %vm7252 = vmand %vm6055, %vm7188
        %vm7253 = vmand %vm6055, %vm7189
        %vm7254 = vmand %vm6056, %vm7190
        %vm7255 = vmand %vm6056, %vm7191
        %vm7256 = vmand %vm6057, %vm7192
        %vm7257 = vmand %vm6057, %vm7193
        %vm7258 = vmand %vm6058, %vm7194
        %vm7259 = vmand %vm6058, %vm7195
        %vm7260 = vmand %vm6059, %vm7196
        %vm7261 = vmand %vm6059, %vm7197
        %vm7262 = vmand %vm6060, %vm7198
        %vm7263 = vmand %vm6060, %vm7199
        %vm7264 = vmand %vm6061, %vm7200
        %vm7265 = vmand %vm6061, %vm7201
        %vm7266 = vmand %vm6062, %vm7202
        %vm7267 = vmand %vm6062, %vm7203
        %vm7268 = vmand %vm6063, %vm7204
        %vm7269 = vmand %vm6063, %vm7205
        %vm7270 = vmand %vm6064, %vm7206
        %vm7271 = vmand %vm6064, %vm7207
        %vm7272 = vmand %vm6065, %vm7208
        %vm7273 = vmand %vm6065, %vm7209
        %v7274 = vsel %vm7210, %v308, 1e+30
        %v7275 = vsel %vm7211, %v309, 1e+30
        %v7276 = vsel %vm7212, %v310, 1e+30
        %v7277 = vsel %vm7213, %v311, 1e+30
        %v7278 = vsel %vm7214, %v312, 1e+30
        %v7279 = vsel %vm7215, %v313, 1e+30
        %v7280 = vsel %vm7216, %v314, 1e+30
        %v7281 = vsel %vm7217, %v315, 1e+30
        %v7282 = vsel %vm7218, %v316, 1e+30
        %v7283 = vsel %vm7219, %v317, 1e+30
        %v7284 = vsel %vm7220, %v318, 1e+30
        %v7285 = vsel %vm7221, %v319, 1e+30
        %v7286 = vsel %vm7222, %v320, 1e+30
        %v7287 = vsel %vm7223, %v321, 1e+30
        %v7288 = vsel %vm7224, %v322, 1e+30
        %v7289 = vsel %vm7225, %v323, 1e+30
        %v7290 = vsel %vm7226, %v324, 1e+30
        %v7291 = vsel %vm7227, %v325, 1e+30
        %v7292 = vsel %vm7228, %v326, 1e+30
        %v7293 = vsel %vm7229, %v327, 1e+30
        %v7294 = vsel %vm7230, %v328, 1e+30
        %v7295 = vsel %vm7231, %v329, 1e+30
        %v7296 = vsel %vm7232, %v330, 1e+30
        %v7297 = vsel %vm7233, %v331, 1e+30
        %v7298 = vsel %vm7234, %v332, 1e+30
        %v7299 = vsel %vm7235, %v333, 1e+30
        %v7300 = vsel %vm7236, %v334, 1e+30
        %v7301 = vsel %vm7237, %v335, 1e+30
        %v7302 = vsel %vm7238, %v336, 1e+30
        %v7303 = vsel %vm7239, %v337, 1e+30
        %v7304 = vsel %vm7240, %v338, 1e+30
        %v7305 = vsel %vm7241, %v339, 1e+30
        %v7306 = vsel %vm7242, %v340, 1e+30
        %v7307 = vsel %vm7243, %v341, 1e+30
        %v7308 = vsel %vm7244, %v342, 1e+30
        %v7309 = vsel %vm7245, %v343, 1e+30
        %v7310 = vsel %vm7246, %v344, 1e+30
        %v7311 = vsel %vm7247, %v345, 1e+30
        %v7312 = vsel %vm7248, %v346, 1e+30
        %v7313 = vsel %vm7249, %v347, 1e+30
        %v7314 = vsel %vm7250, %v348, 1e+30
        %v7315 = vsel %vm7251, %v349, 1e+30
        %v7316 = vsel %vm7252, %v350, 1e+30
        %v7317 = vsel %vm7253, %v351, 1e+30
        %v7318 = vsel %vm7254, %v352, 1e+30
        %v7319 = vsel %vm7255, %v353, 1e+30
        %v7320 = vsel %vm7256, %v354, 1e+30
        %v7321 = vsel %vm7257, %v355, 1e+30
        %v7322 = vsel %vm7258, %v356, 1e+30
        %v7323 = vsel %vm7259, %v357, 1e+30
        %v7324 = vsel %vm7260, %v358, 1e+30
        %v7325 = vsel %vm7261, %v359, 1e+30
        %v7326 = vsel %vm7262, %v360, 1e+30
        %v7327 = vsel %vm7263, %v361, 1e+30
        %v7328 = vsel %vm7264, %v362, 1e+30
        %v7329 = vsel %vm7265, %v363, 1e+30
        %v7330 = vsel %vm7266, %v364, 1e+30
        %v7331 = vsel %vm7267, %v365, 1e+30
        %v7332 = vsel %vm7268, %v366, 1e+30
        %v7333 = vsel %vm7269, %v367, 1e+30
        %v7334 = vsel %vm7270, %v368, 1e+30
        %v7335 = vsel %vm7271, %v369, 1e+30
        %v7336 = vsel %vm7272, %v370, 1e+30
        %v7337 = vsel %vm7273, %v371, 1e+30
        %v7338 = vmin.f32 %v7274, %v7278
        %v7339 = vmin.f32 %v7276, %v7280
        %v7340 = vmin.f32 %v7338, %v7282
        %v7341 = vmin.f32 %v7339, %v7284
        %v7342 = vmin.f32 %v7340, %v7286
        %v7343 = vmin.f32 %v7341, %v7288
        %v7344 = vmin.f32 %v7342, %v7290
        %v7345 = vmin.f32 %v7343, %v7292
        %v7346 = vmin.f32 %v7344, %v7294
        %v7347 = vmin.f32 %v7345, %v7296
        %v7348 = vmin.f32 %v7346, %v7298
        %v7349 = vmin.f32 %v7347, %v7300
        %v7350 = vmin.f32 %v7348, %v7302
        %v7351 = vmin.f32 %v7349, %v7304
        %v7352 = vmin.f32 %v7350, %v7306
        %v7353 = vmin.f32 %v7351, %v7308
        %v7354 = vmin.f32 %v7352, %v7310
        %v7355 = vmin.f32 %v7353, %v7312
        %v7356 = vmin.f32 %v7354, %v7314
        %v7357 = vmin.f32 %v7355, %v7316
        %v7358 = vmin.f32 %v7356, %v7318
        %v7359 = vmin.f32 %v7357, %v7320
        %v7360 = vmin.f32 %v7358, %v7322
        %v7361 = vmin.f32 %v7359, %v7324
        %v7362 = vmin.f32 %v7360, %v7326
        %v7363 = vmin.f32 %v7361, %v7328
        %v7364 = vmin.f32 %v7362, %v7330
        %v7365 = vmin.f32 %v7363, %v7332
        %v7366 = vmin.f32 %v7364, %v7334
        %v7367 = vmin.f32 %v7365, %v7336
        %v7368 = vmin.f32 %v7366, %v7367
        %v7369 = vrot.slane %v7368, 4
        %v7370 = vmin.f32 %v7368, %v7369
        %v7371 = vrot.slane %v7370, 2
        %v7372 = vmin.f32 %v7370, %v7371
        %v7373 = vrot.slane %v7372, 1
        %v7374 = vmin.f32 %v7372, %v7373
        %v7375 = vmin.f32 %v7275, %v7279
        %v7376 = vmin.f32 %v7277, %v7281
        %v7377 = vmin.f32 %v7375, %v7283
        %v7378 = vmin.f32 %v7376, %v7285
        %v7379 = vmin.f32 %v7377, %v7287
        %v7380 = vmin.f32 %v7378, %v7289
        %v7381 = vmin.f32 %v7379, %v7291
        %v7382 = vmin.f32 %v7380, %v7293
        %v7383 = vmin.f32 %v7381, %v7295
        %v7384 = vmin.f32 %v7382, %v7297
        %v7385 = vmin.f32 %v7383, %v7299
        %v7386 = vmin.f32 %v7384, %v7301
        %v7387 = vmin.f32 %v7385, %v7303
        %v7388 = vmin.f32 %v7386, %v7305
        %v7389 = vmin.f32 %v7387, %v7307
        %v7390 = vmin.f32 %v7388, %v7309
        %v7391 = vmin.f32 %v7389, %v7311
        %v7392 = vmin.f32 %v7390, %v7313
        %v7393 = vmin.f32 %v7391, %v7315
        %v7394 = vmin.f32 %v7392, %v7317
        %v7395 = vmin.f32 %v7393, %v7319
        %v7396 = vmin.f32 %v7394, %v7321
        %v7397 = vmin.f32 %v7395, %v7323
        %v7398 = vmin.f32 %v7396, %v7325
        %v7399 = vmin.f32 %v7397, %v7327
        %v7400 = vmin.f32 %v7398, %v7329
        %v7401 = vmin.f32 %v7399, %v7331
        %v7402 = vmin.f32 %v7400, %v7333
        %v7403 = vmin.f32 %v7401, %v7335
        %v7404 = vmin.f32 %v7402, %v7337
        %v7405 = vmin.f32 %v7403, %v7404
        %v7406 = vrot.slane %v7405, 4
        %v7407 = vmin.f32 %v7405, %v7406
        %v7408 = vrot.slane %v7407, 2
        %v7409 = vmin.f32 %v7407, %v7408
        %v7410 = vrot.slane %v7409, 1
        %v7411 = vmin.f32 %v7409, %v7410
        %vm7412 = vcmp.eq.f32.partialorder %v308, %v7374
        %vm7413 = vcmp.eq.f32.partialorder %v309, %v7411
        %vm7414 = vcmp.eq.f32.partialorder %v310, %v7374
        %vm7415 = vcmp.eq.f32.partialorder %v311, %v7411
        %vm7416 = vcmp.eq.f32.partialorder %v312, %v7374
        %vm7417 = vcmp.eq.f32.partialorder %v313, %v7411
        %vm7418 = vcmp.eq.f32.partialorder %v314, %v7374
        %vm7419 = vcmp.eq.f32.partialorder %v315, %v7411
        %vm7420 = vcmp.eq.f32.partialorder %v316, %v7374
        %vm7421 = vcmp.eq.f32.partialorder %v317, %v7411
        %vm7422 = vcmp.eq.f32.partialorder %v318, %v7374
        %vm7423 = vcmp.eq.f32.partialorder %v319, %v7411
        %vm7424 = vcmp.eq.f32.partialorder %v320, %v7374
        %vm7425 = vcmp.eq.f32.partialorder %v321, %v7411
        %vm7426 = vcmp.eq.f32.partialorder %v322, %v7374
        %vm7427 = vcmp.eq.f32.partialorder %v323, %v7411
        %vm7428 = vcmp.eq.f32.partialorder %v324, %v7374
        %vm7429 = vcmp.eq.f32.partialorder %v325, %v7411
        %vm7430 = vcmp.eq.f32.partialorder %v326, %v7374
        %vm7431 = vcmp.eq.f32.partialorder %v327, %v7411
        %vm7432 = vcmp.eq.f32.partialorder %v328, %v7374
        %vm7433 = vcmp.eq.f32.partialorder %v329, %v7411
        %vm7434 = vcmp.eq.f32.partialorder %v330, %v7374
        %vm7435 = vcmp.eq.f32.partialorder %v331, %v7411
        %vm7436 = vcmp.eq.f32.partialorder %v332, %v7374
        %vm7437 = vcmp.eq.f32.partialorder %v333, %v7411
        %vm7438 = vcmp.eq.f32.partialorder %v334, %v7374
        %vm7439 = vcmp.eq.f32.partialorder %v335, %v7411
        %vm7440 = vcmp.eq.f32.partialorder %v336, %v7374
        %vm7441 = vcmp.eq.f32.partialorder %v337, %v7411
        %vm7442 = vcmp.eq.f32.partialorder %v338, %v7374
        %vm7443 = vcmp.eq.f32.partialorder %v339, %v7411
        %vm7444 = vcmp.eq.f32.partialorder %v340, %v7374
        %vm7445 = vcmp.eq.f32.partialorder %v341, %v7411
        %vm7446 = vcmp.eq.f32.partialorder %v342, %v7374
        %vm7447 = vcmp.eq.f32.partialorder %v343, %v7411
        %vm7448 = vcmp.eq.f32.partialorder %v344, %v7374
        %vm7449 = vcmp.eq.f32.partialorder %v345, %v7411
        %vm7450 = vcmp.eq.f32.partialorder %v346, %v7374
        %vm7451 = vcmp.eq.f32.partialorder %v347, %v7411
        %vm7452 = vcmp.eq.f32.partialorder %v348, %v7374
        %vm7453 = vcmp.eq.f32.partialorder %v349, %v7411
        %vm7454 = vcmp.eq.f32.partialorder %v350, %v7374
        %vm7455 = vcmp.eq.f32.partialorder %v351, %v7411
        %vm7456 = vcmp.eq.f32.partialorder %v352, %v7374
        %vm7457 = vcmp.eq.f32.partialorder %v353, %v7411
        %vm7458 = vcmp.eq.f32.partialorder %v354, %v7374
        %vm7459 = vcmp.eq.f32.partialorder %v355, %v7411
        %vm7460 = vcmp.eq.f32.partialorder %v356, %v7374
        %vm7461 = vcmp.eq.f32.partialorder %v357, %v7411
        %vm7462 = vcmp.eq.f32.partialorder %v358, %v7374
        %vm7463 = vcmp.eq.f32.partialorder %v359, %v7411
        %vm7464 = vcmp.eq.f32.partialorder %v360, %v7374
        %vm7465 = vcmp.eq.f32.partialorder %v361, %v7411
        %vm7466 = vcmp.eq.f32.partialorder %v362, %v7374
        %vm7467 = vcmp.eq.f32.partialorder %v363, %v7411
        %vm7468 = vcmp.eq.f32.partialorder %v364, %v7374
        %vm7469 = vcmp.eq.f32.partialorder %v365, %v7411
        %vm7470 = vcmp.eq.f32.partialorder %v366, %v7374
        %vm7471 = vcmp.eq.f32.partialorder %v367, %v7411
        %vm7472 = vcmp.eq.f32.partialorder %v368, %v7374
        %vm7473 = vcmp.eq.f32.partialorder %v369, %v7411
        %vm7474 = vcmp.eq.f32.partialorder %v370, %v7374
        %vm7475 = vcmp.eq.f32.partialorder %v371, %v7411
        %v7476 = vsel %vm7412, %v6335, 0.0
        %v7477 = vsel %vm7413, %v6335, 0.0
        %v7478 = vsel %vm7414, %v6340, 0.0
        %v7479 = vsel %vm7415, %v6340, 0.0
        %v7480 = vsel %vm7416, %v6345, 0.0
        %v7481 = vsel %vm7417, %v6345, 0.0
        %v7482 = vsel %vm7418, %v6350, 0.0
        %v7483 = vsel %vm7419, %v6350, 0.0
        %v7484 = vsel %vm7420, %v6355, 0.0
        %v7485 = vsel %vm7421, %v6355, 0.0
        %v7486 = vsel %vm7422, %v6360, 0.0
        %v7487 = vsel %vm7423, %v6360, 0.0
        %v7488 = vsel %vm7424, %v6365, 0.0
        %v7489 = vsel %vm7425, %v6365, 0.0
        %v7490 = vsel %vm7426, %v6370, 0.0
        %v7491 = vsel %vm7427, %v6370, 0.0
        %v7492 = vsel %vm7428, %v6375, 0.0
        %v7493 = vsel %vm7429, %v6375, 0.0
        %v7494 = vsel %vm7430, %v6380, 0.0
        %v7495 = vsel %vm7431, %v6380, 0.0
        %v7496 = vsel %vm7432, %v6385, 0.0
        %v7497 = vsel %vm7433, %v6385, 0.0
        %v7498 = vsel %vm7434, %v6390, 0.0
        %v7499 = vsel %vm7435, %v6390, 0.0
        %v7500 = vsel %vm7436, %v6395, 0.0
        %v7501 = vsel %vm7437, %v6395, 0.0
        %v7502 = vsel %vm7438, %v6400, 0.0
        %v7503 = vsel %vm7439, %v6400, 0.0
        %v7504 = vsel %vm7440, %v6405, 0.0
        %v7505 = vsel %vm7441, %v6405, 0.0
        %v7506 = vsel %vm7442, %v6410, 0.0
        %v7507 = vsel %vm7443, %v6410, 0.0
        %v7508 = vsel %vm7444, %v6415, 0.0
        %v7509 = vsel %vm7445, %v6415, 0.0
        %v7510 = vsel %vm7446, %v6420, 0.0
        %v7511 = vsel %vm7447, %v6420, 0.0
        %v7512 = vsel %vm7448, %v6425, 0.0
        %v7513 = vsel %vm7449, %v6425, 0.0
        %v7514 = vsel %vm7450, %v6430, 0.0
        %v7515 = vsel %vm7451, %v6430, 0.0
        %v7516 = vsel %vm7452, %v6435, 0.0
        %v7517 = vsel %vm7453, %v6435, 0.0
        %v7518 = vsel %vm7454, %v6440, 0.0
        %v7519 = vsel %vm7455, %v6440, 0.0
        %v7520 = vsel %vm7456, %v6445, 0.0
        %v7521 = vsel %vm7457, %v6445, 0.0
        %v7522 = vsel %vm7458, %v6450, 0.0
        %v7523 = vsel %vm7459, %v6450, 0.0
        %v7524 = vsel %vm7460, %v6455, 0.0
        %v7525 = vsel %vm7461, %v6455, 0.0
        %v7526 = vsel %vm7462, %v6460, 0.0
        %v7527 = vsel %vm7463, %v6460, 0.0
        %v7528 = vsel %vm7464, %v6465, 0.0
        %v7529 = vsel %vm7465, %v6465, 0.0
        %v7530 = vsel %vm7466, %v6470, 0.0
        %v7531 = vsel %vm7467, %v6470, 0.0
        %v7532 = vsel %vm7468, %v6475, 0.0
        %v7533 = vsel %vm7469, %v6475, 0.0
        %v7534 = vsel %vm7470, %v6480, 0.0
        %v7535 = vsel %vm7471, %v6480, 0.0
        %v7536 = vsel %vm7472, %v6485, 0.0
        %v7537 = vsel %vm7473, %v6485, 0.0
        %v7538 = vsel %vm7474, %v6490, 0.0
        %v7539 = vsel %vm7475, %v6490, 0.0
        %v7540 = vadd.f32 %v7476, %v7478
        %v7541 = vadd.f32 %v7540, %v7480
        %v7542 = vadd.f32 %v7541, %v7482
        %v7543 = vadd.f32 %v7542, %v7484
        %v7544 = vadd.f32 %v7543, %v7486
        %v7545 = vadd.f32 %v7544, %v7488
        %v7546 = vadd.f32 %v7545, %v7490
        %v7547 = vadd.f32 %v7546, %v7492
        %v7548 = vadd.f32 %v7547, %v7494
        %v7549 = vadd.f32 %v7548, %v7496
        %v7550 = vadd.f32 %v7549, %v7498
        %v7551 = vadd.f32 %v7550, %v7500
        %v7552 = vadd.f32 %v7551, %v7502
        %v7553 = vadd.f32 %v7552, %v7504
        %v7554 = vadd.f32 %v7553, %v7506
        %v7555 = vadd.f32 %v7554, %v7508
        %v7556 = vadd.f32 %v7555, %v7510
        %v7557 = vadd.f32 %v7556, %v7512
        %v7558 = vadd.f32 %v7557, %v7514
        %v7559 = vadd.f32 %v7558, %v7516
        %v7560 = vadd.f32 %v7559, %v7518
        %v7561 = vadd.f32 %v7560, %v7520
        %v7562 = vadd.f32 %v7561, %v7522
        %v7563 = vadd.f32 %v7562, %v7524
        %v7564 = vadd.f32 %v7563, %v7526
        %v7565 = vadd.f32 %v7564, %v7528
        %v7566 = vadd.f32 %v7565, %v7530
        %v7567 = vadd.f32 %v7566, %v7532
        %v7568 = vadd.f32 %v7567, %v7534
        %v7569 = vadd.f32 %v7568, %v7536
        %v7570 = vadd.f32 %v7569, %v7538
        %v7571 = vrot.slane %v7570, 4
        %v7572 = vadd.f32 %v7570, %v7571
        %v7573 = vrot.slane %v7572, 2
        %v7574 = vadd.f32 %v7572, %v7573
        %v7575 = vrot.slane %v7574, 1
        %v7576 = vadd.f32 %v7574, %v7575
        %v7577 = vadd.f32 %v7477, %v7479
        %v7578 = vadd.f32 %v7577, %v7481
        %v7579 = vadd.f32 %v7578, %v7483
        %v7580 = vadd.f32 %v7579, %v7485
        %v7581 = vadd.f32 %v7580, %v7487
        %v7582 = vadd.f32 %v7581, %v7489
        %v7583 = vadd.f32 %v7582, %v7491
        %v7584 = vadd.f32 %v7583, %v7493
        %v7585 = vadd.f32 %v7584, %v7495
        %v7586 = vadd.f32 %v7585, %v7497
        %v7587 = vadd.f32 %v7586, %v7499
        %v7588 = vadd.f32 %v7587, %v7501
        %v7589 = vadd.f32 %v7588, %v7503
        %v7590 = vadd.f32 %v7589, %v7505
        %v7591 = vadd.f32 %v7590, %v7507
        %v7592 = vadd.f32 %v7591, %v7509
        %v7593 = vadd.f32 %v7592, %v7511
        %v7594 = vadd.f32 %v7593, %v7513
        %v7595 = vadd.f32 %v7594, %v7515
        %v7596 = vadd.f32 %v7595, %v7517
        %v7597 = vadd.f32 %v7596, %v7519
        %v7598 = vadd.f32 %v7597, %v7521
        %v7599 = vadd.f32 %v7598, %v7523
        %v7600 = vadd.f32 %v7599, %v7525
        %v7601 = vadd.f32 %v7600, %v7527
        %v7602 = vadd.f32 %v7601, %v7529
        %v7603 = vadd.f32 %v7602, %v7531
        %v7604 = vadd.f32 %v7603, %v7533
        %v7605 = vadd.f32 %v7604, %v7535
        %v7606 = vadd.f32 %v7605, %v7537
        %v7607 = vadd.f32 %v7606, %v7539
        %v7608 = vrot.slane %v7607, 4
        %v7609 = vadd.f32 %v7607, %v7608
        %v7610 = vrot.slane %v7609, 2
        %v7611 = vadd.f32 %v7609, %v7610
        %v7612 = vrot.slane %v7611, 1
        %v7613 = vadd.f32 %v7611, %v7612
        %v7614 = vmul.f32 %v7374, %v1160
        %v7615 = vmul.f32 %v7411, %v1160
        %v7616 = vadd.f32 %v7614, 0.5
        %v7617 = vadd.f32 %v7615, 0.5
        %v7618 = vfloor.f32 %v7616
        %v7619 = vfloor.f32 %v7617
        %v7620 = vmul.f32 %v7618, 256.0
        %v7621 = vmul.f32 %v7619, 256.0
        %v7622 = vsub.f32 %v7374, %v7620
        %v7623 = vsub.f32 %v7411, %v7621
        %vm7624 = vcmp.lt.f32.partialorder %v7622, 0.0
        %vm7625 = vcmp.lt.f32.partialorder %v7623, 0.0
        %v7626 = vsub.f32 %v7618, 1.0
        %v7627 = vsub.f32 %v7619, 1.0
        %v7628 = vsel %vm7624, %v7626, %v7618
        %v7629 = vsel %vm7625, %v7627, %v7619
        %v7630 = vrsqrt.pop %v7628
        %v7631 = vrsqrt.pop %v7629
        %v7632 = vmul.f32 %v7576, %v7630
        %v7633 = vmul.f32 %v7613, %v7631
        %v7634 = vadd.f32 %v7142, %v7632
        %v7635 = vadd.f32 %v7143, %v7633
        %v7636 = vadd.f32 %v7144, %v7630
        %v7637 = vadd.f32 %v7145, %v7631
        %v7638 = vrcp.pop %v7636
        %v7639 = vmul.f32 %v7634, %v7638
        %v7640 = vrcp.pop %v7637
        %v7641 = vmul.f32 %v7635, %v7640
        %v7644 = vcombine.low %v7639, %v7641
        %v7646 = vunpack.c.l.s4 1966171168
        %v7647 = vunpack.c.0.s8 %v7646
        %v7648 = vlaneseq
        %v7649 = vshrl.u32 %v7648, 7
        %v7650 = vsub.s32 %v7647, %v7649
        %v7651 = vrot.slane %v7644, %v7650
        %v7653 = vunpack.c.l.s4 1966171168
        %v7654 = vunpack.c.0.s8 %v7653
        %v7655 = vlaneseq
        %v7656 = vshrl.u32 %v7655, 7
        %v7657 = vsub.s32 %v7654, %v7656
        %v7658 = vrot.slane %v7651, %v7657
        %v7660 = vsel %vm5873, %v5839, %v7658
        %v7662 = vlaneseq
        %v7663 = vshrl.u32 %v7662, 7
        %v7664 = vsub.s32 0, %v7663
        %v7665 = vrot.slane %v2191, %v7664
        %v7666 = vlaneseq
        %v7667 = vshrl.u32 %v7666, 7
        %v7668 = vsub.s32 1, %v7667
        %v7669 = vrot.slane %v2191, %v7668
        %v7673 = vlaneseq
        %v7674 = vshrl.u32 %v7673, 7
        %v7675 = vsub.s32 0, %v7674
        %v7676 = vrot.slane %v4014, %v7675
        %v7677 = vlaneseq
        %v7678 = vshrl.u32 %v7677, 7
        %v7679 = vsub.s32 1, %v7678
        %v7680 = vrot.slane %v4014, %v7679
        %v7684 = vlaneseq
        %v7685 = vshrl.u32 %v7684, 7
        %v7686 = vsub.s32 0, %v7685
        %v7687 = vrot.slane %v5837, %v7686
        %v7688 = vlaneseq
        %v7689 = vshrl.u32 %v7688, 7
        %v7690 = vsub.s32 1, %v7689
        %v7691 = vrot.slane %v5837, %v7690
        %v7695 = vlaneseq
        %v7696 = vshrl.u32 %v7695, 7
        %v7697 = vsub.s32 0, %v7696
        %v7698 = vrot.slane %v7660, %v7697
        %v7699 = vlaneseq
        %v7700 = vshrl.u32 %v7699, 7
        %v7701 = vsub.s32 1, %v7700
        %v7702 = vrot.slane %v7660, %v7701
        %vm7705 = vcmask 1040384
        %v7706 = vsel %vm7705, %v7665, %v7676
        %v7707 = vsel %vm7705, %v7669, %v7680
        %vm7708 = vcmask 1041408
        %v7709 = vsel %vm7708, %v7706, %v7687
        %v7710 = vsel %vm7708, %v7707, %v7691
        %vm7711 = vcmask 1042432
        %v7712 = vsel %vm7711, %v7709, %v7698
        %v7713 = vsel %vm7711, %v7710, %v7702
        %v7716 = vcombine.low %v7712, %v7713
        %7718 = vst [vmem:[%s219] sm:$0xff] %v7716
        %s7719 = sand.u32 %s119, 1
        %s7720 = scalar_lea.sflag [#allocation3], %s7719
        %s7721 = sand.u32 %s119, 1
        %s7722 = smul.addr %s7721, 8
        %s7723 = scalar_lea.vmem [#allocation2], %s7722
        // Predicated region
        $region33: #{tpu_custom_call.1} parent=31 // pred_check
          %p7724 = pneg %p129
        $region34: #{tpu_custom_call.1} parent=31 // pred_check_branch
          %7726 = sbr.rel (%p7724) target = $region36
        $region35: #{tpu_custom_call.1} parent=31 // pred_region
          %s7727 = smul.u32 2, %s22
          %s7729 = ssub.s32 128, 128
          %7730 = vsyncadd %s7720, %s7729
          %s7731 = smul.addr %s21, 2
          %s7732 = sadd.s32 %s7727, %s7731
          %s7733 = smul.addr %s7732, 64
          %s7734 = scalar_lea.hbm %s3, %s7733
          %s7736 = sshll.u32 %s7723, 4
          %s7737 = int_to_ptr.vmem [resolvable:$true] %s7736
          %7739 = dma.vmem_to_hbm [thread:$0]  %s7737, 128, %s7734, %s7720
        $region36: #{tpu_custom_call.1} parent=31 // pred_fallthru
          _
      $region32: #{tpu_custom_call.1} parent=5 // pred_fallthru
        _
      %p7740 = scmp.le.s32.totalorder 2, %s12
      // Predicated region
      $region37: #{tpu_custom_call.1} parent=5 // pred_check
        %p7741 = pneg %p7740
      $region38: #{tpu_custom_call.1} parent=5 // pred_check_branch
        %7743 = sbr.rel (%p7741) target = $region40
      $region39: #{tpu_custom_call.1} parent=5 // pred_region
        %s7744 = ssub.s32 %s12, 2
        // Predicated region
        $region41: #{tpu_custom_call.1} parent=39 // pred_check
          %p7745 = pneg %p135
        $region42: #{tpu_custom_call.1} parent=39 // pred_check_branch
          %7747 = sbr.rel (%p7745) target = $region44
        $region43: #{tpu_custom_call.1} parent=39 // pred_region
          %s7748 = sand.u32 %s120, 1
          %s7749 = scalar_lea.sflag [#allocation3], %s7748
          %s7750 = sand.u32 %s120, 1
          %s7751 = smul.addr %s7750, 8
          %s7752 = scalar_lea.vmem [#allocation2], %s7751
          %7753 = dma.done %s7749, 128
        $region44: #{tpu_custom_call.1} parent=39 // pred_fallthru
          _
      $region40: #{tpu_custom_call.1} parent=5 // pred_fallthru
        _
    $region6: #{tpu_custom_call.1} parent=1 // loop_footer
      %s16 = sadd.s32 1, %s12
    $region7: #{tpu_custom_call.1} parent=1 // loop_footer_branch
      %11 = sbr.rel target = $region3
    $region8: #{tpu_custom_call.1} parent=1 // loop_exit
      _
    %7754 = vsyncpa [#allocation3], 1
    %s7755 = scalar_lea.sflag [#allocation3], 1
    %7756 = vsyncpa %s7755, 1

</llo_original>
